<compile_context>
chip_gen: v5e
topology: v5e:2x2
jax: 0.10.0
libtpu: 0.0.40
codegen_flags: <defaults>
</compile_context>

<pallas_src>
import functools

import jax
import jax.numpy as jnp
from jax.experimental import pallas as pl
from jax.experimental.pallas import tpu as pltpu

_NEG = -1e30  # padded point columns must never win the max (pre-activations can be < 0)


def primary_caps_kernel(x_ref, w_ref, shift_ref, o_ref, acc_ref, *,
                        dim_caps, cn, tile_n, n_valid, n_pad):
    t = pl.program_id(2)
    nt = pl.num_programs(2)

    @pl.when(t == 0)
    def _init():
        acc_ref[...] = jnp.full_like(acc_ref, _NEG)

    x = x_ref[0]            # (C, tile_n)        bf16 (or f32)
    w = w_ref[0]            # (dim_caps*cn, C)   bf16 (or f32), BN scale folded into rows
    # One MXU matmul per point-tile for all dim_caps*cn conv rows at once; f32 accumulation.
    y = jnp.dot(w, x, preferred_element_type=jnp.float32)        # (dim_caps*cn, tile_n) f32

    def _update(yv):
        # (M_blk, tile_n) -> (dim_caps, cn, tile_n) only regroups sublane tiles
        # (cn is a multiple of 8 / equals num_caps), so it is layout-free.
        pm = jnp.max(yv.reshape(dim_caps, cn, tile_n), axis=-1)   # (dim_caps, cn)
        acc_ref[...] = jnp.maximum(acc_ref[...], pm)

    if n_pad != n_valid:
        # Only the final tile has padded columns; mask only there (pl.when gate).
        n_rem = n_valid - (n_pad - tile_n)     # valid columns in the last tile (static)

        @pl.when(t < nt - 1)
        def _full_tile():
            _update(y)

        @pl.when(t == nt - 1)
        def _partial_tile():
            col = jax.lax.broadcasted_iota(jnp.int32, (1, tile_n), 1)
            _update(y + jnp.where(col < n_rem, 0.0, _NEG))
    else:
        _update(y)

    @pl.when(t == nt - 1)
    def _epilogue():
        # relu(max_n(w.x_n) + shift) == max_n(relu(w.x_n + shift))  (relu monotone,
        # shift constant over points).
        m = jnp.maximum(acc_ref[...] + shift_ref[...], 0.0)        # (dim_caps, cn)
        # Squash over the capsule dimension (axis 0 == dim_caps), Eq. (1).
        sq = jnp.sum(m * m, axis=0, keepdims=True)                 # (1, cn)
        scale = sq / (1.0 + sq) / (jnp.sqrt(sq) + 1e-8)
        o_ref[0] = (m * scale).astype(o_ref.dtype)


def primary_point_capsules(x, w_eff, shift, *, tile_n=512, caps_block=None,
                           compute_dtype=jnp.bfloat16):
    """x: (B, C, N); w_eff: (dim_caps, num_caps, C); shift: (dim_caps, num_caps).

    Returns (B, num_caps, dim_caps), matching the PyTorch module.
    """
    B, C, N = x.shape
    dim_caps, num_caps, _ = w_eff.shape

    # Split num_caps into independent blocks (second "parallel" grid axis) so both
    # v7x TensorCores are busy even at batch 1-2; squash is per-capsule column.
    if caps_block is None:
        caps_block = num_caps // 2 if (num_caps % 256 == 0) else num_caps
    assert num_caps % caps_block == 0
    assert caps_block % 128 == 0 or caps_block == num_caps
    G = num_caps // caps_block
    M_blk = dim_caps * caps_block

    # Points-axis tiling: running-max reduction; never materialize (M, N) f32.
    tile_n = max(128, (tile_n // 128) * 128)
    n_pad = ((N + tile_n - 1) // tile_n) * tile_n
    x_p = x if n_pad == N else jnp.pad(x, ((0, 0), (0, 0), (0, n_pad - N)))
    x_p = x_p.astype(compute_dtype)                      # bf16 MXU path; f32 accumulation

    # (dim_caps, num_caps, C) -> (G, dim_caps*caps_block, C): rows of block g ordered
    # as (i, j_local), i over dim_caps, matching the kernel's leading-dim split.
    w_blocks = (w_eff.reshape(dim_caps, G, caps_block, C)
                .transpose(1, 0, 2, 3)
                .reshape(G, M_blk, C)
                .astype(compute_dtype))
    shift = shift.astype(jnp.float32)

    kernel = functools.partial(
        primary_caps_kernel, dim_caps=dim_caps, cn=caps_block, tile_n=tile_n,
        n_valid=N, n_pad=n_pad)

    itemsize = jnp.dtype(compute_dtype).itemsize
    cost = pl.CostEstimate(
        flops=2 * B * dim_caps * num_caps * C * n_pad,
        transcendentals=B * num_caps,                     # sqrt in squash
        bytes_accessed=(x_p.size * itemsize + w_blocks.size * itemsize
                        + shift.size * 4 + B * dim_caps * num_caps * 4))

    def build(single_buffer_residents):
        res_kw = dict(pipeline_mode=pl.Buffered(1)) if single_buffer_residents else {}
        grid_spec = pltpu.PrefetchScalarGridSpec(
            num_scalar_prefetch=0,
            grid=(B, G, n_pad // tile_n),
            in_specs=[
                pl.BlockSpec((1, C, tile_n), lambda b, g, t: (b, 0, t)),
                # Resident per caps-block; changes only on the slow g axis.
                pl.BlockSpec((1, M_blk, C), lambda b, g, t: (g, 0, 0), **res_kw),
                pl.BlockSpec((dim_caps, caps_block), lambda b, g, t: (0, g), **res_kw),
            ],
            # Lane-dense output block (lane width = caps_block >= 128); the layout
            # transpose to (B, num_caps, dim_caps) stays in the wrapper.
            out_specs=pl.BlockSpec((1, dim_caps, caps_block), lambda b, g, t: (b, 0, g)),
            scratch_shapes=[pltpu.VMEM((dim_caps, caps_block), jnp.float32)],
        )
        return pl.pallas_call(
            kernel,
            out_shape=jax.ShapeDtypeStruct((B, dim_caps, num_caps), jnp.float32),
            grid_spec=grid_spec,
            compiler_params=pltpu.CompilerParams(
                dimension_semantics=("parallel", "parallel", "arbitrary")),
            cost_estimate=cost,
        )

    try:
        out = build(True)(x_p, w_blocks, shift)
    except Exception:
        # pl.Buffered(1) unsupported on this jax version -> default double-buffering.
        out = build(False)(x_p, w_blocks, shift)

    # (B, dim_caps, num_caps) -> (B, num_caps, dim_caps) to match the PyTorch module.
    return jnp.transpose(out, (0, 2, 1))


def init_params(key, in_channels, num_caps, dim_caps):
    """Deterministic synthetic parameters (conv weights/bias + BN affine/stats)."""
    k = jax.random.split(key, 6)
    conv_w = 0.1 * jax.random.normal(k[0], (dim_caps, num_caps, in_channels), jnp.float32)
    conv_b = 0.1 * jax.random.normal(k[1], (dim_caps, num_caps), jnp.float32)
    gamma = 1.0 + 0.1 * jax.random.normal(k[2], (dim_caps, num_caps), jnp.float32)
    beta = 0.1 * jax.random.normal(k[3], (dim_caps, num_caps), jnp.float32)
    mean = 0.1 * jax.random.normal(k[4], (dim_caps, num_caps), jnp.float32)
    var = jax.random.uniform(k[5], (dim_caps, num_caps), jnp.float32, 0.5, 1.5)
    return conv_w, conv_b, gamma, beta, mean, var


def fold_bn(conv_w, conv_b, gamma, beta, mean, var, eps=1e-5):
    scale = gamma / jnp.sqrt(var + eps)                  # (dim_caps, num_caps)
    w_eff = conv_w * scale[:, :, None]                   # fold BN scale into conv weights
    shift = scale * (conv_b - mean) + beta               # fold conv bias + BN shift
    return w_eff, shift


def reference(x, conv_w, conv_b, gamma, beta, mean, var, eps=1e-5):
    """Pure-JAX reference matching the PyTorch forward (inference-mode BN)."""
    y = jnp.einsum("ioc,bcn->bion", conv_w, x) + conv_b[None, :, :, None]
    y = gamma[None, :, :, None] * (y - mean[None, :, :, None]) / jnp.sqrt(
        var[None, :, :, None] + eps) + beta[None, :, :, None]
    y = jnp.maximum(y, 0.0)
    m = jnp.max(y, axis=-1)                              # (B, dim_caps, num_caps)
    out = jnp.transpose(m, (0, 2, 1))                    # (B, num_caps, dim_caps)
    sq = jnp.sum(out * out, axis=-1, keepdims=True)
    return sq / (1.0 + sq) * out / (jnp.sqrt(sq) + 1e-8)


if __name__ == "__main__":
    # Small shapes consistent with the module: x(B, in_channels, N) -> (B, num_caps, dim_caps).
    # N=200 with tile_n=128 exercises the N-tiled running-max (2 tiles, last one partial);
    # num_caps=256 splits into 2 caps-blocks (second parallel grid axis).
    B, C, N = 2, 32, 200
    num_caps, dim_caps = 256, 16

    key = jax.random.PRNGKey(0)
    kx, kp = jax.random.split(key)
    x = jax.random.normal(kx, (B, C, N), jnp.float32)
    conv_w, conv_b, gamma, beta, mean, var = init_params(kp, C, num_caps, dim_caps)
    w_eff, shift = fold_bn(conv_w, conv_b, gamma, beta, mean, var)

    ref = reference(x, conv_w, conv_b, gamma, beta, mean, var)

    # Production path: bf16 MXU inputs, f32 accumulation. Loose tolerance vs f32 reference.
    out = primary_point_capsules(x, w_eff, shift, tile_n=128)
    out = jax.block_until_ready(out)
    assert out.shape == (B, num_caps, dim_caps), out.shape
    assert jnp.allclose(out, ref, atol=3e-2, rtol=3e-2), float(jnp.max(jnp.abs(out - ref)))

    # f32 path: tight numerical check of the kernel structure itself.
    out32 = primary_point_capsules(x, w_eff, shift, tile_n=128, compute_dtype=jnp.float32)
    out32 = jax.block_until_ready(out32)
    assert jnp.allclose(out32, ref, atol=1e-4, rtol=1e-4), float(jnp.max(jnp.abs(out32 - ref)))

    print("KERNEL_OK")
</pallas_src>

<mosaic_0001>
module attributes {stable_mosaic.version = 11 : i64} {
  func.func @primary_caps_kernel(%arg0: i32, %arg1: i32, %arg2: i32, %arg3: memref<1x32x128xbf16, #tpu.memory_space<vmem>>, %arg4: memref<1x2048x32xbf16, #tpu.memory_space<vmem>>, %arg5: memref<16x128xf32, #tpu.memory_space<vmem>>, %arg6: memref<1x16x128xf32, #tpu.memory_space<vmem>>, %arg7: memref<16x128xf32, #tpu.memory_space<vmem>>) attributes {dimension_semantics = [#tpu.dimension_semantics<parallel>, #tpu.dimension_semantics<parallel>, #tpu.dimension_semantics<arbitrary>], iteration_bounds = array<i64: 2, 2, 2>, scalar_prefetch = 0 : i64, scratch_operands = 1 : i64, tpu.core_type = #tpu.core_type<tc>, window_params = [{transform_indices = @transform_0, window_bounds = array<i64: 1, 32, 128>}, {pipeline_mode = #tpu.pipeline_mode<synchronous>, transform_indices = @transform_1, window_bounds = array<i64: 1, 2048, 32>}, {pipeline_mode = #tpu.pipeline_mode<synchronous>, transform_indices = @transform_2, window_bounds = array<i64: 16, 128>}, {transform_indices = @transform_3, window_bounds = array<i64: 1, 16, 128>}]} {
    %c0_i32 = arith.constant 0 : i32
    %0 = arith.cmpi eq, %arg2, %c0_i32 : i32
    %1 = arith.extui %0 : i1 to i32
    %c0_i32_0 = arith.constant 0 : i32
    %2 = arith.cmpi ne, %1, %c0_i32_0 : i32
    scf.if %2 {
      %cst_11 = arith.constant -1.000000e+30 : f32
      %17 = vector.broadcast %cst_11 : f32 to vector<16x128xf32>
      %c0_12 = arith.constant 0 : index
      %c0_13 = arith.constant 0 : index
      %18 = vector.load %arg7[%c0_12, %c0_13] : memref<16x128xf32, #tpu.memory_space<vmem>>, vector<16x128xf32>
      tpu.vector_store %arg7[%c0_12, %c0_13], %17 {strides = array<i32>} : memref<16x128xf32, #tpu.memory_space<vmem>>, vector<16x128xf32>,
    } else {
    }
    %c0 = arith.constant 0 : index
    %c0_1 = arith.constant 0 : index
    %c0_2 = arith.constant 0 : index
    %3 = vector.load %arg3[%c0, %c0_1, %c0_2] : memref<1x32x128xbf16, #tpu.memory_space<vmem>>, vector<1x32x128xbf16>
    %4 = vector.shape_cast %3 : vector<1x32x128xbf16> to vector<32x128xbf16>
    %c0_3 = arith.constant 0 : index
    %c0_4 = arith.constant 0 : index
    %c0_5 = arith.constant 0 : index
    %5 = vector.load %arg4[%c0_3, %c0_4, %c0_5] : memref<1x2048x32xbf16, #tpu.memory_space<vmem>>, vector<1x2048x32xbf16>
    %6 = vector.shape_cast %5 : vector<1x2048x32xbf16> to vector<2048x32xbf16>
    %cst = arith.constant dense<0.000000e+00> : vector<2048x128xf32>
    %7 = tpu.matmul %6, %4, %cst {dimension_numbers = #tpu.dot_dimension_numbers<[1], [0], [0], [1], [0, 0, 1, 1], [], []>} : vector<2048x32xbf16>, vector<32x128xbf16>, vector<2048x128xf32> -> vector<2048x128xf32>
    %c1_i32 = arith.constant 1 : i32
    %8 = arith.cmpi slt, %arg2, %c1_i32 : i32
    %9 = arith.extui %8 : i1 to i32
    %c0_i32_6 = arith.constant 0 : i32
    %10 = arith.cmpi ne, %9, %c0_i32_6 : i32
    scf.if %10 {
      %17 = vector.shape_cast %7 : vector<2048x128xf32> to vector<16x128x128xf32>
      %cst_11 = arith.constant dense<0xFF800000> : vector<16x128xf32>
      %18 = vector.multi_reduction <maximumf>, %17, %cst_11 [2] : vector<16x128x128xf32> to vector<16x128xf32>
      %c0_12 = arith.constant 0 : index
      %c0_13 = arith.constant 0 : index
      %19 = vector.load %arg7[%c0_12, %c0_13] : memref<16x128xf32, #tpu.memory_space<vmem>>, vector<16x128xf32>
      %20 = arith.maximumf %19, %18 : vector<16x128xf32>
      %c0_14 = arith.constant 0 : index
      %c0_15 = arith.constant 0 : index
      %21 = vector.load %arg7[%c0_14, %c0_15] : memref<16x128xf32, #tpu.memory_space<vmem>>, vector<16x128xf32>
      tpu.vector_store %arg7[%c0_14, %c0_15], %20 {strides = array<i32>} : memref<16x128xf32, #tpu.memory_space<vmem>>, vector<16x128xf32>,
    } else {
    }
    %c1_i32_7 = arith.constant 1 : i32
    %11 = arith.cmpi eq, %arg2, %c1_i32_7 : i32
    %12 = arith.extui %11 : i1 to i32
    %c0_i32_8 = arith.constant 0 : i32
    %13 = arith.cmpi ne, %12, %c0_i32_8 : i32
    scf.if %13 {
      %17 = tpu.iota {dimensions = array<i32: 1>} : vector<1x128xi32>
      %c72_i32 = arith.constant 72 : i32
      %18 = vector.broadcast %c72_i32 : i32 to vector<1x128xi32>
      %19 = arith.cmpi slt, %17, %18 : vector<1x128xi32>
      %cst_11 = arith.constant 0.000000e+00 : f32
      %cst_12 = arith.constant -1.000000e+30 : f32
      %20 = vector.broadcast %cst_11 : f32 to vector<1x128xf32>
      %21 = vector.broadcast %cst_12 : f32 to vector<1x128xf32>
      %22 = arith.select %19, %20, %21 : vector<1x128xi1>, vector<1x128xf32>
      %23 = vector.broadcast %22 : vector<1x128xf32> to vector<2048x128xf32>
      %24 = arith.addf %7, %23 : vector<2048x128xf32>
      %25 = vector.shape_cast %24 : vector<2048x128xf32> to vector<16x128x128xf32>
      %cst_13 = arith.constant dense<0xFF800000> : vector<16x128xf32>
      %26 = vector.multi_reduction <maximumf>, %25, %cst_13 [2] : vector<16x128x128xf32> to vector<16x128xf32>
      %c0_14 = arith.constant 0 : index
      %c0_15 = arith.constant 0 : index
      %27 = vector.load %arg7[%c0_14, %c0_15] : memref<16x128xf32, #tpu.memory_space<vmem>>, vector<16x128xf32>
      %28 = arith.maximumf %27, %26 : vector<16x128xf32>
      %c0_16 = arith.constant 0 : index
      %c0_17 = arith.constant 0 : index
      %29 = vector.load %arg7[%c0_16, %c0_17] : memref<16x128xf32, #tpu.memory_space<vmem>>, vector<16x128xf32>
      tpu.vector_store %arg7[%c0_16, %c0_17], %28 {strides = array<i32>} : memref<16x128xf32, #tpu.memory_space<vmem>>, vector<16x128xf32>,
    } else {
    }
    %c1_i32_9 = arith.constant 1 : i32
    %14 = arith.cmpi eq, %arg2, %c1_i32_9 : i32
    %15 = arith.extui %14 : i1 to i32
    %c0_i32_10 = arith.constant 0 : i32
    %16 = arith.cmpi ne, %15, %c0_i32_10 : i32
    scf.if %16 {
      %c0_11 = arith.constant 0 : index
      %c0_12 = arith.constant 0 : index
      %17 = vector.load %arg7[%c0_11, %c0_12] : memref<16x128xf32, #tpu.memory_space<vmem>>, vector<16x128xf32>
      %c0_13 = arith.constant 0 : index
      %c0_14 = arith.constant 0 : index
      %18 = vector.load %arg5[%c0_13, %c0_14] : memref<16x128xf32, #tpu.memory_space<vmem>>, vector<16x128xf32>
      %19 = arith.addf %17, %18 : vector<16x128xf32>
      %cst_15 = arith.constant 0.000000e+00 : f32
      %20 = vector.broadcast %cst_15 : f32 to vector<16x128xf32>
      %21 = arith.maximumf %19, %20 : vector<16x128xf32>
      %22 = arith.mulf %21, %21 : vector<16x128xf32>
      %cst_16 = arith.constant dense<0.000000e+00> : vector<128xf32>
      %23 = vector.multi_reduction <add>, %22, %cst_16 [0] : vector<16x128xf32> to vector<128xf32>
      %24 = vector.shape_cast %23 : vector<128xf32> to vector<1x128xf32>
      %cst_17 = arith.constant 1.000000e+00 : f32
      %25 = vector.broadcast %cst_17 : f32 to vector<1x128xf32>
      %26 = arith.addf %25, %24 : vector<1x128xf32>
      %27 = arith.divf %24, %26 : vector<1x128xf32>
      %28 = math.sqrt %24 : vector<1x128xf32>
      %cst_18 = arith.constant 9.99999993E-9 : f32
      %29 = vector.broadcast %cst_18 : f32 to vector<1x128xf32>
      %30 = arith.addf %28, %29 : vector<1x128xf32>
      %31 = arith.divf %27, %30 : vector<1x128xf32>
      %32 = vector.broadcast %31 : vector<1x128xf32> to vector<16x128xf32>
      %33 = arith.mulf %21, %32 : vector<16x128xf32>
      %c0_19 = arith.constant 0 : index
      %c0_20 = arith.constant 0 : index
      %c0_21 = arith.constant 0 : index
      %34 = vector.load %arg6[%c0_19, %c0_20, %c0_21] : memref<1x16x128xf32, #tpu.memory_space<vmem>>, vector<1x16x128xf32>
      %35 = vector.shape_cast %34 : vector<1x16x128xf32> to vector<16x128xf32>
      %36 = vector.shape_cast %33 : vector<16x128xf32> to vector<1x16x128xf32>
      tpu.vector_store %arg6[%c0_19, %c0_20, %c0_21], %36 {strides = array<i32>} : memref<1x16x128xf32, #tpu.memory_space<vmem>>, vector<1x16x128xf32>,
    } else {
    }
    return
  }
  func.func @transform_0(%arg0: i32, %arg1: i32, %arg2: i32) -> (i32, i32, i32) {
    %c0_i32 = arith.constant 0 : i32
    %c0_i32_0 = arith.constant 0 : i32
    return %arg0, %c0_i32, %arg2 : i32, i32, i32
  }
  func.func @transform_1(%arg0: i32, %arg1: i32, %arg2: i32) -> (i32, i32, i32) {
    %c0_i32 = arith.constant 0 : i32
    %c0_i32_0 = arith.constant 0 : i32
    %c0_i32_1 = arith.constant 0 : i32
    return %arg1, %c0_i32, %c0_i32_0 : i32, i32, i32
  }
  func.func @transform_2(%arg0: i32, %arg1: i32, %arg2: i32) -> (i32, i32) {
    %c0_i32 = arith.constant 0 : i32
    %c0_i32_0 = arith.constant 0 : i32
    return %c0_i32, %arg1 : i32, i32
  }
  func.func @transform_3(%arg0: i32, %arg1: i32, %arg2: i32) -> (i32, i32, i32) {
    %c0_i32 = arith.constant 0 : i32
    %c0_i32_0 = arith.constant 0 : i32
    return %arg0, %c0_i32, %arg1 : i32, i32, i32
  }
}

module attributes {stable_mosaic.version = 11 : i64} {
  func.func @primary_caps_kernel(%arg0: i32, %arg1: i32, %arg2: i32, %arg3: memref<1x32x128xbf16, #tpu.memory_space<vmem>>, %arg4: memref<1x2048x32xbf16, #tpu.memory_space<vmem>>, %arg5: memref<16x128xf32, #tpu.memory_space<vmem>>, %arg6: memref<1x16x128xf32, #tpu.memory_space<vmem>>, %arg7: memref<16x128xf32, #tpu.memory_space<vmem>>) attributes {dimension_semantics = [#tpu.dimension_semantics<parallel>, #tpu.dimension_semantics<parallel>, #tpu.dimension_semantics<arbitrary>], iteration_bounds = array<i64: 2, 2, 2>, scalar_prefetch = 0 : i64, scratch_operands = 1 : i64, tpu.core_type = #tpu.core_type<tc>, window_params = [{transform_indices = @transform_0, window_bounds = array<i64: 1, 32, 128>}, {transform_indices = @transform_1, window_bounds = array<i64: 1, 2048, 32>}, {transform_indices = @transform_2, window_bounds = array<i64: 16, 128>}, {transform_indices = @transform_3, window_bounds = array<i64: 1, 16, 128>}]} {
    %c0_i32 = arith.constant 0 : i32
    %0 = arith.cmpi eq, %arg2, %c0_i32 : i32
    %1 = arith.extui %0 : i1 to i32
    %c0_i32_0 = arith.constant 0 : i32
    %2 = arith.cmpi ne, %1, %c0_i32_0 : i32
    scf.if %2 {
      %cst_11 = arith.constant -1.000000e+30 : f32
      %17 = vector.broadcast %cst_11 : f32 to vector<16x128xf32>
      %c0_12 = arith.constant 0 : index
      %c0_13 = arith.constant 0 : index
      %18 = vector.load %arg7[%c0_12, %c0_13] : memref<16x128xf32, #tpu.memory_space<vmem>>, vector<16x128xf32>
      tpu.vector_store %arg7[%c0_12, %c0_13], %17 {strides = array<i32>} : memref<16x128xf32, #tpu.memory_space<vmem>>, vector<16x128xf32>,
    } else {
    }
    %c0 = arith.constant 0 : index
    %c0_1 = arith.constant 0 : index
    %c0_2 = arith.constant 0 : index
    %3 = vector.load %arg3[%c0, %c0_1, %c0_2] : memref<1x32x128xbf16, #tpu.memory_space<vmem>>, vector<1x32x128xbf16>
    %4 = vector.shape_cast %3 : vector<1x32x128xbf16> to vector<32x128xbf16>
    %c0_3 = arith.constant 0 : index
    %c0_4 = arith.constant 0 : index
    %c0_5 = arith.constant 0 : index
    %5 = vector.load %arg4[%c0_3, %c0_4, %c0_5] : memref<1x2048x32xbf16, #tpu.memory_space<vmem>>, vector<1x2048x32xbf16>
    %6 = vector.shape_cast %5 : vector<1x2048x32xbf16> to vector<2048x32xbf16>
    %cst = arith.constant dense<0.000000e+00> : vector<2048x128xf32>
    %7 = tpu.matmul %6, %4, %cst {dimension_numbers = #tpu.dot_dimension_numbers<[1], [0], [0], [1], [0, 0, 1, 1], [], []>} : vector<2048x32xbf16>, vector<32x128xbf16>, vector<2048x128xf32> -> vector<2048x128xf32>
    %c1_i32 = arith.constant 1 : i32
    %8 = arith.cmpi slt, %arg2, %c1_i32 : i32
    %9 = arith.extui %8 : i1 to i32
    %c0_i32_6 = arith.constant 0 : i32
    %10 = arith.cmpi ne, %9, %c0_i32_6 : i32
    scf.if %10 {
      %17 = vector.shape_cast %7 : vector<2048x128xf32> to vector<16x128x128xf32>
      %cst_11 = arith.constant dense<0xFF800000> : vector<16x128xf32>
      %18 = vector.multi_reduction <maximumf>, %17, %cst_11 [2] : vector<16x128x128xf32> to vector<16x128xf32>
      %c0_12 = arith.constant 0 : index
      %c0_13 = arith.constant 0 : index
      %19 = vector.load %arg7[%c0_12, %c0_13] : memref<16x128xf32, #tpu.memory_space<vmem>>, vector<16x128xf32>
      %20 = arith.maximumf %19, %18 : vector<16x128xf32>
      %c0_14 = arith.constant 0 : index
      %c0_15 = arith.constant 0 : index
      %21 = vector.load %arg7[%c0_14, %c0_15] : memref<16x128xf32, #tpu.memory_space<vmem>>, vector<16x128xf32>
      tpu.vector_store %arg7[%c0_14, %c0_15], %20 {strides = array<i32>} : memref<16x128xf32, #tpu.memory_space<vmem>>, vector<16x128xf32>,
    } else {
    }
    %c1_i32_7 = arith.constant 1 : i32
    %11 = arith.cmpi eq, %arg2, %c1_i32_7 : i32
    %12 = arith.extui %11 : i1 to i32
    %c0_i32_8 = arith.constant 0 : i32
    %13 = arith.cmpi ne, %12, %c0_i32_8 : i32
    scf.if %13 {
      %17 = tpu.iota {dimensions = array<i32: 1>} : vector<1x128xi32>
      %c72_i32 = arith.constant 72 : i32
      %18 = vector.broadcast %c72_i32 : i32 to vector<1x128xi32>
      %19 = arith.cmpi slt, %17, %18 : vector<1x128xi32>
      %cst_11 = arith.constant 0.000000e+00 : f32
      %cst_12 = arith.constant -1.000000e+30 : f32
      %20 = vector.broadcast %cst_11 : f32 to vector<1x128xf32>
      %21 = vector.broadcast %cst_12 : f32 to vector<1x128xf32>
      %22 = arith.select %19, %20, %21 : vector<1x128xi1>, vector<1x128xf32>
      %23 = vector.broadcast %22 : vector<1x128xf32> to vector<2048x128xf32>
      %24 = arith.addf %7, %23 : vector<2048x128xf32>
      %25 = vector.shape_cast %24 : vector<2048x128xf32> to vector<16x128x128xf32>
      %cst_13 = arith.constant dense<0xFF800000> : vector<16x128xf32>
      %26 = vector.multi_reduction <maximumf>, %25, %cst_13 [2] : vector<16x128x128xf32> to vector<16x128xf32>
      %c0_14 = arith.constant 0 : index
      %c0_15 = arith.constant 0 : index
      %27 = vector.load %arg7[%c0_14, %c0_15] : memref<16x128xf32, #tpu.memory_space<vmem>>, vector<16x128xf32>
      %28 = arith.maximumf %27, %26 : vector<16x128xf32>
      %c0_16 = arith.constant 0 : index
      %c0_17 = arith.constant 0 : index
      %29 = vector.load %arg7[%c0_16, %c0_17] : memref<16x128xf32, #tpu.memory_space<vmem>>, vector<16x128xf32>
      tpu.vector_store %arg7[%c0_16, %c0_17], %28 {strides = array<i32>} : memref<16x128xf32, #tpu.memory_space<vmem>>, vector<16x128xf32>,
    } else {
    }
    %c1_i32_9 = arith.constant 1 : i32
    %14 = arith.cmpi eq, %arg2, %c1_i32_9 : i32
    %15 = arith.extui %14 : i1 to i32
    %c0_i32_10 = arith.constant 0 : i32
    %16 = arith.cmpi ne, %15, %c0_i32_10 : i32
    scf.if %16 {
      %c0_11 = arith.constant 0 : index
      %c0_12 = arith.constant 0 : index
      %17 = vector.load %arg7[%c0_11, %c0_12] : memref<16x128xf32, #tpu.memory_space<vmem>>, vector<16x128xf32>
      %c0_13 = arith.constant 0 : index
      %c0_14 = arith.constant 0 : index
      %18 = vector.load %arg5[%c0_13, %c0_14] : memref<16x128xf32, #tpu.memory_space<vmem>>, vector<16x128xf32>
      %19 = arith.addf %17, %18 : vector<16x128xf32>
      %cst_15 = arith.constant 0.000000e+00 : f32
      %20 = vector.broadcast %cst_15 : f32 to vector<16x128xf32>
      %21 = arith.maximumf %19, %20 : vector<16x128xf32>
      %22 = arith.mulf %21, %21 : vector<16x128xf32>
      %cst_16 = arith.constant dense<0.000000e+00> : vector<128xf32>
      %23 = vector.multi_reduction <add>, %22, %cst_16 [0] : vector<16x128xf32> to vector<128xf32>
      %24 = vector.shape_cast %23 : vector<128xf32> to vector<1x128xf32>
      %cst_17 = arith.constant 1.000000e+00 : f32
      %25 = vector.broadcast %cst_17 : f32 to vector<1x128xf32>
      %26 = arith.addf %25, %24 : vector<1x128xf32>
      %27 = arith.divf %24, %26 : vector<1x128xf32>
      %28 = math.sqrt %24 : vector<1x128xf32>
      %cst_18 = arith.constant 9.99999993E-9 : f32
      %29 = vector.broadcast %cst_18 : f32 to vector<1x128xf32>
      %30 = arith.addf %28, %29 : vector<1x128xf32>
      %31 = arith.divf %27, %30 : vector<1x128xf32>
      %32 = vector.broadcast %31 : vector<1x128xf32> to vector<16x128xf32>
      %33 = arith.mulf %21, %32 : vector<16x128xf32>
      %c0_19 = arith.constant 0 : index
      %c0_20 = arith.constant 0 : index
      %c0_21 = arith.constant 0 : index
      %34 = vector.load %arg6[%c0_19, %c0_20, %c0_21] : memref<1x16x128xf32, #tpu.memory_space<vmem>>, vector<1x16x128xf32>
      %35 = vector.shape_cast %34 : vector<1x16x128xf32> to vector<16x128xf32>
      %36 = vector.shape_cast %33 : vector<16x128xf32> to vector<1x16x128xf32>
      tpu.vector_store %arg6[%c0_19, %c0_20, %c0_21], %36 {strides = array<i32>} : memref<1x16x128xf32, #tpu.memory_space<vmem>>, vector<1x16x128xf32>,
    } else {
    }
    return
  }
  func.func @transform_0(%arg0: i32, %arg1: i32, %arg2: i32) -> (i32, i32, i32) {
    %c0_i32 = arith.constant 0 : i32
    %c0_i32_0 = arith.constant 0 : i32
    return %arg0, %c0_i32, %arg2 : i32, i32, i32
  }
  func.func @transform_1(%arg0: i32, %arg1: i32, %arg2: i32) -> (i32, i32, i32) {
    %c0_i32 = arith.constant 0 : i32
    %c0_i32_0 = arith.constant 0 : i32
    %c0_i32_1 = arith.constant 0 : i32
    return %arg1, %c0_i32, %c0_i32_0 : i32, i32, i32
  }
  func.func @transform_2(%arg0: i32, %arg1: i32, %arg2: i32) -> (i32, i32) {
    %c0_i32 = arith.constant 0 : i32
    %c0_i32_0 = arith.constant 0 : i32
    return %c0_i32, %arg1 : i32, i32
  }
  func.func @transform_3(%arg0: i32, %arg1: i32, %arg2: i32) -> (i32, i32, i32) {
    %c0_i32 = arith.constant 0 : i32
    %c0_i32_0 = arith.constant 0 : i32
    return %arg0, %c0_i32, %arg1 : i32, i32, i32
  }
}

</mosaic_0001>

<llo_original>
// kernel: tpu_custom_call.1
$region0: #{tpu_custom_call.1}
  #allocation0 [shape = 'u32[]', space=smem, size = 0x4, offset = 0x4, fixed_abs, tag = 'smem constant byte address 0x4 - core index']
  #allocation1 [shape = 'u32[72,128]{1,0:T(1,128)}', space=vmem, size = 0x9000, scoped, tag = 'internal scratch']
  #allocation2 [shape = 'f32[16,128]{1,0:T(8,128)}', space=vmem, size = 0x2000, scoped, tag = 'scratch operand']
  %s0 = inlined_call_operand.vmem [shape: bf16[2,32,256], index: 0, kind: input, shape index: {}]
  %s1 = inlined_call_operand.vmem [shape: bf16[2,2048,32], index: 1, kind: input, shape index: {}]
  %s2 = inlined_call_operand.vmem [shape: f32[16,256], index: 2, kind: input, shape index: {}]
  %s3 = inlined_call_operand.hbm [shape: f32[2,16,256], index: 3, kind: output, shape index: {}]
  %s4 = sld [smem:[#allocation0]]
  $region136: #{tpu_custom_call.1} parent=0
    _
  %s6 = ssub.s32 1, %s4
  %s7 = scalar_select 0, %s6, %s4
  $region1: #{tpu_custom_call.1} parent=0
    #allocation3 [shape = 'u8[16384]{0}', space=vmem, size = 0x4000, scoped, tag = 'input window, operand 0']
    #allocation4 [shape = 'u8[8192]{0}', space=vmem, size = 0x2000, scoped, tag = 'input window, operand 2, single buffered']
    #allocation5 [shape = 'u8[16384]{0}', space=vmem, size = 0x4000, scoped, tag = 'output window, operand 0']
    #allocation6 [shape = 's32[2]{0}', space=sflag, size = 0x8, scoped, tag = 'scoped memory for tpu_custom_call.1']
    %8 = vsyncpa [#allocation6], 0
    %s9 = scalar_lea.sflag [#allocation6], 1
    %10 = vsyncpa %s9, 0
    loop: start=0, step=1, limit=10
    $region2: #{tpu_custom_call.1} parent=1 // loop_pre_header
      _
    $region3: #{tpu_custom_call.1} parent=1 // loop_header
      %s12 = sphi 0, %s16
      %p13 = scmp.ge.s32.totalorder %s12, 10
      %s19 = sphi 0, %s38
      %s20 = sphi 0, %s34
      %s21 = sphi 0, %s30
      %s22 = sphi 0, %s19
      %s23 = sphi 0, %s20
      %s24 = sphi 0, %s21
      %s25 = sphi 0, %s22
      %s26 = sphi 0, %s23
      %s27 = sphi 0, %s24
      %s43 = sphi 0, %s45
      %s46 = sphi 0, %s43
      %s47 = sphi 0, %s46
      %s63 = sphi 0, %s47
      %s69 = sphi 0, %s71
      %s72 = sphi 0, %s69
      %s73 = sphi 0, %s72
      %s89 = sphi 0, %s73
      %s95 = sphi 0, %s97
      %s98 = sphi 0, %s95
      %s99 = sphi 0, %s98
      %s115 = sphi 0, %s99
      %s123 = sphi 0, %s125
      %s126 = sphi 0, %s123
      %s127 = sphi 0, %s126
      %s143 = sphi 0, %s127
    $region4: #{tpu_custom_call.1} parent=1 // loop_header_branch
      %15 = sbr.rel (%p13) target = $region8
    $region5: #{tpu_custom_call.1} parent=1 // loop_body
      %s17 = ssub.s32 %s12, 1
      %s18 = ssub.s32 %s12, 2
      %s28 = sadd.s32 1, %s21
      %p29 = scmp.ge.s32.totalorder %s28, 2
      %s30 = scalar_select %p29, 0, %s28
      %s31 = sadd.s32 1, %s20
      %s32 = scalar_select %p29, %s31, %s20
      %p33 = scmp.ge.s32.totalorder %s32, 2
      %s34 = scalar_select %p33, 0, %s32
      %s35 = sadd.s32 1, %s19
      %s36 = scalar_select %p33, %s35, %s19
      %p37 = scmp.ge.s32.totalorder %s36, 2
      %s38 = scalar_select %p37, 0, %s36
      %s39 = ssub.s32 %s19, %s38
      %s40 = ssub.s32 %s21, %s30
      %s41 = sor.u32 %s39, %s40
      %p42 = scmp.eq.s32.totalorder %s41, 0
      %s44 = sadd.s32 %s43, 1
      %s45 = scalar_select %p42, %s43, %s44
      %p48 = pneg %p42
      %p49 = scmp.eq.s32.totalorder %s12, 7
      %p50 = por %p48, %p49
      %p51 = scmp.ne.s32.totalorder %s43, %s46
      %p52 = scmp.eq.s32.totalorder %s12, 0
      %p53 = por %p51, %p52
      %p54 = scmp.ne.s32.totalorder %s43, %s46
      %p55 = scmp.eq.s32.totalorder %s17, 7
      %p56 = por %p54, %p55
      %p57 = scmp.ne.s32.totalorder %s46, %s47
      %p58 = scmp.eq.s32.totalorder %s17, 0
      %p59 = por %p57, %p58
      %p60 = scmp.ne.s32.totalorder %s46, %s47
      %p61 = scmp.eq.s32.totalorder %s18, 7
      %p62 = por %p60, %p61
      %p64 = scmp.ne.s32.totalorder %s47, %s63
      %p65 = scmp.eq.s32.totalorder %s18, 0
      %p66 = por %p64, %p65
      %s67 = ssub.s32 %s20, %s34
      %p68 = scmp.eq.s32.totalorder %s67, 0
      %s70 = sadd.s32 %s69, 1
      %s71 = scalar_select %p68, %s69, %s70
      %p74 = pneg %p68
      %p75 = scmp.eq.s32.totalorder %s12, 7
      %p76 = por %p74, %p75
      %p77 = scmp.ne.s32.totalorder %s69, %s72
      %p78 = scmp.eq.s32.totalorder %s12, 0
      %p79 = por %p77, %p78
      %p80 = scmp.ne.s32.totalorder %s69, %s72
      %p81 = scmp.eq.s32.totalorder %s17, 7
      %p82 = por %p80, %p81
      %p83 = scmp.ne.s32.totalorder %s72, %s73
      %p84 = scmp.eq.s32.totalorder %s17, 0
      %p85 = por %p83, %p84
      %p86 = scmp.ne.s32.totalorder %s72, %s73
      %p87 = scmp.eq.s32.totalorder %s18, 7
      %p88 = por %p86, %p87
      %p90 = scmp.ne.s32.totalorder %s73, %s89
      %p91 = scmp.eq.s32.totalorder %s18, 0
      %p92 = por %p90, %p91
      %s93 = ssub.s32 %s20, %s34
      %p94 = scmp.eq.s32.totalorder %s93, 0
      %s96 = sadd.s32 %s95, 1
      %s97 = scalar_select %p94, %s95, %s96
      %p100 = pneg %p94
      %p101 = scmp.eq.s32.totalorder %s12, 7
      %p102 = por %p100, %p101
      %p103 = scmp.ne.s32.totalorder %s95, %s98
      %p104 = scmp.eq.s32.totalorder %s12, 0
      %p105 = por %p103, %p104
      %p106 = scmp.ne.s32.totalorder %s95, %s98
      %p107 = scmp.eq.s32.totalorder %s17, 7
      %p108 = por %p106, %p107
      %p109 = scmp.ne.s32.totalorder %s98, %s99
      %p110 = scmp.eq.s32.totalorder %s17, 0
      %p111 = por %p109, %p110
      %p112 = scmp.ne.s32.totalorder %s98, %s99
      %p113 = scmp.eq.s32.totalorder %s18, 7
      %p114 = por %p112, %p113
      %p116 = scmp.ne.s32.totalorder %s99, %s115
      %p117 = scmp.eq.s32.totalorder %s18, 0
      %p118 = por %p116, %p117
      %s119 = ssub.s32 %s19, %s38
      %s120 = ssub.s32 %s20, %s34
      %s121 = sor.u32 %s119, %s120
      %p122 = scmp.eq.s32.totalorder %s121, 0
      %s124 = sadd.s32 %s123, 1
      %s125 = scalar_select %p122, %s123, %s124
      %p128 = pneg %p122
      %p129 = scmp.eq.s32.totalorder %s12, 7
      %p130 = por %p128, %p129
      %p131 = scmp.ne.s32.totalorder %s123, %s126
      %p132 = scmp.eq.s32.totalorder %s12, 0
      %p133 = por %p131, %p132
      %p134 = scmp.ne.s32.totalorder %s123, %s126
      %p135 = scmp.eq.s32.totalorder %s17, 7
      %p136 = por %p134, %p135
      %p137 = scmp.ne.s32.totalorder %s126, %s127
      %p138 = scmp.eq.s32.totalorder %s17, 0
      %p139 = por %p137, %p138
      %p140 = scmp.ne.s32.totalorder %s126, %s127
      %p141 = scmp.eq.s32.totalorder %s18, 7
      %p142 = por %p140, %p141
      %p144 = scmp.ne.s32.totalorder %s127, %s143
      %p145 = scmp.eq.s32.totalorder %s18, 0
      %p146 = por %p144, %p145
      %p147 = scmp.le.s32.totalorder 1, %s12
      %p148 = scmp.lt.s32.totalorder %s12, 9
      %p149 = pnand %p147, %p148
      %p150 = pneg %p149
      // Predicated region
      $region9: #{tpu_custom_call.1} parent=5 // pred_check
        _
      $region10: #{tpu_custom_call.1} parent=5 // pred_check_branch
        %152 = sbr.rel (%p149) target = $region12
      $region11: #{tpu_custom_call.1} parent=5 // pred_region
        %s153 = ssub.s32 %s12, 1
        // Predicated region
        $region13: #{tpu_custom_call.1} parent=11 // pred_check
          %p154 = pneg %p85
        $region14: #{tpu_custom_call.1} parent=11 // pred_check_branch
          %156 = sbr.rel (%p154) target = $region16
        $region15: #{tpu_custom_call.1} parent=11 // pred_region
          %p157 = scmp.lt.s32.totalorder %s23, 1
          %s158 = scalar_select %p157, %s23, 1
          %s159 = smul.addr %s158, 256
          %s160 = smul.addr %s159, 4
          %s161 = scalar_lea.vmem %s1, %s160
        $region16: #{tpu_custom_call.1} parent=11 // pred_fallthru
          _
        // Predicated region
        $region17: #{tpu_custom_call.1} parent=11 // pred_check
          %p162 = pneg %p111
        $region18: #{tpu_custom_call.1} parent=11 // pred_check_branch
          %164 = sbr.rel (%p162) target = $region20
        $region19: #{tpu_custom_call.1} parent=11 // pred_region
          %s165 = smul.addr %s23, 8
          %s166 = scalar_lea.vmem %s2, %s165
          // Predicated region
          $region21: #{tpu_custom_call.1} parent=19 // pred_check
            _
          $region22: #{tpu_custom_call.1} parent=19 // pred_check_branch
            %168 = sbr.rel (0) target = $region24
          $region23: #{tpu_custom_call.1} parent=19 // pred_region
            // Predicated region
            $region25: #{tpu_custom_call.1} parent=23 // pred_check
              _
            $region26: #{tpu_custom_call.1} parent=23 // pred_check_branch
              %170 = sbr.rel (0) target = $region28
            $region27: #{tpu_custom_call.1} parent=23 // pred_region
              // Predicated region
              $region40: #{tpu_custom_call.1} parent=27 // pred_check
                _
              $region41: #{tpu_custom_call.1} parent=27 // pred_check_branch
                %188 = sbr.rel (0) target = $region43
              $region42: #{tpu_custom_call.1} parent=27 // pred_region
                loop: start=0, step=1, limit=1
                $region44: #{tpu_custom_call.1} parent=42 // loop_pre_header
                  _
                $region45: #{tpu_custom_call.1} parent=42 // loop_header
                  %s190 = sphi 0, %s194
                  %p191 = scmp.ge.s32.totalorder %s190, 1
                  %s195 = sphi %s166, %s166
                  %s196 = sphi [#allocation4], [#allocation4]
                $region46: #{tpu_custom_call.1} parent=42 // loop_header_branch
                  %193 = sbr.rel (%p191) target = $region50
                $region47: #{tpu_custom_call.1} parent=42 // loop_body
                  %v197 = vld [vmem:[%s195] sm:$0xff]
                  %198 = vst [vmem:[%s196] sm:$0xff] %v197
                  %v199 = vld [vmem:[%s195 + $0x10] sm:$0xff]
                  %200 = vst [vmem:[%s196 + $0x8] sm:$0xff] %v199
                $region48: #{tpu_custom_call.1} parent=42 // loop_footer
                  %s194 = sadd.s32 1, %s190
                $region49: #{tpu_custom_call.1} parent=42 // loop_footer_branch
                  %189 = sbr.rel target = $region45
                $region50: #{tpu_custom_call.1} parent=42 // loop_exit
                  _
              $region43: #{tpu_custom_call.1} parent=27 // pred_fallthru
                _
              // Predicated region
              $region51: #{tpu_custom_call.1} parent=27 // pred_check
                _
              $region52: #{tpu_custom_call.1} parent=27 // pred_check_branch
                %202 = sbr.rel target = $region54
              $region53: #{tpu_custom_call.1} parent=27 // pred_region
                _
              $region54: #{tpu_custom_call.1} parent=27 // pred_fallthru
                _
            $region28: #{tpu_custom_call.1} parent=23 // pred_fallthru
              _
            // Predicated region
            $region29: #{tpu_custom_call.1} parent=23 // pred_check
              _
            $region30: #{tpu_custom_call.1} parent=23 // pred_check_branch
              %172 = sbr.rel target = $region32
            $region31: #{tpu_custom_call.1} parent=23 // pred_region
              %s174 = ssub.s32 256, 1
              loop: start=0, step=1, limit=1
              $region33: #{tpu_custom_call.1} parent=31 // loop_pre_header
                _
              $region34: #{tpu_custom_call.1} parent=31 // loop_header
                %s176 = sphi 0, %s180
                %p177 = scmp.ge.s32.totalorder %s176, 1
                %s181 = sphi %s166, %s166
                %s182 = sphi [#allocation4], [#allocation4]
              $region35: #{tpu_custom_call.1} parent=31 // loop_header_branch
                %179 = sbr.rel (%p177) target = $region39
              $region36: #{tpu_custom_call.1} parent=31 // loop_body
                %v183 = vld [vmem:[%s181] sm:%s174]
                %184 = vst [vmem:[%s182] sm:%s174] %v183
                %v185 = vld [vmem:[%s181 + $0x10] sm:%s174]
                %186 = vst [vmem:[%s182 + $0x8] sm:%s174] %v185
              $region37: #{tpu_custom_call.1} parent=31 // loop_footer
                %s180 = sadd.s32 1, %s176
              $region38: #{tpu_custom_call.1} parent=31 // loop_footer_branch
                %175 = sbr.rel target = $region34
              $region39: #{tpu_custom_call.1} parent=31 // loop_exit
                _
            $region32: #{tpu_custom_call.1} parent=23 // pred_fallthru
              _
          $region24: #{tpu_custom_call.1} parent=19 // pred_fallthru
            _
          %203 = vnop
        $region20: #{tpu_custom_call.1} parent=11 // pred_fallthru
          _
      $region12: #{tpu_custom_call.1} parent=5 // pred_fallthru
        _
      %p204 = scmp.lt.s32.totalorder %s12, 8
      // Predicated region
      $region55: #{tpu_custom_call.1} parent=5 // pred_check
        %p205 = pneg %p204
      $region56: #{tpu_custom_call.1} parent=5 // pred_check_branch
        %207 = sbr.rel (%p205) target = $region58
      $region57: #{tpu_custom_call.1} parent=5 // pred_region
        // Predicated region
        $region59: #{tpu_custom_call.1} parent=57 // pred_check
          %p208 = pneg %p53
        $region60: #{tpu_custom_call.1} parent=57 // pred_check_branch
          %210 = sbr.rel (%p208) target = $region62
        $region61: #{tpu_custom_call.1} parent=57 // pred_region
          %s211 = sand.u32 %s43, 1
          %s212 = sand.u32 %s43, 1
          %s213 = smul.addr %s212, 16
          %s214 = scalar_lea.vmem [#allocation3], %s213
          %s215 = smul.addr %s19, 8
          %s216 = sadd.s32 %s21, %s215
          %s217 = smul.addr %s216, 4
          %s218 = scalar_lea.vmem %s0, %s217
          // Predicated region
          $region63: #{tpu_custom_call.1} parent=61 // pred_check
            _
          $region64: #{tpu_custom_call.1} parent=61 // pred_check_branch
            %220 = sbr.rel (0) target = $region66
          $region65: #{tpu_custom_call.1} parent=61 // pred_region
            // Predicated region
            $region67: #{tpu_custom_call.1} parent=65 // pred_check
              _
            $region68: #{tpu_custom_call.1} parent=65 // pred_check_branch
              %222 = sbr.rel target = $region70
            $region69: #{tpu_custom_call.1} parent=65 // pred_region
              // Predicated region
              $region82: #{tpu_custom_call.1} parent=69 // pred_check
                _
              $region83: #{tpu_custom_call.1} parent=69 // pred_check_branch
                %244 = sbr.rel (0) target = $region85
              $region84: #{tpu_custom_call.1} parent=69 // pred_region
                loop: start=0, step=1, limit=1
                $region86: #{tpu_custom_call.1} parent=84 // loop_pre_header
                  _
                $region87: #{tpu_custom_call.1} parent=84 // loop_header
                  %s246 = sphi 0, %s250
                  %p247 = scmp.ge.s32.totalorder %s246, 1
                  %s251 = sphi %s218, %s218
                  %s252 = sphi %s214, %s214
                $region88: #{tpu_custom_call.1} parent=84 // loop_header_branch
                  %249 = sbr.rel (%p247) target = $region92
                $region89: #{tpu_custom_call.1} parent=84 // loop_body
                  _
                $region90: #{tpu_custom_call.1} parent=84 // loop_footer
                  %s250 = sadd.s32 1, %s246
                $region91: #{tpu_custom_call.1} parent=84 // loop_footer_branch
                  %245 = sbr.rel target = $region87
                $region92: #{tpu_custom_call.1} parent=84 // loop_exit
                  _
                %s254 = ssub.s32 16, 1
                loop: start=0, step=1, limit=1
                $region93: #{tpu_custom_call.1} parent=84 // loop_pre_header
                  _
                $region94: #{tpu_custom_call.1} parent=84 // loop_header
                  %s256 = sphi 0, %s260
                  %p257 = scmp.ge.s32.totalorder %s256, 1
                  %s261 = sphi %s218, %s218
                  %s262 = sphi %s214, %s214
                $region95: #{tpu_custom_call.1} parent=84 // loop_header_branch
                  %259 = sbr.rel (%p257) target = $region99
                $region96: #{tpu_custom_call.1} parent=84 // loop_body
                  %v263 = vld [vmem:[%s261] sm:%s254]
                  %264 = vst [vmem:[%s262] sm:%s254] %v263
                  %v265 = vld [vmem:[%s261 + $0x8] sm:%s254]
                  %266 = vst [vmem:[%s262 + $0x4] sm:%s254] %v265
                  %v267 = vld [vmem:[%s261 + $0x10] sm:%s254]
                  %268 = vst [vmem:[%s262 + $0x8] sm:%s254] %v267
                  %v269 = vld [vmem:[%s261 + $0x18] sm:%s254]
                  %270 = vst [vmem:[%s262 + $0xc] sm:%s254] %v269
                $region97: #{tpu_custom_call.1} parent=84 // loop_footer
                  %s260 = sadd.s32 1, %s256
                $region98: #{tpu_custom_call.1} parent=84 // loop_footer_branch
                  %255 = sbr.rel target = $region94
                $region99: #{tpu_custom_call.1} parent=84 // loop_exit
                  _
              $region85: #{tpu_custom_call.1} parent=69 // pred_fallthru
                _
            $region70: #{tpu_custom_call.1} parent=65 // pred_fallthru
              _
            // Predicated region
            $region71: #{tpu_custom_call.1} parent=65 // pred_check
              _
            $region72: #{tpu_custom_call.1} parent=65 // pred_check_branch
              %224 = sbr.rel (0) target = $region74
            $region73: #{tpu_custom_call.1} parent=65 // pred_region
              %s226 = ssub.s32 16, 1
              loop: start=0, step=1, limit=1
              $region75: #{tpu_custom_call.1} parent=73 // loop_pre_header
                _
              $region76: #{tpu_custom_call.1} parent=73 // loop_header
                %s228 = sphi 0, %s232
                %p229 = scmp.ge.s32.totalorder %s228, 1
                %s233 = sphi %s218, %s218
                %s234 = sphi %s214, %s214
              $region77: #{tpu_custom_call.1} parent=73 // loop_header_branch
                %231 = sbr.rel (%p229) target = $region81
              $region78: #{tpu_custom_call.1} parent=73 // loop_body
                %v235 = vld [vmem:[%s233] sm:%s226]
                %236 = vst [vmem:[%s234] sm:%s226] %v235
                %v237 = vld [vmem:[%s233 + $0x8] sm:%s226]
                %238 = vst [vmem:[%s234 + $0x4] sm:%s226] %v237
                %v239 = vld [vmem:[%s233 + $0x10] sm:%s226]
                %240 = vst [vmem:[%s234 + $0x8] sm:%s226] %v239
                %v241 = vld [vmem:[%s233 + $0x18] sm:%s226]
                %242 = vst [vmem:[%s234 + $0xc] sm:%s226] %v241
              $region79: #{tpu_custom_call.1} parent=73 // loop_footer
                %s232 = sadd.s32 1, %s228
              $region80: #{tpu_custom_call.1} parent=73 // loop_footer_branch
                %227 = sbr.rel target = $region76
              $region81: #{tpu_custom_call.1} parent=73 // loop_exit
                _
            $region74: #{tpu_custom_call.1} parent=65 // pred_fallthru
              _
          $region66: #{tpu_custom_call.1} parent=61 // pred_fallthru
            _
          %271 = vnop
        $region62: #{tpu_custom_call.1} parent=57 // pred_fallthru
          _
      $region58: #{tpu_custom_call.1} parent=5 // pred_fallthru
        _
      %p272 = scmp.le.s32.totalorder 1, %s12
      %p273 = scmp.lt.s32.totalorder %s12, 9
      %p274 = pnand %p272, %p273
      %p275 = pneg %p274
      // Predicated region
      $region100: #{tpu_custom_call.1} parent=5 // pred_check
        _
      $region101: #{tpu_custom_call.1} parent=5 // pred_check_branch
        %277 = sbr.rel (%p274) target = $region103
      $region102: #{tpu_custom_call.1} parent=5 // pred_region
        %s278 = ssub.s32 %s12, 1
        %s279 = sand.u32 %s46, 1
        %s280 = sand.u32 %s46, 1
        %s281 = smul.addr %s280, 16
        %s282 = scalar_lea.vmem [#allocation3], %s281
        // Predicated region
        $region104: #{tpu_custom_call.1} parent=102 // pred_check
          %p283 = pneg %p59
        $region105: #{tpu_custom_call.1} parent=102 // pred_check_branch
          %285 = sbr.rel (%p283) target = $region107
        $region106: #{tpu_custom_call.1} parent=102 // pred_region
          _
        $region107: #{tpu_custom_call.1} parent=102 // pred_fallthru
          _
        // Predicated region
        $region108: #{tpu_custom_call.1} parent=102 // pred_check
          %p286 = pneg %p111
        $region109: #{tpu_custom_call.1} parent=102 // pred_check_branch
          %288 = sbr.rel (%p286) target = $region111
        $region110: #{tpu_custom_call.1} parent=102 // pred_region
          _
        $region111: #{tpu_custom_call.1} parent=102 // pred_fallthru
          _
        %s289 = sand.u32 %s46, 1
        %s290 = sand.u32 %s46, 1
        %s291 = smul.addr %s290, 16
        %s292 = scalar_lea.vmem [#allocation3], %s291
        %p293 = pneg %p59
        %p294 = pneg %p56
        %p295 = scmp.lt.s32.totalorder %s23, 1
        %s296 = scalar_select %p295, %s23, 1
        %s297 = smul.addr %s296, 256
        %s298 = smul.addr %s297, 4
        %s299 = scalar_lea.vmem %s1, %s298
        %p300 = pneg %p85
        %p301 = pneg %p82
        %p302 = pneg %p111
        %p303 = pneg %p108
        %p304 = pneg %p139
        %p305 = pneg %p136
        %s306 = sand.u32 %s126, 1
        %s307 = scalar_lea.sflag [#allocation6], %s306
        %s308 = sand.u32 %s126, 1
        %s309 = smul.addr %s308, 16
        %s310 = scalar_lea.vmem [#allocation5], %s309
        %p311 = scmp.lt.s32.totalorder %s23, 1
        %s312 = scalar_select %p311, %s23, 1
        %s313 = smul.addr %s312, 256
        %s314 = smul.addr %s313, 4
        %s315 = scalar_lea.vmem %s1, %s314
        %p317 = scmp.eq.s32.totalorder %s24, 0
        // Predicated region
        $region112: #{tpu_custom_call.1} parent=102 // pred_check
          %p318 = pneg %p317
        $region113: #{tpu_custom_call.1} parent=102 // pred_check_branch
          %320 = sbr.rel (%p318) target = $region115
        $region114: #{tpu_custom_call.1} parent=102 // pred_region
          %321 = vst [vmem:[#allocation2] sm:$0xff] -1e+30
          %322 = vst [vmem:[#allocation2 + $0x8] sm:$0xff] -1e+30
        $region115: #{tpu_custom_call.1} parent=102 // pred_fallthru
          _
        %v323 = vld [vmem:[%s282] sm:$0xf]
        %v324 = vld [vmem:[%s282 + $0x4] sm:$0xf]
        %v325 = vld [vmem:[%s282 + $0x8] sm:$0xf]
        %v326 = vld [vmem:[%s282 + $0xc] sm:$0xf]
        %v327 = vld [vmem:[%s315] sm:$0xf]
        %v328 = vld [vmem:[%s315 + $0x4] sm:$0xf]
        %v329 = vld [vmem:[%s315 + $0x8] sm:$0xf]
        %v330 = vld [vmem:[%s315 + $0xc] sm:$0xf]
        %v331 = vld [vmem:[%s315 + $0x10] sm:$0xf]
        %v332 = vld [vmem:[%s315 + $0x14] sm:$0xf]
        %v333 = vld [vmem:[%s315 + $0x18] sm:$0xf]
        %v334 = vld [vmem:[%s315 + $0x1c] sm:$0xf]
        %v335 = vld [vmem:[%s315 + $0x20] sm:$0xf]
        %v336 = vld [vmem:[%s315 + $0x24] sm:$0xf]
        %v337 = vld [vmem:[%s315 + $0x28] sm:$0xf]
        %v338 = vld [vmem:[%s315 + $0x2c] sm:$0xf]
        %v339 = vld [vmem:[%s315 + $0x30] sm:$0xf]
        %v340 = vld [vmem:[%s315 + $0x34] sm:$0xf]
        %v341 = vld [vmem:[%s315 + $0x38] sm:$0xf]
        %v342 = vld [vmem:[%s315 + $0x3c] sm:$0xf]
        %v343 = vld [vmem:[%s315 + $0x40] sm:$0xf]
        %v344 = vld [vmem:[%s315 + $0x44] sm:$0xf]
        %v345 = vld [vmem:[%s315 + $0x48] sm:$0xf]
        %v346 = vld [vmem:[%s315 + $0x4c] sm:$0xf]
        %v347 = vld [vmem:[%s315 + $0x50] sm:$0xf]
        %v348 = vld [vmem:[%s315 + $0x54] sm:$0xf]
        %v349 = vld [vmem:[%s315 + $0x58] sm:$0xf]
        %v350 = vld [vmem:[%s315 + $0x5c] sm:$0xf]
        %v351 = vld [vmem:[%s315 + $0x60] sm:$0xf]
        %v352 = vld [vmem:[%s315 + $0x64] sm:$0xf]
        %v353 = vld [vmem:[%s315 + $0x68] sm:$0xf]
        %v354 = vld [vmem:[%s315 + $0x6c] sm:$0xf]
        %v355 = vld [vmem:[%s315 + $0x70] sm:$0xf]
        %v356 = vld [vmem:[%s315 + $0x74] sm:$0xf]
        %v357 = vld [vmem:[%s315 + $0x78] sm:$0xf]
        %v358 = vld [vmem:[%s315 + $0x7c] sm:$0xf]
        %v359 = vld [vmem:[%s315 + $0x80] sm:$0xf]
        %v360 = vld [vmem:[%s315 + $0x84] sm:$0xf]
        %v361 = vld [vmem:[%s315 + $0x88] sm:$0xf]
        %v362 = vld [vmem:[%s315 + $0x8c] sm:$0xf]
        %v363 = vld [vmem:[%s315 + $0x90] sm:$0xf]
        %v364 = vld [vmem:[%s315 + $0x94] sm:$0xf]
        %v365 = vld [vmem:[%s315 + $0x98] sm:$0xf]
        %v366 = vld [vmem:[%s315 + $0x9c] sm:$0xf]
        %v367 = vld [vmem:[%s315 + $0xa0] sm:$0xf]
        %v368 = vld [vmem:[%s315 + $0xa4] sm:$0xf]
        %v369 = vld [vmem:[%s315 + $0xa8] sm:$0xf]
        %v370 = vld [vmem:[%s315 + $0xac] sm:$0xf]
        %v371 = vld [vmem:[%s315 + $0xb0] sm:$0xf]
        %v372 = vld [vmem:[%s315 + $0xb4] sm:$0xf]
        %v373 = vld [vmem:[%s315 + $0xb8] sm:$0xf]
        %v374 = vld [vmem:[%s315 + $0xbc] sm:$0xf]
        %v375 = vld [vmem:[%s315 + $0xc0] sm:$0xf]
        %v376 = vld [vmem:[%s315 + $0xc4] sm:$0xf]
        %v377 = vld [vmem:[%s315 + $0xc8] sm:$0xf]
        %v378 = vld [vmem:[%s315 + $0xcc] sm:$0xf]
        %v379 = vld [vmem:[%s315 + $0xd0] sm:$0xf]
        %v380 = vld [vmem:[%s315 + $0xd4] sm:$0xf]
        %v381 = vld [vmem:[%s315 + $0xd8] sm:$0xf]
        %v382 = vld [vmem:[%s315 + $0xdc] sm:$0xf]
        %v383 = vld [vmem:[%s315 + $0xe0] sm:$0xf]
        %v384 = vld [vmem:[%s315 + $0xe4] sm:$0xf]
        %v385 = vld [vmem:[%s315 + $0xe8] sm:$0xf]
        %v386 = vld [vmem:[%s315 + $0xec] sm:$0xf]
        %v387 = vld [vmem:[%s315 + $0xf0] sm:$0xf]
        %v388 = vld [vmem:[%s315 + $0xf4] sm:$0xf]
        %v389 = vld [vmem:[%s315 + $0xf8] sm:$0xf]
        %v390 = vld [vmem:[%s315 + $0xfc] sm:$0xf]
        %v391 = vld [vmem:[%s315 + $0x100] sm:$0xf]
        %v392 = vld [vmem:[%s315 + $0x104] sm:$0xf]
        %v393 = vld [vmem:[%s315 + $0x108] sm:$0xf]
        %v394 = vld [vmem:[%s315 + $0x10c] sm:$0xf]
        %v395 = vld [vmem:[%s315 + $0x110] sm:$0xf]
        %v396 = vld [vmem:[%s315 + $0x114] sm:$0xf]
        %v397 = vld [vmem:[%s315 + $0x118] sm:$0xf]
        %v398 = vld [vmem:[%s315 + $0x11c] sm:$0xf]
        %v399 = vld [vmem:[%s315 + $0x120] sm:$0xf]
        %v400 = vld [vmem:[%s315 + $0x124] sm:$0xf]
        %v401 = vld [vmem:[%s315 + $0x128] sm:$0xf]
        %v402 = vld [vmem:[%s315 + $0x12c] sm:$0xf]
        %v403 = vld [vmem:[%s315 + $0x130] sm:$0xf]
        %v404 = vld [vmem:[%s315 + $0x134] sm:$0xf]
        %v405 = vld [vmem:[%s315 + $0x138] sm:$0xf]
        %v406 = vld [vmem:[%s315 + $0x13c] sm:$0xf]
        %v407 = vld [vmem:[%s315 + $0x140] sm:$0xf]
        %v408 = vld [vmem:[%s315 + $0x144] sm:$0xf]
        %v409 = vld [vmem:[%s315 + $0x148] sm:$0xf]
        %v410 = vld [vmem:[%s315 + $0x14c] sm:$0xf]
        %v411 = vld [vmem:[%s315 + $0x150] sm:$0xf]
        %v412 = vld [vmem:[%s315 + $0x154] sm:$0xf]
        %v413 = vld [vmem:[%s315 + $0x158] sm:$0xf]
        %v414 = vld [vmem:[%s315 + $0x15c] sm:$0xf]
        %v415 = vld [vmem:[%s315 + $0x160] sm:$0xf]
        %v416 = vld [vmem:[%s315 + $0x164] sm:$0xf]
        %v417 = vld [vmem:[%s315 + $0x168] sm:$0xf]
        %v418 = vld [vmem:[%s315 + $0x16c] sm:$0xf]
        %v419 = vld [vmem:[%s315 + $0x170] sm:$0xf]
        %v420 = vld [vmem:[%s315 + $0x174] sm:$0xf]
        %v421 = vld [vmem:[%s315 + $0x178] sm:$0xf]
        %v422 = vld [vmem:[%s315 + $0x17c] sm:$0xf]
        %v423 = vld [vmem:[%s315 + $0x180] sm:$0xf]
        %v424 = vld [vmem:[%s315 + $0x184] sm:$0xf]
        %v425 = vld [vmem:[%s315 + $0x188] sm:$0xf]
        %v426 = vld [vmem:[%s315 + $0x18c] sm:$0xf]
        %v427 = vld [vmem:[%s315 + $0x190] sm:$0xf]
        %v428 = vld [vmem:[%s315 + $0x194] sm:$0xf]
        %v429 = vld [vmem:[%s315 + $0x198] sm:$0xf]
        %v430 = vld [vmem:[%s315 + $0x19c] sm:$0xf]
        %v431 = vld [vmem:[%s315 + $0x1a0] sm:$0xf]
        %v432 = vld [vmem:[%s315 + $0x1a4] sm:$0xf]
        %v433 = vld [vmem:[%s315 + $0x1a8] sm:$0xf]
        %v434 = vld [vmem:[%s315 + $0x1ac] sm:$0xf]
        %v435 = vld [vmem:[%s315 + $0x1b0] sm:$0xf]
        %v436 = vld [vmem:[%s315 + $0x1b4] sm:$0xf]
        %v437 = vld [vmem:[%s315 + $0x1b8] sm:$0xf]
        %v438 = vld [vmem:[%s315 + $0x1bc] sm:$0xf]
        %v439 = vld [vmem:[%s315 + $0x1c0] sm:$0xf]
        %v440 = vld [vmem:[%s315 + $0x1c4] sm:$0xf]
        %v441 = vld [vmem:[%s315 + $0x1c8] sm:$0xf]
        %v442 = vld [vmem:[%s315 + $0x1cc] sm:$0xf]
        %v443 = vld [vmem:[%s315 + $0x1d0] sm:$0xf]
        %v444 = vld [vmem:[%s315 + $0x1d4] sm:$0xf]
        %v445 = vld [vmem:[%s315 + $0x1d8] sm:$0xf]
        %v446 = vld [vmem:[%s315 + $0x1dc] sm:$0xf]
        %v447 = vld [vmem:[%s315 + $0x1e0] sm:$0xf]
        %v448 = vld [vmem:[%s315 + $0x1e4] sm:$0xf]
        %v449 = vld [vmem:[%s315 + $0x1e8] sm:$0xf]
        %v450 = vld [vmem:[%s315 + $0x1ec] sm:$0xf]
        %v451 = vld [vmem:[%s315 + $0x1f0] sm:$0xf]
        %v452 = vld [vmem:[%s315 + $0x1f4] sm:$0xf]
        %v453 = vld [vmem:[%s315 + $0x1f8] sm:$0xf]
        %v454 = vld [vmem:[%s315 + $0x1fc] sm:$0xf]
        %v455 = vld [vmem:[%s315 + $0x200] sm:$0xf]
        %v456 = vld [vmem:[%s315 + $0x204] sm:$0xf]
        %v457 = vld [vmem:[%s315 + $0x208] sm:$0xf]
        %v458 = vld [vmem:[%s315 + $0x20c] sm:$0xf]
        %v459 = vld [vmem:[%s315 + $0x210] sm:$0xf]
        %v460 = vld [vmem:[%s315 + $0x214] sm:$0xf]
        %v461 = vld [vmem:[%s315 + $0x218] sm:$0xf]
        %v462 = vld [vmem:[%s315 + $0x21c] sm:$0xf]
        %v463 = vld [vmem:[%s315 + $0x220] sm:$0xf]
        %v464 = vld [vmem:[%s315 + $0x224] sm:$0xf]
        %v465 = vld [vmem:[%s315 + $0x228] sm:$0xf]
        %v466 = vld [vmem:[%s315 + $0x22c] sm:$0xf]
        %v467 = vld [vmem:[%s315 + $0x230] sm:$0xf]
        %v468 = vld [vmem:[%s315 + $0x234] sm:$0xf]
        %v469 = vld [vmem:[%s315 + $0x238] sm:$0xf]
        %v470 = vld [vmem:[%s315 + $0x23c] sm:$0xf]
        %v471 = vld [vmem:[%s315 + $0x240] sm:$0xf]
        %v472 = vld [vmem:[%s315 + $0x244] sm:$0xf]
        %v473 = vld [vmem:[%s315 + $0x248] sm:$0xf]
        %v474 = vld [vmem:[%s315 + $0x24c] sm:$0xf]
        %v475 = vld [vmem:[%s315 + $0x250] sm:$0xf]
        %v476 = vld [vmem:[%s315 + $0x254] sm:$0xf]
        %v477 = vld [vmem:[%s315 + $0x258] sm:$0xf]
        %v478 = vld [vmem:[%s315 + $0x25c] sm:$0xf]
        %v479 = vld [vmem:[%s315 + $0x260] sm:$0xf]
        %v480 = vld [vmem:[%s315 + $0x264] sm:$0xf]
        %v481 = vld [vmem:[%s315 + $0x268] sm:$0xf]
        %v482 = vld [vmem:[%s315 + $0x26c] sm:$0xf]
        %v483 = vld [vmem:[%s315 + $0x270] sm:$0xf]
        %v484 = vld [vmem:[%s315 + $0x274] sm:$0xf]
        %v485 = vld [vmem:[%s315 + $0x278] sm:$0xf]
        %v486 = vld [vmem:[%s315 + $0x27c] sm:$0xf]
        %v487 = vld [vmem:[%s315 + $0x280] sm:$0xf]
        %v488 = vld [vmem:[%s315 + $0x284] sm:$0xf]
        %v489 = vld [vmem:[%s315 + $0x288] sm:$0xf]
        %v490 = vld [vmem:[%s315 + $0x28c] sm:$0xf]
        %v491 = vld [vmem:[%s315 + $0x290] sm:$0xf]
        %v492 = vld [vmem:[%s315 + $0x294] sm:$0xf]
        %v493 = vld [vmem:[%s315 + $0x298] sm:$0xf]
        %v494 = vld [vmem:[%s315 + $0x29c] sm:$0xf]
        %v495 = vld [vmem:[%s315 + $0x2a0] sm:$0xf]
        %v496 = vld [vmem:[%s315 + $0x2a4] sm:$0xf]
        %v497 = vld [vmem:[%s315 + $0x2a8] sm:$0xf]
        %v498 = vld [vmem:[%s315 + $0x2ac] sm:$0xf]
        %v499 = vld [vmem:[%s315 + $0x2b0] sm:$0xf]
        %v500 = vld [vmem:[%s315 + $0x2b4] sm:$0xf]
        %v501 = vld [vmem:[%s315 + $0x2b8] sm:$0xf]
        %v502 = vld [vmem:[%s315 + $0x2bc] sm:$0xf]
        %v503 = vld [vmem:[%s315 + $0x2c0] sm:$0xf]
        %v504 = vld [vmem:[%s315 + $0x2c4] sm:$0xf]
        %v505 = vld [vmem:[%s315 + $0x2c8] sm:$0xf]
        %v506 = vld [vmem:[%s315 + $0x2cc] sm:$0xf]
        %v507 = vld [vmem:[%s315 + $0x2d0] sm:$0xf]
        %v508 = vld [vmem:[%s315 + $0x2d4] sm:$0xf]
        %v509 = vld [vmem:[%s315 + $0x2d8] sm:$0xf]
        %v510 = vld [vmem:[%s315 + $0x2dc] sm:$0xf]
        %v511 = vld [vmem:[%s315 + $0x2e0] sm:$0xf]
        %v512 = vld [vmem:[%s315 + $0x2e4] sm:$0xf]
        %v513 = vld [vmem:[%s315 + $0x2e8] sm:$0xf]
        %v514 = vld [vmem:[%s315 + $0x2ec] sm:$0xf]
        %v515 = vld [vmem:[%s315 + $0x2f0] sm:$0xf]
        %v516 = vld [vmem:[%s315 + $0x2f4] sm:$0xf]
        %v517 = vld [vmem:[%s315 + $0x2f8] sm:$0xf]
        %v518 = vld [vmem:[%s315 + $0x2fc] sm:$0xf]
        %v519 = vld [vmem:[%s315 + $0x300] sm:$0xf]
        %v520 = vld [vmem:[%s315 + $0x304] sm:$0xf]
        %v521 = vld [vmem:[%s315 + $0x308] sm:$0xf]
        %v522 = vld [vmem:[%s315 + $0x30c] sm:$0xf]
        %v523 = vld [vmem:[%s315 + $0x310] sm:$0xf]
        %v524 = vld [vmem:[%s315 + $0x314] sm:$0xf]
        %v525 = vld [vmem:[%s315 + $0x318] sm:$0xf]
        %v526 = vld [vmem:[%s315 + $0x31c] sm:$0xf]
        %v527 = vld [vmem:[%s315 + $0x320] sm:$0xf]
        %v528 = vld [vmem:[%s315 + $0x324] sm:$0xf]
        %v529 = vld [vmem:[%s315 + $0x328] sm:$0xf]
        %v530 = vld [vmem:[%s315 + $0x32c] sm:$0xf]
        %v531 = vld [vmem:[%s315 + $0x330] sm:$0xf]
        %v532 = vld [vmem:[%s315 + $0x334] sm:$0xf]
        %v533 = vld [vmem:[%s315 + $0x338] sm:$0xf]
        %v534 = vld [vmem:[%s315 + $0x33c] sm:$0xf]
        %v535 = vld [vmem:[%s315 + $0x340] sm:$0xf]
        %v536 = vld [vmem:[%s315 + $0x344] sm:$0xf]
        %v537 = vld [vmem:[%s315 + $0x348] sm:$0xf]
        %v538 = vld [vmem:[%s315 + $0x34c] sm:$0xf]
        %v539 = vld [vmem:[%s315 + $0x350] sm:$0xf]
        %v540 = vld [vmem:[%s315 + $0x354] sm:$0xf]
        %v541 = vld [vmem:[%s315 + $0x358] sm:$0xf]
        %v542 = vld [vmem:[%s315 + $0x35c] sm:$0xf]
        %v543 = vld [vmem:[%s315 + $0x360] sm:$0xf]
        %v544 = vld [vmem:[%s315 + $0x364] sm:$0xf]
        %v545 = vld [vmem:[%s315 + $0x368] sm:$0xf]
        %v546 = vld [vmem:[%s315 + $0x36c] sm:$0xf]
        %v547 = vld [vmem:[%s315 + $0x370] sm:$0xf]
        %v548 = vld [vmem:[%s315 + $0x374] sm:$0xf]
        %v549 = vld [vmem:[%s315 + $0x378] sm:$0xf]
        %v550 = vld [vmem:[%s315 + $0x37c] sm:$0xf]
        %v551 = vld [vmem:[%s315 + $0x380] sm:$0xf]
        %v552 = vld [vmem:[%s315 + $0x384] sm:$0xf]
        %v553 = vld [vmem:[%s315 + $0x388] sm:$0xf]
        %v554 = vld [vmem:[%s315 + $0x38c] sm:$0xf]
        %v555 = vld [vmem:[%s315 + $0x390] sm:$0xf]
        %v556 = vld [vmem:[%s315 + $0x394] sm:$0xf]
        %v557 = vld [vmem:[%s315 + $0x398] sm:$0xf]
        %v558 = vld [vmem:[%s315 + $0x39c] sm:$0xf]
        %v559 = vld [vmem:[%s315 + $0x3a0] sm:$0xf]
        %v560 = vld [vmem:[%s315 + $0x3a4] sm:$0xf]
        %v561 = vld [vmem:[%s315 + $0x3a8] sm:$0xf]
        %v562 = vld [vmem:[%s315 + $0x3ac] sm:$0xf]
        %v563 = vld [vmem:[%s315 + $0x3b0] sm:$0xf]
        %v564 = vld [vmem:[%s315 + $0x3b4] sm:$0xf]
        %v565 = vld [vmem:[%s315 + $0x3b8] sm:$0xf]
        %v566 = vld [vmem:[%s315 + $0x3bc] sm:$0xf]
        %v567 = vld [vmem:[%s315 + $0x3c0] sm:$0xf]
        %v568 = vld [vmem:[%s315 + $0x3c4] sm:$0xf]
        %v569 = vld [vmem:[%s315 + $0x3c8] sm:$0xf]
        %v570 = vld [vmem:[%s315 + $0x3cc] sm:$0xf]
        %v571 = vld [vmem:[%s315 + $0x3d0] sm:$0xf]
        %v572 = vld [vmem:[%s315 + $0x3d4] sm:$0xf]
        %v573 = vld [vmem:[%s315 + $0x3d8] sm:$0xf]
        %v574 = vld [vmem:[%s315 + $0x3dc] sm:$0xf]
        %v575 = vld [vmem:[%s315 + $0x3e0] sm:$0xf]
        %v576 = vld [vmem:[%s315 + $0x3e4] sm:$0xf]
        %v577 = vld [vmem:[%s315 + $0x3e8] sm:$0xf]
        %v578 = vld [vmem:[%s315 + $0x3ec] sm:$0xf]
        %v579 = vld [vmem:[%s315 + $0x3f0] sm:$0xf]
        %v580 = vld [vmem:[%s315 + $0x3f4] sm:$0xf]
        %v581 = vld [vmem:[%s315 + $0x3f8] sm:$0xf]
        %v582 = vld [vmem:[%s315 + $0x3fc] sm:$0xf]
        %v839 = vunpack.c.l.b16 %v327
        %v840 = vunpack.c.l.b16 %v328
        %v841 = vunpack.c.l.b16 %v329
        %v842 = vunpack.c.l.b16 %v330
        %v843 = vunpack.c.l.b16 %v331
        %v844 = vunpack.c.l.b16 %v332
        %v845 = vunpack.c.l.b16 %v333
        %v846 = vunpack.c.l.b16 %v334
        %v847 = vunpack.c.l.b16 %v335
        %v848 = vunpack.c.l.b16 %v336
        %v849 = vunpack.c.l.b16 %v337
        %v850 = vunpack.c.l.b16 %v338
        %v851 = vunpack.c.l.b16 %v339
        %v852 = vunpack.c.l.b16 %v340
        %v853 = vunpack.c.l.b16 %v341
        %v854 = vunpack.c.l.b16 %v342
        %v855 = vunpack.c.l.b16 %v343
        %v856 = vunpack.c.l.b16 %v344
        %v857 = vunpack.c.l.b16 %v345
        %v858 = vunpack.c.l.b16 %v346
        %v859 = vunpack.c.l.b16 %v347
        %v860 = vunpack.c.l.b16 %v348
        %v861 = vunpack.c.l.b16 %v349
        %v862 = vunpack.c.l.b16 %v350
        %v863 = vunpack.c.l.b16 %v351
        %v864 = vunpack.c.l.b16 %v352
        %v865 = vunpack.c.l.b16 %v353
        %v866 = vunpack.c.l.b16 %v354
        %v867 = vunpack.c.l.b16 %v355
        %v868 = vunpack.c.l.b16 %v356
        %v869 = vunpack.c.l.b16 %v357
        %v870 = vunpack.c.l.b16 %v358
        %v871 = vunpack.c.l.b16 %v359
        %v872 = vunpack.c.l.b16 %v360
        %v873 = vunpack.c.l.b16 %v361
        %v874 = vunpack.c.l.b16 %v362
        %v875 = vunpack.c.l.b16 %v363
        %v876 = vunpack.c.l.b16 %v364
        %v877 = vunpack.c.l.b16 %v365
        %v878 = vunpack.c.l.b16 %v366
        %v879 = vunpack.c.l.b16 %v367
        %v880 = vunpack.c.l.b16 %v368
        %v881 = vunpack.c.l.b16 %v369
        %v882 = vunpack.c.l.b16 %v370
        %v883 = vunpack.c.l.b16 %v371
        %v884 = vunpack.c.l.b16 %v372
        %v885 = vunpack.c.l.b16 %v373
        %v886 = vunpack.c.l.b16 %v374
        %v887 = vunpack.c.l.b16 %v375
        %v888 = vunpack.c.l.b16 %v376
        %v889 = vunpack.c.l.b16 %v377
        %v890 = vunpack.c.l.b16 %v378
        %v891 = vunpack.c.l.b16 %v379
        %v892 = vunpack.c.l.b16 %v380
        %v893 = vunpack.c.l.b16 %v381
        %v894 = vunpack.c.l.b16 %v382
        %v895 = vunpack.c.l.b16 %v383
        %v896 = vunpack.c.l.b16 %v384
        %v897 = vunpack.c.l.b16 %v385
        %v898 = vunpack.c.l.b16 %v386
        %v899 = vunpack.c.l.b16 %v387
        %v900 = vunpack.c.l.b16 %v388
        %v901 = vunpack.c.l.b16 %v389
        %v902 = vunpack.c.l.b16 %v390
        %v903 = vunpack.c.l.b16 %v391
        %v904 = vunpack.c.l.b16 %v392
        %v905 = vunpack.c.l.b16 %v393
        %v906 = vunpack.c.l.b16 %v394
        %v907 = vunpack.c.l.b16 %v395
        %v908 = vunpack.c.l.b16 %v396
        %v909 = vunpack.c.l.b16 %v397
        %v910 = vunpack.c.l.b16 %v398
        %v911 = vunpack.c.l.b16 %v399
        %v912 = vunpack.c.l.b16 %v400
        %v913 = vunpack.c.l.b16 %v401
        %v914 = vunpack.c.l.b16 %v402
        %v915 = vunpack.c.l.b16 %v403
        %v916 = vunpack.c.l.b16 %v404
        %v917 = vunpack.c.l.b16 %v405
        %v918 = vunpack.c.l.b16 %v406
        %v919 = vunpack.c.l.b16 %v407
        %v920 = vunpack.c.l.b16 %v408
        %v921 = vunpack.c.l.b16 %v409
        %v922 = vunpack.c.l.b16 %v410
        %v923 = vunpack.c.l.b16 %v411
        %v924 = vunpack.c.l.b16 %v412
        %v925 = vunpack.c.l.b16 %v413
        %v926 = vunpack.c.l.b16 %v414
        %v927 = vunpack.c.l.b16 %v415
        %v928 = vunpack.c.l.b16 %v416
        %v929 = vunpack.c.l.b16 %v417
        %v930 = vunpack.c.l.b16 %v418
        %v931 = vunpack.c.l.b16 %v419
        %v932 = vunpack.c.l.b16 %v420
        %v933 = vunpack.c.l.b16 %v421
        %v934 = vunpack.c.l.b16 %v422
        %v935 = vunpack.c.l.b16 %v423
        %v936 = vunpack.c.l.b16 %v424
        %v937 = vunpack.c.l.b16 %v425
        %v938 = vunpack.c.l.b16 %v426
        %v939 = vunpack.c.l.b16 %v427
        %v940 = vunpack.c.l.b16 %v428
        %v941 = vunpack.c.l.b16 %v429
        %v942 = vunpack.c.l.b16 %v430
        %v943 = vunpack.c.l.b16 %v431
        %v944 = vunpack.c.l.b16 %v432
        %v945 = vunpack.c.l.b16 %v433
        %v946 = vunpack.c.l.b16 %v434
        %v947 = vunpack.c.l.b16 %v435
        %v948 = vunpack.c.l.b16 %v436
        %v949 = vunpack.c.l.b16 %v437
        %v950 = vunpack.c.l.b16 %v438
        %v951 = vunpack.c.l.b16 %v439
        %v952 = vunpack.c.l.b16 %v440
        %v953 = vunpack.c.l.b16 %v441
        %v954 = vunpack.c.l.b16 %v442
        %v955 = vunpack.c.l.b16 %v443
        %v956 = vunpack.c.l.b16 %v444
        %v957 = vunpack.c.l.b16 %v445
        %v958 = vunpack.c.l.b16 %v446
        %v959 = vunpack.c.l.b16 %v447
        %v960 = vunpack.c.l.b16 %v448
        %v961 = vunpack.c.l.b16 %v449
        %v962 = vunpack.c.l.b16 %v450
        %v963 = vunpack.c.l.b16 %v451
        %v964 = vunpack.c.l.b16 %v452
        %v965 = vunpack.c.l.b16 %v453
        %v966 = vunpack.c.l.b16 %v454
        %v967 = vunpack.c.l.b16 %v455
        %v968 = vunpack.c.l.b16 %v456
        %v969 = vunpack.c.l.b16 %v457
        %v970 = vunpack.c.l.b16 %v458
        %v971 = vunpack.c.l.b16 %v459
        %v972 = vunpack.c.l.b16 %v460
        %v973 = vunpack.c.l.b16 %v461
        %v974 = vunpack.c.l.b16 %v462
        %v975 = vunpack.c.l.b16 %v463
        %v976 = vunpack.c.l.b16 %v464
        %v977 = vunpack.c.l.b16 %v465
        %v978 = vunpack.c.l.b16 %v466
        %v979 = vunpack.c.l.b16 %v467
        %v980 = vunpack.c.l.b16 %v468
        %v981 = vunpack.c.l.b16 %v469
        %v982 = vunpack.c.l.b16 %v470
        %v983 = vunpack.c.l.b16 %v471
        %v984 = vunpack.c.l.b16 %v472
        %v985 = vunpack.c.l.b16 %v473
        %v986 = vunpack.c.l.b16 %v474
        %v987 = vunpack.c.l.b16 %v475
        %v988 = vunpack.c.l.b16 %v476
        %v989 = vunpack.c.l.b16 %v477
        %v990 = vunpack.c.l.b16 %v478
        %v991 = vunpack.c.l.b16 %v479
        %v992 = vunpack.c.l.b16 %v480
        %v993 = vunpack.c.l.b16 %v481
        %v994 = vunpack.c.l.b16 %v482
        %v995 = vunpack.c.l.b16 %v483
        %v996 = vunpack.c.l.b16 %v484
        %v997 = vunpack.c.l.b16 %v485
        %v998 = vunpack.c.l.b16 %v486
        %v999 = vunpack.c.l.b16 %v487
        %v1000 = vunpack.c.l.b16 %v488
        %v1001 = vunpack.c.l.b16 %v489
        %v1002 = vunpack.c.l.b16 %v490
        %v1003 = vunpack.c.l.b16 %v491
        %v1004 = vunpack.c.l.b16 %v492
        %v1005 = vunpack.c.l.b16 %v493
        %v1006 = vunpack.c.l.b16 %v494
        %v1007 = vunpack.c.l.b16 %v495
        %v1008 = vunpack.c.l.b16 %v496
        %v1009 = vunpack.c.l.b16 %v497
        %v1010 = vunpack.c.l.b16 %v498
        %v1011 = vunpack.c.l.b16 %v499
        %v1012 = vunpack.c.l.b16 %v500
        %v1013 = vunpack.c.l.b16 %v501
        %v1014 = vunpack.c.l.b16 %v502
        %v1015 = vunpack.c.l.b16 %v503
        %v1016 = vunpack.c.l.b16 %v504
        %v1017 = vunpack.c.l.b16 %v505
        %v1018 = vunpack.c.l.b16 %v506
        %v1019 = vunpack.c.l.b16 %v507
        %v1020 = vunpack.c.l.b16 %v508
        %v1021 = vunpack.c.l.b16 %v509
        %v1022 = vunpack.c.l.b16 %v510
        %v1023 = vunpack.c.l.b16 %v511
        %v1024 = vunpack.c.l.b16 %v512
        %v1025 = vunpack.c.l.b16 %v513
        %v1026 = vunpack.c.l.b16 %v514
        %v1027 = vunpack.c.l.b16 %v515
        %v1028 = vunpack.c.l.b16 %v516
        %v1029 = vunpack.c.l.b16 %v517
        %v1030 = vunpack.c.l.b16 %v518
        %v1031 = vunpack.c.l.b16 %v519
        %v1032 = vunpack.c.l.b16 %v520
        %v1033 = vunpack.c.l.b16 %v521
        %v1034 = vunpack.c.l.b16 %v522
        %v1035 = vunpack.c.l.b16 %v523
        %v1036 = vunpack.c.l.b16 %v524
        %v1037 = vunpack.c.l.b16 %v525
        %v1038 = vunpack.c.l.b16 %v526
        %v1039 = vunpack.c.l.b16 %v527
        %v1040 = vunpack.c.l.b16 %v528
        %v1041 = vunpack.c.l.b16 %v529
        %v1042 = vunpack.c.l.b16 %v530
        %v1043 = vunpack.c.l.b16 %v531
        %v1044 = vunpack.c.l.b16 %v532
        %v1045 = vunpack.c.l.b16 %v533
        %v1046 = vunpack.c.l.b16 %v534
        %v1047 = vunpack.c.l.b16 %v535
        %v1048 = vunpack.c.l.b16 %v536
        %v1049 = vunpack.c.l.b16 %v537
        %v1050 = vunpack.c.l.b16 %v538
        %v1051 = vunpack.c.l.b16 %v539
        %v1052 = vunpack.c.l.b16 %v540
        %v1053 = vunpack.c.l.b16 %v541
        %v1054 = vunpack.c.l.b16 %v542
        %v1055 = vunpack.c.l.b16 %v543
        %v1056 = vunpack.c.l.b16 %v544
        %v1057 = vunpack.c.l.b16 %v545
        %v1058 = vunpack.c.l.b16 %v546
        %v1059 = vunpack.c.l.b16 %v547
        %v1060 = vunpack.c.l.b16 %v548
        %v1061 = vunpack.c.l.b16 %v549
        %v1062 = vunpack.c.l.b16 %v550
        %v1063 = vunpack.c.l.b16 %v551
        %v1064 = vunpack.c.l.b16 %v552
        %v1065 = vunpack.c.l.b16 %v553
        %v1066 = vunpack.c.l.b16 %v554
        %v1067 = vunpack.c.l.b16 %v555
        %v1068 = vunpack.c.l.b16 %v556
        %v1069 = vunpack.c.l.b16 %v557
        %v1070 = vunpack.c.l.b16 %v558
        %v1071 = vunpack.c.l.b16 %v559
        %v1072 = vunpack.c.l.b16 %v560
        %v1073 = vunpack.c.l.b16 %v561
        %v1074 = vunpack.c.l.b16 %v562
        %v1075 = vunpack.c.l.b16 %v563
        %v1076 = vunpack.c.l.b16 %v564
        %v1077 = vunpack.c.l.b16 %v565
        %v1078 = vunpack.c.l.b16 %v566
        %v1079 = vunpack.c.l.b16 %v567
        %v1080 = vunpack.c.l.b16 %v568
        %v1081 = vunpack.c.l.b16 %v569
        %v1082 = vunpack.c.l.b16 %v570
        %v1083 = vunpack.c.l.b16 %v571
        %v1084 = vunpack.c.l.b16 %v572
        %v1085 = vunpack.c.l.b16 %v573
        %v1086 = vunpack.c.l.b16 %v574
        %v1087 = vunpack.c.l.b16 %v575
        %v1088 = vunpack.c.l.b16 %v576
        %v1089 = vunpack.c.l.b16 %v577
        %v1090 = vunpack.c.l.b16 %v578
        %v1091 = vunpack.c.l.b16 %v579
        %v1092 = vunpack.c.l.b16 %v580
        %v1093 = vunpack.c.l.b16 %v581
        %v1094 = vunpack.c.l.b16 %v582
        %v1095 = vpack.c.b16 %v840, %v839
        %v1096 = vpack.c.b16 %v842, %v841
        %v1097 = vpack.c.b16 %v844, %v843
        %v1098 = vpack.c.b16 %v846, %v845
        %v1099 = vpack.c.b16 %v848, %v847
        %v1100 = vpack.c.b16 %v850, %v849
        %v1101 = vpack.c.b16 %v852, %v851
        %v1102 = vpack.c.b16 %v854, %v853
        %v1103 = vpack.c.b16 %v856, %v855
        %v1104 = vpack.c.b16 %v858, %v857
        %v1105 = vpack.c.b16 %v860, %v859
        %v1106 = vpack.c.b16 %v862, %v861
        %v1107 = vpack.c.b16 %v864, %v863
        %v1108 = vpack.c.b16 %v866, %v865
        %v1109 = vpack.c.b16 %v868, %v867
        %v1110 = vpack.c.b16 %v870, %v869
        %v1111 = vpack.c.b16 %v872, %v871
        %v1112 = vpack.c.b16 %v874, %v873
        %v1113 = vpack.c.b16 %v876, %v875
        %v1114 = vpack.c.b16 %v878, %v877
        %v1115 = vpack.c.b16 %v880, %v879
        %v1116 = vpack.c.b16 %v882, %v881
        %v1117 = vpack.c.b16 %v884, %v883
        %v1118 = vpack.c.b16 %v886, %v885
        %v1119 = vpack.c.b16 %v888, %v887
        %v1120 = vpack.c.b16 %v890, %v889
        %v1121 = vpack.c.b16 %v892, %v891
        %v1122 = vpack.c.b16 %v894, %v893
        %v1123 = vpack.c.b16 %v896, %v895
        %v1124 = vpack.c.b16 %v898, %v897
        %v1125 = vpack.c.b16 %v900, %v899
        %v1126 = vpack.c.b16 %v902, %v901
        %v1127 = vpack.c.b16 %v904, %v903
        %v1128 = vpack.c.b16 %v906, %v905
        %v1129 = vpack.c.b16 %v908, %v907
        %v1130 = vpack.c.b16 %v910, %v909
        %v1131 = vpack.c.b16 %v912, %v911
        %v1132 = vpack.c.b16 %v914, %v913
        %v1133 = vpack.c.b16 %v916, %v915
        %v1134 = vpack.c.b16 %v918, %v917
        %v1135 = vpack.c.b16 %v920, %v919
        %v1136 = vpack.c.b16 %v922, %v921
        %v1137 = vpack.c.b16 %v924, %v923
        %v1138 = vpack.c.b16 %v926, %v925
        %v1139 = vpack.c.b16 %v928, %v927
        %v1140 = vpack.c.b16 %v930, %v929
        %v1141 = vpack.c.b16 %v932, %v931
        %v1142 = vpack.c.b16 %v934, %v933
        %v1143 = vpack.c.b16 %v936, %v935
        %v1144 = vpack.c.b16 %v938, %v937
        %v1145 = vpack.c.b16 %v940, %v939
        %v1146 = vpack.c.b16 %v942, %v941
        %v1147 = vpack.c.b16 %v944, %v943
        %v1148 = vpack.c.b16 %v946, %v945
        %v1149 = vpack.c.b16 %v948, %v947
        %v1150 = vpack.c.b16 %v950, %v949
        %v1151 = vpack.c.b16 %v952, %v951
        %v1152 = vpack.c.b16 %v954, %v953
        %v1153 = vpack.c.b16 %v956, %v955
        %v1154 = vpack.c.b16 %v958, %v957
        %v1155 = vpack.c.b16 %v960, %v959
        %v1156 = vpack.c.b16 %v962, %v961
        %v1157 = vpack.c.b16 %v964, %v963
        %v1158 = vpack.c.b16 %v966, %v965
        %v1159 = vpack.c.b16 %v968, %v967
        %v1160 = vpack.c.b16 %v970, %v969
        %v1161 = vpack.c.b16 %v972, %v971
        %v1162 = vpack.c.b16 %v974, %v973
        %v1163 = vpack.c.b16 %v976, %v975
        %v1164 = vpack.c.b16 %v978, %v977
        %v1165 = vpack.c.b16 %v980, %v979
        %v1166 = vpack.c.b16 %v982, %v981
        %v1167 = vpack.c.b16 %v984, %v983
        %v1168 = vpack.c.b16 %v986, %v985
        %v1169 = vpack.c.b16 %v988, %v987
        %v1170 = vpack.c.b16 %v990, %v989
        %v1171 = vpack.c.b16 %v992, %v991
        %v1172 = vpack.c.b16 %v994, %v993
        %v1173 = vpack.c.b16 %v996, %v995
        %v1174 = vpack.c.b16 %v998, %v997
        %v1175 = vpack.c.b16 %v1000, %v999
        %v1176 = vpack.c.b16 %v1002, %v1001
        %v1177 = vpack.c.b16 %v1004, %v1003
        %v1178 = vpack.c.b16 %v1006, %v1005
        %v1179 = vpack.c.b16 %v1008, %v1007
        %v1180 = vpack.c.b16 %v1010, %v1009
        %v1181 = vpack.c.b16 %v1012, %v1011
        %v1182 = vpack.c.b16 %v1014, %v1013
        %v1183 = vpack.c.b16 %v1016, %v1015
        %v1184 = vpack.c.b16 %v1018, %v1017
        %v1185 = vpack.c.b16 %v1020, %v1019
        %v1186 = vpack.c.b16 %v1022, %v1021
        %v1187 = vpack.c.b16 %v1024, %v1023
        %v1188 = vpack.c.b16 %v1026, %v1025
        %v1189 = vpack.c.b16 %v1028, %v1027
        %v1190 = vpack.c.b16 %v1030, %v1029
        %v1191 = vpack.c.b16 %v1032, %v1031
        %v1192 = vpack.c.b16 %v1034, %v1033
        %v1193 = vpack.c.b16 %v1036, %v1035
        %v1194 = vpack.c.b16 %v1038, %v1037
        %v1195 = vpack.c.b16 %v1040, %v1039
        %v1196 = vpack.c.b16 %v1042, %v1041
        %v1197 = vpack.c.b16 %v1044, %v1043
        %v1198 = vpack.c.b16 %v1046, %v1045
        %v1199 = vpack.c.b16 %v1048, %v1047
        %v1200 = vpack.c.b16 %v1050, %v1049
        %v1201 = vpack.c.b16 %v1052, %v1051
        %v1202 = vpack.c.b16 %v1054, %v1053
        %v1203 = vpack.c.b16 %v1056, %v1055
        %v1204 = vpack.c.b16 %v1058, %v1057
        %v1205 = vpack.c.b16 %v1060, %v1059
        %v1206 = vpack.c.b16 %v1062, %v1061
        %v1207 = vpack.c.b16 %v1064, %v1063
        %v1208 = vpack.c.b16 %v1066, %v1065
        %v1209 = vpack.c.b16 %v1068, %v1067
        %v1210 = vpack.c.b16 %v1070, %v1069
        %v1211 = vpack.c.b16 %v1072, %v1071
        %v1212 = vpack.c.b16 %v1074, %v1073
        %v1213 = vpack.c.b16 %v1076, %v1075
        %v1214 = vpack.c.b16 %v1078, %v1077
        %v1215 = vpack.c.b16 %v1080, %v1079
        %v1216 = vpack.c.b16 %v1082, %v1081
        %v1217 = vpack.c.b16 %v1084, %v1083
        %v1218 = vpack.c.b16 %v1086, %v1085
        %v1219 = vpack.c.b16 %v1088, %v1087
        %v1220 = vpack.c.b16 %v1090, %v1089
        %v1221 = vpack.c.b16 %v1092, %v1091
        %v1222 = vpack.c.b16 %v1094, %v1093
        %v1227 = vunpack.c.l.b16 %v323
        %v1228 = vunpack.c.l.b16 %v324
        %v1229 = vunpack.c.l.b16 %v325
        %v1230 = vunpack.c.l.b16 %v326
        %v1231 = vpack.c.b16 %v1228, %v1227
        %v1232 = vpack.c.b16 %v1230, %v1229
        %vm1235 = vcmask 261120
        %v1237 = vsel %vm1235, %v1095, 0
        %v1240 = vsel %vm1235, %v1096, 0
        %v1243 = vsel %vm1235, %v1097, 0
        %v1246 = vsel %vm1235, %v1098, 0
        %v1249 = vsel %vm1235, %v1099, 0
        %v1252 = vsel %vm1235, %v1100, 0
        %v1255 = vsel %vm1235, %v1101, 0
        %v1258 = vsel %vm1235, %v1102, 0
        %v1261 = vsel %vm1235, %v1103, 0
        %v1264 = vsel %vm1235, %v1104, 0
        %v1267 = vsel %vm1235, %v1105, 0
        %v1270 = vsel %vm1235, %v1106, 0
        %v1273 = vsel %vm1235, %v1107, 0
        %v1276 = vsel %vm1235, %v1108, 0
        %v1279 = vsel %vm1235, %v1109, 0
        %v1282 = vsel %vm1235, %v1110, 0
        %v1285 = vsel %vm1235, %v1111, 0
        %v1288 = vsel %vm1235, %v1112, 0
        %v1291 = vsel %vm1235, %v1113, 0
        %v1294 = vsel %vm1235, %v1114, 0
        %v1297 = vsel %vm1235, %v1115, 0
        %v1300 = vsel %vm1235, %v1116, 0
        %v1303 = vsel %vm1235, %v1117, 0
        %v1306 = vsel %vm1235, %v1118, 0
        %v1309 = vsel %vm1235, %v1119, 0
        %v1312 = vsel %vm1235, %v1120, 0
        %v1315 = vsel %vm1235, %v1121, 0
        %v1318 = vsel %vm1235, %v1122, 0
        %v1321 = vsel %vm1235, %v1123, 0
        %v1324 = vsel %vm1235, %v1124, 0
        %v1327 = vsel %vm1235, %v1125, 0
        %v1330 = vsel %vm1235, %v1126, 0
        %v1333 = vsel %vm1235, %v1127, 0
        %v1336 = vsel %vm1235, %v1128, 0
        %v1339 = vsel %vm1235, %v1129, 0
        %v1342 = vsel %vm1235, %v1130, 0
        %v1345 = vsel %vm1235, %v1131, 0
        %v1348 = vsel %vm1235, %v1132, 0
        %v1351 = vsel %vm1235, %v1133, 0
        %v1354 = vsel %vm1235, %v1134, 0
        %v1357 = vsel %vm1235, %v1135, 0
        %v1360 = vsel %vm1235, %v1136, 0
        %v1363 = vsel %vm1235, %v1137, 0
        %v1366 = vsel %vm1235, %v1138, 0
        %v1369 = vsel %vm1235, %v1139, 0
        %v1372 = vsel %vm1235, %v1140, 0
        %v1375 = vsel %vm1235, %v1141, 0
        %v1378 = vsel %vm1235, %v1142, 0
        %v1381 = vsel %vm1235, %v1143, 0
        %v1384 = vsel %vm1235, %v1144, 0
        %v1387 = vsel %vm1235, %v1145, 0
        %v1390 = vsel %vm1235, %v1146, 0
        %v1393 = vsel %vm1235, %v1147, 0
        %v1396 = vsel %vm1235, %v1148, 0
        %v1399 = vsel %vm1235, %v1149, 0
        %v1402 = vsel %vm1235, %v1150, 0
        %v1405 = vsel %vm1235, %v1151, 0
        %v1408 = vsel %vm1235, %v1152, 0
        %v1411 = vsel %vm1235, %v1153, 0
        %v1414 = vsel %vm1235, %v1154, 0
        %v1417 = vsel %vm1235, %v1155, 0
        %v1420 = vsel %vm1235, %v1156, 0
        %v1423 = vsel %vm1235, %v1157, 0
        %v1426 = vsel %vm1235, %v1158, 0
        %v1429 = vsel %vm1235, %v1159, 0
        %v1432 = vsel %vm1235, %v1160, 0
        %v1435 = vsel %vm1235, %v1161, 0
        %v1438 = vsel %vm1235, %v1162, 0
        %v1441 = vsel %vm1235, %v1163, 0
        %v1444 = vsel %vm1235, %v1164, 0
        %v1447 = vsel %vm1235, %v1165, 0
        %v1450 = vsel %vm1235, %v1166, 0
        %v1453 = vsel %vm1235, %v1167, 0
        %v1456 = vsel %vm1235, %v1168, 0
        %v1459 = vsel %vm1235, %v1169, 0
        %v1462 = vsel %vm1235, %v1170, 0
        %v1465 = vsel %vm1235, %v1171, 0
        %v1468 = vsel %vm1235, %v1172, 0
        %v1471 = vsel %vm1235, %v1173, 0
        %v1474 = vsel %vm1235, %v1174, 0
        %v1477 = vsel %vm1235, %v1175, 0
        %v1480 = vsel %vm1235, %v1176, 0
        %v1483 = vsel %vm1235, %v1177, 0
        %v1486 = vsel %vm1235, %v1178, 0
        %v1489 = vsel %vm1235, %v1179, 0
        %v1492 = vsel %vm1235, %v1180, 0
        %v1495 = vsel %vm1235, %v1181, 0
        %v1498 = vsel %vm1235, %v1182, 0
        %v1501 = vsel %vm1235, %v1183, 0
        %v1504 = vsel %vm1235, %v1184, 0
        %v1507 = vsel %vm1235, %v1185, 0
        %v1510 = vsel %vm1235, %v1186, 0
        %v1513 = vsel %vm1235, %v1187, 0
        %v1516 = vsel %vm1235, %v1188, 0
        %v1519 = vsel %vm1235, %v1189, 0
        %v1522 = vsel %vm1235, %v1190, 0
        %v1525 = vsel %vm1235, %v1191, 0
        %v1528 = vsel %vm1235, %v1192, 0
        %v1531 = vsel %vm1235, %v1193, 0
        %v1534 = vsel %vm1235, %v1194, 0
        %v1537 = vsel %vm1235, %v1195, 0
        %v1540 = vsel %vm1235, %v1196, 0
        %v1543 = vsel %vm1235, %v1197, 0
        %v1546 = vsel %vm1235, %v1198, 0
        %v1549 = vsel %vm1235, %v1199, 0
        %v1552 = vsel %vm1235, %v1200, 0
        %v1555 = vsel %vm1235, %v1201, 0
        %v1558 = vsel %vm1235, %v1202, 0
        %v1561 = vsel %vm1235, %v1203, 0
        %v1564 = vsel %vm1235, %v1204, 0
        %v1567 = vsel %vm1235, %v1205, 0
        %v1570 = vsel %vm1235, %v1206, 0
        %v1573 = vsel %vm1235, %v1207, 0
        %v1576 = vsel %vm1235, %v1208, 0
        %v1579 = vsel %vm1235, %v1209, 0
        %v1582 = vsel %vm1235, %v1210, 0
        %v1585 = vsel %vm1235, %v1211, 0
        %v1588 = vsel %vm1235, %v1212, 0
        %v1591 = vsel %vm1235, %v1213, 0
        %v1594 = vsel %vm1235, %v1214, 0
        %v1597 = vsel %vm1235, %v1215, 0
        %v1600 = vsel %vm1235, %v1216, 0
        %v1603 = vsel %vm1235, %v1217, 0
        %v1606 = vsel %vm1235, %v1218, 0
        %v1609 = vsel %vm1235, %v1219, 0
        %v1612 = vsel %vm1235, %v1220, 0
        %v1615 = vsel %vm1235, %v1221, 0
        %v1618 = vsel %vm1235, %v1222, 0
        %1620 = vmatpush.bf16.msra.mxu0 0
        %1621 = vmatpush.bf16.msra.mxu0 0
        %1622 = vmatpush.bf16.msra.mxu0 0
        %1623 = vmatpush.bf16.msra.mxu0 0
        %1624 = vmatpush.bf16.msra.mxu0 0
        %1625 = vmatpush.bf16.msra.mxu0 0
        %1626 = vmatpush.bf16.msra.mxu0 %v1232
        %1627 = vmatpush.bf16.msra.mxu0 %v1231
        %1628 = vmatmul.bf16.gmra.mxu0 %v1237
        %v1629 = vpop.f32.mrf.mxu0
        %v1630 = vadd.f32 0.0, %v1629
        %v1631 = vpop.f32.mrf.mxu0
        %v1632 = vadd.f32 0.0, %v1631
        %1633 = vmatmul.bf16.gmra.mxu0 %v1240
        %v1634 = vpop.f32.mrf.mxu0
        %v1635 = vadd.f32 0.0, %v1634
        %v1636 = vpop.f32.mrf.mxu0
        %v1637 = vadd.f32 0.0, %v1636
        %1638 = vmatmul.bf16.gmra.mxu0 %v1243
        %v1639 = vpop.f32.mrf.mxu0
        %v1640 = vadd.f32 0.0, %v1639
        %v1641 = vpop.f32.mrf.mxu0
        %v1642 = vadd.f32 0.0, %v1641
        %1643 = vmatmul.bf16.gmra.mxu0 %v1246
        %v1644 = vpop.f32.mrf.mxu0
        %v1645 = vadd.f32 0.0, %v1644
        %v1646 = vpop.f32.mrf.mxu0
        %v1647 = vadd.f32 0.0, %v1646
        %1648 = vmatmul.bf16.gmra.mxu0 %v1249
        %v1649 = vpop.f32.mrf.mxu0
        %v1650 = vadd.f32 0.0, %v1649
        %v1651 = vpop.f32.mrf.mxu0
        %v1652 = vadd.f32 0.0, %v1651
        %1653 = vmatmul.bf16.gmra.mxu0 %v1252
        %v1654 = vpop.f32.mrf.mxu0
        %v1655 = vadd.f32 0.0, %v1654
        %v1656 = vpop.f32.mrf.mxu0
        %v1657 = vadd.f32 0.0, %v1656
        %1658 = vmatmul.bf16.gmra.mxu0 %v1255
        %v1659 = vpop.f32.mrf.mxu0
        %v1660 = vadd.f32 0.0, %v1659
        %v1661 = vpop.f32.mrf.mxu0
        %v1662 = vadd.f32 0.0, %v1661
        %1663 = vmatmul.bf16.gmra.mxu0 %v1258
        %v1664 = vpop.f32.mrf.mxu0
        %v1665 = vadd.f32 0.0, %v1664
        %v1666 = vpop.f32.mrf.mxu0
        %v1667 = vadd.f32 0.0, %v1666
        %1668 = vmatmul.bf16.gmra.mxu0 %v1261
        %v1669 = vpop.f32.mrf.mxu0
        %v1670 = vadd.f32 0.0, %v1669
        %v1671 = vpop.f32.mrf.mxu0
        %v1672 = vadd.f32 0.0, %v1671
        %1673 = vmatmul.bf16.gmra.mxu0 %v1264
        %v1674 = vpop.f32.mrf.mxu0
        %v1675 = vadd.f32 0.0, %v1674
        %v1676 = vpop.f32.mrf.mxu0
        %v1677 = vadd.f32 0.0, %v1676
        %1678 = vmatmul.bf16.gmra.mxu0 %v1267
        %v1679 = vpop.f32.mrf.mxu0
        %v1680 = vadd.f32 0.0, %v1679
        %v1681 = vpop.f32.mrf.mxu0
        %v1682 = vadd.f32 0.0, %v1681
        %1683 = vmatmul.bf16.gmra.mxu0 %v1270
        %v1684 = vpop.f32.mrf.mxu0
        %v1685 = vadd.f32 0.0, %v1684
        %v1686 = vpop.f32.mrf.mxu0
        %v1687 = vadd.f32 0.0, %v1686
        %1688 = vmatmul.bf16.gmra.mxu0 %v1273
        %v1689 = vpop.f32.mrf.mxu0
        %v1690 = vadd.f32 0.0, %v1689
        %v1691 = vpop.f32.mrf.mxu0
        %v1692 = vadd.f32 0.0, %v1691
        %1693 = vmatmul.bf16.gmra.mxu0 %v1276
        %v1694 = vpop.f32.mrf.mxu0
        %v1695 = vadd.f32 0.0, %v1694
        %v1696 = vpop.f32.mrf.mxu0
        %v1697 = vadd.f32 0.0, %v1696
        %1698 = vmatmul.bf16.gmra.mxu0 %v1279
        %v1699 = vpop.f32.mrf.mxu0
        %v1700 = vadd.f32 0.0, %v1699
        %v1701 = vpop.f32.mrf.mxu0
        %v1702 = vadd.f32 0.0, %v1701
        %1703 = vmatmul.bf16.gmra.mxu0 %v1282
        %v1704 = vpop.f32.mrf.mxu0
        %v1705 = vadd.f32 0.0, %v1704
        %v1706 = vpop.f32.mrf.mxu0
        %v1707 = vadd.f32 0.0, %v1706
        %1708 = vmatmul.bf16.gmra.mxu0 %v1285
        %v1709 = vpop.f32.mrf.mxu0
        %v1710 = vadd.f32 0.0, %v1709
        %v1711 = vpop.f32.mrf.mxu0
        %v1712 = vadd.f32 0.0, %v1711
        %1713 = vmatmul.bf16.gmra.mxu0 %v1288
        %v1714 = vpop.f32.mrf.mxu0
        %v1715 = vadd.f32 0.0, %v1714
        %v1716 = vpop.f32.mrf.mxu0
        %v1717 = vadd.f32 0.0, %v1716
        %1718 = vmatmul.bf16.gmra.mxu0 %v1291
        %v1719 = vpop.f32.mrf.mxu0
        %v1720 = vadd.f32 0.0, %v1719
        %v1721 = vpop.f32.mrf.mxu0
        %v1722 = vadd.f32 0.0, %v1721
        %1723 = vmatmul.bf16.gmra.mxu0 %v1294
        %v1724 = vpop.f32.mrf.mxu0
        %v1725 = vadd.f32 0.0, %v1724
        %v1726 = vpop.f32.mrf.mxu0
        %v1727 = vadd.f32 0.0, %v1726
        %1728 = vmatmul.bf16.gmra.mxu0 %v1297
        %v1729 = vpop.f32.mrf.mxu0
        %v1730 = vadd.f32 0.0, %v1729
        %v1731 = vpop.f32.mrf.mxu0
        %v1732 = vadd.f32 0.0, %v1731
        %1733 = vmatmul.bf16.gmra.mxu0 %v1300
        %v1734 = vpop.f32.mrf.mxu0
        %v1735 = vadd.f32 0.0, %v1734
        %v1736 = vpop.f32.mrf.mxu0
        %v1737 = vadd.f32 0.0, %v1736
        %1738 = vmatmul.bf16.gmra.mxu0 %v1303
        %v1739 = vpop.f32.mrf.mxu0
        %v1740 = vadd.f32 0.0, %v1739
        %v1741 = vpop.f32.mrf.mxu0
        %v1742 = vadd.f32 0.0, %v1741
        %1743 = vmatmul.bf16.gmra.mxu0 %v1306
        %v1744 = vpop.f32.mrf.mxu0
        %v1745 = vadd.f32 0.0, %v1744
        %v1746 = vpop.f32.mrf.mxu0
        %v1747 = vadd.f32 0.0, %v1746
        %1748 = vmatmul.bf16.gmra.mxu0 %v1309
        %v1749 = vpop.f32.mrf.mxu0
        %v1750 = vadd.f32 0.0, %v1749
        %v1751 = vpop.f32.mrf.mxu0
        %v1752 = vadd.f32 0.0, %v1751
        %1753 = vmatmul.bf16.gmra.mxu0 %v1312
        %v1754 = vpop.f32.mrf.mxu0
        %v1755 = vadd.f32 0.0, %v1754
        %v1756 = vpop.f32.mrf.mxu0
        %v1757 = vadd.f32 0.0, %v1756
        %1758 = vmatmul.bf16.gmra.mxu0 %v1315
        %v1759 = vpop.f32.mrf.mxu0
        %v1760 = vadd.f32 0.0, %v1759
        %v1761 = vpop.f32.mrf.mxu0
        %v1762 = vadd.f32 0.0, %v1761
        %1763 = vmatmul.bf16.gmra.mxu0 %v1318
        %v1764 = vpop.f32.mrf.mxu0
        %v1765 = vadd.f32 0.0, %v1764
        %v1766 = vpop.f32.mrf.mxu0
        %v1767 = vadd.f32 0.0, %v1766
        %1768 = vmatmul.bf16.gmra.mxu0 %v1321
        %v1769 = vpop.f32.mrf.mxu0
        %v1770 = vadd.f32 0.0, %v1769
        %v1771 = vpop.f32.mrf.mxu0
        %v1772 = vadd.f32 0.0, %v1771
        %1773 = vmatmul.bf16.gmra.mxu0 %v1324
        %v1774 = vpop.f32.mrf.mxu0
        %v1775 = vadd.f32 0.0, %v1774
        %v1776 = vpop.f32.mrf.mxu0
        %v1777 = vadd.f32 0.0, %v1776
        %1778 = vmatmul.bf16.gmra.mxu0 %v1327
        %v1779 = vpop.f32.mrf.mxu0
        %v1780 = vadd.f32 0.0, %v1779
        %v1781 = vpop.f32.mrf.mxu0
        %v1782 = vadd.f32 0.0, %v1781
        %1783 = vmatmul.bf16.gmra.mxu0 %v1330
        %v1784 = vpop.f32.mrf.mxu0
        %v1785 = vadd.f32 0.0, %v1784
        %v1786 = vpop.f32.mrf.mxu0
        %v1787 = vadd.f32 0.0, %v1786
        %1788 = vmatmul.bf16.gmra.mxu0 %v1333
        %v1789 = vpop.f32.mrf.mxu0
        %v1790 = vadd.f32 0.0, %v1789
        %v1791 = vpop.f32.mrf.mxu0
        %v1792 = vadd.f32 0.0, %v1791
        %1793 = vmatmul.bf16.gmra.mxu0 %v1336
        %v1794 = vpop.f32.mrf.mxu0
        %v1795 = vadd.f32 0.0, %v1794
        %v1796 = vpop.f32.mrf.mxu0
        %v1797 = vadd.f32 0.0, %v1796
        %1798 = vmatmul.bf16.gmra.mxu0 %v1339
        %v1799 = vpop.f32.mrf.mxu0
        %v1800 = vadd.f32 0.0, %v1799
        %v1801 = vpop.f32.mrf.mxu0
        %v1802 = vadd.f32 0.0, %v1801
        %1803 = vmatmul.bf16.gmra.mxu0 %v1342
        %v1804 = vpop.f32.mrf.mxu0
        %v1805 = vadd.f32 0.0, %v1804
        %v1806 = vpop.f32.mrf.mxu0
        %v1807 = vadd.f32 0.0, %v1806
        %1808 = vmatmul.bf16.gmra.mxu0 %v1345
        %v1809 = vpop.f32.mrf.mxu0
        %v1810 = vadd.f32 0.0, %v1809
        %v1811 = vpop.f32.mrf.mxu0
        %v1812 = vadd.f32 0.0, %v1811
        %1813 = vmatmul.bf16.gmra.mxu0 %v1348
        %v1814 = vpop.f32.mrf.mxu0
        %v1815 = vadd.f32 0.0, %v1814
        %v1816 = vpop.f32.mrf.mxu0
        %v1817 = vadd.f32 0.0, %v1816
        %1818 = vmatmul.bf16.gmra.mxu0 %v1351
        %v1819 = vpop.f32.mrf.mxu0
        %v1820 = vadd.f32 0.0, %v1819
        %v1821 = vpop.f32.mrf.mxu0
        %v1822 = vadd.f32 0.0, %v1821
        %1823 = vmatmul.bf16.gmra.mxu0 %v1354
        %v1824 = vpop.f32.mrf.mxu0
        %v1825 = vadd.f32 0.0, %v1824
        %v1826 = vpop.f32.mrf.mxu0
        %v1827 = vadd.f32 0.0, %v1826
        %1828 = vmatmul.bf16.gmra.mxu0 %v1357
        %v1829 = vpop.f32.mrf.mxu0
        %v1830 = vadd.f32 0.0, %v1829
        %v1831 = vpop.f32.mrf.mxu0
        %v1832 = vadd.f32 0.0, %v1831
        %1833 = vmatmul.bf16.gmra.mxu0 %v1360
        %v1834 = vpop.f32.mrf.mxu0
        %v1835 = vadd.f32 0.0, %v1834
        %v1836 = vpop.f32.mrf.mxu0
        %v1837 = vadd.f32 0.0, %v1836
        %1838 = vmatmul.bf16.gmra.mxu0 %v1363
        %v1839 = vpop.f32.mrf.mxu0
        %v1840 = vadd.f32 0.0, %v1839
        %v1841 = vpop.f32.mrf.mxu0
        %v1842 = vadd.f32 0.0, %v1841
        %1843 = vmatmul.bf16.gmra.mxu0 %v1366
        %v1844 = vpop.f32.mrf.mxu0
        %v1845 = vadd.f32 0.0, %v1844
        %v1846 = vpop.f32.mrf.mxu0
        %v1847 = vadd.f32 0.0, %v1846
        %1848 = vmatmul.bf16.gmra.mxu0 %v1369
        %v1849 = vpop.f32.mrf.mxu0
        %v1850 = vadd.f32 0.0, %v1849
        %v1851 = vpop.f32.mrf.mxu0
        %v1852 = vadd.f32 0.0, %v1851
        %1853 = vmatmul.bf16.gmra.mxu0 %v1372
        %v1854 = vpop.f32.mrf.mxu0
        %v1855 = vadd.f32 0.0, %v1854
        %v1856 = vpop.f32.mrf.mxu0
        %v1857 = vadd.f32 0.0, %v1856
        %1858 = vmatmul.bf16.gmra.mxu0 %v1375
        %v1859 = vpop.f32.mrf.mxu0
        %v1860 = vadd.f32 0.0, %v1859
        %v1861 = vpop.f32.mrf.mxu0
        %v1862 = vadd.f32 0.0, %v1861
        %1863 = vmatmul.bf16.gmra.mxu0 %v1378
        %v1864 = vpop.f32.mrf.mxu0
        %v1865 = vadd.f32 0.0, %v1864
        %v1866 = vpop.f32.mrf.mxu0
        %v1867 = vadd.f32 0.0, %v1866
        %1868 = vmatmul.bf16.gmra.mxu0 %v1381
        %v1869 = vpop.f32.mrf.mxu0
        %v1870 = vadd.f32 0.0, %v1869
        %v1871 = vpop.f32.mrf.mxu0
        %v1872 = vadd.f32 0.0, %v1871
        %1873 = vmatmul.bf16.gmra.mxu0 %v1384
        %v1874 = vpop.f32.mrf.mxu0
        %v1875 = vadd.f32 0.0, %v1874
        %v1876 = vpop.f32.mrf.mxu0
        %v1877 = vadd.f32 0.0, %v1876
        %1878 = vmatmul.bf16.gmra.mxu0 %v1387
        %v1879 = vpop.f32.mrf.mxu0
        %v1880 = vadd.f32 0.0, %v1879
        %v1881 = vpop.f32.mrf.mxu0
        %v1882 = vadd.f32 0.0, %v1881
        %1883 = vmatmul.bf16.gmra.mxu0 %v1390
        %v1884 = vpop.f32.mrf.mxu0
        %v1885 = vadd.f32 0.0, %v1884
        %v1886 = vpop.f32.mrf.mxu0
        %v1887 = vadd.f32 0.0, %v1886
        %1888 = vmatmul.bf16.gmra.mxu0 %v1393
        %v1889 = vpop.f32.mrf.mxu0
        %v1890 = vadd.f32 0.0, %v1889
        %v1891 = vpop.f32.mrf.mxu0
        %v1892 = vadd.f32 0.0, %v1891
        %1893 = vmatmul.bf16.gmra.mxu0 %v1396
        %v1894 = vpop.f32.mrf.mxu0
        %v1895 = vadd.f32 0.0, %v1894
        %v1896 = vpop.f32.mrf.mxu0
        %v1897 = vadd.f32 0.0, %v1896
        %1898 = vmatmul.bf16.gmra.mxu0 %v1399
        %v1899 = vpop.f32.mrf.mxu0
        %v1900 = vadd.f32 0.0, %v1899
        %v1901 = vpop.f32.mrf.mxu0
        %v1902 = vadd.f32 0.0, %v1901
        %1903 = vmatmul.bf16.gmra.mxu0 %v1402
        %v1904 = vpop.f32.mrf.mxu0
        %v1905 = vadd.f32 0.0, %v1904
        %v1906 = vpop.f32.mrf.mxu0
        %v1907 = vadd.f32 0.0, %v1906
        %1908 = vmatmul.bf16.gmra.mxu0 %v1405
        %v1909 = vpop.f32.mrf.mxu0
        %v1910 = vadd.f32 0.0, %v1909
        %v1911 = vpop.f32.mrf.mxu0
        %v1912 = vadd.f32 0.0, %v1911
        %1913 = vmatmul.bf16.gmra.mxu0 %v1408
        %v1914 = vpop.f32.mrf.mxu0
        %v1915 = vadd.f32 0.0, %v1914
        %v1916 = vpop.f32.mrf.mxu0
        %v1917 = vadd.f32 0.0, %v1916
        %1918 = vmatmul.bf16.gmra.mxu0 %v1411
        %v1919 = vpop.f32.mrf.mxu0
        %v1920 = vadd.f32 0.0, %v1919
        %v1921 = vpop.f32.mrf.mxu0
        %v1922 = vadd.f32 0.0, %v1921
        %1923 = vmatmul.bf16.gmra.mxu0 %v1414
        %v1924 = vpop.f32.mrf.mxu0
        %v1925 = vadd.f32 0.0, %v1924
        %v1926 = vpop.f32.mrf.mxu0
        %v1927 = vadd.f32 0.0, %v1926
        %1928 = vmatmul.bf16.gmra.mxu0 %v1417
        %v1929 = vpop.f32.mrf.mxu0
        %v1930 = vadd.f32 0.0, %v1929
        %v1931 = vpop.f32.mrf.mxu0
        %v1932 = vadd.f32 0.0, %v1931
        %1933 = vmatmul.bf16.gmra.mxu0 %v1420
        %v1934 = vpop.f32.mrf.mxu0
        %v1935 = vadd.f32 0.0, %v1934
        %v1936 = vpop.f32.mrf.mxu0
        %v1937 = vadd.f32 0.0, %v1936
        %1938 = vmatmul.bf16.gmra.mxu0 %v1423
        %v1939 = vpop.f32.mrf.mxu0
        %v1940 = vadd.f32 0.0, %v1939
        %v1941 = vpop.f32.mrf.mxu0
        %v1942 = vadd.f32 0.0, %v1941
        %1943 = vmatmul.bf16.gmra.mxu0 %v1426
        %v1944 = vpop.f32.mrf.mxu0
        %v1945 = vadd.f32 0.0, %v1944
        %v1946 = vpop.f32.mrf.mxu0
        %v1947 = vadd.f32 0.0, %v1946
        %1948 = vmatmul.bf16.gmra.mxu0 %v1429
        %v1949 = vpop.f32.mrf.mxu0
        %v1950 = vadd.f32 0.0, %v1949
        %v1951 = vpop.f32.mrf.mxu0
        %v1952 = vadd.f32 0.0, %v1951
        %1953 = vmatmul.bf16.gmra.mxu0 %v1432
        %v1954 = vpop.f32.mrf.mxu0
        %v1955 = vadd.f32 0.0, %v1954
        %v1956 = vpop.f32.mrf.mxu0
        %v1957 = vadd.f32 0.0, %v1956
        %1958 = vmatmul.bf16.gmra.mxu0 %v1435
        %v1959 = vpop.f32.mrf.mxu0
        %v1960 = vadd.f32 0.0, %v1959
        %v1961 = vpop.f32.mrf.mxu0
        %v1962 = vadd.f32 0.0, %v1961
        %1963 = vmatmul.bf16.gmra.mxu0 %v1438
        %v1964 = vpop.f32.mrf.mxu0
        %v1965 = vadd.f32 0.0, %v1964
        %v1966 = vpop.f32.mrf.mxu0
        %v1967 = vadd.f32 0.0, %v1966
        %1968 = vmatmul.bf16.gmra.mxu0 %v1441
        %v1969 = vpop.f32.mrf.mxu0
        %v1970 = vadd.f32 0.0, %v1969
        %v1971 = vpop.f32.mrf.mxu0
        %v1972 = vadd.f32 0.0, %v1971
        %1973 = vmatmul.bf16.gmra.mxu0 %v1444
        %v1974 = vpop.f32.mrf.mxu0
        %v1975 = vadd.f32 0.0, %v1974
        %v1976 = vpop.f32.mrf.mxu0
        %v1977 = vadd.f32 0.0, %v1976
        %1978 = vmatmul.bf16.gmra.mxu0 %v1447
        %v1979 = vpop.f32.mrf.mxu0
        %v1980 = vadd.f32 0.0, %v1979
        %v1981 = vpop.f32.mrf.mxu0
        %v1982 = vadd.f32 0.0, %v1981
        %1983 = vmatmul.bf16.gmra.mxu0 %v1450
        %v1984 = vpop.f32.mrf.mxu0
        %v1985 = vadd.f32 0.0, %v1984
        %v1986 = vpop.f32.mrf.mxu0
        %v1987 = vadd.f32 0.0, %v1986
        %1988 = vmatmul.bf16.gmra.mxu0 %v1453
        %v1989 = vpop.f32.mrf.mxu0
        %v1990 = vadd.f32 0.0, %v1989
        %v1991 = vpop.f32.mrf.mxu0
        %v1992 = vadd.f32 0.0, %v1991
        %1993 = vmatmul.bf16.gmra.mxu0 %v1456
        %v1994 = vpop.f32.mrf.mxu0
        %v1995 = vadd.f32 0.0, %v1994
        %v1996 = vpop.f32.mrf.mxu0
        %v1997 = vadd.f32 0.0, %v1996
        %1998 = vmatmul.bf16.gmra.mxu0 %v1459
        %v1999 = vpop.f32.mrf.mxu0
        %v2000 = vadd.f32 0.0, %v1999
        %v2001 = vpop.f32.mrf.mxu0
        %v2002 = vadd.f32 0.0, %v2001
        %2003 = vmatmul.bf16.gmra.mxu0 %v1462
        %v2004 = vpop.f32.mrf.mxu0
        %v2005 = vadd.f32 0.0, %v2004
        %v2006 = vpop.f32.mrf.mxu0
        %v2007 = vadd.f32 0.0, %v2006
        %2008 = vmatmul.bf16.gmra.mxu0 %v1465
        %v2009 = vpop.f32.mrf.mxu0
        %v2010 = vadd.f32 0.0, %v2009
        %v2011 = vpop.f32.mrf.mxu0
        %v2012 = vadd.f32 0.0, %v2011
        %2013 = vmatmul.bf16.gmra.mxu0 %v1468
        %v2014 = vpop.f32.mrf.mxu0
        %v2015 = vadd.f32 0.0, %v2014
        %v2016 = vpop.f32.mrf.mxu0
        %v2017 = vadd.f32 0.0, %v2016
        %2018 = vmatmul.bf16.gmra.mxu0 %v1471
        %v2019 = vpop.f32.mrf.mxu0
        %v2020 = vadd.f32 0.0, %v2019
        %v2021 = vpop.f32.mrf.mxu0
        %v2022 = vadd.f32 0.0, %v2021
        %2023 = vmatmul.bf16.gmra.mxu0 %v1474
        %v2024 = vpop.f32.mrf.mxu0
        %v2025 = vadd.f32 0.0, %v2024
        %v2026 = vpop.f32.mrf.mxu0
        %v2027 = vadd.f32 0.0, %v2026
        %2028 = vmatmul.bf16.gmra.mxu0 %v1477
        %v2029 = vpop.f32.mrf.mxu0
        %v2030 = vadd.f32 0.0, %v2029
        %v2031 = vpop.f32.mrf.mxu0
        %v2032 = vadd.f32 0.0, %v2031
        %2033 = vmatmul.bf16.gmra.mxu0 %v1480
        %v2034 = vpop.f32.mrf.mxu0
        %v2035 = vadd.f32 0.0, %v2034
        %v2036 = vpop.f32.mrf.mxu0
        %v2037 = vadd.f32 0.0, %v2036
        %2038 = vmatmul.bf16.gmra.mxu0 %v1483
        %v2039 = vpop.f32.mrf.mxu0
        %v2040 = vadd.f32 0.0, %v2039
        %v2041 = vpop.f32.mrf.mxu0
        %v2042 = vadd.f32 0.0, %v2041
        %2043 = vmatmul.bf16.gmra.mxu0 %v1486
        %v2044 = vpop.f32.mrf.mxu0
        %v2045 = vadd.f32 0.0, %v2044
        %v2046 = vpop.f32.mrf.mxu0
        %v2047 = vadd.f32 0.0, %v2046
        %2048 = vmatmul.bf16.gmra.mxu0 %v1489
        %v2049 = vpop.f32.mrf.mxu0
        %v2050 = vadd.f32 0.0, %v2049
        %v2051 = vpop.f32.mrf.mxu0
        %v2052 = vadd.f32 0.0, %v2051
        %2053 = vmatmul.bf16.gmra.mxu0 %v1492
        %v2054 = vpop.f32.mrf.mxu0
        %v2055 = vadd.f32 0.0, %v2054
        %v2056 = vpop.f32.mrf.mxu0
        %v2057 = vadd.f32 0.0, %v2056
        %2058 = vmatmul.bf16.gmra.mxu0 %v1495
        %v2059 = vpop.f32.mrf.mxu0
        %v2060 = vadd.f32 0.0, %v2059
        %v2061 = vpop.f32.mrf.mxu0
        %v2062 = vadd.f32 0.0, %v2061
        %2063 = vmatmul.bf16.gmra.mxu0 %v1498
        %v2064 = vpop.f32.mrf.mxu0
        %v2065 = vadd.f32 0.0, %v2064
        %v2066 = vpop.f32.mrf.mxu0
        %v2067 = vadd.f32 0.0, %v2066
        %2068 = vmatmul.bf16.gmra.mxu0 %v1501
        %v2069 = vpop.f32.mrf.mxu0
        %v2070 = vadd.f32 0.0, %v2069
        %v2071 = vpop.f32.mrf.mxu0
        %v2072 = vadd.f32 0.0, %v2071
        %2073 = vmatmul.bf16.gmra.mxu0 %v1504
        %v2074 = vpop.f32.mrf.mxu0
        %v2075 = vadd.f32 0.0, %v2074
        %v2076 = vpop.f32.mrf.mxu0
        %v2077 = vadd.f32 0.0, %v2076
        %2078 = vmatmul.bf16.gmra.mxu0 %v1507
        %v2079 = vpop.f32.mrf.mxu0
        %v2080 = vadd.f32 0.0, %v2079
        %v2081 = vpop.f32.mrf.mxu0
        %v2082 = vadd.f32 0.0, %v2081
        %2083 = vmatmul.bf16.gmra.mxu0 %v1510
        %v2084 = vpop.f32.mrf.mxu0
        %v2085 = vadd.f32 0.0, %v2084
        %v2086 = vpop.f32.mrf.mxu0
        %v2087 = vadd.f32 0.0, %v2086
        %2088 = vmatmul.bf16.gmra.mxu0 %v1513
        %v2089 = vpop.f32.mrf.mxu0
        %v2090 = vadd.f32 0.0, %v2089
        %v2091 = vpop.f32.mrf.mxu0
        %v2092 = vadd.f32 0.0, %v2091
        %2093 = vmatmul.bf16.gmra.mxu0 %v1516
        %v2094 = vpop.f32.mrf.mxu0
        %v2095 = vadd.f32 0.0, %v2094
        %v2096 = vpop.f32.mrf.mxu0
        %v2097 = vadd.f32 0.0, %v2096
        %2098 = vmatmul.bf16.gmra.mxu0 %v1519
        %v2099 = vpop.f32.mrf.mxu0
        %v2100 = vadd.f32 0.0, %v2099
        %v2101 = vpop.f32.mrf.mxu0
        %v2102 = vadd.f32 0.0, %v2101
        %2103 = vmatmul.bf16.gmra.mxu0 %v1522
        %v2104 = vpop.f32.mrf.mxu0
        %v2105 = vadd.f32 0.0, %v2104
        %v2106 = vpop.f32.mrf.mxu0
        %v2107 = vadd.f32 0.0, %v2106
        %2108 = vmatmul.bf16.gmra.mxu0 %v1525
        %v2109 = vpop.f32.mrf.mxu0
        %v2110 = vadd.f32 0.0, %v2109
        %v2111 = vpop.f32.mrf.mxu0
        %v2112 = vadd.f32 0.0, %v2111
        %2113 = vmatmul.bf16.gmra.mxu0 %v1528
        %v2114 = vpop.f32.mrf.mxu0
        %v2115 = vadd.f32 0.0, %v2114
        %v2116 = vpop.f32.mrf.mxu0
        %v2117 = vadd.f32 0.0, %v2116
        %2118 = vmatmul.bf16.gmra.mxu0 %v1531
        %v2119 = vpop.f32.mrf.mxu0
        %v2120 = vadd.f32 0.0, %v2119
        %v2121 = vpop.f32.mrf.mxu0
        %v2122 = vadd.f32 0.0, %v2121
        %2123 = vmatmul.bf16.gmra.mxu0 %v1534
        %v2124 = vpop.f32.mrf.mxu0
        %v2125 = vadd.f32 0.0, %v2124
        %v2126 = vpop.f32.mrf.mxu0
        %v2127 = vadd.f32 0.0, %v2126
        %2128 = vmatmul.bf16.gmra.mxu0 %v1537
        %v2129 = vpop.f32.mrf.mxu0
        %v2130 = vadd.f32 0.0, %v2129
        %v2131 = vpop.f32.mrf.mxu0
        %v2132 = vadd.f32 0.0, %v2131
        %2133 = vmatmul.bf16.gmra.mxu0 %v1540
        %v2134 = vpop.f32.mrf.mxu0
        %v2135 = vadd.f32 0.0, %v2134
        %v2136 = vpop.f32.mrf.mxu0
        %v2137 = vadd.f32 0.0, %v2136
        %2138 = vmatmul.bf16.gmra.mxu0 %v1543
        %v2139 = vpop.f32.mrf.mxu0
        %v2140 = vadd.f32 0.0, %v2139
        %v2141 = vpop.f32.mrf.mxu0
        %v2142 = vadd.f32 0.0, %v2141
        %2143 = vmatmul.bf16.gmra.mxu0 %v1546
        %v2144 = vpop.f32.mrf.mxu0
        %v2145 = vadd.f32 0.0, %v2144
        %v2146 = vpop.f32.mrf.mxu0
        %v2147 = vadd.f32 0.0, %v2146
        %2148 = vmatmul.bf16.gmra.mxu0 %v1549
        %v2149 = vpop.f32.mrf.mxu0
        %v2150 = vadd.f32 0.0, %v2149
        %v2151 = vpop.f32.mrf.mxu0
        %v2152 = vadd.f32 0.0, %v2151
        %2153 = vmatmul.bf16.gmra.mxu0 %v1552
        %v2154 = vpop.f32.mrf.mxu0
        %v2155 = vadd.f32 0.0, %v2154
        %v2156 = vpop.f32.mrf.mxu0
        %v2157 = vadd.f32 0.0, %v2156
        %2158 = vmatmul.bf16.gmra.mxu0 %v1555
        %v2159 = vpop.f32.mrf.mxu0
        %v2160 = vadd.f32 0.0, %v2159
        %v2161 = vpop.f32.mrf.mxu0
        %v2162 = vadd.f32 0.0, %v2161
        %2163 = vmatmul.bf16.gmra.mxu0 %v1558
        %v2164 = vpop.f32.mrf.mxu0
        %v2165 = vadd.f32 0.0, %v2164
        %v2166 = vpop.f32.mrf.mxu0
        %v2167 = vadd.f32 0.0, %v2166
        %2168 = vmatmul.bf16.gmra.mxu0 %v1561
        %v2169 = vpop.f32.mrf.mxu0
        %v2170 = vadd.f32 0.0, %v2169
        %v2171 = vpop.f32.mrf.mxu0
        %v2172 = vadd.f32 0.0, %v2171
        %2173 = vmatmul.bf16.gmra.mxu0 %v1564
        %v2174 = vpop.f32.mrf.mxu0
        %v2175 = vadd.f32 0.0, %v2174
        %v2176 = vpop.f32.mrf.mxu0
        %v2177 = vadd.f32 0.0, %v2176
        %2178 = vmatmul.bf16.gmra.mxu0 %v1567
        %v2179 = vpop.f32.mrf.mxu0
        %v2180 = vadd.f32 0.0, %v2179
        %v2181 = vpop.f32.mrf.mxu0
        %v2182 = vadd.f32 0.0, %v2181
        %2183 = vmatmul.bf16.gmra.mxu0 %v1570
        %v2184 = vpop.f32.mrf.mxu0
        %v2185 = vadd.f32 0.0, %v2184
        %v2186 = vpop.f32.mrf.mxu0
        %v2187 = vadd.f32 0.0, %v2186
        %2188 = vmatmul.bf16.gmra.mxu0 %v1573
        %v2189 = vpop.f32.mrf.mxu0
        %v2190 = vadd.f32 0.0, %v2189
        %v2191 = vpop.f32.mrf.mxu0
        %v2192 = vadd.f32 0.0, %v2191
        %2193 = vmatmul.bf16.gmra.mxu0 %v1576
        %v2194 = vpop.f32.mrf.mxu0
        %v2195 = vadd.f32 0.0, %v2194
        %v2196 = vpop.f32.mrf.mxu0
        %v2197 = vadd.f32 0.0, %v2196
        %2198 = vmatmul.bf16.gmra.mxu0 %v1579
        %v2199 = vpop.f32.mrf.mxu0
        %v2200 = vadd.f32 0.0, %v2199
        %v2201 = vpop.f32.mrf.mxu0
        %v2202 = vadd.f32 0.0, %v2201
        %2203 = vmatmul.bf16.gmra.mxu0 %v1582
        %v2204 = vpop.f32.mrf.mxu0
        %v2205 = vadd.f32 0.0, %v2204
        %v2206 = vpop.f32.mrf.mxu0
        %v2207 = vadd.f32 0.0, %v2206
        %2208 = vmatmul.bf16.gmra.mxu0 %v1585
        %v2209 = vpop.f32.mrf.mxu0
        %v2210 = vadd.f32 0.0, %v2209
        %v2211 = vpop.f32.mrf.mxu0
        %v2212 = vadd.f32 0.0, %v2211
        %2213 = vmatmul.bf16.gmra.mxu0 %v1588
        %v2214 = vpop.f32.mrf.mxu0
        %v2215 = vadd.f32 0.0, %v2214
        %v2216 = vpop.f32.mrf.mxu0
        %v2217 = vadd.f32 0.0, %v2216
        %2218 = vmatmul.bf16.gmra.mxu0 %v1591
        %v2219 = vpop.f32.mrf.mxu0
        %v2220 = vadd.f32 0.0, %v2219
        %v2221 = vpop.f32.mrf.mxu0
        %v2222 = vadd.f32 0.0, %v2221
        %2223 = vmatmul.bf16.gmra.mxu0 %v1594
        %v2224 = vpop.f32.mrf.mxu0
        %v2225 = vadd.f32 0.0, %v2224
        %v2226 = vpop.f32.mrf.mxu0
        %v2227 = vadd.f32 0.0, %v2226
        %2228 = vmatmul.bf16.gmra.mxu0 %v1597
        %v2229 = vpop.f32.mrf.mxu0
        %v2230 = vadd.f32 0.0, %v2229
        %v2231 = vpop.f32.mrf.mxu0
        %v2232 = vadd.f32 0.0, %v2231
        %2233 = vmatmul.bf16.gmra.mxu0 %v1600
        %v2234 = vpop.f32.mrf.mxu0
        %v2235 = vadd.f32 0.0, %v2234
        %v2236 = vpop.f32.mrf.mxu0
        %v2237 = vadd.f32 0.0, %v2236
        %2238 = vmatmul.bf16.gmra.mxu0 %v1603
        %v2239 = vpop.f32.mrf.mxu0
        %v2240 = vadd.f32 0.0, %v2239
        %v2241 = vpop.f32.mrf.mxu0
        %v2242 = vadd.f32 0.0, %v2241
        %2243 = vmatmul.bf16.gmra.mxu0 %v1606
        %v2244 = vpop.f32.mrf.mxu0
        %v2245 = vadd.f32 0.0, %v2244
        %v2246 = vpop.f32.mrf.mxu0
        %v2247 = vadd.f32 0.0, %v2246
        %2248 = vmatmul.bf16.gmra.mxu0 %v1609
        %v2249 = vpop.f32.mrf.mxu0
        %v2250 = vadd.f32 0.0, %v2249
        %v2251 = vpop.f32.mrf.mxu0
        %v2252 = vadd.f32 0.0, %v2251
        %2253 = vmatmul.bf16.gmra.mxu0 %v1612
        %v2254 = vpop.f32.mrf.mxu0
        %v2255 = vadd.f32 0.0, %v2254
        %v2256 = vpop.f32.mrf.mxu0
        %v2257 = vadd.f32 0.0, %v2256
        %2258 = vmatmul.bf16.gmra.mxu0 %v1615
        %v2259 = vpop.f32.mrf.mxu0
        %v2260 = vadd.f32 0.0, %v2259
        %v2261 = vpop.f32.mrf.mxu0
        %v2262 = vadd.f32 0.0, %v2261
        %2263 = vmatmul.bf16.gmra.mxu0 %v1618
        %v2264 = vpop.f32.mrf.mxu0
        %v2265 = vadd.f32 0.0, %v2264
        %v2266 = vpop.f32.mrf.mxu0
        %v2267 = vadd.f32 0.0, %v2266
        %2268 = vdwg.mxu0
        %p2269 = scmp.lt.s32.totalorder %s24, 1
        // Predicated region
        $region116: #{tpu_custom_call.1} parent=102 // pred_check
          %p2270 = pneg %p2269
        $region117: #{tpu_custom_call.1} parent=102 // pred_check_branch
          %2272 = sbr.rel (%p2270) target = $region119
        $region118: #{tpu_custom_call.1} parent=102 // pred_region
          %2273 = vmax.xlane.f32.xlu0 %v1630
          %v2274 = vpop.xlane.xlu0 %2273
          %2275 = vmax.xlane.f32.xlu0 %v1632
          %v2276 = vpop.xlane.xlu0 %2275
          %2277 = vmax.xlane.f32.xlu0 %v1635
          %v2278 = vpop.xlane.xlu0 %2277
          %2279 = vmax.xlane.f32.xlu0 %v1637
          %v2280 = vpop.xlane.xlu0 %2279
          %2281 = vmax.xlane.f32.xlu0 %v1640
          %v2282 = vpop.xlane.xlu0 %2281
          %2283 = vmax.xlane.f32.xlu0 %v1642
          %v2284 = vpop.xlane.xlu0 %2283
          %2285 = vmax.xlane.f32.xlu0 %v1645
          %v2286 = vpop.xlane.xlu0 %2285
          %2287 = vmax.xlane.f32.xlu0 %v1647
          %v2288 = vpop.xlane.xlu0 %2287
          %2289 = vmax.xlane.f32.xlu0 %v1650
          %v2290 = vpop.xlane.xlu0 %2289
          %2291 = vmax.xlane.f32.xlu0 %v1652
          %v2292 = vpop.xlane.xlu0 %2291
          %2293 = vmax.xlane.f32.xlu0 %v1655
          %v2294 = vpop.xlane.xlu0 %2293
          %2295 = vmax.xlane.f32.xlu0 %v1657
          %v2296 = vpop.xlane.xlu0 %2295
          %2297 = vmax.xlane.f32.xlu0 %v1660
          %v2298 = vpop.xlane.xlu0 %2297
          %2299 = vmax.xlane.f32.xlu0 %v1662
          %v2300 = vpop.xlane.xlu0 %2299
          %2301 = vmax.xlane.f32.xlu0 %v1665
          %v2302 = vpop.xlane.xlu0 %2301
          %2303 = vmax.xlane.f32.xlu0 %v1667
          %v2304 = vpop.xlane.xlu0 %2303
          %2305 = vmax.xlane.f32.xlu0 %v1670
          %v2306 = vpop.xlane.xlu0 %2305
          %2307 = vmax.xlane.f32.xlu0 %v1672
          %v2308 = vpop.xlane.xlu0 %2307
          %2309 = vmax.xlane.f32.xlu0 %v1675
          %v2310 = vpop.xlane.xlu0 %2309
          %2311 = vmax.xlane.f32.xlu0 %v1677
          %v2312 = vpop.xlane.xlu0 %2311
          %2313 = vmax.xlane.f32.xlu0 %v1680
          %v2314 = vpop.xlane.xlu0 %2313
          %2315 = vmax.xlane.f32.xlu0 %v1682
          %v2316 = vpop.xlane.xlu0 %2315
          %2317 = vmax.xlane.f32.xlu0 %v1685
          %v2318 = vpop.xlane.xlu0 %2317
          %2319 = vmax.xlane.f32.xlu0 %v1687
          %v2320 = vpop.xlane.xlu0 %2319
          %2321 = vmax.xlane.f32.xlu0 %v1690
          %v2322 = vpop.xlane.xlu0 %2321
          %2323 = vmax.xlane.f32.xlu0 %v1692
          %v2324 = vpop.xlane.xlu0 %2323
          %2325 = vmax.xlane.f32.xlu0 %v1695
          %v2326 = vpop.xlane.xlu0 %2325
          %2327 = vmax.xlane.f32.xlu0 %v1697
          %v2328 = vpop.xlane.xlu0 %2327
          %2329 = vmax.xlane.f32.xlu0 %v1700
          %v2330 = vpop.xlane.xlu0 %2329
          %2331 = vmax.xlane.f32.xlu0 %v1702
          %v2332 = vpop.xlane.xlu0 %2331
          %2333 = vmax.xlane.f32.xlu0 %v1705
          %v2334 = vpop.xlane.xlu0 %2333
          %2335 = vmax.xlane.f32.xlu0 %v1707
          %v2336 = vpop.xlane.xlu0 %2335
          %2337 = vmax.xlane.f32.xlu0 %v1710
          %v2338 = vpop.xlane.xlu0 %2337
          %2339 = vmax.xlane.f32.xlu0 %v1712
          %v2340 = vpop.xlane.xlu0 %2339
          %2341 = vmax.xlane.f32.xlu0 %v1715
          %v2342 = vpop.xlane.xlu0 %2341
          %2343 = vmax.xlane.f32.xlu0 %v1717
          %v2344 = vpop.xlane.xlu0 %2343
          %2345 = vmax.xlane.f32.xlu0 %v1720
          %v2346 = vpop.xlane.xlu0 %2345
          %2347 = vmax.xlane.f32.xlu0 %v1722
          %v2348 = vpop.xlane.xlu0 %2347
          %2349 = vmax.xlane.f32.xlu0 %v1725
          %v2350 = vpop.xlane.xlu0 %2349
          %2351 = vmax.xlane.f32.xlu0 %v1727
          %v2352 = vpop.xlane.xlu0 %2351
          %2353 = vmax.xlane.f32.xlu0 %v1730
          %v2354 = vpop.xlane.xlu0 %2353
          %2355 = vmax.xlane.f32.xlu0 %v1732
          %v2356 = vpop.xlane.xlu0 %2355
          %2357 = vmax.xlane.f32.xlu0 %v1735
          %v2358 = vpop.xlane.xlu0 %2357
          %2359 = vmax.xlane.f32.xlu0 %v1737
          %v2360 = vpop.xlane.xlu0 %2359
          %2361 = vmax.xlane.f32.xlu0 %v1740
          %v2362 = vpop.xlane.xlu0 %2361
          %2363 = vmax.xlane.f32.xlu0 %v1742
          %v2364 = vpop.xlane.xlu0 %2363
          %2365 = vmax.xlane.f32.xlu0 %v1745
          %v2366 = vpop.xlane.xlu0 %2365
          %2367 = vmax.xlane.f32.xlu0 %v1747
          %v2368 = vpop.xlane.xlu0 %2367
          %2369 = vmax.xlane.f32.xlu0 %v1750
          %v2370 = vpop.xlane.xlu0 %2369
          %2371 = vmax.xlane.f32.xlu0 %v1752
          %v2372 = vpop.xlane.xlu0 %2371
          %2373 = vmax.xlane.f32.xlu0 %v1755
          %v2374 = vpop.xlane.xlu0 %2373
          %2375 = vmax.xlane.f32.xlu0 %v1757
          %v2376 = vpop.xlane.xlu0 %2375
          %2377 = vmax.xlane.f32.xlu0 %v1760
          %v2378 = vpop.xlane.xlu0 %2377
          %2379 = vmax.xlane.f32.xlu0 %v1762
          %v2380 = vpop.xlane.xlu0 %2379
          %2381 = vmax.xlane.f32.xlu0 %v1765
          %v2382 = vpop.xlane.xlu0 %2381
          %2383 = vmax.xlane.f32.xlu0 %v1767
          %v2384 = vpop.xlane.xlu0 %2383
          %2385 = vmax.xlane.f32.xlu0 %v1770
          %v2386 = vpop.xlane.xlu0 %2385
          %2387 = vmax.xlane.f32.xlu0 %v1772
          %v2388 = vpop.xlane.xlu0 %2387
          %2389 = vmax.xlane.f32.xlu0 %v1775
          %v2390 = vpop.xlane.xlu0 %2389
          %2391 = vmax.xlane.f32.xlu0 %v1777
          %v2392 = vpop.xlane.xlu0 %2391
          %2393 = vmax.xlane.f32.xlu0 %v1780
          %v2394 = vpop.xlane.xlu0 %2393
          %2395 = vmax.xlane.f32.xlu0 %v1782
          %v2396 = vpop.xlane.xlu0 %2395
          %2397 = vmax.xlane.f32.xlu0 %v1785
          %v2398 = vpop.xlane.xlu0 %2397
          %2399 = vmax.xlane.f32.xlu0 %v1787
          %v2400 = vpop.xlane.xlu0 %2399
          %2401 = vmax.xlane.f32.xlu0 %v1790
          %v2402 = vpop.xlane.xlu0 %2401
          %2403 = vmax.xlane.f32.xlu0 %v1792
          %v2404 = vpop.xlane.xlu0 %2403
          %2405 = vmax.xlane.f32.xlu0 %v1795
          %v2406 = vpop.xlane.xlu0 %2405
          %2407 = vmax.xlane.f32.xlu0 %v1797
          %v2408 = vpop.xlane.xlu0 %2407
          %2409 = vmax.xlane.f32.xlu0 %v1800
          %v2410 = vpop.xlane.xlu0 %2409
          %2411 = vmax.xlane.f32.xlu0 %v1802
          %v2412 = vpop.xlane.xlu0 %2411
          %2413 = vmax.xlane.f32.xlu0 %v1805
          %v2414 = vpop.xlane.xlu0 %2413
          %2415 = vmax.xlane.f32.xlu0 %v1807
          %v2416 = vpop.xlane.xlu0 %2415
          %2417 = vmax.xlane.f32.xlu0 %v1810
          %v2418 = vpop.xlane.xlu0 %2417
          %2419 = vmax.xlane.f32.xlu0 %v1812
          %v2420 = vpop.xlane.xlu0 %2419
          %2421 = vmax.xlane.f32.xlu0 %v1815
          %v2422 = vpop.xlane.xlu0 %2421
          %2423 = vmax.xlane.f32.xlu0 %v1817
          %v2424 = vpop.xlane.xlu0 %2423
          %2425 = vmax.xlane.f32.xlu0 %v1820
          %v2426 = vpop.xlane.xlu0 %2425
          %2427 = vmax.xlane.f32.xlu0 %v1822
          %v2428 = vpop.xlane.xlu0 %2427
          %2429 = vmax.xlane.f32.xlu0 %v1825
          %v2430 = vpop.xlane.xlu0 %2429
          %2431 = vmax.xlane.f32.xlu0 %v1827
          %v2432 = vpop.xlane.xlu0 %2431
          %2433 = vmax.xlane.f32.xlu0 %v1830
          %v2434 = vpop.xlane.xlu0 %2433
          %2435 = vmax.xlane.f32.xlu0 %v1832
          %v2436 = vpop.xlane.xlu0 %2435
          %2437 = vmax.xlane.f32.xlu0 %v1835
          %v2438 = vpop.xlane.xlu0 %2437
          %2439 = vmax.xlane.f32.xlu0 %v1837
          %v2440 = vpop.xlane.xlu0 %2439
          %2441 = vmax.xlane.f32.xlu0 %v1840
          %v2442 = vpop.xlane.xlu0 %2441
          %2443 = vmax.xlane.f32.xlu0 %v1842
          %v2444 = vpop.xlane.xlu0 %2443
          %2445 = vmax.xlane.f32.xlu0 %v1845
          %v2446 = vpop.xlane.xlu0 %2445
          %2447 = vmax.xlane.f32.xlu0 %v1847
          %v2448 = vpop.xlane.xlu0 %2447
          %2449 = vmax.xlane.f32.xlu0 %v1850
          %v2450 = vpop.xlane.xlu0 %2449
          %2451 = vmax.xlane.f32.xlu0 %v1852
          %v2452 = vpop.xlane.xlu0 %2451
          %2453 = vmax.xlane.f32.xlu0 %v1855
          %v2454 = vpop.xlane.xlu0 %2453
          %2455 = vmax.xlane.f32.xlu0 %v1857
          %v2456 = vpop.xlane.xlu0 %2455
          %2457 = vmax.xlane.f32.xlu0 %v1860
          %v2458 = vpop.xlane.xlu0 %2457
          %2459 = vmax.xlane.f32.xlu0 %v1862
          %v2460 = vpop.xlane.xlu0 %2459
          %2461 = vmax.xlane.f32.xlu0 %v1865
          %v2462 = vpop.xlane.xlu0 %2461
          %2463 = vmax.xlane.f32.xlu0 %v1867
          %v2464 = vpop.xlane.xlu0 %2463
          %2465 = vmax.xlane.f32.xlu0 %v1870
          %v2466 = vpop.xlane.xlu0 %2465
          %2467 = vmax.xlane.f32.xlu0 %v1872
          %v2468 = vpop.xlane.xlu0 %2467
          %2469 = vmax.xlane.f32.xlu0 %v1875
          %v2470 = vpop.xlane.xlu0 %2469
          %2471 = vmax.xlane.f32.xlu0 %v1877
          %v2472 = vpop.xlane.xlu0 %2471
          %2473 = vmax.xlane.f32.xlu0 %v1880
          %v2474 = vpop.xlane.xlu0 %2473
          %2475 = vmax.xlane.f32.xlu0 %v1882
          %v2476 = vpop.xlane.xlu0 %2475
          %2477 = vmax.xlane.f32.xlu0 %v1885
          %v2478 = vpop.xlane.xlu0 %2477
          %2479 = vmax.xlane.f32.xlu0 %v1887
          %v2480 = vpop.xlane.xlu0 %2479
          %2481 = vmax.xlane.f32.xlu0 %v1890
          %v2482 = vpop.xlane.xlu0 %2481
          %2483 = vmax.xlane.f32.xlu0 %v1892
          %v2484 = vpop.xlane.xlu0 %2483
          %2485 = vmax.xlane.f32.xlu0 %v1895
          %v2486 = vpop.xlane.xlu0 %2485
          %2487 = vmax.xlane.f32.xlu0 %v1897
          %v2488 = vpop.xlane.xlu0 %2487
          %2489 = vmax.xlane.f32.xlu0 %v1900
          %v2490 = vpop.xlane.xlu0 %2489
          %2491 = vmax.xlane.f32.xlu0 %v1902
          %v2492 = vpop.xlane.xlu0 %2491
          %2493 = vmax.xlane.f32.xlu0 %v1905
          %v2494 = vpop.xlane.xlu0 %2493
          %2495 = vmax.xlane.f32.xlu0 %v1907
          %v2496 = vpop.xlane.xlu0 %2495
          %2497 = vmax.xlane.f32.xlu0 %v1910
          %v2498 = vpop.xlane.xlu0 %2497
          %2499 = vmax.xlane.f32.xlu0 %v1912
          %v2500 = vpop.xlane.xlu0 %2499
          %2501 = vmax.xlane.f32.xlu0 %v1915
          %v2502 = vpop.xlane.xlu0 %2501
          %2503 = vmax.xlane.f32.xlu0 %v1917
          %v2504 = vpop.xlane.xlu0 %2503
          %2505 = vmax.xlane.f32.xlu0 %v1920
          %v2506 = vpop.xlane.xlu0 %2505
          %2507 = vmax.xlane.f32.xlu0 %v1922
          %v2508 = vpop.xlane.xlu0 %2507
          %2509 = vmax.xlane.f32.xlu0 %v1925
          %v2510 = vpop.xlane.xlu0 %2509
          %2511 = vmax.xlane.f32.xlu0 %v1927
          %v2512 = vpop.xlane.xlu0 %2511
          %2513 = vmax.xlane.f32.xlu0 %v1930
          %v2514 = vpop.xlane.xlu0 %2513
          %2515 = vmax.xlane.f32.xlu0 %v1932
          %v2516 = vpop.xlane.xlu0 %2515
          %2517 = vmax.xlane.f32.xlu0 %v1935
          %v2518 = vpop.xlane.xlu0 %2517
          %2519 = vmax.xlane.f32.xlu0 %v1937
          %v2520 = vpop.xlane.xlu0 %2519
          %2521 = vmax.xlane.f32.xlu0 %v1940
          %v2522 = vpop.xlane.xlu0 %2521
          %2523 = vmax.xlane.f32.xlu0 %v1942
          %v2524 = vpop.xlane.xlu0 %2523
          %2525 = vmax.xlane.f32.xlu0 %v1945
          %v2526 = vpop.xlane.xlu0 %2525
          %2527 = vmax.xlane.f32.xlu0 %v1947
          %v2528 = vpop.xlane.xlu0 %2527
          %2529 = vmax.xlane.f32.xlu0 %v1950
          %v2530 = vpop.xlane.xlu0 %2529
          %2531 = vmax.xlane.f32.xlu0 %v1952
          %v2532 = vpop.xlane.xlu0 %2531
          %2533 = vmax.xlane.f32.xlu0 %v1955
          %v2534 = vpop.xlane.xlu0 %2533
          %2535 = vmax.xlane.f32.xlu0 %v1957
          %v2536 = vpop.xlane.xlu0 %2535
          %2537 = vmax.xlane.f32.xlu0 %v1960
          %v2538 = vpop.xlane.xlu0 %2537
          %2539 = vmax.xlane.f32.xlu0 %v1962
          %v2540 = vpop.xlane.xlu0 %2539
          %2541 = vmax.xlane.f32.xlu0 %v1965
          %v2542 = vpop.xlane.xlu0 %2541
          %2543 = vmax.xlane.f32.xlu0 %v1967
          %v2544 = vpop.xlane.xlu0 %2543
          %2545 = vmax.xlane.f32.xlu0 %v1970
          %v2546 = vpop.xlane.xlu0 %2545
          %2547 = vmax.xlane.f32.xlu0 %v1972
          %v2548 = vpop.xlane.xlu0 %2547
          %2549 = vmax.xlane.f32.xlu0 %v1975
          %v2550 = vpop.xlane.xlu0 %2549
          %2551 = vmax.xlane.f32.xlu0 %v1977
          %v2552 = vpop.xlane.xlu0 %2551
          %2553 = vmax.xlane.f32.xlu0 %v1980
          %v2554 = vpop.xlane.xlu0 %2553
          %2555 = vmax.xlane.f32.xlu0 %v1982
          %v2556 = vpop.xlane.xlu0 %2555
          %2557 = vmax.xlane.f32.xlu0 %v1985
          %v2558 = vpop.xlane.xlu0 %2557
          %2559 = vmax.xlane.f32.xlu0 %v1987
          %v2560 = vpop.xlane.xlu0 %2559
          %2561 = vmax.xlane.f32.xlu0 %v1990
          %v2562 = vpop.xlane.xlu0 %2561
          %2563 = vmax.xlane.f32.xlu0 %v1992
          %v2564 = vpop.xlane.xlu0 %2563
          %2565 = vmax.xlane.f32.xlu0 %v1995
          %v2566 = vpop.xlane.xlu0 %2565
          %2567 = vmax.xlane.f32.xlu0 %v1997
          %v2568 = vpop.xlane.xlu0 %2567
          %2569 = vmax.xlane.f32.xlu0 %v2000
          %v2570 = vpop.xlane.xlu0 %2569
          %2571 = vmax.xlane.f32.xlu0 %v2002
          %v2572 = vpop.xlane.xlu0 %2571
          %2573 = vmax.xlane.f32.xlu0 %v2005
          %v2574 = vpop.xlane.xlu0 %2573
          %2575 = vmax.xlane.f32.xlu0 %v2007
          %v2576 = vpop.xlane.xlu0 %2575
          %2577 = vmax.xlane.f32.xlu0 %v2010
          %v2578 = vpop.xlane.xlu0 %2577
          %2579 = vmax.xlane.f32.xlu0 %v2012
          %v2580 = vpop.xlane.xlu0 %2579
          %2581 = vmax.xlane.f32.xlu0 %v2015
          %v2582 = vpop.xlane.xlu0 %2581
          %2583 = vmax.xlane.f32.xlu0 %v2017
          %v2584 = vpop.xlane.xlu0 %2583
          %2585 = vmax.xlane.f32.xlu0 %v2020
          %v2586 = vpop.xlane.xlu0 %2585
          %2587 = vmax.xlane.f32.xlu0 %v2022
          %v2588 = vpop.xlane.xlu0 %2587
          %2589 = vmax.xlane.f32.xlu0 %v2025
          %v2590 = vpop.xlane.xlu0 %2589
          %2591 = vmax.xlane.f32.xlu0 %v2027
          %v2592 = vpop.xlane.xlu0 %2591
          %2593 = vmax.xlane.f32.xlu0 %v2030
          %v2594 = vpop.xlane.xlu0 %2593
          %2595 = vmax.xlane.f32.xlu0 %v2032
          %v2596 = vpop.xlane.xlu0 %2595
          %2597 = vmax.xlane.f32.xlu0 %v2035
          %v2598 = vpop.xlane.xlu0 %2597
          %2599 = vmax.xlane.f32.xlu0 %v2037
          %v2600 = vpop.xlane.xlu0 %2599
          %2601 = vmax.xlane.f32.xlu0 %v2040
          %v2602 = vpop.xlane.xlu0 %2601
          %2603 = vmax.xlane.f32.xlu0 %v2042
          %v2604 = vpop.xlane.xlu0 %2603
          %2605 = vmax.xlane.f32.xlu0 %v2045
          %v2606 = vpop.xlane.xlu0 %2605
          %2607 = vmax.xlane.f32.xlu0 %v2047
          %v2608 = vpop.xlane.xlu0 %2607
          %2609 = vmax.xlane.f32.xlu0 %v2050
          %v2610 = vpop.xlane.xlu0 %2609
          %2611 = vmax.xlane.f32.xlu0 %v2052
          %v2612 = vpop.xlane.xlu0 %2611
          %2613 = vmax.xlane.f32.xlu0 %v2055
          %v2614 = vpop.xlane.xlu0 %2613
          %2615 = vmax.xlane.f32.xlu0 %v2057
          %v2616 = vpop.xlane.xlu0 %2615
          %2617 = vmax.xlane.f32.xlu0 %v2060
          %v2618 = vpop.xlane.xlu0 %2617
          %2619 = vmax.xlane.f32.xlu0 %v2062
          %v2620 = vpop.xlane.xlu0 %2619
          %2621 = vmax.xlane.f32.xlu0 %v2065
          %v2622 = vpop.xlane.xlu0 %2621
          %2623 = vmax.xlane.f32.xlu0 %v2067
          %v2624 = vpop.xlane.xlu0 %2623
          %2625 = vmax.xlane.f32.xlu0 %v2070
          %v2626 = vpop.xlane.xlu0 %2625
          %2627 = vmax.xlane.f32.xlu0 %v2072
          %v2628 = vpop.xlane.xlu0 %2627
          %2629 = vmax.xlane.f32.xlu0 %v2075
          %v2630 = vpop.xlane.xlu0 %2629
          %2631 = vmax.xlane.f32.xlu0 %v2077
          %v2632 = vpop.xlane.xlu0 %2631
          %2633 = vmax.xlane.f32.xlu0 %v2080
          %v2634 = vpop.xlane.xlu0 %2633
          %2635 = vmax.xlane.f32.xlu0 %v2082
          %v2636 = vpop.xlane.xlu0 %2635
          %2637 = vmax.xlane.f32.xlu0 %v2085
          %v2638 = vpop.xlane.xlu0 %2637
          %2639 = vmax.xlane.f32.xlu0 %v2087
          %v2640 = vpop.xlane.xlu0 %2639
          %2641 = vmax.xlane.f32.xlu0 %v2090
          %v2642 = vpop.xlane.xlu0 %2641
          %2643 = vmax.xlane.f32.xlu0 %v2092
          %v2644 = vpop.xlane.xlu0 %2643
          %2645 = vmax.xlane.f32.xlu0 %v2095
          %v2646 = vpop.xlane.xlu0 %2645
          %2647 = vmax.xlane.f32.xlu0 %v2097
          %v2648 = vpop.xlane.xlu0 %2647
          %2649 = vmax.xlane.f32.xlu0 %v2100
          %v2650 = vpop.xlane.xlu0 %2649
          %2651 = vmax.xlane.f32.xlu0 %v2102
          %v2652 = vpop.xlane.xlu0 %2651
          %2653 = vmax.xlane.f32.xlu0 %v2105
          %v2654 = vpop.xlane.xlu0 %2653
          %2655 = vmax.xlane.f32.xlu0 %v2107
          %v2656 = vpop.xlane.xlu0 %2655
          %2657 = vmax.xlane.f32.xlu0 %v2110
          %v2658 = vpop.xlane.xlu0 %2657
          %2659 = vmax.xlane.f32.xlu0 %v2112
          %v2660 = vpop.xlane.xlu0 %2659
          %2661 = vmax.xlane.f32.xlu0 %v2115
          %v2662 = vpop.xlane.xlu0 %2661
          %2663 = vmax.xlane.f32.xlu0 %v2117
          %v2664 = vpop.xlane.xlu0 %2663
          %2665 = vmax.xlane.f32.xlu0 %v2120
          %v2666 = vpop.xlane.xlu0 %2665
          %2667 = vmax.xlane.f32.xlu0 %v2122
          %v2668 = vpop.xlane.xlu0 %2667
          %2669 = vmax.xlane.f32.xlu0 %v2125
          %v2670 = vpop.xlane.xlu0 %2669
          %2671 = vmax.xlane.f32.xlu0 %v2127
          %v2672 = vpop.xlane.xlu0 %2671
          %2673 = vmax.xlane.f32.xlu0 %v2130
          %v2674 = vpop.xlane.xlu0 %2673
          %2675 = vmax.xlane.f32.xlu0 %v2132
          %v2676 = vpop.xlane.xlu0 %2675
          %2677 = vmax.xlane.f32.xlu0 %v2135
          %v2678 = vpop.xlane.xlu0 %2677
          %2679 = vmax.xlane.f32.xlu0 %v2137
          %v2680 = vpop.xlane.xlu0 %2679
          %2681 = vmax.xlane.f32.xlu0 %v2140
          %v2682 = vpop.xlane.xlu0 %2681
          %2683 = vmax.xlane.f32.xlu0 %v2142
          %v2684 = vpop.xlane.xlu0 %2683
          %2685 = vmax.xlane.f32.xlu0 %v2145
          %v2686 = vpop.xlane.xlu0 %2685
          %2687 = vmax.xlane.f32.xlu0 %v2147
          %v2688 = vpop.xlane.xlu0 %2687
          %2689 = vmax.xlane.f32.xlu0 %v2150
          %v2690 = vpop.xlane.xlu0 %2689
          %2691 = vmax.xlane.f32.xlu0 %v2152
          %v2692 = vpop.xlane.xlu0 %2691
          %2693 = vmax.xlane.f32.xlu0 %v2155
          %v2694 = vpop.xlane.xlu0 %2693
          %2695 = vmax.xlane.f32.xlu0 %v2157
          %v2696 = vpop.xlane.xlu0 %2695
          %2697 = vmax.xlane.f32.xlu0 %v2160
          %v2698 = vpop.xlane.xlu0 %2697
          %2699 = vmax.xlane.f32.xlu0 %v2162
          %v2700 = vpop.xlane.xlu0 %2699
          %2701 = vmax.xlane.f32.xlu0 %v2165
          %v2702 = vpop.xlane.xlu0 %2701
          %2703 = vmax.xlane.f32.xlu0 %v2167
          %v2704 = vpop.xlane.xlu0 %2703
          %2705 = vmax.xlane.f32.xlu0 %v2170
          %v2706 = vpop.xlane.xlu0 %2705
          %2707 = vmax.xlane.f32.xlu0 %v2172
          %v2708 = vpop.xlane.xlu0 %2707
          %2709 = vmax.xlane.f32.xlu0 %v2175
          %v2710 = vpop.xlane.xlu0 %2709
          %2711 = vmax.xlane.f32.xlu0 %v2177
          %v2712 = vpop.xlane.xlu0 %2711
          %2713 = vmax.xlane.f32.xlu0 %v2180
          %v2714 = vpop.xlane.xlu0 %2713
          %2715 = vmax.xlane.f32.xlu0 %v2182
          %v2716 = vpop.xlane.xlu0 %2715
          %2717 = vmax.xlane.f32.xlu0 %v2185
          %v2718 = vpop.xlane.xlu0 %2717
          %2719 = vmax.xlane.f32.xlu0 %v2187
          %v2720 = vpop.xlane.xlu0 %2719
          %2721 = vmax.xlane.f32.xlu0 %v2190
          %v2722 = vpop.xlane.xlu0 %2721
          %2723 = vmax.xlane.f32.xlu0 %v2192
          %v2724 = vpop.xlane.xlu0 %2723
          %2725 = vmax.xlane.f32.xlu0 %v2195
          %v2726 = vpop.xlane.xlu0 %2725
          %2727 = vmax.xlane.f32.xlu0 %v2197
          %v2728 = vpop.xlane.xlu0 %2727
          %2729 = vmax.xlane.f32.xlu0 %v2200
          %v2730 = vpop.xlane.xlu0 %2729
          %2731 = vmax.xlane.f32.xlu0 %v2202
          %v2732 = vpop.xlane.xlu0 %2731
          %2733 = vmax.xlane.f32.xlu0 %v2205
          %v2734 = vpop.xlane.xlu0 %2733
          %2735 = vmax.xlane.f32.xlu0 %v2207
          %v2736 = vpop.xlane.xlu0 %2735
          %2737 = vmax.xlane.f32.xlu0 %v2210
          %v2738 = vpop.xlane.xlu0 %2737
          %2739 = vmax.xlane.f32.xlu0 %v2212
          %v2740 = vpop.xlane.xlu0 %2739
          %2741 = vmax.xlane.f32.xlu0 %v2215
          %v2742 = vpop.xlane.xlu0 %2741
          %2743 = vmax.xlane.f32.xlu0 %v2217
          %v2744 = vpop.xlane.xlu0 %2743
          %2745 = vmax.xlane.f32.xlu0 %v2220
          %v2746 = vpop.xlane.xlu0 %2745
          %2747 = vmax.xlane.f32.xlu0 %v2222
          %v2748 = vpop.xlane.xlu0 %2747
          %2749 = vmax.xlane.f32.xlu0 %v2225
          %v2750 = vpop.xlane.xlu0 %2749
          %2751 = vmax.xlane.f32.xlu0 %v2227
          %v2752 = vpop.xlane.xlu0 %2751
          %2753 = vmax.xlane.f32.xlu0 %v2230
          %v2754 = vpop.xlane.xlu0 %2753
          %2755 = vmax.xlane.f32.xlu0 %v2232
          %v2756 = vpop.xlane.xlu0 %2755
          %2757 = vmax.xlane.f32.xlu0 %v2235
          %v2758 = vpop.xlane.xlu0 %2757
          %2759 = vmax.xlane.f32.xlu0 %v2237
          %v2760 = vpop.xlane.xlu0 %2759
          %2761 = vmax.xlane.f32.xlu0 %v2240
          %v2762 = vpop.xlane.xlu0 %2761
          %2763 = vmax.xlane.f32.xlu0 %v2242
          %v2764 = vpop.xlane.xlu0 %2763
          %2765 = vmax.xlane.f32.xlu0 %v2245
          %v2766 = vpop.xlane.xlu0 %2765
          %2767 = vmax.xlane.f32.xlu0 %v2247
          %v2768 = vpop.xlane.xlu0 %2767
          %2769 = vmax.xlane.f32.xlu0 %v2250
          %v2770 = vpop.xlane.xlu0 %2769
          %2771 = vmax.xlane.f32.xlu0 %v2252
          %v2772 = vpop.xlane.xlu0 %2771
          %2773 = vmax.xlane.f32.xlu0 %v2255
          %v2774 = vpop.xlane.xlu0 %2773
          %2775 = vmax.xlane.f32.xlu0 %v2257
          %v2776 = vpop.xlane.xlu0 %2775
          %2777 = vmax.xlane.f32.xlu0 %v2260
          %v2778 = vpop.xlane.xlu0 %2777
          %2779 = vmax.xlane.f32.xlu0 %v2262
          %v2780 = vpop.xlane.xlu0 %2779
          %2781 = vmax.xlane.f32.xlu0 %v2265
          %v2782 = vpop.xlane.xlu0 %2781
          %2783 = vmax.xlane.f32.xlu0 %v2267
          %v2784 = vpop.xlane.xlu0 %2783
          %v2785 = vld [vmem:[#allocation2] sm:$0xff]
          %v2786 = vld [vmem:[#allocation2 + $0x8] sm:$0xff]
          %v3043 = vlaneseq
          %v3044 = vand.u32 %v3043, 127
          %v3045 = vperm.slane %v2274, %v3044
          %v3046 = vadd.s32 %v3044, 4294967288
          %v3047 = vperm.slane %v2276, %v3046
          %vm3048 = vcmask 130112
          %v3049 = vsel %vm3048, %v3047, %v3045
          %v3050 = vadd.s32 %v3044, 4294967280
          %v3051 = vperm.slane %v2278, %v3050
          %vm3052 = vcmask 195712
          %v3053 = vsel %vm3052, %v3051, %v3049
          %v3054 = vadd.s32 %v3044, 4294967272
          %v3055 = vperm.slane %v2280, %v3054
          %vm3056 = vcmask 261312
          %v3057 = vsel %vm3056, %v3055, %v3053
          %v3058 = vadd.s32 %v3044, 4294967264
          %v3059 = vperm.slane %v2282, %v3058
          %vm3060 = vcmask 326912
          %v3061 = vsel %vm3060, %v3059, %v3057
          %v3062 = vadd.s32 %v3044, 4294967256
          %v3063 = vperm.slane %v2284, %v3062
          %vm3064 = vcmask 392512
          %v3065 = vsel %vm3064, %v3063, %v3061
          %v3066 = vadd.s32 %v3044, 4294967248
          %v3067 = vperm.slane %v2286, %v3066
          %vm3068 = vcmask 458112
          %v3069 = vsel %vm3068, %v3067, %v3065
          %v3070 = vadd.s32 %v3044, 4294967240
          %v3071 = vperm.slane %v2288, %v3070
          %vm3072 = vcmask 523712
          %v3073 = vsel %vm3072, %v3071, %v3069
          %v3074 = vadd.s32 %v3044, 4294967232
          %v3075 = vperm.slane %v2290, %v3074
          %vm3076 = vcmask 589312
          %v3077 = vsel %vm3076, %v3075, %v3073
          %v3078 = vadd.s32 %v3044, 4294967224
          %v3079 = vperm.slane %v2292, %v3078
          %vm3080 = vcmask 654912
          %v3081 = vsel %vm3080, %v3079, %v3077
          %v3082 = vadd.s32 %v3044, 4294967216
          %v3083 = vperm.slane %v2294, %v3082
          %vm3084 = vcmask 720512
          %v3085 = vsel %vm3084, %v3083, %v3081
          %v3086 = vadd.s32 %v3044, 4294967208
          %v3087 = vperm.slane %v2296, %v3086
          %vm3088 = vcmask 786112
          %v3089 = vsel %vm3088, %v3087, %v3085
          %v3090 = vadd.s32 %v3044, 4294967200
          %v3091 = vperm.slane %v2298, %v3090
          %vm3092 = vcmask 851712
          %v3093 = vsel %vm3092, %v3091, %v3089
          %v3094 = vadd.s32 %v3044, 4294967192
          %v3095 = vperm.slane %v2300, %v3094
          %vm3096 = vcmask 917312
          %v3097 = vsel %vm3096, %v3095, %v3093
          %v3098 = vadd.s32 %v3044, 4294967184
          %v3099 = vperm.slane %v2302, %v3098
          %vm3100 = vcmask 982912
          %v3101 = vsel %vm3100, %v3099, %v3097
          %v3102 = vadd.s32 %v3044, 4294967176
          %v3103 = vperm.slane %v2304, %v3102
          %vm3104 = vcmask 1048512
          %v3105 = vsel %vm3104, %v3103, %v3101
          %v3106 = vperm.slane %v2306, %v3044
          %v3107 = vperm.slane %v2308, %v3046
          %v3108 = vsel %vm3048, %v3107, %v3106
          %v3109 = vperm.slane %v2310, %v3050
          %v3110 = vsel %vm3052, %v3109, %v3108
          %v3111 = vperm.slane %v2312, %v3054
          %v3112 = vsel %vm3056, %v3111, %v3110
          %v3113 = vperm.slane %v2314, %v3058
          %v3114 = vsel %vm3060, %v3113, %v3112
          %v3115 = vperm.slane %v2316, %v3062
          %v3116 = vsel %vm3064, %v3115, %v3114
          %v3117 = vperm.slane %v2318, %v3066
          %v3118 = vsel %vm3068, %v3117, %v3116
          %v3119 = vperm.slane %v2320, %v3070
          %v3120 = vsel %vm3072, %v3119, %v3118
          %v3121 = vperm.slane %v2322, %v3074
          %v3122 = vsel %vm3076, %v3121, %v3120
          %v3123 = vperm.slane %v2324, %v3078
          %v3124 = vsel %vm3080, %v3123, %v3122
          %v3125 = vperm.slane %v2326, %v3082
          %v3126 = vsel %vm3084, %v3125, %v3124
          %v3127 = vperm.slane %v2328, %v3086
          %v3128 = vsel %vm3088, %v3127, %v3126
          %v3129 = vperm.slane %v2330, %v3090
          %v3130 = vsel %vm3092, %v3129, %v3128
          %v3131 = vperm.slane %v2332, %v3094
          %v3132 = vsel %vm3096, %v3131, %v3130
          %v3133 = vperm.slane %v2334, %v3098
          %v3134 = vsel %vm3100, %v3133, %v3132
          %v3135 = vperm.slane %v2336, %v3102
          %v3136 = vsel %vm3104, %v3135, %v3134
          %v3137 = vperm.slane %v2338, %v3044
          %v3138 = vperm.slane %v2340, %v3046
          %v3139 = vsel %vm3048, %v3138, %v3137
          %v3140 = vperm.slane %v2342, %v3050
          %v3141 = vsel %vm3052, %v3140, %v3139
          %v3142 = vperm.slane %v2344, %v3054
          %v3143 = vsel %vm3056, %v3142, %v3141
          %v3144 = vperm.slane %v2346, %v3058
          %v3145 = vsel %vm3060, %v3144, %v3143
          %v3146 = vperm.slane %v2348, %v3062
          %v3147 = vsel %vm3064, %v3146, %v3145
          %v3148 = vperm.slane %v2350, %v3066
          %v3149 = vsel %vm3068, %v3148, %v3147
          %v3150 = vperm.slane %v2352, %v3070
          %v3151 = vsel %vm3072, %v3150, %v3149
          %v3152 = vperm.slane %v2354, %v3074
          %v3153 = vsel %vm3076, %v3152, %v3151
          %v3154 = vperm.slane %v2356, %v3078
          %v3155 = vsel %vm3080, %v3154, %v3153
          %v3156 = vperm.slane %v2358, %v3082
          %v3157 = vsel %vm3084, %v3156, %v3155
          %v3158 = vperm.slane %v2360, %v3086
          %v3159 = vsel %vm3088, %v3158, %v3157
          %v3160 = vperm.slane %v2362, %v3090
          %v3161 = vsel %vm3092, %v3160, %v3159
          %v3162 = vperm.slane %v2364, %v3094
          %v3163 = vsel %vm3096, %v3162, %v3161
          %v3164 = vperm.slane %v2366, %v3098
          %v3165 = vsel %vm3100, %v3164, %v3163
          %v3166 = vperm.slane %v2368, %v3102
          %v3167 = vsel %vm3104, %v3166, %v3165
          %v3168 = vperm.slane %v2370, %v3044
          %v3169 = vperm.slane %v2372, %v3046
          %v3170 = vsel %vm3048, %v3169, %v3168
          %v3171 = vperm.slane %v2374, %v3050
          %v3172 = vsel %vm3052, %v3171, %v3170
          %v3173 = vperm.slane %v2376, %v3054
          %v3174 = vsel %vm3056, %v3173, %v3172
          %v3175 = vperm.slane %v2378, %v3058
          %v3176 = vsel %vm3060, %v3175, %v3174
          %v3177 = vperm.slane %v2380, %v3062
          %v3178 = vsel %vm3064, %v3177, %v3176
          %v3179 = vperm.slane %v2382, %v3066
          %v3180 = vsel %vm3068, %v3179, %v3178
          %v3181 = vperm.slane %v2384, %v3070
          %v3182 = vsel %vm3072, %v3181, %v3180
          %v3183 = vperm.slane %v2386, %v3074
          %v3184 = vsel %vm3076, %v3183, %v3182
          %v3185 = vperm.slane %v2388, %v3078
          %v3186 = vsel %vm3080, %v3185, %v3184
          %v3187 = vperm.slane %v2390, %v3082
          %v3188 = vsel %vm3084, %v3187, %v3186
          %v3189 = vperm.slane %v2392, %v3086
          %v3190 = vsel %vm3088, %v3189, %v3188
          %v3191 = vperm.slane %v2394, %v3090
          %v3192 = vsel %vm3092, %v3191, %v3190
          %v3193 = vperm.slane %v2396, %v3094
          %v3194 = vsel %vm3096, %v3193, %v3192
          %v3195 = vperm.slane %v2398, %v3098
          %v3196 = vsel %vm3100, %v3195, %v3194
          %v3197 = vperm.slane %v2400, %v3102
          %v3198 = vsel %vm3104, %v3197, %v3196
          %v3199 = vperm.slane %v2402, %v3044
          %v3200 = vperm.slane %v2404, %v3046
          %v3201 = vsel %vm3048, %v3200, %v3199
          %v3202 = vperm.slane %v2406, %v3050
          %v3203 = vsel %vm3052, %v3202, %v3201
          %v3204 = vperm.slane %v2408, %v3054
          %v3205 = vsel %vm3056, %v3204, %v3203
          %v3206 = vperm.slane %v2410, %v3058
          %v3207 = vsel %vm3060, %v3206, %v3205
          %v3208 = vperm.slane %v2412, %v3062
          %v3209 = vsel %vm3064, %v3208, %v3207
          %v3210 = vperm.slane %v2414, %v3066
          %v3211 = vsel %vm3068, %v3210, %v3209
          %v3212 = vperm.slane %v2416, %v3070
          %v3213 = vsel %vm3072, %v3212, %v3211
          %v3214 = vperm.slane %v2418, %v3074
          %v3215 = vsel %vm3076, %v3214, %v3213
          %v3216 = vperm.slane %v2420, %v3078
          %v3217 = vsel %vm3080, %v3216, %v3215
          %v3218 = vperm.slane %v2422, %v3082
          %v3219 = vsel %vm3084, %v3218, %v3217
          %v3220 = vperm.slane %v2424, %v3086
          %v3221 = vsel %vm3088, %v3220, %v3219
          %v3222 = vperm.slane %v2426, %v3090
          %v3223 = vsel %vm3092, %v3222, %v3221
          %v3224 = vperm.slane %v2428, %v3094
          %v3225 = vsel %vm3096, %v3224, %v3223
          %v3226 = vperm.slane %v2430, %v3098
          %v3227 = vsel %vm3100, %v3226, %v3225
          %v3228 = vperm.slane %v2432, %v3102
          %v3229 = vsel %vm3104, %v3228, %v3227
          %v3230 = vperm.slane %v2434, %v3044
          %v3231 = vperm.slane %v2436, %v3046
          %v3232 = vsel %vm3048, %v3231, %v3230
          %v3233 = vperm.slane %v2438, %v3050
          %v3234 = vsel %vm3052, %v3233, %v3232
          %v3235 = vperm.slane %v2440, %v3054
          %v3236 = vsel %vm3056, %v3235, %v3234
          %v3237 = vperm.slane %v2442, %v3058
          %v3238 = vsel %vm3060, %v3237, %v3236
          %v3239 = vperm.slane %v2444, %v3062
          %v3240 = vsel %vm3064, %v3239, %v3238
          %v3241 = vperm.slane %v2446, %v3066
          %v3242 = vsel %vm3068, %v3241, %v3240
          %v3243 = vperm.slane %v2448, %v3070
          %v3244 = vsel %vm3072, %v3243, %v3242
          %v3245 = vperm.slane %v2450, %v3074
          %v3246 = vsel %vm3076, %v3245, %v3244
          %v3247 = vperm.slane %v2452, %v3078
          %v3248 = vsel %vm3080, %v3247, %v3246
          %v3249 = vperm.slane %v2454, %v3082
          %v3250 = vsel %vm3084, %v3249, %v3248
          %v3251 = vperm.slane %v2456, %v3086
          %v3252 = vsel %vm3088, %v3251, %v3250
          %v3253 = vperm.slane %v2458, %v3090
          %v3254 = vsel %vm3092, %v3253, %v3252
          %v3255 = vperm.slane %v2460, %v3094
          %v3256 = vsel %vm3096, %v3255, %v3254
          %v3257 = vperm.slane %v2462, %v3098
          %v3258 = vsel %vm3100, %v3257, %v3256
          %v3259 = vperm.slane %v2464, %v3102
          %v3260 = vsel %vm3104, %v3259, %v3258
          %v3261 = vperm.slane %v2466, %v3044
          %v3262 = vperm.slane %v2468, %v3046
          %v3263 = vsel %vm3048, %v3262, %v3261
          %v3264 = vperm.slane %v2470, %v3050
          %v3265 = vsel %vm3052, %v3264, %v3263
          %v3266 = vperm.slane %v2472, %v3054
          %v3267 = vsel %vm3056, %v3266, %v3265
          %v3268 = vperm.slane %v2474, %v3058
          %v3269 = vsel %vm3060, %v3268, %v3267
          %v3270 = vperm.slane %v2476, %v3062
          %v3271 = vsel %vm3064, %v3270, %v3269
          %v3272 = vperm.slane %v2478, %v3066
          %v3273 = vsel %vm3068, %v3272, %v3271
          %v3274 = vperm.slane %v2480, %v3070
          %v3275 = vsel %vm3072, %v3274, %v3273
          %v3276 = vperm.slane %v2482, %v3074
          %v3277 = vsel %vm3076, %v3276, %v3275
          %v3278 = vperm.slane %v2484, %v3078
          %v3279 = vsel %vm3080, %v3278, %v3277
          %v3280 = vperm.slane %v2486, %v3082
          %v3281 = vsel %vm3084, %v3280, %v3279
          %v3282 = vperm.slane %v2488, %v3086
          %v3283 = vsel %vm3088, %v3282, %v3281
          %v3284 = vperm.slane %v2490, %v3090
          %v3285 = vsel %vm3092, %v3284, %v3283
          %v3286 = vperm.slane %v2492, %v3094
          %v3287 = vsel %vm3096, %v3286, %v3285
          %v3288 = vperm.slane %v2494, %v3098
          %v3289 = vsel %vm3100, %v3288, %v3287
          %v3290 = vperm.slane %v2496, %v3102
          %v3291 = vsel %vm3104, %v3290, %v3289
          %v3292 = vperm.slane %v2498, %v3044
          %v3293 = vperm.slane %v2500, %v3046
          %v3294 = vsel %vm3048, %v3293, %v3292
          %v3295 = vperm.slane %v2502, %v3050
          %v3296 = vsel %vm3052, %v3295, %v3294
          %v3297 = vperm.slane %v2504, %v3054
          %v3298 = vsel %vm3056, %v3297, %v3296
          %v3299 = vperm.slane %v2506, %v3058
          %v3300 = vsel %vm3060, %v3299, %v3298
          %v3301 = vperm.slane %v2508, %v3062
          %v3302 = vsel %vm3064, %v3301, %v3300
          %v3303 = vperm.slane %v2510, %v3066
          %v3304 = vsel %vm3068, %v3303, %v3302
          %v3305 = vperm.slane %v2512, %v3070
          %v3306 = vsel %vm3072, %v3305, %v3304
          %v3307 = vperm.slane %v2514, %v3074
          %v3308 = vsel %vm3076, %v3307, %v3306
          %v3309 = vperm.slane %v2516, %v3078
          %v3310 = vsel %vm3080, %v3309, %v3308
          %v3311 = vperm.slane %v2518, %v3082
          %v3312 = vsel %vm3084, %v3311, %v3310
          %v3313 = vperm.slane %v2520, %v3086
          %v3314 = vsel %vm3088, %v3313, %v3312
          %v3315 = vperm.slane %v2522, %v3090
          %v3316 = vsel %vm3092, %v3315, %v3314
          %v3317 = vperm.slane %v2524, %v3094
          %v3318 = vsel %vm3096, %v3317, %v3316
          %v3319 = vperm.slane %v2526, %v3098
          %v3320 = vsel %vm3100, %v3319, %v3318
          %v3321 = vperm.slane %v2528, %v3102
          %v3322 = vsel %vm3104, %v3321, %v3320
          %v3323 = vperm.slane %v2530, %v3044
          %v3324 = vperm.slane %v2532, %v3046
          %v3325 = vsel %vm3048, %v3324, %v3323
          %v3326 = vperm.slane %v2534, %v3050
          %v3327 = vsel %vm3052, %v3326, %v3325
          %v3328 = vperm.slane %v2536, %v3054
          %v3329 = vsel %vm3056, %v3328, %v3327
          %v3330 = vperm.slane %v2538, %v3058
          %v3331 = vsel %vm3060, %v3330, %v3329
          %v3332 = vperm.slane %v2540, %v3062
          %v3333 = vsel %vm3064, %v3332, %v3331
          %v3334 = vperm.slane %v2542, %v3066
          %v3335 = vsel %vm3068, %v3334, %v3333
          %v3336 = vperm.slane %v2544, %v3070
          %v3337 = vsel %vm3072, %v3336, %v3335
          %v3338 = vperm.slane %v2546, %v3074
          %v3339 = vsel %vm3076, %v3338, %v3337
          %v3340 = vperm.slane %v2548, %v3078
          %v3341 = vsel %vm3080, %v3340, %v3339
          %v3342 = vperm.slane %v2550, %v3082
          %v3343 = vsel %vm3084, %v3342, %v3341
          %v3344 = vperm.slane %v2552, %v3086
          %v3345 = vsel %vm3088, %v3344, %v3343
          %v3346 = vperm.slane %v2554, %v3090
          %v3347 = vsel %vm3092, %v3346, %v3345
          %v3348 = vperm.slane %v2556, %v3094
          %v3349 = vsel %vm3096, %v3348, %v3347
          %v3350 = vperm.slane %v2558, %v3098
          %v3351 = vsel %vm3100, %v3350, %v3349
          %v3352 = vperm.slane %v2560, %v3102
          %v3353 = vsel %vm3104, %v3352, %v3351
          %v3354 = vperm.slane %v2562, %v3044
          %v3355 = vperm.slane %v2564, %v3046
          %v3356 = vsel %vm3048, %v3355, %v3354
          %v3357 = vperm.slane %v2566, %v3050
          %v3358 = vsel %vm3052, %v3357, %v3356
          %v3359 = vperm.slane %v2568, %v3054
          %v3360 = vsel %vm3056, %v3359, %v3358
          %v3361 = vperm.slane %v2570, %v3058
          %v3362 = vsel %vm3060, %v3361, %v3360
          %v3363 = vperm.slane %v2572, %v3062
          %v3364 = vsel %vm3064, %v3363, %v3362
          %v3365 = vperm.slane %v2574, %v3066
          %v3366 = vsel %vm3068, %v3365, %v3364
          %v3367 = vperm.slane %v2576, %v3070
          %v3368 = vsel %vm3072, %v3367, %v3366
          %v3369 = vperm.slane %v2578, %v3074
          %v3370 = vsel %vm3076, %v3369, %v3368
          %v3371 = vperm.slane %v2580, %v3078
          %v3372 = vsel %vm3080, %v3371, %v3370
          %v3373 = vperm.slane %v2582, %v3082
          %v3374 = vsel %vm3084, %v3373, %v3372
          %v3375 = vperm.slane %v2584, %v3086
          %v3376 = vsel %vm3088, %v3375, %v3374
          %v3377 = vperm.slane %v2586, %v3090
          %v3378 = vsel %vm3092, %v3377, %v3376
          %v3379 = vperm.slane %v2588, %v3094
          %v3380 = vsel %vm3096, %v3379, %v3378
          %v3381 = vperm.slane %v2590, %v3098
          %v3382 = vsel %vm3100, %v3381, %v3380
          %v3383 = vperm.slane %v2592, %v3102
          %v3384 = vsel %vm3104, %v3383, %v3382
          %v3385 = vperm.slane %v2594, %v3044
          %v3386 = vperm.slane %v2596, %v3046
          %v3387 = vsel %vm3048, %v3386, %v3385
          %v3388 = vperm.slane %v2598, %v3050
          %v3389 = vsel %vm3052, %v3388, %v3387
          %v3390 = vperm.slane %v2600, %v3054
          %v3391 = vsel %vm3056, %v3390, %v3389
          %v3392 = vperm.slane %v2602, %v3058
          %v3393 = vsel %vm3060, %v3392, %v3391
          %v3394 = vperm.slane %v2604, %v3062
          %v3395 = vsel %vm3064, %v3394, %v3393
          %v3396 = vperm.slane %v2606, %v3066
          %v3397 = vsel %vm3068, %v3396, %v3395
          %v3398 = vperm.slane %v2608, %v3070
          %v3399 = vsel %vm3072, %v3398, %v3397
          %v3400 = vperm.slane %v2610, %v3074
          %v3401 = vsel %vm3076, %v3400, %v3399
          %v3402 = vperm.slane %v2612, %v3078
          %v3403 = vsel %vm3080, %v3402, %v3401
          %v3404 = vperm.slane %v2614, %v3082
          %v3405 = vsel %vm3084, %v3404, %v3403
          %v3406 = vperm.slane %v2616, %v3086
          %v3407 = vsel %vm3088, %v3406, %v3405
          %v3408 = vperm.slane %v2618, %v3090
          %v3409 = vsel %vm3092, %v3408, %v3407
          %v3410 = vperm.slane %v2620, %v3094
          %v3411 = vsel %vm3096, %v3410, %v3409
          %v3412 = vperm.slane %v2622, %v3098
          %v3413 = vsel %vm3100, %v3412, %v3411
          %v3414 = vperm.slane %v2624, %v3102
          %v3415 = vsel %vm3104, %v3414, %v3413
          %v3416 = vperm.slane %v2626, %v3044
          %v3417 = vperm.slane %v2628, %v3046
          %v3418 = vsel %vm3048, %v3417, %v3416
          %v3419 = vperm.slane %v2630, %v3050
          %v3420 = vsel %vm3052, %v3419, %v3418
          %v3421 = vperm.slane %v2632, %v3054
          %v3422 = vsel %vm3056, %v3421, %v3420
          %v3423 = vperm.slane %v2634, %v3058
          %v3424 = vsel %vm3060, %v3423, %v3422
          %v3425 = vperm.slane %v2636, %v3062
          %v3426 = vsel %vm3064, %v3425, %v3424
          %v3427 = vperm.slane %v2638, %v3066
          %v3428 = vsel %vm3068, %v3427, %v3426
          %v3429 = vperm.slane %v2640, %v3070
          %v3430 = vsel %vm3072, %v3429, %v3428
          %v3431 = vperm.slane %v2642, %v3074
          %v3432 = vsel %vm3076, %v3431, %v3430
          %v3433 = vperm.slane %v2644, %v3078
          %v3434 = vsel %vm3080, %v3433, %v3432
          %v3435 = vperm.slane %v2646, %v3082
          %v3436 = vsel %vm3084, %v3435, %v3434
          %v3437 = vperm.slane %v2648, %v3086
          %v3438 = vsel %vm3088, %v3437, %v3436
          %v3439 = vperm.slane %v2650, %v3090
          %v3440 = vsel %vm3092, %v3439, %v3438
          %v3441 = vperm.slane %v2652, %v3094
          %v3442 = vsel %vm3096, %v3441, %v3440
          %v3443 = vperm.slane %v2654, %v3098
          %v3444 = vsel %vm3100, %v3443, %v3442
          %v3445 = vperm.slane %v2656, %v3102
          %v3446 = vsel %vm3104, %v3445, %v3444
          %v3447 = vperm.slane %v2658, %v3044
          %v3448 = vperm.slane %v2660, %v3046
          %v3449 = vsel %vm3048, %v3448, %v3447
          %v3450 = vperm.slane %v2662, %v3050
          %v3451 = vsel %vm3052, %v3450, %v3449
          %v3452 = vperm.slane %v2664, %v3054
          %v3453 = vsel %vm3056, %v3452, %v3451
          %v3454 = vperm.slane %v2666, %v3058
          %v3455 = vsel %vm3060, %v3454, %v3453
          %v3456 = vperm.slane %v2668, %v3062
          %v3457 = vsel %vm3064, %v3456, %v3455
          %v3458 = vperm.slane %v2670, %v3066
          %v3459 = vsel %vm3068, %v3458, %v3457
          %v3460 = vperm.slane %v2672, %v3070
          %v3461 = vsel %vm3072, %v3460, %v3459
          %v3462 = vperm.slane %v2674, %v3074
          %v3463 = vsel %vm3076, %v3462, %v3461
          %v3464 = vperm.slane %v2676, %v3078
          %v3465 = vsel %vm3080, %v3464, %v3463
          %v3466 = vperm.slane %v2678, %v3082
          %v3467 = vsel %vm3084, %v3466, %v3465
          %v3468 = vperm.slane %v2680, %v3086
          %v3469 = vsel %vm3088, %v3468, %v3467
          %v3470 = vperm.slane %v2682, %v3090
          %v3471 = vsel %vm3092, %v3470, %v3469
          %v3472 = vperm.slane %v2684, %v3094
          %v3473 = vsel %vm3096, %v3472, %v3471
          %v3474 = vperm.slane %v2686, %v3098
          %v3475 = vsel %vm3100, %v3474, %v3473
          %v3476 = vperm.slane %v2688, %v3102
          %v3477 = vsel %vm3104, %v3476, %v3475
          %v3478 = vperm.slane %v2690, %v3044
          %v3479 = vperm.slane %v2692, %v3046
          %v3480 = vsel %vm3048, %v3479, %v3478
          %v3481 = vperm.slane %v2694, %v3050
          %v3482 = vsel %vm3052, %v3481, %v3480
          %v3483 = vperm.slane %v2696, %v3054
          %v3484 = vsel %vm3056, %v3483, %v3482
          %v3485 = vperm.slane %v2698, %v3058
          %v3486 = vsel %vm3060, %v3485, %v3484
          %v3487 = vperm.slane %v2700, %v3062
          %v3488 = vsel %vm3064, %v3487, %v3486
          %v3489 = vperm.slane %v2702, %v3066
          %v3490 = vsel %vm3068, %v3489, %v3488
          %v3491 = vperm.slane %v2704, %v3070
          %v3492 = vsel %vm3072, %v3491, %v3490
          %v3493 = vperm.slane %v2706, %v3074
          %v3494 = vsel %vm3076, %v3493, %v3492
          %v3495 = vperm.slane %v2708, %v3078
          %v3496 = vsel %vm3080, %v3495, %v3494
          %v3497 = vperm.slane %v2710, %v3082
          %v3498 = vsel %vm3084, %v3497, %v3496
          %v3499 = vperm.slane %v2712, %v3086
          %v3500 = vsel %vm3088, %v3499, %v3498
          %v3501 = vperm.slane %v2714, %v3090
          %v3502 = vsel %vm3092, %v3501, %v3500
          %v3503 = vperm.slane %v2716, %v3094
          %v3504 = vsel %vm3096, %v3503, %v3502
          %v3505 = vperm.slane %v2718, %v3098
          %v3506 = vsel %vm3100, %v3505, %v3504
          %v3507 = vperm.slane %v2720, %v3102
          %v3508 = vsel %vm3104, %v3507, %v3506
          %v3509 = vperm.slane %v2722, %v3044
          %v3510 = vperm.slane %v2724, %v3046
          %v3511 = vsel %vm3048, %v3510, %v3509
          %v3512 = vperm.slane %v2726, %v3050
          %v3513 = vsel %vm3052, %v3512, %v3511
          %v3514 = vperm.slane %v2728, %v3054
          %v3515 = vsel %vm3056, %v3514, %v3513
          %v3516 = vperm.slane %v2730, %v3058
          %v3517 = vsel %vm3060, %v3516, %v3515
          %v3518 = vperm.slane %v2732, %v3062
          %v3519 = vsel %vm3064, %v3518, %v3517
          %v3520 = vperm.slane %v2734, %v3066
          %v3521 = vsel %vm3068, %v3520, %v3519
          %v3522 = vperm.slane %v2736, %v3070
          %v3523 = vsel %vm3072, %v3522, %v3521
          %v3524 = vperm.slane %v2738, %v3074
          %v3525 = vsel %vm3076, %v3524, %v3523
          %v3526 = vperm.slane %v2740, %v3078
          %v3527 = vsel %vm3080, %v3526, %v3525
          %v3528 = vperm.slane %v2742, %v3082
          %v3529 = vsel %vm3084, %v3528, %v3527
          %v3530 = vperm.slane %v2744, %v3086
          %v3531 = vsel %vm3088, %v3530, %v3529
          %v3532 = vperm.slane %v2746, %v3090
          %v3533 = vsel %vm3092, %v3532, %v3531
          %v3534 = vperm.slane %v2748, %v3094
          %v3535 = vsel %vm3096, %v3534, %v3533
          %v3536 = vperm.slane %v2750, %v3098
          %v3537 = vsel %vm3100, %v3536, %v3535
          %v3538 = vperm.slane %v2752, %v3102
          %v3539 = vsel %vm3104, %v3538, %v3537
          %v3540 = vperm.slane %v2754, %v3044
          %v3541 = vperm.slane %v2756, %v3046
          %v3542 = vsel %vm3048, %v3541, %v3540
          %v3543 = vperm.slane %v2758, %v3050
          %v3544 = vsel %vm3052, %v3543, %v3542
          %v3545 = vperm.slane %v2760, %v3054
          %v3546 = vsel %vm3056, %v3545, %v3544
          %v3547 = vperm.slane %v2762, %v3058
          %v3548 = vsel %vm3060, %v3547, %v3546
          %v3549 = vperm.slane %v2764, %v3062
          %v3550 = vsel %vm3064, %v3549, %v3548
          %v3551 = vperm.slane %v2766, %v3066
          %v3552 = vsel %vm3068, %v3551, %v3550
          %v3553 = vperm.slane %v2768, %v3070
          %v3554 = vsel %vm3072, %v3553, %v3552
          %v3555 = vperm.slane %v2770, %v3074
          %v3556 = vsel %vm3076, %v3555, %v3554
          %v3557 = vperm.slane %v2772, %v3078
          %v3558 = vsel %vm3080, %v3557, %v3556
          %v3559 = vperm.slane %v2774, %v3082
          %v3560 = vsel %vm3084, %v3559, %v3558
          %v3561 = vperm.slane %v2776, %v3086
          %v3562 = vsel %vm3088, %v3561, %v3560
          %v3563 = vperm.slane %v2778, %v3090
          %v3564 = vsel %vm3092, %v3563, %v3562
          %v3565 = vperm.slane %v2780, %v3094
          %v3566 = vsel %vm3096, %v3565, %v3564
          %v3567 = vperm.slane %v2782, %v3098
          %v3568 = vsel %vm3100, %v3567, %v3566
          %v3569 = vperm.slane %v2784, %v3102
          %v3570 = vsel %vm3104, %v3569, %v3568
          %vm3571 = vcmask 1041409
          %v3572 = vsel %vm3571, %v3136, %v3105
          %vm3573 = vcmask 1042434
          %v3574 = vsel %vm3573, %v3167, %v3572
          %vm3575 = vcmask 1043459
          %v3576 = vsel %vm3575, %v3198, %v3574
          %vm3577 = vcmask 1044484
          %v3578 = vsel %vm3577, %v3229, %v3576
          %vm3579 = vcmask 1045509
          %v3580 = vsel %vm3579, %v3260, %v3578
          %vm3581 = vcmask 1046534
          %v3582 = vsel %vm3581, %v3291, %v3580
          %vm3583 = vcmask 1047559
          %v3584 = vsel %vm3583, %v3322, %v3582
          %v3585 = vsel %vm3571, %v3384, %v3353
          %v3586 = vsel %vm3573, %v3415, %v3585
          %v3587 = vsel %vm3575, %v3446, %v3586
          %v3588 = vsel %vm3577, %v3477, %v3587
          %v3589 = vsel %vm3579, %v3508, %v3588
          %v3590 = vsel %vm3581, %v3539, %v3589
          %v3591 = vsel %vm3583, %v3570, %v3590
          %v3594 = vmax.f32 %v2785, %v3584
          %v3595 = vmax.f32 %v2786, %v3591
          %3596 = vst [vmem:[#allocation2] sm:$0xff] %v3594
          %3597 = vst [vmem:[#allocation2 + $0x8] sm:$0xff] %v3595
        $region119: #{tpu_custom_call.1} parent=102 // pred_fallthru
          _
        %p3598 = scmp.eq.s32.totalorder %s24, 1
        // Predicated region
        $region120: #{tpu_custom_call.1} parent=102 // pred_check
          %p3599 = pneg %p3598
        $region121: #{tpu_custom_call.1} parent=102 // pred_check_branch
          %3601 = sbr.rel (%p3599) target = $region123
        $region122: #{tpu_custom_call.1} parent=102 // pred_region
          %v3602 = vlaneseq
          %v3603 = vand.u32 %v3602, 127
          %vm3604 = vcmp.lt.s32.totalorder %v3603, 72
          %v3605 = vsel %vm3604, 0.0, -1e+30
          %v3606 = vadd.f32 %v1630, %v3605
          %v3607 = vadd.f32 %v1632, %v3605
          %v3608 = vadd.f32 %v1635, %v3605
          %v3609 = vadd.f32 %v1637, %v3605
          %v3610 = vadd.f32 %v1640, %v3605
          %v3611 = vadd.f32 %v1642, %v3605
          %v3612 = vadd.f32 %v1645, %v3605
          %v3613 = vadd.f32 %v1647, %v3605
          %v3614 = vadd.f32 %v1650, %v3605
          %v3615 = vadd.f32 %v1652, %v3605
          %v3616 = vadd.f32 %v1655, %v3605
          %v3617 = vadd.f32 %v1657, %v3605
          %v3618 = vadd.f32 %v1660, %v3605
          %v3619 = vadd.f32 %v1662, %v3605
          %v3620 = vadd.f32 %v1665, %v3605
          %v3621 = vadd.f32 %v1667, %v3605
          %v3622 = vadd.f32 %v1670, %v3605
          %v3623 = vadd.f32 %v1672, %v3605
          %v3624 = vadd.f32 %v1675, %v3605
          %v3625 = vadd.f32 %v1677, %v3605
          %v3626 = vadd.f32 %v1680, %v3605
          %v3627 = vadd.f32 %v1682, %v3605
          %v3628 = vadd.f32 %v1685, %v3605
          %v3629 = vadd.f32 %v1687, %v3605
          %v3630 = vadd.f32 %v1690, %v3605
          %v3631 = vadd.f32 %v1692, %v3605
          %v3632 = vadd.f32 %v1695, %v3605
          %v3633 = vadd.f32 %v1697, %v3605
          %v3634 = vadd.f32 %v1700, %v3605
          %v3635 = vadd.f32 %v1702, %v3605
          %v3636 = vadd.f32 %v1705, %v3605
          %v3637 = vadd.f32 %v1707, %v3605
          %v3638 = vadd.f32 %v1710, %v3605
          %v3639 = vadd.f32 %v1712, %v3605
          %v3640 = vadd.f32 %v1715, %v3605
          %v3641 = vadd.f32 %v1717, %v3605
          %v3642 = vadd.f32 %v1720, %v3605
          %v3643 = vadd.f32 %v1722, %v3605
          %v3644 = vadd.f32 %v1725, %v3605
          %v3645 = vadd.f32 %v1727, %v3605
          %v3646 = vadd.f32 %v1730, %v3605
          %v3647 = vadd.f32 %v1732, %v3605
          %v3648 = vadd.f32 %v1735, %v3605
          %v3649 = vadd.f32 %v1737, %v3605
          %v3650 = vadd.f32 %v1740, %v3605
          %v3651 = vadd.f32 %v1742, %v3605
          %v3652 = vadd.f32 %v1745, %v3605
          %v3653 = vadd.f32 %v1747, %v3605
          %v3654 = vadd.f32 %v1750, %v3605
          %v3655 = vadd.f32 %v1752, %v3605
          %v3656 = vadd.f32 %v1755, %v3605
          %v3657 = vadd.f32 %v1757, %v3605
          %v3658 = vadd.f32 %v1760, %v3605
          %v3659 = vadd.f32 %v1762, %v3605
          %v3660 = vadd.f32 %v1765, %v3605
          %v3661 = vadd.f32 %v1767, %v3605
          %v3662 = vadd.f32 %v1770, %v3605
          %v3663 = vadd.f32 %v1772, %v3605
          %v3664 = vadd.f32 %v1775, %v3605
          %v3665 = vadd.f32 %v1777, %v3605
          %v3666 = vadd.f32 %v1780, %v3605
          %v3667 = vadd.f32 %v1782, %v3605
          %v3668 = vadd.f32 %v1785, %v3605
          %v3669 = vadd.f32 %v1787, %v3605
          %v3670 = vadd.f32 %v1790, %v3605
          %v3671 = vadd.f32 %v1792, %v3605
          %v3672 = vadd.f32 %v1795, %v3605
          %v3673 = vadd.f32 %v1797, %v3605
          %v3674 = vadd.f32 %v1800, %v3605
          %v3675 = vadd.f32 %v1802, %v3605
          %v3676 = vadd.f32 %v1805, %v3605
          %v3677 = vadd.f32 %v1807, %v3605
          %v3678 = vadd.f32 %v1810, %v3605
          %v3679 = vadd.f32 %v1812, %v3605
          %v3680 = vadd.f32 %v1815, %v3605
          %v3681 = vadd.f32 %v1817, %v3605
          %v3682 = vadd.f32 %v1820, %v3605
          %v3683 = vadd.f32 %v1822, %v3605
          %v3684 = vadd.f32 %v1825, %v3605
          %v3685 = vadd.f32 %v1827, %v3605
          %v3686 = vadd.f32 %v1830, %v3605
          %v3687 = vadd.f32 %v1832, %v3605
          %v3688 = vadd.f32 %v1835, %v3605
          %v3689 = vadd.f32 %v1837, %v3605
          %v3690 = vadd.f32 %v1840, %v3605
          %v3691 = vadd.f32 %v1842, %v3605
          %v3692 = vadd.f32 %v1845, %v3605
          %v3693 = vadd.f32 %v1847, %v3605
          %v3694 = vadd.f32 %v1850, %v3605
          %v3695 = vadd.f32 %v1852, %v3605
          %v3696 = vadd.f32 %v1855, %v3605
          %v3697 = vadd.f32 %v1857, %v3605
          %v3698 = vadd.f32 %v1860, %v3605
          %v3699 = vadd.f32 %v1862, %v3605
          %v3700 = vadd.f32 %v1865, %v3605
          %v3701 = vadd.f32 %v1867, %v3605
          %v3702 = vadd.f32 %v1870, %v3605
          %v3703 = vadd.f32 %v1872, %v3605
          %v3704 = vadd.f32 %v1875, %v3605
          %v3705 = vadd.f32 %v1877, %v3605
          %v3706 = vadd.f32 %v1880, %v3605
          %v3707 = vadd.f32 %v1882, %v3605
          %v3708 = vadd.f32 %v1885, %v3605
          %v3709 = vadd.f32 %v1887, %v3605
          %v3710 = vadd.f32 %v1890, %v3605
          %v3711 = vadd.f32 %v1892, %v3605
          %v3712 = vadd.f32 %v1895, %v3605
          %v3713 = vadd.f32 %v1897, %v3605
          %v3714 = vadd.f32 %v1900, %v3605
          %v3715 = vadd.f32 %v1902, %v3605
          %v3716 = vadd.f32 %v1905, %v3605
          %v3717 = vadd.f32 %v1907, %v3605
          %v3718 = vadd.f32 %v1910, %v3605
          %v3719 = vadd.f32 %v1912, %v3605
          %v3720 = vadd.f32 %v1915, %v3605
          %v3721 = vadd.f32 %v1917, %v3605
          %v3722 = vadd.f32 %v1920, %v3605
          %v3723 = vadd.f32 %v1922, %v3605
          %v3724 = vadd.f32 %v1925, %v3605
          %v3725 = vadd.f32 %v1927, %v3605
          %v3726 = vadd.f32 %v1930, %v3605
          %v3727 = vadd.f32 %v1932, %v3605
          %v3728 = vadd.f32 %v1935, %v3605
          %v3729 = vadd.f32 %v1937, %v3605
          %v3730 = vadd.f32 %v1940, %v3605
          %v3731 = vadd.f32 %v1942, %v3605
          %v3732 = vadd.f32 %v1945, %v3605
          %v3733 = vadd.f32 %v1947, %v3605
          %v3734 = vadd.f32 %v1950, %v3605
          %v3735 = vadd.f32 %v1952, %v3605
          %v3736 = vadd.f32 %v1955, %v3605
          %v3737 = vadd.f32 %v1957, %v3605
          %v3738 = vadd.f32 %v1960, %v3605
          %v3739 = vadd.f32 %v1962, %v3605
          %v3740 = vadd.f32 %v1965, %v3605
          %v3741 = vadd.f32 %v1967, %v3605
          %v3742 = vadd.f32 %v1970, %v3605
          %v3743 = vadd.f32 %v1972, %v3605
          %v3744 = vadd.f32 %v1975, %v3605
          %v3745 = vadd.f32 %v1977, %v3605
          %v3746 = vadd.f32 %v1980, %v3605
          %v3747 = vadd.f32 %v1982, %v3605
          %v3748 = vadd.f32 %v1985, %v3605
          %v3749 = vadd.f32 %v1987, %v3605
          %v3750 = vadd.f32 %v1990, %v3605
          %v3751 = vadd.f32 %v1992, %v3605
          %v3752 = vadd.f32 %v1995, %v3605
          %v3753 = vadd.f32 %v1997, %v3605
          %v3754 = vadd.f32 %v2000, %v3605
          %v3755 = vadd.f32 %v2002, %v3605
          %v3756 = vadd.f32 %v2005, %v3605
          %v3757 = vadd.f32 %v2007, %v3605
          %v3758 = vadd.f32 %v2010, %v3605
          %v3759 = vadd.f32 %v2012, %v3605
          %v3760 = vadd.f32 %v2015, %v3605
          %v3761 = vadd.f32 %v2017, %v3605
          %v3762 = vadd.f32 %v2020, %v3605
          %v3763 = vadd.f32 %v2022, %v3605
          %v3764 = vadd.f32 %v2025, %v3605
          %v3765 = vadd.f32 %v2027, %v3605
          %v3766 = vadd.f32 %v2030, %v3605
          %v3767 = vadd.f32 %v2032, %v3605
          %v3768 = vadd.f32 %v2035, %v3605
          %v3769 = vadd.f32 %v2037, %v3605
          %v3770 = vadd.f32 %v2040, %v3605
          %v3771 = vadd.f32 %v2042, %v3605
          %v3772 = vadd.f32 %v2045, %v3605
          %v3773 = vadd.f32 %v2047, %v3605
          %v3774 = vadd.f32 %v2050, %v3605
          %v3775 = vadd.f32 %v2052, %v3605
          %v3776 = vadd.f32 %v2055, %v3605
          %v3777 = vadd.f32 %v2057, %v3605
          %v3778 = vadd.f32 %v2060, %v3605
          %v3779 = vadd.f32 %v2062, %v3605
          %v3780 = vadd.f32 %v2065, %v3605
          %v3781 = vadd.f32 %v2067, %v3605
          %v3782 = vadd.f32 %v2070, %v3605
          %v3783 = vadd.f32 %v2072, %v3605
          %v3784 = vadd.f32 %v2075, %v3605
          %v3785 = vadd.f32 %v2077, %v3605
          %v3786 = vadd.f32 %v2080, %v3605
          %v3787 = vadd.f32 %v2082, %v3605
          %v3788 = vadd.f32 %v2085, %v3605
          %v3789 = vadd.f32 %v2087, %v3605
          %v3790 = vadd.f32 %v2090, %v3605
          %v3791 = vadd.f32 %v2092, %v3605
          %v3792 = vadd.f32 %v2095, %v3605
          %v3793 = vadd.f32 %v2097, %v3605
          %v3794 = vadd.f32 %v2100, %v3605
          %v3795 = vadd.f32 %v2102, %v3605
          %v3796 = vadd.f32 %v2105, %v3605
          %v3797 = vadd.f32 %v2107, %v3605
          %v3798 = vadd.f32 %v2110, %v3605
          %v3799 = vadd.f32 %v2112, %v3605
          %v3800 = vadd.f32 %v2115, %v3605
          %v3801 = vadd.f32 %v2117, %v3605
          %v3802 = vadd.f32 %v2120, %v3605
          %v3803 = vadd.f32 %v2122, %v3605
          %v3804 = vadd.f32 %v2125, %v3605
          %v3805 = vadd.f32 %v2127, %v3605
          %v3806 = vadd.f32 %v2130, %v3605
          %v3807 = vadd.f32 %v2132, %v3605
          %v3808 = vadd.f32 %v2135, %v3605
          %v3809 = vadd.f32 %v2137, %v3605
          %v3810 = vadd.f32 %v2140, %v3605
          %v3811 = vadd.f32 %v2142, %v3605
          %v3812 = vadd.f32 %v2145, %v3605
          %v3813 = vadd.f32 %v2147, %v3605
          %v3814 = vadd.f32 %v2150, %v3605
          %v3815 = vadd.f32 %v2152, %v3605
          %v3816 = vadd.f32 %v2155, %v3605
          %v3817 = vadd.f32 %v2157, %v3605
          %v3818 = vadd.f32 %v2160, %v3605
          %v3819 = vadd.f32 %v2162, %v3605
          %v3820 = vadd.f32 %v2165, %v3605
          %v3821 = vadd.f32 %v2167, %v3605
          %v3822 = vadd.f32 %v2170, %v3605
          %v3823 = vadd.f32 %v2172, %v3605
          %v3824 = vadd.f32 %v2175, %v3605
          %v3825 = vadd.f32 %v2177, %v3605
          %v3826 = vadd.f32 %v2180, %v3605
          %v3827 = vadd.f32 %v2182, %v3605
          %v3828 = vadd.f32 %v2185, %v3605
          %v3829 = vadd.f32 %v2187, %v3605
          %v3830 = vadd.f32 %v2190, %v3605
          %v3831 = vadd.f32 %v2192, %v3605
          %v3832 = vadd.f32 %v2195, %v3605
          %v3833 = vadd.f32 %v2197, %v3605
          %v3834 = vadd.f32 %v2200, %v3605
          %v3835 = vadd.f32 %v2202, %v3605
          %v3836 = vadd.f32 %v2205, %v3605
          %v3837 = vadd.f32 %v2207, %v3605
          %v3838 = vadd.f32 %v2210, %v3605
          %v3839 = vadd.f32 %v2212, %v3605
          %v3840 = vadd.f32 %v2215, %v3605
          %v3841 = vadd.f32 %v2217, %v3605
          %v3842 = vadd.f32 %v2220, %v3605
          %v3843 = vadd.f32 %v2222, %v3605
          %v3844 = vadd.f32 %v2225, %v3605
          %v3845 = vadd.f32 %v2227, %v3605
          %v3846 = vadd.f32 %v2230, %v3605
          %v3847 = vadd.f32 %v2232, %v3605
          %v3848 = vadd.f32 %v2235, %v3605
          %v3849 = vadd.f32 %v2237, %v3605
          %v3850 = vadd.f32 %v2240, %v3605
          %v3851 = vadd.f32 %v2242, %v3605
          %v3852 = vadd.f32 %v2245, %v3605
          %v3853 = vadd.f32 %v2247, %v3605
          %v3854 = vadd.f32 %v2250, %v3605
          %v3855 = vadd.f32 %v2252, %v3605
          %v3856 = vadd.f32 %v2255, %v3605
          %v3857 = vadd.f32 %v2257, %v3605
          %v3858 = vadd.f32 %v2260, %v3605
          %v3859 = vadd.f32 %v2262, %v3605
          %v3860 = vadd.f32 %v2265, %v3605
          %v3861 = vadd.f32 %v2267, %v3605
          %3862 = vmax.xlane.f32.xlu0 %v3606
          %v3863 = vpop.xlane.xlu0 %3862
          %3864 = vmax.xlane.f32.xlu0 %v3607
          %v3865 = vpop.xlane.xlu0 %3864
          %3866 = vmax.xlane.f32.xlu0 %v3608
          %v3867 = vpop.xlane.xlu0 %3866
          %3868 = vmax.xlane.f32.xlu0 %v3609
          %v3869 = vpop.xlane.xlu0 %3868
          %3870 = vmax.xlane.f32.xlu0 %v3610
          %v3871 = vpop.xlane.xlu0 %3870
          %3872 = vmax.xlane.f32.xlu0 %v3611
          %v3873 = vpop.xlane.xlu0 %3872
          %3874 = vmax.xlane.f32.xlu0 %v3612
          %v3875 = vpop.xlane.xlu0 %3874
          %3876 = vmax.xlane.f32.xlu0 %v3613
          %v3877 = vpop.xlane.xlu0 %3876
          %3878 = vmax.xlane.f32.xlu0 %v3614
          %v3879 = vpop.xlane.xlu0 %3878
          %3880 = vmax.xlane.f32.xlu0 %v3615
          %v3881 = vpop.xlane.xlu0 %3880
          %3882 = vmax.xlane.f32.xlu0 %v3616
          %v3883 = vpop.xlane.xlu0 %3882
          %3884 = vmax.xlane.f32.xlu0 %v3617
          %v3885 = vpop.xlane.xlu0 %3884
          %3886 = vmax.xlane.f32.xlu0 %v3618
          %v3887 = vpop.xlane.xlu0 %3886
          %3888 = vmax.xlane.f32.xlu0 %v3619
          %v3889 = vpop.xlane.xlu0 %3888
          %3890 = vmax.xlane.f32.xlu0 %v3620
          %v3891 = vpop.xlane.xlu0 %3890
          %3892 = vmax.xlane.f32.xlu0 %v3621
          %v3893 = vpop.xlane.xlu0 %3892
          %3894 = vmax.xlane.f32.xlu0 %v3622
          %v3895 = vpop.xlane.xlu0 %3894
          %3896 = vmax.xlane.f32.xlu0 %v3623
          %v3897 = vpop.xlane.xlu0 %3896
          %3898 = vmax.xlane.f32.xlu0 %v3624
          %v3899 = vpop.xlane.xlu0 %3898
          %3900 = vmax.xlane.f32.xlu0 %v3625
          %v3901 = vpop.xlane.xlu0 %3900
          %3902 = vmax.xlane.f32.xlu0 %v3626
          %v3903 = vpop.xlane.xlu0 %3902
          %3904 = vmax.xlane.f32.xlu0 %v3627
          %v3905 = vpop.xlane.xlu0 %3904
          %3906 = vmax.xlane.f32.xlu0 %v3628
          %v3907 = vpop.xlane.xlu0 %3906
          %3908 = vmax.xlane.f32.xlu0 %v3629
          %v3909 = vpop.xlane.xlu0 %3908
          %3910 = vmax.xlane.f32.xlu0 %v3630
          %v3911 = vpop.xlane.xlu0 %3910
          %3912 = vmax.xlane.f32.xlu0 %v3631
          %v3913 = vpop.xlane.xlu0 %3912
          %3914 = vmax.xlane.f32.xlu0 %v3632
          %v3915 = vpop.xlane.xlu0 %3914
          %3916 = vmax.xlane.f32.xlu0 %v3633
          %v3917 = vpop.xlane.xlu0 %3916
          %3918 = vmax.xlane.f32.xlu0 %v3634
          %v3919 = vpop.xlane.xlu0 %3918
          %3920 = vmax.xlane.f32.xlu0 %v3635
          %v3921 = vpop.xlane.xlu0 %3920
          %3922 = vmax.xlane.f32.xlu0 %v3636
          %v3923 = vpop.xlane.xlu0 %3922
          %3924 = vmax.xlane.f32.xlu0 %v3637
          %v3925 = vpop.xlane.xlu0 %3924
          %3926 = vmax.xlane.f32.xlu0 %v3638
          %v3927 = vpop.xlane.xlu0 %3926
          %3928 = vmax.xlane.f32.xlu0 %v3639
          %v3929 = vpop.xlane.xlu0 %3928
          %3930 = vmax.xlane.f32.xlu0 %v3640
          %v3931 = vpop.xlane.xlu0 %3930
          %3932 = vmax.xlane.f32.xlu0 %v3641
          %v3933 = vpop.xlane.xlu0 %3932
          %3934 = vmax.xlane.f32.xlu0 %v3642
          %v3935 = vpop.xlane.xlu0 %3934
          %3936 = vmax.xlane.f32.xlu0 %v3643
          %v3937 = vpop.xlane.xlu0 %3936
          %3938 = vmax.xlane.f32.xlu0 %v3644
          %v3939 = vpop.xlane.xlu0 %3938
          %3940 = vmax.xlane.f32.xlu0 %v3645
          %v3941 = vpop.xlane.xlu0 %3940
          %3942 = vmax.xlane.f32.xlu0 %v3646
          %v3943 = vpop.xlane.xlu0 %3942
          %3944 = vmax.xlane.f32.xlu0 %v3647
          %v3945 = vpop.xlane.xlu0 %3944
          %3946 = vmax.xlane.f32.xlu0 %v3648
          %v3947 = vpop.xlane.xlu0 %3946
          %3948 = vmax.xlane.f32.xlu0 %v3649
          %v3949 = vpop.xlane.xlu0 %3948
          %3950 = vmax.xlane.f32.xlu0 %v3650
          %v3951 = vpop.xlane.xlu0 %3950
          %3952 = vmax.xlane.f32.xlu0 %v3651
          %v3953 = vpop.xlane.xlu0 %3952
          %3954 = vmax.xlane.f32.xlu0 %v3652
          %v3955 = vpop.xlane.xlu0 %3954
          %3956 = vmax.xlane.f32.xlu0 %v3653
          %v3957 = vpop.xlane.xlu0 %3956
          %3958 = vmax.xlane.f32.xlu0 %v3654
          %v3959 = vpop.xlane.xlu0 %3958
          %3960 = vmax.xlane.f32.xlu0 %v3655
          %v3961 = vpop.xlane.xlu0 %3960
          %3962 = vmax.xlane.f32.xlu0 %v3656
          %v3963 = vpop.xlane.xlu0 %3962
          %3964 = vmax.xlane.f32.xlu0 %v3657
          %v3965 = vpop.xlane.xlu0 %3964
          %3966 = vmax.xlane.f32.xlu0 %v3658
          %v3967 = vpop.xlane.xlu0 %3966
          %3968 = vmax.xlane.f32.xlu0 %v3659
          %v3969 = vpop.xlane.xlu0 %3968
          %3970 = vmax.xlane.f32.xlu0 %v3660
          %v3971 = vpop.xlane.xlu0 %3970
          %3972 = vmax.xlane.f32.xlu0 %v3661
          %v3973 = vpop.xlane.xlu0 %3972
          %3974 = vmax.xlane.f32.xlu0 %v3662
          %v3975 = vpop.xlane.xlu0 %3974
          %3976 = vmax.xlane.f32.xlu0 %v3663
          %v3977 = vpop.xlane.xlu0 %3976
          %3978 = vmax.xlane.f32.xlu0 %v3664
          %v3979 = vpop.xlane.xlu0 %3978
          %3980 = vmax.xlane.f32.xlu0 %v3665
          %v3981 = vpop.xlane.xlu0 %3980
          %3982 = vmax.xlane.f32.xlu0 %v3666
          %v3983 = vpop.xlane.xlu0 %3982
          %3984 = vmax.xlane.f32.xlu0 %v3667
          %v3985 = vpop.xlane.xlu0 %3984
          %3986 = vmax.xlane.f32.xlu0 %v3668
          %v3987 = vpop.xlane.xlu0 %3986
          %3988 = vmax.xlane.f32.xlu0 %v3669
          %v3989 = vpop.xlane.xlu0 %3988
          %3990 = vmax.xlane.f32.xlu0 %v3670
          %v3991 = vpop.xlane.xlu0 %3990
          %3992 = vmax.xlane.f32.xlu0 %v3671
          %v3993 = vpop.xlane.xlu0 %3992
          %3994 = vmax.xlane.f32.xlu0 %v3672
          %v3995 = vpop.xlane.xlu0 %3994
          %3996 = vmax.xlane.f32.xlu0 %v3673
          %v3997 = vpop.xlane.xlu0 %3996
          %3998 = vmax.xlane.f32.xlu0 %v3674
          %v3999 = vpop.xlane.xlu0 %3998
          %4000 = vmax.xlane.f32.xlu0 %v3675
          %v4001 = vpop.xlane.xlu0 %4000
          %4002 = vmax.xlane.f32.xlu0 %v3676
          %v4003 = vpop.xlane.xlu0 %4002
          %4004 = vmax.xlane.f32.xlu0 %v3677
          %v4005 = vpop.xlane.xlu0 %4004
          %4006 = vmax.xlane.f32.xlu0 %v3678
          %v4007 = vpop.xlane.xlu0 %4006
          %4008 = vmax.xlane.f32.xlu0 %v3679
          %v4009 = vpop.xlane.xlu0 %4008
          %4010 = vmax.xlane.f32.xlu0 %v3680
          %v4011 = vpop.xlane.xlu0 %4010
          %4012 = vmax.xlane.f32.xlu0 %v3681
          %v4013 = vpop.xlane.xlu0 %4012
          %4014 = vmax.xlane.f32.xlu0 %v3682
          %v4015 = vpop.xlane.xlu0 %4014
          %4016 = vmax.xlane.f32.xlu0 %v3683
          %v4017 = vpop.xlane.xlu0 %4016
          %4018 = vmax.xlane.f32.xlu0 %v3684
          %v4019 = vpop.xlane.xlu0 %4018
          %4020 = vmax.xlane.f32.xlu0 %v3685
          %v4021 = vpop.xlane.xlu0 %4020
          %4022 = vmax.xlane.f32.xlu0 %v3686
          %v4023 = vpop.xlane.xlu0 %4022
          %4024 = vmax.xlane.f32.xlu0 %v3687
          %v4025 = vpop.xlane.xlu0 %4024
          %4026 = vmax.xlane.f32.xlu0 %v3688
          %v4027 = vpop.xlane.xlu0 %4026
          %4028 = vmax.xlane.f32.xlu0 %v3689
          %v4029 = vpop.xlane.xlu0 %4028
          %4030 = vmax.xlane.f32.xlu0 %v3690
          %v4031 = vpop.xlane.xlu0 %4030
          %4032 = vmax.xlane.f32.xlu0 %v3691
          %v4033 = vpop.xlane.xlu0 %4032
          %4034 = vmax.xlane.f32.xlu0 %v3692
          %v4035 = vpop.xlane.xlu0 %4034
          %4036 = vmax.xlane.f32.xlu0 %v3693
          %v4037 = vpop.xlane.xlu0 %4036
          %4038 = vmax.xlane.f32.xlu0 %v3694
          %v4039 = vpop.xlane.xlu0 %4038
          %4040 = vmax.xlane.f32.xlu0 %v3695
          %v4041 = vpop.xlane.xlu0 %4040
          %4042 = vmax.xlane.f32.xlu0 %v3696
          %v4043 = vpop.xlane.xlu0 %4042
          %4044 = vmax.xlane.f32.xlu0 %v3697
          %v4045 = vpop.xlane.xlu0 %4044
          %4046 = vmax.xlane.f32.xlu0 %v3698
          %v4047 = vpop.xlane.xlu0 %4046
          %4048 = vmax.xlane.f32.xlu0 %v3699
          %v4049 = vpop.xlane.xlu0 %4048
          %4050 = vmax.xlane.f32.xlu0 %v3700
          %v4051 = vpop.xlane.xlu0 %4050
          %4052 = vmax.xlane.f32.xlu0 %v3701
          %v4053 = vpop.xlane.xlu0 %4052
          %4054 = vmax.xlane.f32.xlu0 %v3702
          %v4055 = vpop.xlane.xlu0 %4054
          %4056 = vmax.xlane.f32.xlu0 %v3703
          %v4057 = vpop.xlane.xlu0 %4056
          %4058 = vmax.xlane.f32.xlu0 %v3704
          %v4059 = vpop.xlane.xlu0 %4058
          %4060 = vmax.xlane.f32.xlu0 %v3705
          %v4061 = vpop.xlane.xlu0 %4060
          %4062 = vmax.xlane.f32.xlu0 %v3706
          %v4063 = vpop.xlane.xlu0 %4062
          %4064 = vmax.xlane.f32.xlu0 %v3707
          %v4065 = vpop.xlane.xlu0 %4064
          %4066 = vmax.xlane.f32.xlu0 %v3708
          %v4067 = vpop.xlane.xlu0 %4066
          %4068 = vmax.xlane.f32.xlu0 %v3709
          %v4069 = vpop.xlane.xlu0 %4068
          %4070 = vmax.xlane.f32.xlu0 %v3710
          %v4071 = vpop.xlane.xlu0 %4070
          %4072 = vmax.xlane.f32.xlu0 %v3711
          %v4073 = vpop.xlane.xlu0 %4072
          %4074 = vmax.xlane.f32.xlu0 %v3712
          %v4075 = vpop.xlane.xlu0 %4074
          %4076 = vmax.xlane.f32.xlu0 %v3713
          %v4077 = vpop.xlane.xlu0 %4076
          %4078 = vmax.xlane.f32.xlu0 %v3714
          %v4079 = vpop.xlane.xlu0 %4078
          %4080 = vmax.xlane.f32.xlu0 %v3715
          %v4081 = vpop.xlane.xlu0 %4080
          %4082 = vmax.xlane.f32.xlu0 %v3716
          %v4083 = vpop.xlane.xlu0 %4082
          %4084 = vmax.xlane.f32.xlu0 %v3717
          %v4085 = vpop.xlane.xlu0 %4084
          %4086 = vmax.xlane.f32.xlu0 %v3718
          %v4087 = vpop.xlane.xlu0 %4086
          %4088 = vmax.xlane.f32.xlu0 %v3719
          %v4089 = vpop.xlane.xlu0 %4088
          %4090 = vmax.xlane.f32.xlu0 %v3720
          %v4091 = vpop.xlane.xlu0 %4090
          %4092 = vmax.xlane.f32.xlu0 %v3721
          %v4093 = vpop.xlane.xlu0 %4092
          %4094 = vmax.xlane.f32.xlu0 %v3722
          %v4095 = vpop.xlane.xlu0 %4094
          %4096 = vmax.xlane.f32.xlu0 %v3723
          %v4097 = vpop.xlane.xlu0 %4096
          %4098 = vmax.xlane.f32.xlu0 %v3724
          %v4099 = vpop.xlane.xlu0 %4098
          %4100 = vmax.xlane.f32.xlu0 %v3725
          %v4101 = vpop.xlane.xlu0 %4100
          %4102 = vmax.xlane.f32.xlu0 %v3726
          %v4103 = vpop.xlane.xlu0 %4102
          %4104 = vmax.xlane.f32.xlu0 %v3727
          %v4105 = vpop.xlane.xlu0 %4104
          %4106 = vmax.xlane.f32.xlu0 %v3728
          %v4107 = vpop.xlane.xlu0 %4106
          %4108 = vmax.xlane.f32.xlu0 %v3729
          %v4109 = vpop.xlane.xlu0 %4108
          %4110 = vmax.xlane.f32.xlu0 %v3730
          %v4111 = vpop.xlane.xlu0 %4110
          %4112 = vmax.xlane.f32.xlu0 %v3731
          %v4113 = vpop.xlane.xlu0 %4112
          %4114 = vmax.xlane.f32.xlu0 %v3732
          %v4115 = vpop.xlane.xlu0 %4114
          %4116 = vmax.xlane.f32.xlu0 %v3733
          %v4117 = vpop.xlane.xlu0 %4116
          %4118 = vmax.xlane.f32.xlu0 %v3734
          %v4119 = vpop.xlane.xlu0 %4118
          %4120 = vmax.xlane.f32.xlu0 %v3735
          %v4121 = vpop.xlane.xlu0 %4120
          %4122 = vmax.xlane.f32.xlu0 %v3736
          %v4123 = vpop.xlane.xlu0 %4122
          %4124 = vmax.xlane.f32.xlu0 %v3737
          %v4125 = vpop.xlane.xlu0 %4124
          %4126 = vmax.xlane.f32.xlu0 %v3738
          %v4127 = vpop.xlane.xlu0 %4126
          %4128 = vmax.xlane.f32.xlu0 %v3739
          %v4129 = vpop.xlane.xlu0 %4128
          %4130 = vmax.xlane.f32.xlu0 %v3740
          %v4131 = vpop.xlane.xlu0 %4130
          %4132 = vmax.xlane.f32.xlu0 %v3741
          %v4133 = vpop.xlane.xlu0 %4132
          %4134 = vmax.xlane.f32.xlu0 %v3742
          %v4135 = vpop.xlane.xlu0 %4134
          %4136 = vmax.xlane.f32.xlu0 %v3743
          %v4137 = vpop.xlane.xlu0 %4136
          %4138 = vmax.xlane.f32.xlu0 %v3744
          %v4139 = vpop.xlane.xlu0 %4138
          %4140 = vmax.xlane.f32.xlu0 %v3745
          %v4141 = vpop.xlane.xlu0 %4140
          %4142 = vmax.xlane.f32.xlu0 %v3746
          %v4143 = vpop.xlane.xlu0 %4142
          %4144 = vmax.xlane.f32.xlu0 %v3747
          %v4145 = vpop.xlane.xlu0 %4144
          %4146 = vmax.xlane.f32.xlu0 %v3748
          %v4147 = vpop.xlane.xlu0 %4146
          %4148 = vmax.xlane.f32.xlu0 %v3749
          %v4149 = vpop.xlane.xlu0 %4148
          %4150 = vmax.xlane.f32.xlu0 %v3750
          %v4151 = vpop.xlane.xlu0 %4150
          %4152 = vmax.xlane.f32.xlu0 %v3751
          %v4153 = vpop.xlane.xlu0 %4152
          %4154 = vmax.xlane.f32.xlu0 %v3752
          %v4155 = vpop.xlane.xlu0 %4154
          %4156 = vmax.xlane.f32.xlu0 %v3753
          %v4157 = vpop.xlane.xlu0 %4156
          %4158 = vmax.xlane.f32.xlu0 %v3754
          %v4159 = vpop.xlane.xlu0 %4158
          %4160 = vmax.xlane.f32.xlu0 %v3755
          %v4161 = vpop.xlane.xlu0 %4160
          %4162 = vmax.xlane.f32.xlu0 %v3756
          %v4163 = vpop.xlane.xlu0 %4162
          %4164 = vmax.xlane.f32.xlu0 %v3757
          %v4165 = vpop.xlane.xlu0 %4164
          %4166 = vmax.xlane.f32.xlu0 %v3758
          %v4167 = vpop.xlane.xlu0 %4166
          %4168 = vmax.xlane.f32.xlu0 %v3759
          %v4169 = vpop.xlane.xlu0 %4168
          %4170 = vmax.xlane.f32.xlu0 %v3760
          %v4171 = vpop.xlane.xlu0 %4170
          %4172 = vmax.xlane.f32.xlu0 %v3761
          %v4173 = vpop.xlane.xlu0 %4172
          %4174 = vmax.xlane.f32.xlu0 %v3762
          %v4175 = vpop.xlane.xlu0 %4174
          %4176 = vmax.xlane.f32.xlu0 %v3763
          %v4177 = vpop.xlane.xlu0 %4176
          %4178 = vmax.xlane.f32.xlu0 %v3764
          %v4179 = vpop.xlane.xlu0 %4178
          %4180 = vmax.xlane.f32.xlu0 %v3765
          %v4181 = vpop.xlane.xlu0 %4180
          %4182 = vmax.xlane.f32.xlu0 %v3766
          %v4183 = vpop.xlane.xlu0 %4182
          %4184 = vmax.xlane.f32.xlu0 %v3767
          %v4185 = vpop.xlane.xlu0 %4184
          %4186 = vmax.xlane.f32.xlu0 %v3768
          %v4187 = vpop.xlane.xlu0 %4186
          %4188 = vmax.xlane.f32.xlu0 %v3769
          %v4189 = vpop.xlane.xlu0 %4188
          %4190 = vmax.xlane.f32.xlu0 %v3770
          %v4191 = vpop.xlane.xlu0 %4190
          %4192 = vmax.xlane.f32.xlu0 %v3771
          %v4193 = vpop.xlane.xlu0 %4192
          %4194 = vmax.xlane.f32.xlu0 %v3772
          %v4195 = vpop.xlane.xlu0 %4194
          %4196 = vmax.xlane.f32.xlu0 %v3773
          %v4197 = vpop.xlane.xlu0 %4196
          %4198 = vmax.xlane.f32.xlu0 %v3774
          %v4199 = vpop.xlane.xlu0 %4198
          %4200 = vmax.xlane.f32.xlu0 %v3775
          %v4201 = vpop.xlane.xlu0 %4200
          %4202 = vmax.xlane.f32.xlu0 %v3776
          %v4203 = vpop.xlane.xlu0 %4202
          %4204 = vmax.xlane.f32.xlu0 %v3777
          %v4205 = vpop.xlane.xlu0 %4204
          %4206 = vmax.xlane.f32.xlu0 %v3778
          %v4207 = vpop.xlane.xlu0 %4206
          %4208 = vmax.xlane.f32.xlu0 %v3779
          %v4209 = vpop.xlane.xlu0 %4208
          %4210 = vmax.xlane.f32.xlu0 %v3780
          %v4211 = vpop.xlane.xlu0 %4210
          %4212 = vmax.xlane.f32.xlu0 %v3781
          %v4213 = vpop.xlane.xlu0 %4212
          %4214 = vmax.xlane.f32.xlu0 %v3782
          %v4215 = vpop.xlane.xlu0 %4214
          %4216 = vmax.xlane.f32.xlu0 %v3783
          %v4217 = vpop.xlane.xlu0 %4216
          %4218 = vmax.xlane.f32.xlu0 %v3784
          %v4219 = vpop.xlane.xlu0 %4218
          %4220 = vmax.xlane.f32.xlu0 %v3785
          %v4221 = vpop.xlane.xlu0 %4220
          %4222 = vmax.xlane.f32.xlu0 %v3786
          %v4223 = vpop.xlane.xlu0 %4222
          %4224 = vmax.xlane.f32.xlu0 %v3787
          %v4225 = vpop.xlane.xlu0 %4224
          %4226 = vmax.xlane.f32.xlu0 %v3788
          %v4227 = vpop.xlane.xlu0 %4226
          %4228 = vmax.xlane.f32.xlu0 %v3789
          %v4229 = vpop.xlane.xlu0 %4228
          %4230 = vmax.xlane.f32.xlu0 %v3790
          %v4231 = vpop.xlane.xlu0 %4230
          %4232 = vmax.xlane.f32.xlu0 %v3791
          %v4233 = vpop.xlane.xlu0 %4232
          %4234 = vmax.xlane.f32.xlu0 %v3792
          %v4235 = vpop.xlane.xlu0 %4234
          %4236 = vmax.xlane.f32.xlu0 %v3793
          %v4237 = vpop.xlane.xlu0 %4236
          %4238 = vmax.xlane.f32.xlu0 %v3794
          %v4239 = vpop.xlane.xlu0 %4238
          %4240 = vmax.xlane.f32.xlu0 %v3795
          %v4241 = vpop.xlane.xlu0 %4240
          %4242 = vmax.xlane.f32.xlu0 %v3796
          %v4243 = vpop.xlane.xlu0 %4242
          %4244 = vmax.xlane.f32.xlu0 %v3797
          %v4245 = vpop.xlane.xlu0 %4244
          %4246 = vmax.xlane.f32.xlu0 %v3798
          %v4247 = vpop.xlane.xlu0 %4246
          %4248 = vmax.xlane.f32.xlu0 %v3799
          %v4249 = vpop.xlane.xlu0 %4248
          %4250 = vmax.xlane.f32.xlu0 %v3800
          %v4251 = vpop.xlane.xlu0 %4250
          %4252 = vmax.xlane.f32.xlu0 %v3801
          %v4253 = vpop.xlane.xlu0 %4252
          %4254 = vmax.xlane.f32.xlu0 %v3802
          %v4255 = vpop.xlane.xlu0 %4254
          %4256 = vmax.xlane.f32.xlu0 %v3803
          %v4257 = vpop.xlane.xlu0 %4256
          %4258 = vmax.xlane.f32.xlu0 %v3804
          %v4259 = vpop.xlane.xlu0 %4258
          %4260 = vmax.xlane.f32.xlu0 %v3805
          %v4261 = vpop.xlane.xlu0 %4260
          %4262 = vmax.xlane.f32.xlu0 %v3806
          %v4263 = vpop.xlane.xlu0 %4262
          %4264 = vmax.xlane.f32.xlu0 %v3807
          %v4265 = vpop.xlane.xlu0 %4264
          %4266 = vmax.xlane.f32.xlu0 %v3808
          %v4267 = vpop.xlane.xlu0 %4266
          %4268 = vmax.xlane.f32.xlu0 %v3809
          %v4269 = vpop.xlane.xlu0 %4268
          %4270 = vmax.xlane.f32.xlu0 %v3810
          %v4271 = vpop.xlane.xlu0 %4270
          %4272 = vmax.xlane.f32.xlu0 %v3811
          %v4273 = vpop.xlane.xlu0 %4272
          %4274 = vmax.xlane.f32.xlu0 %v3812
          %v4275 = vpop.xlane.xlu0 %4274
          %4276 = vmax.xlane.f32.xlu0 %v3813
          %v4277 = vpop.xlane.xlu0 %4276
          %4278 = vmax.xlane.f32.xlu0 %v3814
          %v4279 = vpop.xlane.xlu0 %4278
          %4280 = vmax.xlane.f32.xlu0 %v3815
          %v4281 = vpop.xlane.xlu0 %4280
          %4282 = vmax.xlane.f32.xlu0 %v3816
          %v4283 = vpop.xlane.xlu0 %4282
          %4284 = vmax.xlane.f32.xlu0 %v3817
          %v4285 = vpop.xlane.xlu0 %4284
          %4286 = vmax.xlane.f32.xlu0 %v3818
          %v4287 = vpop.xlane.xlu0 %4286
          %4288 = vmax.xlane.f32.xlu0 %v3819
          %v4289 = vpop.xlane.xlu0 %4288
          %4290 = vmax.xlane.f32.xlu0 %v3820
          %v4291 = vpop.xlane.xlu0 %4290
          %4292 = vmax.xlane.f32.xlu0 %v3821
          %v4293 = vpop.xlane.xlu0 %4292
          %4294 = vmax.xlane.f32.xlu0 %v3822
          %v4295 = vpop.xlane.xlu0 %4294
          %4296 = vmax.xlane.f32.xlu0 %v3823
          %v4297 = vpop.xlane.xlu0 %4296
          %4298 = vmax.xlane.f32.xlu0 %v3824
          %v4299 = vpop.xlane.xlu0 %4298
          %4300 = vmax.xlane.f32.xlu0 %v3825
          %v4301 = vpop.xlane.xlu0 %4300
          %4302 = vmax.xlane.f32.xlu0 %v3826
          %v4303 = vpop.xlane.xlu0 %4302
          %4304 = vmax.xlane.f32.xlu0 %v3827
          %v4305 = vpop.xlane.xlu0 %4304
          %4306 = vmax.xlane.f32.xlu0 %v3828
          %v4307 = vpop.xlane.xlu0 %4306
          %4308 = vmax.xlane.f32.xlu0 %v3829
          %v4309 = vpop.xlane.xlu0 %4308
          %4310 = vmax.xlane.f32.xlu0 %v3830
          %v4311 = vpop.xlane.xlu0 %4310
          %4312 = vmax.xlane.f32.xlu0 %v3831
          %v4313 = vpop.xlane.xlu0 %4312
          %4314 = vmax.xlane.f32.xlu0 %v3832
          %v4315 = vpop.xlane.xlu0 %4314
          %4316 = vmax.xlane.f32.xlu0 %v3833
          %v4317 = vpop.xlane.xlu0 %4316
          %4318 = vmax.xlane.f32.xlu0 %v3834
          %v4319 = vpop.xlane.xlu0 %4318
          %4320 = vmax.xlane.f32.xlu0 %v3835
          %v4321 = vpop.xlane.xlu0 %4320
          %4322 = vmax.xlane.f32.xlu0 %v3836
          %v4323 = vpop.xlane.xlu0 %4322
          %4324 = vmax.xlane.f32.xlu0 %v3837
          %v4325 = vpop.xlane.xlu0 %4324
          %4326 = vmax.xlane.f32.xlu0 %v3838
          %v4327 = vpop.xlane.xlu0 %4326
          %4328 = vmax.xlane.f32.xlu0 %v3839
          %v4329 = vpop.xlane.xlu0 %4328
          %4330 = vmax.xlane.f32.xlu0 %v3840
          %v4331 = vpop.xlane.xlu0 %4330
          %4332 = vmax.xlane.f32.xlu0 %v3841
          %v4333 = vpop.xlane.xlu0 %4332
          %4334 = vmax.xlane.f32.xlu0 %v3842
          %v4335 = vpop.xlane.xlu0 %4334
          %4336 = vmax.xlane.f32.xlu0 %v3843
          %v4337 = vpop.xlane.xlu0 %4336
          %4338 = vmax.xlane.f32.xlu0 %v3844
          %v4339 = vpop.xlane.xlu0 %4338
          %4340 = vmax.xlane.f32.xlu0 %v3845
          %v4341 = vpop.xlane.xlu0 %4340
          %4342 = vmax.xlane.f32.xlu0 %v3846
          %v4343 = vpop.xlane.xlu0 %4342
          %4344 = vmax.xlane.f32.xlu0 %v3847
          %v4345 = vpop.xlane.xlu0 %4344
          %4346 = vmax.xlane.f32.xlu0 %v3848
          %v4347 = vpop.xlane.xlu0 %4346
          %4348 = vmax.xlane.f32.xlu0 %v3849
          %v4349 = vpop.xlane.xlu0 %4348
          %4350 = vmax.xlane.f32.xlu0 %v3850
          %v4351 = vpop.xlane.xlu0 %4350
          %4352 = vmax.xlane.f32.xlu0 %v3851
          %v4353 = vpop.xlane.xlu0 %4352
          %4354 = vmax.xlane.f32.xlu0 %v3852
          %v4355 = vpop.xlane.xlu0 %4354
          %4356 = vmax.xlane.f32.xlu0 %v3853
          %v4357 = vpop.xlane.xlu0 %4356
          %4358 = vmax.xlane.f32.xlu0 %v3854
          %v4359 = vpop.xlane.xlu0 %4358
          %4360 = vmax.xlane.f32.xlu0 %v3855
          %v4361 = vpop.xlane.xlu0 %4360
          %4362 = vmax.xlane.f32.xlu0 %v3856
          %v4363 = vpop.xlane.xlu0 %4362
          %4364 = vmax.xlane.f32.xlu0 %v3857
          %v4365 = vpop.xlane.xlu0 %4364
          %4366 = vmax.xlane.f32.xlu0 %v3858
          %v4367 = vpop.xlane.xlu0 %4366
          %4368 = vmax.xlane.f32.xlu0 %v3859
          %v4369 = vpop.xlane.xlu0 %4368
          %4370 = vmax.xlane.f32.xlu0 %v3860
          %v4371 = vpop.xlane.xlu0 %4370
          %4372 = vmax.xlane.f32.xlu0 %v3861
          %v4373 = vpop.xlane.xlu0 %4372
          %v4374 = vld [vmem:[#allocation2] sm:$0xff]
          %v4375 = vld [vmem:[#allocation2 + $0x8] sm:$0xff]
          %v4632 = vperm.slane %v3863, %v3603
          %v4633 = vadd.s32 %v3603, 4294967288
          %v4634 = vperm.slane %v3865, %v4633
          %vm4635 = vcmask 130112
          %v4636 = vsel %vm4635, %v4634, %v4632
          %v4637 = vadd.s32 %v3603, 4294967280
          %v4638 = vperm.slane %v3867, %v4637
          %vm4639 = vcmask 195712
          %v4640 = vsel %vm4639, %v4638, %v4636
          %v4641 = vadd.s32 %v3603, 4294967272
          %v4642 = vperm.slane %v3869, %v4641
          %vm4643 = vcmask 261312
          %v4644 = vsel %vm4643, %v4642, %v4640
          %v4645 = vadd.s32 %v3603, 4294967264
          %v4646 = vperm.slane %v3871, %v4645
          %vm4647 = vcmask 326912
          %v4648 = vsel %vm4647, %v4646, %v4644
          %v4649 = vadd.s32 %v3603, 4294967256
          %v4650 = vperm.slane %v3873, %v4649
          %vm4651 = vcmask 392512
          %v4652 = vsel %vm4651, %v4650, %v4648
          %v4653 = vadd.s32 %v3603, 4294967248
          %v4654 = vperm.slane %v3875, %v4653
          %vm4655 = vcmask 458112
          %v4656 = vsel %vm4655, %v4654, %v4652
          %v4657 = vadd.s32 %v3603, 4294967240
          %v4658 = vperm.slane %v3877, %v4657
          %vm4659 = vcmask 523712
          %v4660 = vsel %vm4659, %v4658, %v4656
          %v4661 = vadd.s32 %v3603, 4294967232
          %v4662 = vperm.slane %v3879, %v4661
          %vm4663 = vcmask 589312
          %v4664 = vsel %vm4663, %v4662, %v4660
          %v4665 = vadd.s32 %v3603, 4294967224
          %v4666 = vperm.slane %v3881, %v4665
          %vm4667 = vcmask 654912
          %v4668 = vsel %vm4667, %v4666, %v4664
          %v4669 = vadd.s32 %v3603, 4294967216
          %v4670 = vperm.slane %v3883, %v4669
          %vm4671 = vcmask 720512
          %v4672 = vsel %vm4671, %v4670, %v4668
          %v4673 = vadd.s32 %v3603, 4294967208
          %v4674 = vperm.slane %v3885, %v4673
          %vm4675 = vcmask 786112
          %v4676 = vsel %vm4675, %v4674, %v4672
          %v4677 = vadd.s32 %v3603, 4294967200
          %v4678 = vperm.slane %v3887, %v4677
          %vm4679 = vcmask 851712
          %v4680 = vsel %vm4679, %v4678, %v4676
          %v4681 = vadd.s32 %v3603, 4294967192
          %v4682 = vperm.slane %v3889, %v4681
          %vm4683 = vcmask 917312
          %v4684 = vsel %vm4683, %v4682, %v4680
          %v4685 = vadd.s32 %v3603, 4294967184
          %v4686 = vperm.slane %v3891, %v4685
          %vm4687 = vcmask 982912
          %v4688 = vsel %vm4687, %v4686, %v4684
          %v4689 = vadd.s32 %v3603, 4294967176
          %v4690 = vperm.slane %v3893, %v4689
          %vm4691 = vcmask 1048512
          %v4692 = vsel %vm4691, %v4690, %v4688
          %v4693 = vperm.slane %v3895, %v3603
          %v4694 = vperm.slane %v3897, %v4633
          %v4695 = vsel %vm4635, %v4694, %v4693
          %v4696 = vperm.slane %v3899, %v4637
          %v4697 = vsel %vm4639, %v4696, %v4695
          %v4698 = vperm.slane %v3901, %v4641
          %v4699 = vsel %vm4643, %v4698, %v4697
          %v4700 = vperm.slane %v3903, %v4645
          %v4701 = vsel %vm4647, %v4700, %v4699
          %v4702 = vperm.slane %v3905, %v4649
          %v4703 = vsel %vm4651, %v4702, %v4701
          %v4704 = vperm.slane %v3907, %v4653
          %v4705 = vsel %vm4655, %v4704, %v4703
          %v4706 = vperm.slane %v3909, %v4657
          %v4707 = vsel %vm4659, %v4706, %v4705
          %v4708 = vperm.slane %v3911, %v4661
          %v4709 = vsel %vm4663, %v4708, %v4707
          %v4710 = vperm.slane %v3913, %v4665
          %v4711 = vsel %vm4667, %v4710, %v4709
          %v4712 = vperm.slane %v3915, %v4669
          %v4713 = vsel %vm4671, %v4712, %v4711
          %v4714 = vperm.slane %v3917, %v4673
          %v4715 = vsel %vm4675, %v4714, %v4713
          %v4716 = vperm.slane %v3919, %v4677
          %v4717 = vsel %vm4679, %v4716, %v4715
          %v4718 = vperm.slane %v3921, %v4681
          %v4719 = vsel %vm4683, %v4718, %v4717
          %v4720 = vperm.slane %v3923, %v4685
          %v4721 = vsel %vm4687, %v4720, %v4719
          %v4722 = vperm.slane %v3925, %v4689
          %v4723 = vsel %vm4691, %v4722, %v4721
          %v4724 = vperm.slane %v3927, %v3603
          %v4725 = vperm.slane %v3929, %v4633
          %v4726 = vsel %vm4635, %v4725, %v4724
          %v4727 = vperm.slane %v3931, %v4637
          %v4728 = vsel %vm4639, %v4727, %v4726
          %v4729 = vperm.slane %v3933, %v4641
          %v4730 = vsel %vm4643, %v4729, %v4728
          %v4731 = vperm.slane %v3935, %v4645
          %v4732 = vsel %vm4647, %v4731, %v4730
          %v4733 = vperm.slane %v3937, %v4649
          %v4734 = vsel %vm4651, %v4733, %v4732
          %v4735 = vperm.slane %v3939, %v4653
          %v4736 = vsel %vm4655, %v4735, %v4734
          %v4737 = vperm.slane %v3941, %v4657
          %v4738 = vsel %vm4659, %v4737, %v4736
          %v4739 = vperm.slane %v3943, %v4661
          %v4740 = vsel %vm4663, %v4739, %v4738
          %v4741 = vperm.slane %v3945, %v4665
          %v4742 = vsel %vm4667, %v4741, %v4740
          %v4743 = vperm.slane %v3947, %v4669
          %v4744 = vsel %vm4671, %v4743, %v4742
          %v4745 = vperm.slane %v3949, %v4673
          %v4746 = vsel %vm4675, %v4745, %v4744
          %v4747 = vperm.slane %v3951, %v4677
          %v4748 = vsel %vm4679, %v4747, %v4746
          %v4749 = vperm.slane %v3953, %v4681
          %v4750 = vsel %vm4683, %v4749, %v4748
          %v4751 = vperm.slane %v3955, %v4685
          %v4752 = vsel %vm4687, %v4751, %v4750
          %v4753 = vperm.slane %v3957, %v4689
          %v4754 = vsel %vm4691, %v4753, %v4752
          %v4755 = vperm.slane %v3959, %v3603
          %v4756 = vperm.slane %v3961, %v4633
          %v4757 = vsel %vm4635, %v4756, %v4755
          %v4758 = vperm.slane %v3963, %v4637
          %v4759 = vsel %vm4639, %v4758, %v4757
          %v4760 = vperm.slane %v3965, %v4641
          %v4761 = vsel %vm4643, %v4760, %v4759
          %v4762 = vperm.slane %v3967, %v4645
          %v4763 = vsel %vm4647, %v4762, %v4761
          %v4764 = vperm.slane %v3969, %v4649
          %v4765 = vsel %vm4651, %v4764, %v4763
          %v4766 = vperm.slane %v3971, %v4653
          %v4767 = vsel %vm4655, %v4766, %v4765
          %v4768 = vperm.slane %v3973, %v4657
          %v4769 = vsel %vm4659, %v4768, %v4767
          %v4770 = vperm.slane %v3975, %v4661
          %v4771 = vsel %vm4663, %v4770, %v4769
          %v4772 = vperm.slane %v3977, %v4665
          %v4773 = vsel %vm4667, %v4772, %v4771
          %v4774 = vperm.slane %v3979, %v4669
          %v4775 = vsel %vm4671, %v4774, %v4773
          %v4776 = vperm.slane %v3981, %v4673
          %v4777 = vsel %vm4675, %v4776, %v4775
          %v4778 = vperm.slane %v3983, %v4677
          %v4779 = vsel %vm4679, %v4778, %v4777
          %v4780 = vperm.slane %v3985, %v4681
          %v4781 = vsel %vm4683, %v4780, %v4779
          %v4782 = vperm.slane %v3987, %v4685
          %v4783 = vsel %vm4687, %v4782, %v4781
          %v4784 = vperm.slane %v3989, %v4689
          %v4785 = vsel %vm4691, %v4784, %v4783
          %v4786 = vperm.slane %v3991, %v3603
          %v4787 = vperm.slane %v3993, %v4633
          %v4788 = vsel %vm4635, %v4787, %v4786
          %v4789 = vperm.slane %v3995, %v4637
          %v4790 = vsel %vm4639, %v4789, %v4788
          %v4791 = vperm.slane %v3997, %v4641
          %v4792 = vsel %vm4643, %v4791, %v4790
          %v4793 = vperm.slane %v3999, %v4645
          %v4794 = vsel %vm4647, %v4793, %v4792
          %v4795 = vperm.slane %v4001, %v4649
          %v4796 = vsel %vm4651, %v4795, %v4794
          %v4797 = vperm.slane %v4003, %v4653
          %v4798 = vsel %vm4655, %v4797, %v4796
          %v4799 = vperm.slane %v4005, %v4657
          %v4800 = vsel %vm4659, %v4799, %v4798
          %v4801 = vperm.slane %v4007, %v4661
          %v4802 = vsel %vm4663, %v4801, %v4800
          %v4803 = vperm.slane %v4009, %v4665
          %v4804 = vsel %vm4667, %v4803, %v4802
          %v4805 = vperm.slane %v4011, %v4669
          %v4806 = vsel %vm4671, %v4805, %v4804
          %v4807 = vperm.slane %v4013, %v4673
          %v4808 = vsel %vm4675, %v4807, %v4806
          %v4809 = vperm.slane %v4015, %v4677
          %v4810 = vsel %vm4679, %v4809, %v4808
          %v4811 = vperm.slane %v4017, %v4681
          %v4812 = vsel %vm4683, %v4811, %v4810
          %v4813 = vperm.slane %v4019, %v4685
          %v4814 = vsel %vm4687, %v4813, %v4812
          %v4815 = vperm.slane %v4021, %v4689
          %v4816 = vsel %vm4691, %v4815, %v4814
          %v4817 = vperm.slane %v4023, %v3603
          %v4818 = vperm.slane %v4025, %v4633
          %v4819 = vsel %vm4635, %v4818, %v4817
          %v4820 = vperm.slane %v4027, %v4637
          %v4821 = vsel %vm4639, %v4820, %v4819
          %v4822 = vperm.slane %v4029, %v4641
          %v4823 = vsel %vm4643, %v4822, %v4821
          %v4824 = vperm.slane %v4031, %v4645
          %v4825 = vsel %vm4647, %v4824, %v4823
          %v4826 = vperm.slane %v4033, %v4649
          %v4827 = vsel %vm4651, %v4826, %v4825
          %v4828 = vperm.slane %v4035, %v4653
          %v4829 = vsel %vm4655, %v4828, %v4827
          %v4830 = vperm.slane %v4037, %v4657
          %v4831 = vsel %vm4659, %v4830, %v4829
          %v4832 = vperm.slane %v4039, %v4661
          %v4833 = vsel %vm4663, %v4832, %v4831
          %v4834 = vperm.slane %v4041, %v4665
          %v4835 = vsel %vm4667, %v4834, %v4833
          %v4836 = vperm.slane %v4043, %v4669
          %v4837 = vsel %vm4671, %v4836, %v4835
          %v4838 = vperm.slane %v4045, %v4673
          %v4839 = vsel %vm4675, %v4838, %v4837
          %v4840 = vperm.slane %v4047, %v4677
          %v4841 = vsel %vm4679, %v4840, %v4839
          %v4842 = vperm.slane %v4049, %v4681
          %v4843 = vsel %vm4683, %v4842, %v4841
          %v4844 = vperm.slane %v4051, %v4685
          %v4845 = vsel %vm4687, %v4844, %v4843
          %v4846 = vperm.slane %v4053, %v4689
          %v4847 = vsel %vm4691, %v4846, %v4845
          %v4848 = vperm.slane %v4055, %v3603
          %v4849 = vperm.slane %v4057, %v4633
          %v4850 = vsel %vm4635, %v4849, %v4848
          %v4851 = vperm.slane %v4059, %v4637
          %v4852 = vsel %vm4639, %v4851, %v4850
          %v4853 = vperm.slane %v4061, %v4641
          %v4854 = vsel %vm4643, %v4853, %v4852
          %v4855 = vperm.slane %v4063, %v4645
          %v4856 = vsel %vm4647, %v4855, %v4854
          %v4857 = vperm.slane %v4065, %v4649
          %v4858 = vsel %vm4651, %v4857, %v4856
          %v4859 = vperm.slane %v4067, %v4653
          %v4860 = vsel %vm4655, %v4859, %v4858
          %v4861 = vperm.slane %v4069, %v4657
          %v4862 = vsel %vm4659, %v4861, %v4860
          %v4863 = vperm.slane %v4071, %v4661
          %v4864 = vsel %vm4663, %v4863, %v4862
          %v4865 = vperm.slane %v4073, %v4665
          %v4866 = vsel %vm4667, %v4865, %v4864
          %v4867 = vperm.slane %v4075, %v4669
          %v4868 = vsel %vm4671, %v4867, %v4866
          %v4869 = vperm.slane %v4077, %v4673
          %v4870 = vsel %vm4675, %v4869, %v4868
          %v4871 = vperm.slane %v4079, %v4677
          %v4872 = vsel %vm4679, %v4871, %v4870
          %v4873 = vperm.slane %v4081, %v4681
          %v4874 = vsel %vm4683, %v4873, %v4872
          %v4875 = vperm.slane %v4083, %v4685
          %v4876 = vsel %vm4687, %v4875, %v4874
          %v4877 = vperm.slane %v4085, %v4689
          %v4878 = vsel %vm4691, %v4877, %v4876
          %v4879 = vperm.slane %v4087, %v3603
          %v4880 = vperm.slane %v4089, %v4633
          %v4881 = vsel %vm4635, %v4880, %v4879
          %v4882 = vperm.slane %v4091, %v4637
          %v4883 = vsel %vm4639, %v4882, %v4881
          %v4884 = vperm.slane %v4093, %v4641
          %v4885 = vsel %vm4643, %v4884, %v4883
          %v4886 = vperm.slane %v4095, %v4645
          %v4887 = vsel %vm4647, %v4886, %v4885
          %v4888 = vperm.slane %v4097, %v4649
          %v4889 = vsel %vm4651, %v4888, %v4887
          %v4890 = vperm.slane %v4099, %v4653
          %v4891 = vsel %vm4655, %v4890, %v4889
          %v4892 = vperm.slane %v4101, %v4657
          %v4893 = vsel %vm4659, %v4892, %v4891
          %v4894 = vperm.slane %v4103, %v4661
          %v4895 = vsel %vm4663, %v4894, %v4893
          %v4896 = vperm.slane %v4105, %v4665
          %v4897 = vsel %vm4667, %v4896, %v4895
          %v4898 = vperm.slane %v4107, %v4669
          %v4899 = vsel %vm4671, %v4898, %v4897
          %v4900 = vperm.slane %v4109, %v4673
          %v4901 = vsel %vm4675, %v4900, %v4899
          %v4902 = vperm.slane %v4111, %v4677
          %v4903 = vsel %vm4679, %v4902, %v4901
          %v4904 = vperm.slane %v4113, %v4681
          %v4905 = vsel %vm4683, %v4904, %v4903
          %v4906 = vperm.slane %v4115, %v4685
          %v4907 = vsel %vm4687, %v4906, %v4905
          %v4908 = vperm.slane %v4117, %v4689
          %v4909 = vsel %vm4691, %v4908, %v4907
          %v4910 = vperm.slane %v4119, %v3603
          %v4911 = vperm.slane %v4121, %v4633
          %v4912 = vsel %vm4635, %v4911, %v4910
          %v4913 = vperm.slane %v4123, %v4637
          %v4914 = vsel %vm4639, %v4913, %v4912
          %v4915 = vperm.slane %v4125, %v4641
          %v4916 = vsel %vm4643, %v4915, %v4914
          %v4917 = vperm.slane %v4127, %v4645
          %v4918 = vsel %vm4647, %v4917, %v4916
          %v4919 = vperm.slane %v4129, %v4649
          %v4920 = vsel %vm4651, %v4919, %v4918
          %v4921 = vperm.slane %v4131, %v4653
          %v4922 = vsel %vm4655, %v4921, %v4920
          %v4923 = vperm.slane %v4133, %v4657
          %v4924 = vsel %vm4659, %v4923, %v4922
          %v4925 = vperm.slane %v4135, %v4661
          %v4926 = vsel %vm4663, %v4925, %v4924
          %v4927 = vperm.slane %v4137, %v4665
          %v4928 = vsel %vm4667, %v4927, %v4926
          %v4929 = vperm.slane %v4139, %v4669
          %v4930 = vsel %vm4671, %v4929, %v4928
          %v4931 = vperm.slane %v4141, %v4673
          %v4932 = vsel %vm4675, %v4931, %v4930
          %v4933 = vperm.slane %v4143, %v4677
          %v4934 = vsel %vm4679, %v4933, %v4932
          %v4935 = vperm.slane %v4145, %v4681
          %v4936 = vsel %vm4683, %v4935, %v4934
          %v4937 = vperm.slane %v4147, %v4685
          %v4938 = vsel %vm4687, %v4937, %v4936
          %v4939 = vperm.slane %v4149, %v4689
          %v4940 = vsel %vm4691, %v4939, %v4938
          %v4941 = vperm.slane %v4151, %v3603
          %v4942 = vperm.slane %v4153, %v4633
          %v4943 = vsel %vm4635, %v4942, %v4941
          %v4944 = vperm.slane %v4155, %v4637
          %v4945 = vsel %vm4639, %v4944, %v4943
          %v4946 = vperm.slane %v4157, %v4641
          %v4947 = vsel %vm4643, %v4946, %v4945
          %v4948 = vperm.slane %v4159, %v4645
          %v4949 = vsel %vm4647, %v4948, %v4947
          %v4950 = vperm.slane %v4161, %v4649
          %v4951 = vsel %vm4651, %v4950, %v4949
          %v4952 = vperm.slane %v4163, %v4653
          %v4953 = vsel %vm4655, %v4952, %v4951
          %v4954 = vperm.slane %v4165, %v4657
          %v4955 = vsel %vm4659, %v4954, %v4953
          %v4956 = vperm.slane %v4167, %v4661
          %v4957 = vsel %vm4663, %v4956, %v4955
          %v4958 = vperm.slane %v4169, %v4665
          %v4959 = vsel %vm4667, %v4958, %v4957
          %v4960 = vperm.slane %v4171, %v4669
          %v4961 = vsel %vm4671, %v4960, %v4959
          %v4962 = vperm.slane %v4173, %v4673
          %v4963 = vsel %vm4675, %v4962, %v4961
          %v4964 = vperm.slane %v4175, %v4677
          %v4965 = vsel %vm4679, %v4964, %v4963
          %v4966 = vperm.slane %v4177, %v4681
          %v4967 = vsel %vm4683, %v4966, %v4965
          %v4968 = vperm.slane %v4179, %v4685
          %v4969 = vsel %vm4687, %v4968, %v4967
          %v4970 = vperm.slane %v4181, %v4689
          %v4971 = vsel %vm4691, %v4970, %v4969
          %v4972 = vperm.slane %v4183, %v3603
          %v4973 = vperm.slane %v4185, %v4633
          %v4974 = vsel %vm4635, %v4973, %v4972
          %v4975 = vperm.slane %v4187, %v4637
          %v4976 = vsel %vm4639, %v4975, %v4974
          %v4977 = vperm.slane %v4189, %v4641
          %v4978 = vsel %vm4643, %v4977, %v4976
          %v4979 = vperm.slane %v4191, %v4645
          %v4980 = vsel %vm4647, %v4979, %v4978
          %v4981 = vperm.slane %v4193, %v4649
          %v4982 = vsel %vm4651, %v4981, %v4980
          %v4983 = vperm.slane %v4195, %v4653
          %v4984 = vsel %vm4655, %v4983, %v4982
          %v4985 = vperm.slane %v4197, %v4657
          %v4986 = vsel %vm4659, %v4985, %v4984
          %v4987 = vperm.slane %v4199, %v4661
          %v4988 = vsel %vm4663, %v4987, %v4986
          %v4989 = vperm.slane %v4201, %v4665
          %v4990 = vsel %vm4667, %v4989, %v4988
          %v4991 = vperm.slane %v4203, %v4669
          %v4992 = vsel %vm4671, %v4991, %v4990
          %v4993 = vperm.slane %v4205, %v4673
          %v4994 = vsel %vm4675, %v4993, %v4992
          %v4995 = vperm.slane %v4207, %v4677
          %v4996 = vsel %vm4679, %v4995, %v4994
          %v4997 = vperm.slane %v4209, %v4681
          %v4998 = vsel %vm4683, %v4997, %v4996
          %v4999 = vperm.slane %v4211, %v4685
          %v5000 = vsel %vm4687, %v4999, %v4998
          %v5001 = vperm.slane %v4213, %v4689
          %v5002 = vsel %vm4691, %v5001, %v5000
          %v5003 = vperm.slane %v4215, %v3603
          %v5004 = vperm.slane %v4217, %v4633
          %v5005 = vsel %vm4635, %v5004, %v5003
          %v5006 = vperm.slane %v4219, %v4637
          %v5007 = vsel %vm4639, %v5006, %v5005
          %v5008 = vperm.slane %v4221, %v4641
          %v5009 = vsel %vm4643, %v5008, %v5007
          %v5010 = vperm.slane %v4223, %v4645
          %v5011 = vsel %vm4647, %v5010, %v5009
          %v5012 = vperm.slane %v4225, %v4649
          %v5013 = vsel %vm4651, %v5012, %v5011
          %v5014 = vperm.slane %v4227, %v4653
          %v5015 = vsel %vm4655, %v5014, %v5013
          %v5016 = vperm.slane %v4229, %v4657
          %v5017 = vsel %vm4659, %v5016, %v5015
          %v5018 = vperm.slane %v4231, %v4661
          %v5019 = vsel %vm4663, %v5018, %v5017
          %v5020 = vperm.slane %v4233, %v4665
          %v5021 = vsel %vm4667, %v5020, %v5019
          %v5022 = vperm.slane %v4235, %v4669
          %v5023 = vsel %vm4671, %v5022, %v5021
          %v5024 = vperm.slane %v4237, %v4673
          %v5025 = vsel %vm4675, %v5024, %v5023
          %v5026 = vperm.slane %v4239, %v4677
          %v5027 = vsel %vm4679, %v5026, %v5025
          %v5028 = vperm.slane %v4241, %v4681
          %v5029 = vsel %vm4683, %v5028, %v5027
          %v5030 = vperm.slane %v4243, %v4685
          %v5031 = vsel %vm4687, %v5030, %v5029
          %v5032 = vperm.slane %v4245, %v4689
          %v5033 = vsel %vm4691, %v5032, %v5031
          %v5034 = vperm.slane %v4247, %v3603
          %v5035 = vperm.slane %v4249, %v4633
          %v5036 = vsel %vm4635, %v5035, %v5034
          %v5037 = vperm.slane %v4251, %v4637
          %v5038 = vsel %vm4639, %v5037, %v5036
          %v5039 = vperm.slane %v4253, %v4641
          %v5040 = vsel %vm4643, %v5039, %v5038
          %v5041 = vperm.slane %v4255, %v4645
          %v5042 = vsel %vm4647, %v5041, %v5040
          %v5043 = vperm.slane %v4257, %v4649
          %v5044 = vsel %vm4651, %v5043, %v5042
          %v5045 = vperm.slane %v4259, %v4653
          %v5046 = vsel %vm4655, %v5045, %v5044
          %v5047 = vperm.slane %v4261, %v4657
          %v5048 = vsel %vm4659, %v5047, %v5046
          %v5049 = vperm.slane %v4263, %v4661
          %v5050 = vsel %vm4663, %v5049, %v5048
          %v5051 = vperm.slane %v4265, %v4665
          %v5052 = vsel %vm4667, %v5051, %v5050
          %v5053 = vperm.slane %v4267, %v4669
          %v5054 = vsel %vm4671, %v5053, %v5052
          %v5055 = vperm.slane %v4269, %v4673
          %v5056 = vsel %vm4675, %v5055, %v5054
          %v5057 = vperm.slane %v4271, %v4677
          %v5058 = vsel %vm4679, %v5057, %v5056
          %v5059 = vperm.slane %v4273, %v4681
          %v5060 = vsel %vm4683, %v5059, %v5058
          %v5061 = vperm.slane %v4275, %v4685
          %v5062 = vsel %vm4687, %v5061, %v5060
          %v5063 = vperm.slane %v4277, %v4689
          %v5064 = vsel %vm4691, %v5063, %v5062
          %v5065 = vperm.slane %v4279, %v3603
          %v5066 = vperm.slane %v4281, %v4633
          %v5067 = vsel %vm4635, %v5066, %v5065
          %v5068 = vperm.slane %v4283, %v4637
          %v5069 = vsel %vm4639, %v5068, %v5067
          %v5070 = vperm.slane %v4285, %v4641
          %v5071 = vsel %vm4643, %v5070, %v5069
          %v5072 = vperm.slane %v4287, %v4645
          %v5073 = vsel %vm4647, %v5072, %v5071
          %v5074 = vperm.slane %v4289, %v4649
          %v5075 = vsel %vm4651, %v5074, %v5073
          %v5076 = vperm.slane %v4291, %v4653
          %v5077 = vsel %vm4655, %v5076, %v5075
          %v5078 = vperm.slane %v4293, %v4657
          %v5079 = vsel %vm4659, %v5078, %v5077
          %v5080 = vperm.slane %v4295, %v4661
          %v5081 = vsel %vm4663, %v5080, %v5079
          %v5082 = vperm.slane %v4297, %v4665
          %v5083 = vsel %vm4667, %v5082, %v5081
          %v5084 = vperm.slane %v4299, %v4669
          %v5085 = vsel %vm4671, %v5084, %v5083
          %v5086 = vperm.slane %v4301, %v4673
          %v5087 = vsel %vm4675, %v5086, %v5085
          %v5088 = vperm.slane %v4303, %v4677
          %v5089 = vsel %vm4679, %v5088, %v5087
          %v5090 = vperm.slane %v4305, %v4681
          %v5091 = vsel %vm4683, %v5090, %v5089
          %v5092 = vperm.slane %v4307, %v4685
          %v5093 = vsel %vm4687, %v5092, %v5091
          %v5094 = vperm.slane %v4309, %v4689
          %v5095 = vsel %vm4691, %v5094, %v5093
          %v5096 = vperm.slane %v4311, %v3603
          %v5097 = vperm.slane %v4313, %v4633
          %v5098 = vsel %vm4635, %v5097, %v5096
          %v5099 = vperm.slane %v4315, %v4637
          %v5100 = vsel %vm4639, %v5099, %v5098
          %v5101 = vperm.slane %v4317, %v4641
          %v5102 = vsel %vm4643, %v5101, %v5100
          %v5103 = vperm.slane %v4319, %v4645
          %v5104 = vsel %vm4647, %v5103, %v5102
          %v5105 = vperm.slane %v4321, %v4649
          %v5106 = vsel %vm4651, %v5105, %v5104
          %v5107 = vperm.slane %v4323, %v4653
          %v5108 = vsel %vm4655, %v5107, %v5106
          %v5109 = vperm.slane %v4325, %v4657
          %v5110 = vsel %vm4659, %v5109, %v5108
          %v5111 = vperm.slane %v4327, %v4661
          %v5112 = vsel %vm4663, %v5111, %v5110
          %v5113 = vperm.slane %v4329, %v4665
          %v5114 = vsel %vm4667, %v5113, %v5112
          %v5115 = vperm.slane %v4331, %v4669
          %v5116 = vsel %vm4671, %v5115, %v5114
          %v5117 = vperm.slane %v4333, %v4673
          %v5118 = vsel %vm4675, %v5117, %v5116
          %v5119 = vperm.slane %v4335, %v4677
          %v5120 = vsel %vm4679, %v5119, %v5118
          %v5121 = vperm.slane %v4337, %v4681
          %v5122 = vsel %vm4683, %v5121, %v5120
          %v5123 = vperm.slane %v4339, %v4685
          %v5124 = vsel %vm4687, %v5123, %v5122
          %v5125 = vperm.slane %v4341, %v4689
          %v5126 = vsel %vm4691, %v5125, %v5124
          %v5127 = vperm.slane %v4343, %v3603
          %v5128 = vperm.slane %v4345, %v4633
          %v5129 = vsel %vm4635, %v5128, %v5127
          %v5130 = vperm.slane %v4347, %v4637
          %v5131 = vsel %vm4639, %v5130, %v5129
          %v5132 = vperm.slane %v4349, %v4641
          %v5133 = vsel %vm4643, %v5132, %v5131
          %v5134 = vperm.slane %v4351, %v4645
          %v5135 = vsel %vm4647, %v5134, %v5133
          %v5136 = vperm.slane %v4353, %v4649
          %v5137 = vsel %vm4651, %v5136, %v5135
          %v5138 = vperm.slane %v4355, %v4653
          %v5139 = vsel %vm4655, %v5138, %v5137
          %v5140 = vperm.slane %v4357, %v4657
          %v5141 = vsel %vm4659, %v5140, %v5139
          %v5142 = vperm.slane %v4359, %v4661
          %v5143 = vsel %vm4663, %v5142, %v5141
          %v5144 = vperm.slane %v4361, %v4665
          %v5145 = vsel %vm4667, %v5144, %v5143
          %v5146 = vperm.slane %v4363, %v4669
          %v5147 = vsel %vm4671, %v5146, %v5145
          %v5148 = vperm.slane %v4365, %v4673
          %v5149 = vsel %vm4675, %v5148, %v5147
          %v5150 = vperm.slane %v4367, %v4677
          %v5151 = vsel %vm4679, %v5150, %v5149
          %v5152 = vperm.slane %v4369, %v4681
          %v5153 = vsel %vm4683, %v5152, %v5151
          %v5154 = vperm.slane %v4371, %v4685
          %v5155 = vsel %vm4687, %v5154, %v5153
          %v5156 = vperm.slane %v4373, %v4689
          %v5157 = vsel %vm4691, %v5156, %v5155
          %vm5158 = vcmask 1041409
          %v5159 = vsel %vm5158, %v4723, %v4692
          %vm5160 = vcmask 1042434
          %v5161 = vsel %vm5160, %v4754, %v5159
          %vm5162 = vcmask 1043459
          %v5163 = vsel %vm5162, %v4785, %v5161
          %vm5164 = vcmask 1044484
          %v5165 = vsel %vm5164, %v4816, %v5163
          %vm5166 = vcmask 1045509
          %v5167 = vsel %vm5166, %v4847, %v5165
          %vm5168 = vcmask 1046534
          %v5169 = vsel %vm5168, %v4878, %v5167
          %vm5170 = vcmask 1047559
          %v5171 = vsel %vm5170, %v4909, %v5169
          %v5172 = vsel %vm5158, %v4971, %v4940
          %v5173 = vsel %vm5160, %v5002, %v5172
          %v5174 = vsel %vm5162, %v5033, %v5173
          %v5175 = vsel %vm5164, %v5064, %v5174
          %v5176 = vsel %vm5166, %v5095, %v5175
          %v5177 = vsel %vm5168, %v5126, %v5176
          %v5178 = vsel %vm5170, %v5157, %v5177
          %v5181 = vmax.f32 %v4374, %v5171
          %v5182 = vmax.f32 %v4375, %v5178
          %5183 = vst [vmem:[#allocation2] sm:$0xff] %v5181
          %5184 = vst [vmem:[#allocation2 + $0x8] sm:$0xff] %v5182
          %v5185 = vld [vmem:[#allocation2] sm:$0xff]
          %v5186 = vld [vmem:[#allocation2 + $0x8] sm:$0xff]
          %v5187 = vld [vmem:[#allocation4] sm:$0xff]
          %v5188 = vld [vmem:[#allocation4 + $0x8] sm:$0xff]
          %v5189 = vadd.f32 %v5185, %v5187
          %v5190 = vadd.f32 %v5186, %v5188
          %v5191 = vmax.f32 %v5189, 0.0
          %v5192 = vmax.f32 %v5190, 0.0
          %v5193 = vmul.f32 %v5191, %v5191
          %v5194 = vmul.f32 %v5192, %v5192
          %v5195 = vadd.f32 %v5193, %v5194
          %v5196 = vrot.slane %v5195, 4
          %v5197 = vadd.f32 %v5195, %v5196
          %v5198 = vrot.slane %v5197, 2
          %v5199 = vadd.f32 %v5197, %v5198
          %v5200 = vrot.slane %v5199, 1
          %v5201 = vadd.f32 %v5199, %v5200
          %v5202 = vadd.f32 %v5201, 1.0
          %v5203 = vrcp.pop %v5202
          %v5204 = vmul.f32 %v5202, %v5203
          %v5205 = vsub.f32 1.0, %v5204
          %v5206 = vmul.f32 %v5203, %v5205
          %v5207 = vadd.f32 %v5203, %v5206
          %vm5208 = vweird.f32 %v5202
          %vm5209 = vweird.f32 %v5203
          %vm5210 = vmor %vm5208, %vm5209
          %v5211 = vsel %vm5210, %v5203, %v5207
          %v5212 = vand.u32 2147483647, %v5202
          %vm5213 = vcmp.eq.f32.partialorder %v5212, 8.507059e+37
          %v5214 = vand.u32 %v5202, 2147483648
          %v5215 = vor.u32 1.1754944e-38, %v5214
          %v5216 = vsel %vm5213, %v5215, %v5211
          %v5217 = vmul.f32 %v5201, %v5216
          %v5218 = vrsqrt.pop %v5201
          %v5219 = vmul.f32 %v5218, %v5201
          %v5220 = vmul.f32 %v5219, %v5218
          %v5221 = vmul.f32 0.5, %v5220
          %v5222 = vsub.f32 1.5, %v5221
          %v5223 = vmul.f32 %v5218, %v5222
          %v5224 = vmul.f32 %v5201, %v5223
          %vm5225 = vcmp.eq.f32.partialorder %v5201, inf
          %v5226 = vsel %vm5225, %v5201, %v5224
          %vm5227 = vcmp.eq.f32.partialorder %v5201, 0.0
          %v5228 = vand.u32 %v5201, 2147483648
          %v5229 = vsel %vm5227, %v5228, %v5226
          %v5230 = vadd.f32 %v5229, 1e-08
          %v5231 = vrcp.pop %v5230
          %v5232 = vmul.f32 %v5230, %v5231
          %v5233 = vsub.f32 1.0, %v5232
          %v5234 = vmul.f32 %v5231, %v5233
          %v5235 = vadd.f32 %v5231, %v5234
          %vm5236 = vweird.f32 %v5230
          %vm5237 = vweird.f32 %v5231
          %vm5238 = vmor %vm5236, %vm5237
          %v5239 = vsel %vm5238, %v5231, %v5235
          %v5240 = vand.u32 2147483647, %v5230
          %vm5241 = vcmp.eq.f32.partialorder %v5240, 8.507059e+37
          %v5242 = vand.u32 %v5230, 2147483648
          %v5243 = vor.u32 1.1754944e-38, %v5242
          %v5244 = vsel %vm5241, %v5243, %v5239
          %v5245 = vmul.f32 %v5217, %v5244
          %v5246 = vmul.f32 %v5191, %v5245
          %v5247 = vmul.f32 %v5192, %v5245
          %5248 = vst [vmem:[%s310] sm:$0xff] %v5246
          %5249 = vst [vmem:[%s310 + $0x8] sm:$0xff] %v5247
        $region123: #{tpu_custom_call.1} parent=102 // pred_fallthru
          _
        %s5250 = sand.u32 %s126, 1
        %s5251 = scalar_lea.sflag [#allocation6], %s5250
        %s5252 = sand.u32 %s126, 1
        %s5253 = smul.addr %s5252, 16
        %s5254 = scalar_lea.vmem [#allocation5], %s5253
        // Predicated region
        $region124: #{tpu_custom_call.1} parent=102 // pred_check
          %p5255 = pneg %p136
        $region125: #{tpu_custom_call.1} parent=102 // pred_check_branch
          %5257 = sbr.rel (%p5255) target = $region127
        $region126: #{tpu_custom_call.1} parent=102 // pred_region
          %5259 = vsyncadd %s5251, 0
          %s5260 = smul.addr %s22, 4
          %s5261 = sadd.s32 %s23, %s5260
          %s5262 = smul.addr %s5261, 8
          %s5263 = scalar_lea.hbm %s3, %s5262
          %s5264 = sshll.u32 %s5254, 4
          %s5265 = int_to_ptr.vmem [resolvable:$true] %s5264
          %s5266 = sshll.u32 %s5263, 4
          %s5267 = int_to_ptr.hbm [resolvable:$true] %s5266
          %5272 = dma.vmem_to_hbm [thread:$0]  %s5265, 256, %s5267, %s5251, 128, 256, 8
        $region127: #{tpu_custom_call.1} parent=102 // pred_fallthru
          _
      $region103: #{tpu_custom_call.1} parent=5 // pred_fallthru
        _
      %p5273 = scmp.le.s32.totalorder 2, %s12
      // Predicated region
      $region128: #{tpu_custom_call.1} parent=5 // pred_check
        %p5274 = pneg %p5273
      $region129: #{tpu_custom_call.1} parent=5 // pred_check_branch
        %5276 = sbr.rel (%p5274) target = $region131
      $region130: #{tpu_custom_call.1} parent=5 // pred_region
        %s5277 = ssub.s32 %s12, 2
        // Predicated region
        $region132: #{tpu_custom_call.1} parent=130 // pred_check
          %p5278 = pneg %p142
        $region133: #{tpu_custom_call.1} parent=130 // pred_check_branch
          %5280 = sbr.rel (%p5278) target = $region135
        $region134: #{tpu_custom_call.1} parent=130 // pred_region
          %s5281 = sand.u32 %s127, 1
          %s5282 = scalar_lea.sflag [#allocation6], %s5281
          %s5283 = sand.u32 %s127, 1
          %s5284 = smul.addr %s5283, 16
          %s5285 = scalar_lea.vmem [#allocation5], %s5284
          %5287 = dma.done %s5282, 256
        $region135: #{tpu_custom_call.1} parent=130 // pred_fallthru
          _
      $region131: #{tpu_custom_call.1} parent=5 // pred_fallthru
        _
    $region6: #{tpu_custom_call.1} parent=1 // loop_footer
      %s16 = sadd.s32 1, %s12
    $region7: #{tpu_custom_call.1} parent=1 // loop_footer_branch
      %11 = sbr.rel target = $region3
    $region8: #{tpu_custom_call.1} parent=1 // loop_exit
      _
    %5288 = vsyncpa [#allocation6], 1
    %s5289 = scalar_lea.sflag [#allocation6], 1
    %5290 = vsyncpa %s5289, 1

// kernel: tpu_custom_call.1
$region0: #{tpu_custom_call.1}
  #allocation0 [shape = 'u32[]', space=smem, size = 0x4, offset = 0x4, fixed_abs, tag = 'smem constant byte address 0x4 - core index']
  #allocation1 [shape = 'u32[72,128]{1,0:T(1,128)}', space=vmem, size = 0x9000, scoped, tag = 'internal scratch']
  #allocation2 [shape = 'f32[16,128]{1,0:T(8,128)}', space=vmem, size = 0x2000, scoped, tag = 'scratch operand']
  %s0 = inlined_call_operand.vmem [shape: bf16[2,32,256], index: 0, kind: input, shape index: {}]
  %s1 = inlined_call_operand.vmem [shape: bf16[2,2048,32], index: 1, kind: input, shape index: {}]
  %s2 = inlined_call_operand.vmem [shape: f32[16,256], index: 2, kind: input, shape index: {}]
  %s3 = inlined_call_operand.hbm [shape: f32[2,16,256], index: 3, kind: output, shape index: {}]
  %s4 = sld [smem:[#allocation0]]
  $region136: #{tpu_custom_call.1} parent=0
    _
  %s6 = ssub.s32 1, %s4
  %s7 = scalar_select 0, %s6, %s4
  $region1: #{tpu_custom_call.1} parent=0
    #allocation3 [shape = 'u8[16384]{0}', space=vmem, size = 0x4000, scoped, tag = 'input window, operand 0']
    #allocation4 [shape = 'u8[16384]{0}', space=vmem, size = 0x4000, scoped, tag = 'input window, operand 2']
    #allocation5 [shape = 'u8[16384]{0}', space=vmem, size = 0x4000, scoped, tag = 'output window, operand 0']
    #allocation6 [shape = 's32[2]{0}', space=sflag, size = 0x8, scoped, tag = 'scoped memory for tpu_custom_call.1']
    %8 = vsyncpa [#allocation6], 0
    %s9 = scalar_lea.sflag [#allocation6], 1
    %10 = vsyncpa %s9, 0
    loop: start=0, step=1, limit=10
    $region2: #{tpu_custom_call.1} parent=1 // loop_pre_header
      _
    $region3: #{tpu_custom_call.1} parent=1 // loop_header
      %s12 = sphi 0, %s16
      %p13 = scmp.ge.s32.totalorder %s12, 10
      %s19 = sphi 0, %s38
      %s20 = sphi 0, %s34
      %s21 = sphi 0, %s30
      %s22 = sphi 0, %s19
      %s23 = sphi 0, %s20
      %s24 = sphi 0, %s21
      %s25 = sphi 0, %s22
      %s26 = sphi 0, %s23
      %s27 = sphi 0, %s24
      %s43 = sphi 0, %s45
      %s46 = sphi 0, %s43
      %s47 = sphi 0, %s46
      %s63 = sphi 0, %s47
      %s69 = sphi 0, %s71
      %s72 = sphi 0, %s69
      %s73 = sphi 0, %s72
      %s89 = sphi 0, %s73
      %s95 = sphi 0, %s97
      %s98 = sphi 0, %s95
      %s99 = sphi 0, %s98
      %s115 = sphi 0, %s99
      %s123 = sphi 0, %s125
      %s126 = sphi 0, %s123
      %s127 = sphi 0, %s126
      %s143 = sphi 0, %s127
    $region4: #{tpu_custom_call.1} parent=1 // loop_header_branch
      %15 = sbr.rel (%p13) target = $region8
    $region5: #{tpu_custom_call.1} parent=1 // loop_body
      %s17 = ssub.s32 %s12, 1
      %s18 = ssub.s32 %s12, 2
      %s28 = sadd.s32 1, %s21
      %p29 = scmp.ge.s32.totalorder %s28, 2
      %s30 = scalar_select %p29, 0, %s28
      %s31 = sadd.s32 1, %s20
      %s32 = scalar_select %p29, %s31, %s20
      %p33 = scmp.ge.s32.totalorder %s32, 2
      %s34 = scalar_select %p33, 0, %s32
      %s35 = sadd.s32 1, %s19
      %s36 = scalar_select %p33, %s35, %s19
      %p37 = scmp.ge.s32.totalorder %s36, 2
      %s38 = scalar_select %p37, 0, %s36
      %s39 = ssub.s32 %s19, %s38
      %s40 = ssub.s32 %s21, %s30
      %s41 = sor.u32 %s39, %s40
      %p42 = scmp.eq.s32.totalorder %s41, 0
      %s44 = sadd.s32 %s43, 1
      %s45 = scalar_select %p42, %s43, %s44
      %p48 = pneg %p42
      %p49 = scmp.eq.s32.totalorder %s12, 7
      %p50 = por %p48, %p49
      %p51 = scmp.ne.s32.totalorder %s43, %s46
      %p52 = scmp.eq.s32.totalorder %s12, 0
      %p53 = por %p51, %p52
      %p54 = scmp.ne.s32.totalorder %s43, %s46
      %p55 = scmp.eq.s32.totalorder %s17, 7
      %p56 = por %p54, %p55
      %p57 = scmp.ne.s32.totalorder %s46, %s47
      %p58 = scmp.eq.s32.totalorder %s17, 0
      %p59 = por %p57, %p58
      %p60 = scmp.ne.s32.totalorder %s46, %s47
      %p61 = scmp.eq.s32.totalorder %s18, 7
      %p62 = por %p60, %p61
      %p64 = scmp.ne.s32.totalorder %s47, %s63
      %p65 = scmp.eq.s32.totalorder %s18, 0
      %p66 = por %p64, %p65
      %s67 = ssub.s32 %s20, %s34
      %p68 = scmp.eq.s32.totalorder %s67, 0
      %s70 = sadd.s32 %s69, 1
      %s71 = scalar_select %p68, %s69, %s70
      %p74 = pneg %p68
      %p75 = scmp.eq.s32.totalorder %s12, 7
      %p76 = por %p74, %p75
      %p77 = scmp.ne.s32.totalorder %s69, %s72
      %p78 = scmp.eq.s32.totalorder %s12, 0
      %p79 = por %p77, %p78
      %p80 = scmp.ne.s32.totalorder %s69, %s72
      %p81 = scmp.eq.s32.totalorder %s17, 7
      %p82 = por %p80, %p81
      %p83 = scmp.ne.s32.totalorder %s72, %s73
      %p84 = scmp.eq.s32.totalorder %s17, 0
      %p85 = por %p83, %p84
      %p86 = scmp.ne.s32.totalorder %s72, %s73
      %p87 = scmp.eq.s32.totalorder %s18, 7
      %p88 = por %p86, %p87
      %p90 = scmp.ne.s32.totalorder %s73, %s89
      %p91 = scmp.eq.s32.totalorder %s18, 0
      %p92 = por %p90, %p91
      %s93 = ssub.s32 %s20, %s34
      %p94 = scmp.eq.s32.totalorder %s93, 0
      %s96 = sadd.s32 %s95, 1
      %s97 = scalar_select %p94, %s95, %s96
      %p100 = pneg %p94
      %p101 = scmp.eq.s32.totalorder %s12, 7
      %p102 = por %p100, %p101
      %p103 = scmp.ne.s32.totalorder %s95, %s98
      %p104 = scmp.eq.s32.totalorder %s12, 0
      %p105 = por %p103, %p104
      %p106 = scmp.ne.s32.totalorder %s95, %s98
      %p107 = scmp.eq.s32.totalorder %s17, 7
      %p108 = por %p106, %p107
      %p109 = scmp.ne.s32.totalorder %s98, %s99
      %p110 = scmp.eq.s32.totalorder %s17, 0
      %p111 = por %p109, %p110
      %p112 = scmp.ne.s32.totalorder %s98, %s99
      %p113 = scmp.eq.s32.totalorder %s18, 7
      %p114 = por %p112, %p113
      %p116 = scmp.ne.s32.totalorder %s99, %s115
      %p117 = scmp.eq.s32.totalorder %s18, 0
      %p118 = por %p116, %p117
      %s119 = ssub.s32 %s19, %s38
      %s120 = ssub.s32 %s20, %s34
      %s121 = sor.u32 %s119, %s120
      %p122 = scmp.eq.s32.totalorder %s121, 0
      %s124 = sadd.s32 %s123, 1
      %s125 = scalar_select %p122, %s123, %s124
      %p128 = pneg %p122
      %p129 = scmp.eq.s32.totalorder %s12, 7
      %p130 = por %p128, %p129
      %p131 = scmp.ne.s32.totalorder %s123, %s126
      %p132 = scmp.eq.s32.totalorder %s12, 0
      %p133 = por %p131, %p132
      %p134 = scmp.ne.s32.totalorder %s123, %s126
      %p135 = scmp.eq.s32.totalorder %s17, 7
      %p136 = por %p134, %p135
      %p137 = scmp.ne.s32.totalorder %s126, %s127
      %p138 = scmp.eq.s32.totalorder %s17, 0
      %p139 = por %p137, %p138
      %p140 = scmp.ne.s32.totalorder %s126, %s127
      %p141 = scmp.eq.s32.totalorder %s18, 7
      %p142 = por %p140, %p141
      %p144 = scmp.ne.s32.totalorder %s127, %s143
      %p145 = scmp.eq.s32.totalorder %s18, 0
      %p146 = por %p144, %p145
      %p147 = scmp.le.s32.totalorder 1, %s12
      %p148 = scmp.lt.s32.totalorder %s12, 9
      %p149 = pnand %p147, %p148
      %p150 = pneg %p149
      // Predicated region
      $region9: #{tpu_custom_call.1} parent=5 // pred_check
        _
      $region10: #{tpu_custom_call.1} parent=5 // pred_check_branch
        %152 = sbr.rel (%p149) target = $region12
      $region11: #{tpu_custom_call.1} parent=5 // pred_region
        %s153 = ssub.s32 %s12, 1
      $region12: #{tpu_custom_call.1} parent=5 // pred_fallthru
        _
      %p154 = scmp.lt.s32.totalorder %s12, 8
      // Predicated region
      $region13: #{tpu_custom_call.1} parent=5 // pred_check
        %p155 = pneg %p154
      $region14: #{tpu_custom_call.1} parent=5 // pred_check_branch
        %157 = sbr.rel (%p155) target = $region16
      $region15: #{tpu_custom_call.1} parent=5 // pred_region
        // Predicated region
        $region17: #{tpu_custom_call.1} parent=15 // pred_check
          %p158 = pneg %p53
        $region18: #{tpu_custom_call.1} parent=15 // pred_check_branch
          %160 = sbr.rel (%p158) target = $region20
        $region19: #{tpu_custom_call.1} parent=15 // pred_region
          %s161 = sand.u32 %s43, 1
          %s162 = sand.u32 %s43, 1
          %s163 = smul.addr %s162, 16
          %s164 = scalar_lea.vmem [#allocation3], %s163
          %s165 = smul.addr %s19, 8
          %s166 = sadd.s32 %s21, %s165
          %s167 = smul.addr %s166, 4
          %s168 = scalar_lea.vmem %s0, %s167
          // Predicated region
          $region21: #{tpu_custom_call.1} parent=19 // pred_check
            _
          $region22: #{tpu_custom_call.1} parent=19 // pred_check_branch
            %170 = sbr.rel (0) target = $region24
          $region23: #{tpu_custom_call.1} parent=19 // pred_region
            // Predicated region
            $region25: #{tpu_custom_call.1} parent=23 // pred_check
              _
            $region26: #{tpu_custom_call.1} parent=23 // pred_check_branch
              %172 = sbr.rel target = $region28
            $region27: #{tpu_custom_call.1} parent=23 // pred_region
              // Predicated region
              $region40: #{tpu_custom_call.1} parent=27 // pred_check
                _
              $region41: #{tpu_custom_call.1} parent=27 // pred_check_branch
                %194 = sbr.rel (0) target = $region43
              $region42: #{tpu_custom_call.1} parent=27 // pred_region
                loop: start=0, step=1, limit=1
                $region44: #{tpu_custom_call.1} parent=42 // loop_pre_header
                  _
                $region45: #{tpu_custom_call.1} parent=42 // loop_header
                  %s196 = sphi 0, %s200
                  %p197 = scmp.ge.s32.totalorder %s196, 1
                  %s201 = sphi %s168, %s168
                  %s202 = sphi %s164, %s164
                $region46: #{tpu_custom_call.1} parent=42 // loop_header_branch
                  %199 = sbr.rel (%p197) target = $region50
                $region47: #{tpu_custom_call.1} parent=42 // loop_body
                  _
                $region48: #{tpu_custom_call.1} parent=42 // loop_footer
                  %s200 = sadd.s32 1, %s196
                $region49: #{tpu_custom_call.1} parent=42 // loop_footer_branch
                  %195 = sbr.rel target = $region45
                $region50: #{tpu_custom_call.1} parent=42 // loop_exit
                  _
                %s204 = ssub.s32 16, 1
                loop: start=0, step=1, limit=1
                $region51: #{tpu_custom_call.1} parent=42 // loop_pre_header
                  _
                $region52: #{tpu_custom_call.1} parent=42 // loop_header
                  %s206 = sphi 0, %s210
                  %p207 = scmp.ge.s32.totalorder %s206, 1
                  %s211 = sphi %s168, %s168
                  %s212 = sphi %s164, %s164
                $region53: #{tpu_custom_call.1} parent=42 // loop_header_branch
                  %209 = sbr.rel (%p207) target = $region57
                $region54: #{tpu_custom_call.1} parent=42 // loop_body
                  %v213 = vld [vmem:[%s211] sm:%s204]
                  %214 = vst [vmem:[%s212] sm:%s204] %v213
                  %v215 = vld [vmem:[%s211 + $0x8] sm:%s204]
                  %216 = vst [vmem:[%s212 + $0x4] sm:%s204] %v215
                  %v217 = vld [vmem:[%s211 + $0x10] sm:%s204]
                  %218 = vst [vmem:[%s212 + $0x8] sm:%s204] %v217
                  %v219 = vld [vmem:[%s211 + $0x18] sm:%s204]
                  %220 = vst [vmem:[%s212 + $0xc] sm:%s204] %v219
                $region55: #{tpu_custom_call.1} parent=42 // loop_footer
                  %s210 = sadd.s32 1, %s206
                $region56: #{tpu_custom_call.1} parent=42 // loop_footer_branch
                  %205 = sbr.rel target = $region52
                $region57: #{tpu_custom_call.1} parent=42 // loop_exit
                  _
              $region43: #{tpu_custom_call.1} parent=27 // pred_fallthru
                _
            $region28: #{tpu_custom_call.1} parent=23 // pred_fallthru
              _
            // Predicated region
            $region29: #{tpu_custom_call.1} parent=23 // pred_check
              _
            $region30: #{tpu_custom_call.1} parent=23 // pred_check_branch
              %174 = sbr.rel (0) target = $region32
            $region31: #{tpu_custom_call.1} parent=23 // pred_region
              %s176 = ssub.s32 16, 1
              loop: start=0, step=1, limit=1
              $region33: #{tpu_custom_call.1} parent=31 // loop_pre_header
                _
              $region34: #{tpu_custom_call.1} parent=31 // loop_header
                %s178 = sphi 0, %s182
                %p179 = scmp.ge.s32.totalorder %s178, 1
                %s183 = sphi %s168, %s168
                %s184 = sphi %s164, %s164
              $region35: #{tpu_custom_call.1} parent=31 // loop_header_branch
                %181 = sbr.rel (%p179) target = $region39
              $region36: #{tpu_custom_call.1} parent=31 // loop_body
                %v185 = vld [vmem:[%s183] sm:%s176]
                %186 = vst [vmem:[%s184] sm:%s176] %v185
                %v187 = vld [vmem:[%s183 + $0x8] sm:%s176]
                %188 = vst [vmem:[%s184 + $0x4] sm:%s176] %v187
                %v189 = vld [vmem:[%s183 + $0x10] sm:%s176]
                %190 = vst [vmem:[%s184 + $0x8] sm:%s176] %v189
                %v191 = vld [vmem:[%s183 + $0x18] sm:%s176]
                %192 = vst [vmem:[%s184 + $0xc] sm:%s176] %v191
              $region37: #{tpu_custom_call.1} parent=31 // loop_footer
                %s182 = sadd.s32 1, %s178
              $region38: #{tpu_custom_call.1} parent=31 // loop_footer_branch
                %177 = sbr.rel target = $region34
              $region39: #{tpu_custom_call.1} parent=31 // loop_exit
                _
            $region32: #{tpu_custom_call.1} parent=23 // pred_fallthru
              _
          $region24: #{tpu_custom_call.1} parent=19 // pred_fallthru
            _
          %221 = vnop
        $region20: #{tpu_custom_call.1} parent=15 // pred_fallthru
          _
        // Predicated region
        $region58: #{tpu_custom_call.1} parent=15 // pred_check
          %p222 = pneg %p79
        $region59: #{tpu_custom_call.1} parent=15 // pred_check_branch
          %224 = sbr.rel (%p222) target = $region61
        $region60: #{tpu_custom_call.1} parent=15 // pred_region
          %p225 = scmp.lt.s32.totalorder %s20, 1
          %s226 = scalar_select %p225, %s20, 1
          %s227 = smul.addr %s226, 256
          %s228 = smul.addr %s227, 4
          %s229 = scalar_lea.vmem %s1, %s228
        $region61: #{tpu_custom_call.1} parent=15 // pred_fallthru
          _
        // Predicated region
        $region62: #{tpu_custom_call.1} parent=15 // pred_check
          %p230 = pneg %p105
        $region63: #{tpu_custom_call.1} parent=15 // pred_check_branch
          %232 = sbr.rel (%p230) target = $region65
        $region64: #{tpu_custom_call.1} parent=15 // pred_region
          %s233 = sand.u32 %s95, 1
          %s234 = sand.u32 %s95, 1
          %s235 = smul.addr %s234, 16
          %s236 = scalar_lea.vmem [#allocation4], %s235
          %s237 = smul.addr %s20, 8
          %s238 = scalar_lea.vmem %s2, %s237
          // Predicated region
          $region66: #{tpu_custom_call.1} parent=64 // pred_check
            _
          $region67: #{tpu_custom_call.1} parent=64 // pred_check_branch
            %240 = sbr.rel (0) target = $region69
          $region68: #{tpu_custom_call.1} parent=64 // pred_region
            // Predicated region
            $region70: #{tpu_custom_call.1} parent=68 // pred_check
              _
            $region71: #{tpu_custom_call.1} parent=68 // pred_check_branch
              %242 = sbr.rel (0) target = $region73
            $region72: #{tpu_custom_call.1} parent=68 // pred_region
              // Predicated region
              $region85: #{tpu_custom_call.1} parent=72 // pred_check
                _
              $region86: #{tpu_custom_call.1} parent=72 // pred_check_branch
                %260 = sbr.rel (0) target = $region88
              $region87: #{tpu_custom_call.1} parent=72 // pred_region
                loop: start=0, step=1, limit=1
                $region89: #{tpu_custom_call.1} parent=87 // loop_pre_header
                  _
                $region90: #{tpu_custom_call.1} parent=87 // loop_header
                  %s262 = sphi 0, %s266
                  %p263 = scmp.ge.s32.totalorder %s262, 1
                  %s267 = sphi %s238, %s238
                  %s268 = sphi %s236, %s236
                $region91: #{tpu_custom_call.1} parent=87 // loop_header_branch
                  %265 = sbr.rel (%p263) target = $region95
                $region92: #{tpu_custom_call.1} parent=87 // loop_body
                  %v269 = vld [vmem:[%s267] sm:$0xff]
                  %270 = vst [vmem:[%s268] sm:$0xff] %v269
                  %v271 = vld [vmem:[%s267 + $0x10] sm:$0xff]
                  %272 = vst [vmem:[%s268 + $0x8] sm:$0xff] %v271
                $region93: #{tpu_custom_call.1} parent=87 // loop_footer
                  %s266 = sadd.s32 1, %s262
                $region94: #{tpu_custom_call.1} parent=87 // loop_footer_branch
                  %261 = sbr.rel target = $region90
                $region95: #{tpu_custom_call.1} parent=87 // loop_exit
                  _
              $region88: #{tpu_custom_call.1} parent=72 // pred_fallthru
                _
              // Predicated region
              $region96: #{tpu_custom_call.1} parent=72 // pred_check
                _
              $region97: #{tpu_custom_call.1} parent=72 // pred_check_branch
                %274 = sbr.rel target = $region99
              $region98: #{tpu_custom_call.1} parent=72 // pred_region
                _
              $region99: #{tpu_custom_call.1} parent=72 // pred_fallthru
                _
            $region73: #{tpu_custom_call.1} parent=68 // pred_fallthru
              _
            // Predicated region
            $region74: #{tpu_custom_call.1} parent=68 // pred_check
              _
            $region75: #{tpu_custom_call.1} parent=68 // pred_check_branch
              %244 = sbr.rel target = $region77
            $region76: #{tpu_custom_call.1} parent=68 // pred_region
              %s246 = ssub.s32 256, 1
              loop: start=0, step=1, limit=1
              $region78: #{tpu_custom_call.1} parent=76 // loop_pre_header
                _
              $region79: #{tpu_custom_call.1} parent=76 // loop_header
                %s248 = sphi 0, %s252
                %p249 = scmp.ge.s32.totalorder %s248, 1
                %s253 = sphi %s238, %s238
                %s254 = sphi %s236, %s236
              $region80: #{tpu_custom_call.1} parent=76 // loop_header_branch
                %251 = sbr.rel (%p249) target = $region84
              $region81: #{tpu_custom_call.1} parent=76 // loop_body
                %v255 = vld [vmem:[%s253] sm:%s246]
                %256 = vst [vmem:[%s254] sm:%s246] %v255
                %v257 = vld [vmem:[%s253 + $0x10] sm:%s246]
                %258 = vst [vmem:[%s254 + $0x8] sm:%s246] %v257
              $region82: #{tpu_custom_call.1} parent=76 // loop_footer
                %s252 = sadd.s32 1, %s248
              $region83: #{tpu_custom_call.1} parent=76 // loop_footer_branch
                %247 = sbr.rel target = $region79
              $region84: #{tpu_custom_call.1} parent=76 // loop_exit
                _
            $region77: #{tpu_custom_call.1} parent=68 // pred_fallthru
              _
          $region69: #{tpu_custom_call.1} parent=64 // pred_fallthru
            _
          %275 = vnop
        $region65: #{tpu_custom_call.1} parent=15 // pred_fallthru
          _
      $region16: #{tpu_custom_call.1} parent=5 // pred_fallthru
        _
      %p276 = scmp.le.s32.totalorder 1, %s12
      %p277 = scmp.lt.s32.totalorder %s12, 9
      %p278 = pnand %p276, %p277
      %p279 = pneg %p278
      // Predicated region
      $region100: #{tpu_custom_call.1} parent=5 // pred_check
        _
      $region101: #{tpu_custom_call.1} parent=5 // pred_check_branch
        %281 = sbr.rel (%p278) target = $region103
      $region102: #{tpu_custom_call.1} parent=5 // pred_region
        %s282 = ssub.s32 %s12, 1
        %s283 = sand.u32 %s46, 1
        %s284 = sand.u32 %s46, 1
        %s285 = smul.addr %s284, 16
        %s286 = scalar_lea.vmem [#allocation3], %s285
        // Predicated region
        $region104: #{tpu_custom_call.1} parent=102 // pred_check
          %p287 = pneg %p59
        $region105: #{tpu_custom_call.1} parent=102 // pred_check_branch
          %289 = sbr.rel (%p287) target = $region107
        $region106: #{tpu_custom_call.1} parent=102 // pred_region
          _
        $region107: #{tpu_custom_call.1} parent=102 // pred_fallthru
          _
        %s290 = sand.u32 %s98, 1
        %s291 = sand.u32 %s98, 1
        %s292 = smul.addr %s291, 16
        %s293 = scalar_lea.vmem [#allocation4], %s292
        // Predicated region
        $region108: #{tpu_custom_call.1} parent=102 // pred_check
          %p294 = pneg %p111
        $region109: #{tpu_custom_call.1} parent=102 // pred_check_branch
          %296 = sbr.rel (%p294) target = $region111
        $region110: #{tpu_custom_call.1} parent=102 // pred_region
          _
        $region111: #{tpu_custom_call.1} parent=102 // pred_fallthru
          _
        %s297 = sand.u32 %s46, 1
        %s298 = sand.u32 %s46, 1
        %s299 = smul.addr %s298, 16
        %s300 = scalar_lea.vmem [#allocation3], %s299
        %p301 = pneg %p59
        %p302 = pneg %p56
        %p303 = scmp.lt.s32.totalorder %s23, 1
        %s304 = scalar_select %p303, %s23, 1
        %s305 = smul.addr %s304, 256
        %s306 = smul.addr %s305, 4
        %s307 = scalar_lea.vmem %s1, %s306
        %p308 = pneg %p85
        %p309 = pneg %p82
        %s310 = sand.u32 %s98, 1
        %s311 = sand.u32 %s98, 1
        %s312 = smul.addr %s311, 16
        %s313 = scalar_lea.vmem [#allocation4], %s312
        %p314 = pneg %p111
        %p315 = pneg %p108
        %p316 = pneg %p139
        %p317 = pneg %p136
        %s318 = sand.u32 %s126, 1
        %s319 = scalar_lea.sflag [#allocation6], %s318
        %s320 = sand.u32 %s126, 1
        %s321 = smul.addr %s320, 16
        %s322 = scalar_lea.vmem [#allocation5], %s321
        %p323 = scmp.lt.s32.totalorder %s23, 1
        %s324 = scalar_select %p323, %s23, 1
        %s325 = smul.addr %s324, 256
        %s326 = smul.addr %s325, 4
        %s327 = scalar_lea.vmem %s1, %s326
        %p329 = scmp.eq.s32.totalorder %s24, 0
        // Predicated region
        $region112: #{tpu_custom_call.1} parent=102 // pred_check
          %p330 = pneg %p329
        $region113: #{tpu_custom_call.1} parent=102 // pred_check_branch
          %332 = sbr.rel (%p330) target = $region115
        $region114: #{tpu_custom_call.1} parent=102 // pred_region
          %333 = vst [vmem:[#allocation2] sm:$0xff] -1e+30
          %334 = vst [vmem:[#allocation2 + $0x8] sm:$0xff] -1e+30
        $region115: #{tpu_custom_call.1} parent=102 // pred_fallthru
          _
        %v335 = vld [vmem:[%s286] sm:$0xf]
        %v336 = vld [vmem:[%s286 + $0x4] sm:$0xf]
        %v337 = vld [vmem:[%s286 + $0x8] sm:$0xf]
        %v338 = vld [vmem:[%s286 + $0xc] sm:$0xf]
        %v339 = vld [vmem:[%s327] sm:$0xf]
        %v340 = vld [vmem:[%s327 + $0x4] sm:$0xf]
        %v341 = vld [vmem:[%s327 + $0x8] sm:$0xf]
        %v342 = vld [vmem:[%s327 + $0xc] sm:$0xf]
        %v343 = vld [vmem:[%s327 + $0x10] sm:$0xf]
        %v344 = vld [vmem:[%s327 + $0x14] sm:$0xf]
        %v345 = vld [vmem:[%s327 + $0x18] sm:$0xf]
        %v346 = vld [vmem:[%s327 + $0x1c] sm:$0xf]
        %v347 = vld [vmem:[%s327 + $0x20] sm:$0xf]
        %v348 = vld [vmem:[%s327 + $0x24] sm:$0xf]
        %v349 = vld [vmem:[%s327 + $0x28] sm:$0xf]
        %v350 = vld [vmem:[%s327 + $0x2c] sm:$0xf]
        %v351 = vld [vmem:[%s327 + $0x30] sm:$0xf]
        %v352 = vld [vmem:[%s327 + $0x34] sm:$0xf]
        %v353 = vld [vmem:[%s327 + $0x38] sm:$0xf]
        %v354 = vld [vmem:[%s327 + $0x3c] sm:$0xf]
        %v355 = vld [vmem:[%s327 + $0x40] sm:$0xf]
        %v356 = vld [vmem:[%s327 + $0x44] sm:$0xf]
        %v357 = vld [vmem:[%s327 + $0x48] sm:$0xf]
        %v358 = vld [vmem:[%s327 + $0x4c] sm:$0xf]
        %v359 = vld [vmem:[%s327 + $0x50] sm:$0xf]
        %v360 = vld [vmem:[%s327 + $0x54] sm:$0xf]
        %v361 = vld [vmem:[%s327 + $0x58] sm:$0xf]
        %v362 = vld [vmem:[%s327 + $0x5c] sm:$0xf]
        %v363 = vld [vmem:[%s327 + $0x60] sm:$0xf]
        %v364 = vld [vmem:[%s327 + $0x64] sm:$0xf]
        %v365 = vld [vmem:[%s327 + $0x68] sm:$0xf]
        %v366 = vld [vmem:[%s327 + $0x6c] sm:$0xf]
        %v367 = vld [vmem:[%s327 + $0x70] sm:$0xf]
        %v368 = vld [vmem:[%s327 + $0x74] sm:$0xf]
        %v369 = vld [vmem:[%s327 + $0x78] sm:$0xf]
        %v370 = vld [vmem:[%s327 + $0x7c] sm:$0xf]
        %v371 = vld [vmem:[%s327 + $0x80] sm:$0xf]
        %v372 = vld [vmem:[%s327 + $0x84] sm:$0xf]
        %v373 = vld [vmem:[%s327 + $0x88] sm:$0xf]
        %v374 = vld [vmem:[%s327 + $0x8c] sm:$0xf]
        %v375 = vld [vmem:[%s327 + $0x90] sm:$0xf]
        %v376 = vld [vmem:[%s327 + $0x94] sm:$0xf]
        %v377 = vld [vmem:[%s327 + $0x98] sm:$0xf]
        %v378 = vld [vmem:[%s327 + $0x9c] sm:$0xf]
        %v379 = vld [vmem:[%s327 + $0xa0] sm:$0xf]
        %v380 = vld [vmem:[%s327 + $0xa4] sm:$0xf]
        %v381 = vld [vmem:[%s327 + $0xa8] sm:$0xf]
        %v382 = vld [vmem:[%s327 + $0xac] sm:$0xf]
        %v383 = vld [vmem:[%s327 + $0xb0] sm:$0xf]
        %v384 = vld [vmem:[%s327 + $0xb4] sm:$0xf]
        %v385 = vld [vmem:[%s327 + $0xb8] sm:$0xf]
        %v386 = vld [vmem:[%s327 + $0xbc] sm:$0xf]
        %v387 = vld [vmem:[%s327 + $0xc0] sm:$0xf]
        %v388 = vld [vmem:[%s327 + $0xc4] sm:$0xf]
        %v389 = vld [vmem:[%s327 + $0xc8] sm:$0xf]
        %v390 = vld [vmem:[%s327 + $0xcc] sm:$0xf]
        %v391 = vld [vmem:[%s327 + $0xd0] sm:$0xf]
        %v392 = vld [vmem:[%s327 + $0xd4] sm:$0xf]
        %v393 = vld [vmem:[%s327 + $0xd8] sm:$0xf]
        %v394 = vld [vmem:[%s327 + $0xdc] sm:$0xf]
        %v395 = vld [vmem:[%s327 + $0xe0] sm:$0xf]
        %v396 = vld [vmem:[%s327 + $0xe4] sm:$0xf]
        %v397 = vld [vmem:[%s327 + $0xe8] sm:$0xf]
        %v398 = vld [vmem:[%s327 + $0xec] sm:$0xf]
        %v399 = vld [vmem:[%s327 + $0xf0] sm:$0xf]
        %v400 = vld [vmem:[%s327 + $0xf4] sm:$0xf]
        %v401 = vld [vmem:[%s327 + $0xf8] sm:$0xf]
        %v402 = vld [vmem:[%s327 + $0xfc] sm:$0xf]
        %v403 = vld [vmem:[%s327 + $0x100] sm:$0xf]
        %v404 = vld [vmem:[%s327 + $0x104] sm:$0xf]
        %v405 = vld [vmem:[%s327 + $0x108] sm:$0xf]
        %v406 = vld [vmem:[%s327 + $0x10c] sm:$0xf]
        %v407 = vld [vmem:[%s327 + $0x110] sm:$0xf]
        %v408 = vld [vmem:[%s327 + $0x114] sm:$0xf]
        %v409 = vld [vmem:[%s327 + $0x118] sm:$0xf]
        %v410 = vld [vmem:[%s327 + $0x11c] sm:$0xf]
        %v411 = vld [vmem:[%s327 + $0x120] sm:$0xf]
        %v412 = vld [vmem:[%s327 + $0x124] sm:$0xf]
        %v413 = vld [vmem:[%s327 + $0x128] sm:$0xf]
        %v414 = vld [vmem:[%s327 + $0x12c] sm:$0xf]
        %v415 = vld [vmem:[%s327 + $0x130] sm:$0xf]
        %v416 = vld [vmem:[%s327 + $0x134] sm:$0xf]
        %v417 = vld [vmem:[%s327 + $0x138] sm:$0xf]
        %v418 = vld [vmem:[%s327 + $0x13c] sm:$0xf]
        %v419 = vld [vmem:[%s327 + $0x140] sm:$0xf]
        %v420 = vld [vmem:[%s327 + $0x144] sm:$0xf]
        %v421 = vld [vmem:[%s327 + $0x148] sm:$0xf]
        %v422 = vld [vmem:[%s327 + $0x14c] sm:$0xf]
        %v423 = vld [vmem:[%s327 + $0x150] sm:$0xf]
        %v424 = vld [vmem:[%s327 + $0x154] sm:$0xf]
        %v425 = vld [vmem:[%s327 + $0x158] sm:$0xf]
        %v426 = vld [vmem:[%s327 + $0x15c] sm:$0xf]
        %v427 = vld [vmem:[%s327 + $0x160] sm:$0xf]
        %v428 = vld [vmem:[%s327 + $0x164] sm:$0xf]
        %v429 = vld [vmem:[%s327 + $0x168] sm:$0xf]
        %v430 = vld [vmem:[%s327 + $0x16c] sm:$0xf]
        %v431 = vld [vmem:[%s327 + $0x170] sm:$0xf]
        %v432 = vld [vmem:[%s327 + $0x174] sm:$0xf]
        %v433 = vld [vmem:[%s327 + $0x178] sm:$0xf]
        %v434 = vld [vmem:[%s327 + $0x17c] sm:$0xf]
        %v435 = vld [vmem:[%s327 + $0x180] sm:$0xf]
        %v436 = vld [vmem:[%s327 + $0x184] sm:$0xf]
        %v437 = vld [vmem:[%s327 + $0x188] sm:$0xf]
        %v438 = vld [vmem:[%s327 + $0x18c] sm:$0xf]
        %v439 = vld [vmem:[%s327 + $0x190] sm:$0xf]
        %v440 = vld [vmem:[%s327 + $0x194] sm:$0xf]
        %v441 = vld [vmem:[%s327 + $0x198] sm:$0xf]
        %v442 = vld [vmem:[%s327 + $0x19c] sm:$0xf]
        %v443 = vld [vmem:[%s327 + $0x1a0] sm:$0xf]
        %v444 = vld [vmem:[%s327 + $0x1a4] sm:$0xf]
        %v445 = vld [vmem:[%s327 + $0x1a8] sm:$0xf]
        %v446 = vld [vmem:[%s327 + $0x1ac] sm:$0xf]
        %v447 = vld [vmem:[%s327 + $0x1b0] sm:$0xf]
        %v448 = vld [vmem:[%s327 + $0x1b4] sm:$0xf]
        %v449 = vld [vmem:[%s327 + $0x1b8] sm:$0xf]
        %v450 = vld [vmem:[%s327 + $0x1bc] sm:$0xf]
        %v451 = vld [vmem:[%s327 + $0x1c0] sm:$0xf]
        %v452 = vld [vmem:[%s327 + $0x1c4] sm:$0xf]
        %v453 = vld [vmem:[%s327 + $0x1c8] sm:$0xf]
        %v454 = vld [vmem:[%s327 + $0x1cc] sm:$0xf]
        %v455 = vld [vmem:[%s327 + $0x1d0] sm:$0xf]
        %v456 = vld [vmem:[%s327 + $0x1d4] sm:$0xf]
        %v457 = vld [vmem:[%s327 + $0x1d8] sm:$0xf]
        %v458 = vld [vmem:[%s327 + $0x1dc] sm:$0xf]
        %v459 = vld [vmem:[%s327 + $0x1e0] sm:$0xf]
        %v460 = vld [vmem:[%s327 + $0x1e4] sm:$0xf]
        %v461 = vld [vmem:[%s327 + $0x1e8] sm:$0xf]
        %v462 = vld [vmem:[%s327 + $0x1ec] sm:$0xf]
        %v463 = vld [vmem:[%s327 + $0x1f0] sm:$0xf]
        %v464 = vld [vmem:[%s327 + $0x1f4] sm:$0xf]
        %v465 = vld [vmem:[%s327 + $0x1f8] sm:$0xf]
        %v466 = vld [vmem:[%s327 + $0x1fc] sm:$0xf]
        %v467 = vld [vmem:[%s327 + $0x200] sm:$0xf]
        %v468 = vld [vmem:[%s327 + $0x204] sm:$0xf]
        %v469 = vld [vmem:[%s327 + $0x208] sm:$0xf]
        %v470 = vld [vmem:[%s327 + $0x20c] sm:$0xf]
        %v471 = vld [vmem:[%s327 + $0x210] sm:$0xf]
        %v472 = vld [vmem:[%s327 + $0x214] sm:$0xf]
        %v473 = vld [vmem:[%s327 + $0x218] sm:$0xf]
        %v474 = vld [vmem:[%s327 + $0x21c] sm:$0xf]
        %v475 = vld [vmem:[%s327 + $0x220] sm:$0xf]
        %v476 = vld [vmem:[%s327 + $0x224] sm:$0xf]
        %v477 = vld [vmem:[%s327 + $0x228] sm:$0xf]
        %v478 = vld [vmem:[%s327 + $0x22c] sm:$0xf]
        %v479 = vld [vmem:[%s327 + $0x230] sm:$0xf]
        %v480 = vld [vmem:[%s327 + $0x234] sm:$0xf]
        %v481 = vld [vmem:[%s327 + $0x238] sm:$0xf]
        %v482 = vld [vmem:[%s327 + $0x23c] sm:$0xf]
        %v483 = vld [vmem:[%s327 + $0x240] sm:$0xf]
        %v484 = vld [vmem:[%s327 + $0x244] sm:$0xf]
        %v485 = vld [vmem:[%s327 + $0x248] sm:$0xf]
        %v486 = vld [vmem:[%s327 + $0x24c] sm:$0xf]
        %v487 = vld [vmem:[%s327 + $0x250] sm:$0xf]
        %v488 = vld [vmem:[%s327 + $0x254] sm:$0xf]
        %v489 = vld [vmem:[%s327 + $0x258] sm:$0xf]
        %v490 = vld [vmem:[%s327 + $0x25c] sm:$0xf]
        %v491 = vld [vmem:[%s327 + $0x260] sm:$0xf]
        %v492 = vld [vmem:[%s327 + $0x264] sm:$0xf]
        %v493 = vld [vmem:[%s327 + $0x268] sm:$0xf]
        %v494 = vld [vmem:[%s327 + $0x26c] sm:$0xf]
        %v495 = vld [vmem:[%s327 + $0x270] sm:$0xf]
        %v496 = vld [vmem:[%s327 + $0x274] sm:$0xf]
        %v497 = vld [vmem:[%s327 + $0x278] sm:$0xf]
        %v498 = vld [vmem:[%s327 + $0x27c] sm:$0xf]
        %v499 = vld [vmem:[%s327 + $0x280] sm:$0xf]
        %v500 = vld [vmem:[%s327 + $0x284] sm:$0xf]
        %v501 = vld [vmem:[%s327 + $0x288] sm:$0xf]
        %v502 = vld [vmem:[%s327 + $0x28c] sm:$0xf]
        %v503 = vld [vmem:[%s327 + $0x290] sm:$0xf]
        %v504 = vld [vmem:[%s327 + $0x294] sm:$0xf]
        %v505 = vld [vmem:[%s327 + $0x298] sm:$0xf]
        %v506 = vld [vmem:[%s327 + $0x29c] sm:$0xf]
        %v507 = vld [vmem:[%s327 + $0x2a0] sm:$0xf]
        %v508 = vld [vmem:[%s327 + $0x2a4] sm:$0xf]
        %v509 = vld [vmem:[%s327 + $0x2a8] sm:$0xf]
        %v510 = vld [vmem:[%s327 + $0x2ac] sm:$0xf]
        %v511 = vld [vmem:[%s327 + $0x2b0] sm:$0xf]
        %v512 = vld [vmem:[%s327 + $0x2b4] sm:$0xf]
        %v513 = vld [vmem:[%s327 + $0x2b8] sm:$0xf]
        %v514 = vld [vmem:[%s327 + $0x2bc] sm:$0xf]
        %v515 = vld [vmem:[%s327 + $0x2c0] sm:$0xf]
        %v516 = vld [vmem:[%s327 + $0x2c4] sm:$0xf]
        %v517 = vld [vmem:[%s327 + $0x2c8] sm:$0xf]
        %v518 = vld [vmem:[%s327 + $0x2cc] sm:$0xf]
        %v519 = vld [vmem:[%s327 + $0x2d0] sm:$0xf]
        %v520 = vld [vmem:[%s327 + $0x2d4] sm:$0xf]
        %v521 = vld [vmem:[%s327 + $0x2d8] sm:$0xf]
        %v522 = vld [vmem:[%s327 + $0x2dc] sm:$0xf]
        %v523 = vld [vmem:[%s327 + $0x2e0] sm:$0xf]
        %v524 = vld [vmem:[%s327 + $0x2e4] sm:$0xf]
        %v525 = vld [vmem:[%s327 + $0x2e8] sm:$0xf]
        %v526 = vld [vmem:[%s327 + $0x2ec] sm:$0xf]
        %v527 = vld [vmem:[%s327 + $0x2f0] sm:$0xf]
        %v528 = vld [vmem:[%s327 + $0x2f4] sm:$0xf]
        %v529 = vld [vmem:[%s327 + $0x2f8] sm:$0xf]
        %v530 = vld [vmem:[%s327 + $0x2fc] sm:$0xf]
        %v531 = vld [vmem:[%s327 + $0x300] sm:$0xf]
        %v532 = vld [vmem:[%s327 + $0x304] sm:$0xf]
        %v533 = vld [vmem:[%s327 + $0x308] sm:$0xf]
        %v534 = vld [vmem:[%s327 + $0x30c] sm:$0xf]
        %v535 = vld [vmem:[%s327 + $0x310] sm:$0xf]
        %v536 = vld [vmem:[%s327 + $0x314] sm:$0xf]
        %v537 = vld [vmem:[%s327 + $0x318] sm:$0xf]
        %v538 = vld [vmem:[%s327 + $0x31c] sm:$0xf]
        %v539 = vld [vmem:[%s327 + $0x320] sm:$0xf]
        %v540 = vld [vmem:[%s327 + $0x324] sm:$0xf]
        %v541 = vld [vmem:[%s327 + $0x328] sm:$0xf]
        %v542 = vld [vmem:[%s327 + $0x32c] sm:$0xf]
        %v543 = vld [vmem:[%s327 + $0x330] sm:$0xf]
        %v544 = vld [vmem:[%s327 + $0x334] sm:$0xf]
        %v545 = vld [vmem:[%s327 + $0x338] sm:$0xf]
        %v546 = vld [vmem:[%s327 + $0x33c] sm:$0xf]
        %v547 = vld [vmem:[%s327 + $0x340] sm:$0xf]
        %v548 = vld [vmem:[%s327 + $0x344] sm:$0xf]
        %v549 = vld [vmem:[%s327 + $0x348] sm:$0xf]
        %v550 = vld [vmem:[%s327 + $0x34c] sm:$0xf]
        %v551 = vld [vmem:[%s327 + $0x350] sm:$0xf]
        %v552 = vld [vmem:[%s327 + $0x354] sm:$0xf]
        %v553 = vld [vmem:[%s327 + $0x358] sm:$0xf]
        %v554 = vld [vmem:[%s327 + $0x35c] sm:$0xf]
        %v555 = vld [vmem:[%s327 + $0x360] sm:$0xf]
        %v556 = vld [vmem:[%s327 + $0x364] sm:$0xf]
        %v557 = vld [vmem:[%s327 + $0x368] sm:$0xf]
        %v558 = vld [vmem:[%s327 + $0x36c] sm:$0xf]
        %v559 = vld [vmem:[%s327 + $0x370] sm:$0xf]
        %v560 = vld [vmem:[%s327 + $0x374] sm:$0xf]
        %v561 = vld [vmem:[%s327 + $0x378] sm:$0xf]
        %v562 = vld [vmem:[%s327 + $0x37c] sm:$0xf]
        %v563 = vld [vmem:[%s327 + $0x380] sm:$0xf]
        %v564 = vld [vmem:[%s327 + $0x384] sm:$0xf]
        %v565 = vld [vmem:[%s327 + $0x388] sm:$0xf]
        %v566 = vld [vmem:[%s327 + $0x38c] sm:$0xf]
        %v567 = vld [vmem:[%s327 + $0x390] sm:$0xf]
        %v568 = vld [vmem:[%s327 + $0x394] sm:$0xf]
        %v569 = vld [vmem:[%s327 + $0x398] sm:$0xf]
        %v570 = vld [vmem:[%s327 + $0x39c] sm:$0xf]
        %v571 = vld [vmem:[%s327 + $0x3a0] sm:$0xf]
        %v572 = vld [vmem:[%s327 + $0x3a4] sm:$0xf]
        %v573 = vld [vmem:[%s327 + $0x3a8] sm:$0xf]
        %v574 = vld [vmem:[%s327 + $0x3ac] sm:$0xf]
        %v575 = vld [vmem:[%s327 + $0x3b0] sm:$0xf]
        %v576 = vld [vmem:[%s327 + $0x3b4] sm:$0xf]
        %v577 = vld [vmem:[%s327 + $0x3b8] sm:$0xf]
        %v578 = vld [vmem:[%s327 + $0x3bc] sm:$0xf]
        %v579 = vld [vmem:[%s327 + $0x3c0] sm:$0xf]
        %v580 = vld [vmem:[%s327 + $0x3c4] sm:$0xf]
        %v581 = vld [vmem:[%s327 + $0x3c8] sm:$0xf]
        %v582 = vld [vmem:[%s327 + $0x3cc] sm:$0xf]
        %v583 = vld [vmem:[%s327 + $0x3d0] sm:$0xf]
        %v584 = vld [vmem:[%s327 + $0x3d4] sm:$0xf]
        %v585 = vld [vmem:[%s327 + $0x3d8] sm:$0xf]
        %v586 = vld [vmem:[%s327 + $0x3dc] sm:$0xf]
        %v587 = vld [vmem:[%s327 + $0x3e0] sm:$0xf]
        %v588 = vld [vmem:[%s327 + $0x3e4] sm:$0xf]
        %v589 = vld [vmem:[%s327 + $0x3e8] sm:$0xf]
        %v590 = vld [vmem:[%s327 + $0x3ec] sm:$0xf]
        %v591 = vld [vmem:[%s327 + $0x3f0] sm:$0xf]
        %v592 = vld [vmem:[%s327 + $0x3f4] sm:$0xf]
        %v593 = vld [vmem:[%s327 + $0x3f8] sm:$0xf]
        %v594 = vld [vmem:[%s327 + $0x3fc] sm:$0xf]
        %v851 = vunpack.c.l.b16 %v339
        %v852 = vunpack.c.l.b16 %v340
        %v853 = vunpack.c.l.b16 %v341
        %v854 = vunpack.c.l.b16 %v342
        %v855 = vunpack.c.l.b16 %v343
        %v856 = vunpack.c.l.b16 %v344
        %v857 = vunpack.c.l.b16 %v345
        %v858 = vunpack.c.l.b16 %v346
        %v859 = vunpack.c.l.b16 %v347
        %v860 = vunpack.c.l.b16 %v348
        %v861 = vunpack.c.l.b16 %v349
        %v862 = vunpack.c.l.b16 %v350
        %v863 = vunpack.c.l.b16 %v351
        %v864 = vunpack.c.l.b16 %v352
        %v865 = vunpack.c.l.b16 %v353
        %v866 = vunpack.c.l.b16 %v354
        %v867 = vunpack.c.l.b16 %v355
        %v868 = vunpack.c.l.b16 %v356
        %v869 = vunpack.c.l.b16 %v357
        %v870 = vunpack.c.l.b16 %v358
        %v871 = vunpack.c.l.b16 %v359
        %v872 = vunpack.c.l.b16 %v360
        %v873 = vunpack.c.l.b16 %v361
        %v874 = vunpack.c.l.b16 %v362
        %v875 = vunpack.c.l.b16 %v363
        %v876 = vunpack.c.l.b16 %v364
        %v877 = vunpack.c.l.b16 %v365
        %v878 = vunpack.c.l.b16 %v366
        %v879 = vunpack.c.l.b16 %v367
        %v880 = vunpack.c.l.b16 %v368
        %v881 = vunpack.c.l.b16 %v369
        %v882 = vunpack.c.l.b16 %v370
        %v883 = vunpack.c.l.b16 %v371
        %v884 = vunpack.c.l.b16 %v372
        %v885 = vunpack.c.l.b16 %v373
        %v886 = vunpack.c.l.b16 %v374
        %v887 = vunpack.c.l.b16 %v375
        %v888 = vunpack.c.l.b16 %v376
        %v889 = vunpack.c.l.b16 %v377
        %v890 = vunpack.c.l.b16 %v378
        %v891 = vunpack.c.l.b16 %v379
        %v892 = vunpack.c.l.b16 %v380
        %v893 = vunpack.c.l.b16 %v381
        %v894 = vunpack.c.l.b16 %v382
        %v895 = vunpack.c.l.b16 %v383
        %v896 = vunpack.c.l.b16 %v384
        %v897 = vunpack.c.l.b16 %v385
        %v898 = vunpack.c.l.b16 %v386
        %v899 = vunpack.c.l.b16 %v387
        %v900 = vunpack.c.l.b16 %v388
        %v901 = vunpack.c.l.b16 %v389
        %v902 = vunpack.c.l.b16 %v390
        %v903 = vunpack.c.l.b16 %v391
        %v904 = vunpack.c.l.b16 %v392
        %v905 = vunpack.c.l.b16 %v393
        %v906 = vunpack.c.l.b16 %v394
        %v907 = vunpack.c.l.b16 %v395
        %v908 = vunpack.c.l.b16 %v396
        %v909 = vunpack.c.l.b16 %v397
        %v910 = vunpack.c.l.b16 %v398
        %v911 = vunpack.c.l.b16 %v399
        %v912 = vunpack.c.l.b16 %v400
        %v913 = vunpack.c.l.b16 %v401
        %v914 = vunpack.c.l.b16 %v402
        %v915 = vunpack.c.l.b16 %v403
        %v916 = vunpack.c.l.b16 %v404
        %v917 = vunpack.c.l.b16 %v405
        %v918 = vunpack.c.l.b16 %v406
        %v919 = vunpack.c.l.b16 %v407
        %v920 = vunpack.c.l.b16 %v408
        %v921 = vunpack.c.l.b16 %v409
        %v922 = vunpack.c.l.b16 %v410
        %v923 = vunpack.c.l.b16 %v411
        %v924 = vunpack.c.l.b16 %v412
        %v925 = vunpack.c.l.b16 %v413
        %v926 = vunpack.c.l.b16 %v414
        %v927 = vunpack.c.l.b16 %v415
        %v928 = vunpack.c.l.b16 %v416
        %v929 = vunpack.c.l.b16 %v417
        %v930 = vunpack.c.l.b16 %v418
        %v931 = vunpack.c.l.b16 %v419
        %v932 = vunpack.c.l.b16 %v420
        %v933 = vunpack.c.l.b16 %v421
        %v934 = vunpack.c.l.b16 %v422
        %v935 = vunpack.c.l.b16 %v423
        %v936 = vunpack.c.l.b16 %v424
        %v937 = vunpack.c.l.b16 %v425
        %v938 = vunpack.c.l.b16 %v426
        %v939 = vunpack.c.l.b16 %v427
        %v940 = vunpack.c.l.b16 %v428
        %v941 = vunpack.c.l.b16 %v429
        %v942 = vunpack.c.l.b16 %v430
        %v943 = vunpack.c.l.b16 %v431
        %v944 = vunpack.c.l.b16 %v432
        %v945 = vunpack.c.l.b16 %v433
        %v946 = vunpack.c.l.b16 %v434
        %v947 = vunpack.c.l.b16 %v435
        %v948 = vunpack.c.l.b16 %v436
        %v949 = vunpack.c.l.b16 %v437
        %v950 = vunpack.c.l.b16 %v438
        %v951 = vunpack.c.l.b16 %v439
        %v952 = vunpack.c.l.b16 %v440
        %v953 = vunpack.c.l.b16 %v441
        %v954 = vunpack.c.l.b16 %v442
        %v955 = vunpack.c.l.b16 %v443
        %v956 = vunpack.c.l.b16 %v444
        %v957 = vunpack.c.l.b16 %v445
        %v958 = vunpack.c.l.b16 %v446
        %v959 = vunpack.c.l.b16 %v447
        %v960 = vunpack.c.l.b16 %v448
        %v961 = vunpack.c.l.b16 %v449
        %v962 = vunpack.c.l.b16 %v450
        %v963 = vunpack.c.l.b16 %v451
        %v964 = vunpack.c.l.b16 %v452
        %v965 = vunpack.c.l.b16 %v453
        %v966 = vunpack.c.l.b16 %v454
        %v967 = vunpack.c.l.b16 %v455
        %v968 = vunpack.c.l.b16 %v456
        %v969 = vunpack.c.l.b16 %v457
        %v970 = vunpack.c.l.b16 %v458
        %v971 = vunpack.c.l.b16 %v459
        %v972 = vunpack.c.l.b16 %v460
        %v973 = vunpack.c.l.b16 %v461
        %v974 = vunpack.c.l.b16 %v462
        %v975 = vunpack.c.l.b16 %v463
        %v976 = vunpack.c.l.b16 %v464
        %v977 = vunpack.c.l.b16 %v465
        %v978 = vunpack.c.l.b16 %v466
        %v979 = vunpack.c.l.b16 %v467
        %v980 = vunpack.c.l.b16 %v468
        %v981 = vunpack.c.l.b16 %v469
        %v982 = vunpack.c.l.b16 %v470
        %v983 = vunpack.c.l.b16 %v471
        %v984 = vunpack.c.l.b16 %v472
        %v985 = vunpack.c.l.b16 %v473
        %v986 = vunpack.c.l.b16 %v474
        %v987 = vunpack.c.l.b16 %v475
        %v988 = vunpack.c.l.b16 %v476
        %v989 = vunpack.c.l.b16 %v477
        %v990 = vunpack.c.l.b16 %v478
        %v991 = vunpack.c.l.b16 %v479
        %v992 = vunpack.c.l.b16 %v480
        %v993 = vunpack.c.l.b16 %v481
        %v994 = vunpack.c.l.b16 %v482
        %v995 = vunpack.c.l.b16 %v483
        %v996 = vunpack.c.l.b16 %v484
        %v997 = vunpack.c.l.b16 %v485
        %v998 = vunpack.c.l.b16 %v486
        %v999 = vunpack.c.l.b16 %v487
        %v1000 = vunpack.c.l.b16 %v488
        %v1001 = vunpack.c.l.b16 %v489
        %v1002 = vunpack.c.l.b16 %v490
        %v1003 = vunpack.c.l.b16 %v491
        %v1004 = vunpack.c.l.b16 %v492
        %v1005 = vunpack.c.l.b16 %v493
        %v1006 = vunpack.c.l.b16 %v494
        %v1007 = vunpack.c.l.b16 %v495
        %v1008 = vunpack.c.l.b16 %v496
        %v1009 = vunpack.c.l.b16 %v497
        %v1010 = vunpack.c.l.b16 %v498
        %v1011 = vunpack.c.l.b16 %v499
        %v1012 = vunpack.c.l.b16 %v500
        %v1013 = vunpack.c.l.b16 %v501
        %v1014 = vunpack.c.l.b16 %v502
        %v1015 = vunpack.c.l.b16 %v503
        %v1016 = vunpack.c.l.b16 %v504
        %v1017 = vunpack.c.l.b16 %v505
        %v1018 = vunpack.c.l.b16 %v506
        %v1019 = vunpack.c.l.b16 %v507
        %v1020 = vunpack.c.l.b16 %v508
        %v1021 = vunpack.c.l.b16 %v509
        %v1022 = vunpack.c.l.b16 %v510
        %v1023 = vunpack.c.l.b16 %v511
        %v1024 = vunpack.c.l.b16 %v512
        %v1025 = vunpack.c.l.b16 %v513
        %v1026 = vunpack.c.l.b16 %v514
        %v1027 = vunpack.c.l.b16 %v515
        %v1028 = vunpack.c.l.b16 %v516
        %v1029 = vunpack.c.l.b16 %v517
        %v1030 = vunpack.c.l.b16 %v518
        %v1031 = vunpack.c.l.b16 %v519
        %v1032 = vunpack.c.l.b16 %v520
        %v1033 = vunpack.c.l.b16 %v521
        %v1034 = vunpack.c.l.b16 %v522
        %v1035 = vunpack.c.l.b16 %v523
        %v1036 = vunpack.c.l.b16 %v524
        %v1037 = vunpack.c.l.b16 %v525
        %v1038 = vunpack.c.l.b16 %v526
        %v1039 = vunpack.c.l.b16 %v527
        %v1040 = vunpack.c.l.b16 %v528
        %v1041 = vunpack.c.l.b16 %v529
        %v1042 = vunpack.c.l.b16 %v530
        %v1043 = vunpack.c.l.b16 %v531
        %v1044 = vunpack.c.l.b16 %v532
        %v1045 = vunpack.c.l.b16 %v533
        %v1046 = vunpack.c.l.b16 %v534
        %v1047 = vunpack.c.l.b16 %v535
        %v1048 = vunpack.c.l.b16 %v536
        %v1049 = vunpack.c.l.b16 %v537
        %v1050 = vunpack.c.l.b16 %v538
        %v1051 = vunpack.c.l.b16 %v539
        %v1052 = vunpack.c.l.b16 %v540
        %v1053 = vunpack.c.l.b16 %v541
        %v1054 = vunpack.c.l.b16 %v542
        %v1055 = vunpack.c.l.b16 %v543
        %v1056 = vunpack.c.l.b16 %v544
        %v1057 = vunpack.c.l.b16 %v545
        %v1058 = vunpack.c.l.b16 %v546
        %v1059 = vunpack.c.l.b16 %v547
        %v1060 = vunpack.c.l.b16 %v548
        %v1061 = vunpack.c.l.b16 %v549
        %v1062 = vunpack.c.l.b16 %v550
        %v1063 = vunpack.c.l.b16 %v551
        %v1064 = vunpack.c.l.b16 %v552
        %v1065 = vunpack.c.l.b16 %v553
        %v1066 = vunpack.c.l.b16 %v554
        %v1067 = vunpack.c.l.b16 %v555
        %v1068 = vunpack.c.l.b16 %v556
        %v1069 = vunpack.c.l.b16 %v557
        %v1070 = vunpack.c.l.b16 %v558
        %v1071 = vunpack.c.l.b16 %v559
        %v1072 = vunpack.c.l.b16 %v560
        %v1073 = vunpack.c.l.b16 %v561
        %v1074 = vunpack.c.l.b16 %v562
        %v1075 = vunpack.c.l.b16 %v563
        %v1076 = vunpack.c.l.b16 %v564
        %v1077 = vunpack.c.l.b16 %v565
        %v1078 = vunpack.c.l.b16 %v566
        %v1079 = vunpack.c.l.b16 %v567
        %v1080 = vunpack.c.l.b16 %v568
        %v1081 = vunpack.c.l.b16 %v569
        %v1082 = vunpack.c.l.b16 %v570
        %v1083 = vunpack.c.l.b16 %v571
        %v1084 = vunpack.c.l.b16 %v572
        %v1085 = vunpack.c.l.b16 %v573
        %v1086 = vunpack.c.l.b16 %v574
        %v1087 = vunpack.c.l.b16 %v575
        %v1088 = vunpack.c.l.b16 %v576
        %v1089 = vunpack.c.l.b16 %v577
        %v1090 = vunpack.c.l.b16 %v578
        %v1091 = vunpack.c.l.b16 %v579
        %v1092 = vunpack.c.l.b16 %v580
        %v1093 = vunpack.c.l.b16 %v581
        %v1094 = vunpack.c.l.b16 %v582
        %v1095 = vunpack.c.l.b16 %v583
        %v1096 = vunpack.c.l.b16 %v584
        %v1097 = vunpack.c.l.b16 %v585
        %v1098 = vunpack.c.l.b16 %v586
        %v1099 = vunpack.c.l.b16 %v587
        %v1100 = vunpack.c.l.b16 %v588
        %v1101 = vunpack.c.l.b16 %v589
        %v1102 = vunpack.c.l.b16 %v590
        %v1103 = vunpack.c.l.b16 %v591
        %v1104 = vunpack.c.l.b16 %v592
        %v1105 = vunpack.c.l.b16 %v593
        %v1106 = vunpack.c.l.b16 %v594
        %v1107 = vpack.c.b16 %v852, %v851
        %v1108 = vpack.c.b16 %v854, %v853
        %v1109 = vpack.c.b16 %v856, %v855
        %v1110 = vpack.c.b16 %v858, %v857
        %v1111 = vpack.c.b16 %v860, %v859
        %v1112 = vpack.c.b16 %v862, %v861
        %v1113 = vpack.c.b16 %v864, %v863
        %v1114 = vpack.c.b16 %v866, %v865
        %v1115 = vpack.c.b16 %v868, %v867
        %v1116 = vpack.c.b16 %v870, %v869
        %v1117 = vpack.c.b16 %v872, %v871
        %v1118 = vpack.c.b16 %v874, %v873
        %v1119 = vpack.c.b16 %v876, %v875
        %v1120 = vpack.c.b16 %v878, %v877
        %v1121 = vpack.c.b16 %v880, %v879
        %v1122 = vpack.c.b16 %v882, %v881
        %v1123 = vpack.c.b16 %v884, %v883
        %v1124 = vpack.c.b16 %v886, %v885
        %v1125 = vpack.c.b16 %v888, %v887
        %v1126 = vpack.c.b16 %v890, %v889
        %v1127 = vpack.c.b16 %v892, %v891
        %v1128 = vpack.c.b16 %v894, %v893
        %v1129 = vpack.c.b16 %v896, %v895
        %v1130 = vpack.c.b16 %v898, %v897
        %v1131 = vpack.c.b16 %v900, %v899
        %v1132 = vpack.c.b16 %v902, %v901
        %v1133 = vpack.c.b16 %v904, %v903
        %v1134 = vpack.c.b16 %v906, %v905
        %v1135 = vpack.c.b16 %v908, %v907
        %v1136 = vpack.c.b16 %v910, %v909
        %v1137 = vpack.c.b16 %v912, %v911
        %v1138 = vpack.c.b16 %v914, %v913
        %v1139 = vpack.c.b16 %v916, %v915
        %v1140 = vpack.c.b16 %v918, %v917
        %v1141 = vpack.c.b16 %v920, %v919
        %v1142 = vpack.c.b16 %v922, %v921
        %v1143 = vpack.c.b16 %v924, %v923
        %v1144 = vpack.c.b16 %v926, %v925
        %v1145 = vpack.c.b16 %v928, %v927
        %v1146 = vpack.c.b16 %v930, %v929
        %v1147 = vpack.c.b16 %v932, %v931
        %v1148 = vpack.c.b16 %v934, %v933
        %v1149 = vpack.c.b16 %v936, %v935
        %v1150 = vpack.c.b16 %v938, %v937
        %v1151 = vpack.c.b16 %v940, %v939
        %v1152 = vpack.c.b16 %v942, %v941
        %v1153 = vpack.c.b16 %v944, %v943
        %v1154 = vpack.c.b16 %v946, %v945
        %v1155 = vpack.c.b16 %v948, %v947
        %v1156 = vpack.c.b16 %v950, %v949
        %v1157 = vpack.c.b16 %v952, %v951
        %v1158 = vpack.c.b16 %v954, %v953
        %v1159 = vpack.c.b16 %v956, %v955
        %v1160 = vpack.c.b16 %v958, %v957
        %v1161 = vpack.c.b16 %v960, %v959
        %v1162 = vpack.c.b16 %v962, %v961
        %v1163 = vpack.c.b16 %v964, %v963
        %v1164 = vpack.c.b16 %v966, %v965
        %v1165 = vpack.c.b16 %v968, %v967
        %v1166 = vpack.c.b16 %v970, %v969
        %v1167 = vpack.c.b16 %v972, %v971
        %v1168 = vpack.c.b16 %v974, %v973
        %v1169 = vpack.c.b16 %v976, %v975
        %v1170 = vpack.c.b16 %v978, %v977
        %v1171 = vpack.c.b16 %v980, %v979
        %v1172 = vpack.c.b16 %v982, %v981
        %v1173 = vpack.c.b16 %v984, %v983
        %v1174 = vpack.c.b16 %v986, %v985
        %v1175 = vpack.c.b16 %v988, %v987
        %v1176 = vpack.c.b16 %v990, %v989
        %v1177 = vpack.c.b16 %v992, %v991
        %v1178 = vpack.c.b16 %v994, %v993
        %v1179 = vpack.c.b16 %v996, %v995
        %v1180 = vpack.c.b16 %v998, %v997
        %v1181 = vpack.c.b16 %v1000, %v999
        %v1182 = vpack.c.b16 %v1002, %v1001
        %v1183 = vpack.c.b16 %v1004, %v1003
        %v1184 = vpack.c.b16 %v1006, %v1005
        %v1185 = vpack.c.b16 %v1008, %v1007
        %v1186 = vpack.c.b16 %v1010, %v1009
        %v1187 = vpack.c.b16 %v1012, %v1011
        %v1188 = vpack.c.b16 %v1014, %v1013
        %v1189 = vpack.c.b16 %v1016, %v1015
        %v1190 = vpack.c.b16 %v1018, %v1017
        %v1191 = vpack.c.b16 %v1020, %v1019
        %v1192 = vpack.c.b16 %v1022, %v1021
        %v1193 = vpack.c.b16 %v1024, %v1023
        %v1194 = vpack.c.b16 %v1026, %v1025
        %v1195 = vpack.c.b16 %v1028, %v1027
        %v1196 = vpack.c.b16 %v1030, %v1029
        %v1197 = vpack.c.b16 %v1032, %v1031
        %v1198 = vpack.c.b16 %v1034, %v1033
        %v1199 = vpack.c.b16 %v1036, %v1035
        %v1200 = vpack.c.b16 %v1038, %v1037
        %v1201 = vpack.c.b16 %v1040, %v1039
        %v1202 = vpack.c.b16 %v1042, %v1041
        %v1203 = vpack.c.b16 %v1044, %v1043
        %v1204 = vpack.c.b16 %v1046, %v1045
        %v1205 = vpack.c.b16 %v1048, %v1047
        %v1206 = vpack.c.b16 %v1050, %v1049
        %v1207 = vpack.c.b16 %v1052, %v1051
        %v1208 = vpack.c.b16 %v1054, %v1053
        %v1209 = vpack.c.b16 %v1056, %v1055
        %v1210 = vpack.c.b16 %v1058, %v1057
        %v1211 = vpack.c.b16 %v1060, %v1059
        %v1212 = vpack.c.b16 %v1062, %v1061
        %v1213 = vpack.c.b16 %v1064, %v1063
        %v1214 = vpack.c.b16 %v1066, %v1065
        %v1215 = vpack.c.b16 %v1068, %v1067
        %v1216 = vpack.c.b16 %v1070, %v1069
        %v1217 = vpack.c.b16 %v1072, %v1071
        %v1218 = vpack.c.b16 %v1074, %v1073
        %v1219 = vpack.c.b16 %v1076, %v1075
        %v1220 = vpack.c.b16 %v1078, %v1077
        %v1221 = vpack.c.b16 %v1080, %v1079
        %v1222 = vpack.c.b16 %v1082, %v1081
        %v1223 = vpack.c.b16 %v1084, %v1083
        %v1224 = vpack.c.b16 %v1086, %v1085
        %v1225 = vpack.c.b16 %v1088, %v1087
        %v1226 = vpack.c.b16 %v1090, %v1089
        %v1227 = vpack.c.b16 %v1092, %v1091
        %v1228 = vpack.c.b16 %v1094, %v1093
        %v1229 = vpack.c.b16 %v1096, %v1095
        %v1230 = vpack.c.b16 %v1098, %v1097
        %v1231 = vpack.c.b16 %v1100, %v1099
        %v1232 = vpack.c.b16 %v1102, %v1101
        %v1233 = vpack.c.b16 %v1104, %v1103
        %v1234 = vpack.c.b16 %v1106, %v1105
        %v1239 = vunpack.c.l.b16 %v335
        %v1240 = vunpack.c.l.b16 %v336
        %v1241 = vunpack.c.l.b16 %v337
        %v1242 = vunpack.c.l.b16 %v338
        %v1243 = vpack.c.b16 %v1240, %v1239
        %v1244 = vpack.c.b16 %v1242, %v1241
        %vm1247 = vcmask 261120
        %v1249 = vsel %vm1247, %v1107, 0
        %v1252 = vsel %vm1247, %v1108, 0
        %v1255 = vsel %vm1247, %v1109, 0
        %v1258 = vsel %vm1247, %v1110, 0
        %v1261 = vsel %vm1247, %v1111, 0
        %v1264 = vsel %vm1247, %v1112, 0
        %v1267 = vsel %vm1247, %v1113, 0
        %v1270 = vsel %vm1247, %v1114, 0
        %v1273 = vsel %vm1247, %v1115, 0
        %v1276 = vsel %vm1247, %v1116, 0
        %v1279 = vsel %vm1247, %v1117, 0
        %v1282 = vsel %vm1247, %v1118, 0
        %v1285 = vsel %vm1247, %v1119, 0
        %v1288 = vsel %vm1247, %v1120, 0
        %v1291 = vsel %vm1247, %v1121, 0
        %v1294 = vsel %vm1247, %v1122, 0
        %v1297 = vsel %vm1247, %v1123, 0
        %v1300 = vsel %vm1247, %v1124, 0
        %v1303 = vsel %vm1247, %v1125, 0
        %v1306 = vsel %vm1247, %v1126, 0
        %v1309 = vsel %vm1247, %v1127, 0
        %v1312 = vsel %vm1247, %v1128, 0
        %v1315 = vsel %vm1247, %v1129, 0
        %v1318 = vsel %vm1247, %v1130, 0
        %v1321 = vsel %vm1247, %v1131, 0
        %v1324 = vsel %vm1247, %v1132, 0
        %v1327 = vsel %vm1247, %v1133, 0
        %v1330 = vsel %vm1247, %v1134, 0
        %v1333 = vsel %vm1247, %v1135, 0
        %v1336 = vsel %vm1247, %v1136, 0
        %v1339 = vsel %vm1247, %v1137, 0
        %v1342 = vsel %vm1247, %v1138, 0
        %v1345 = vsel %vm1247, %v1139, 0
        %v1348 = vsel %vm1247, %v1140, 0
        %v1351 = vsel %vm1247, %v1141, 0
        %v1354 = vsel %vm1247, %v1142, 0
        %v1357 = vsel %vm1247, %v1143, 0
        %v1360 = vsel %vm1247, %v1144, 0
        %v1363 = vsel %vm1247, %v1145, 0
        %v1366 = vsel %vm1247, %v1146, 0
        %v1369 = vsel %vm1247, %v1147, 0
        %v1372 = vsel %vm1247, %v1148, 0
        %v1375 = vsel %vm1247, %v1149, 0
        %v1378 = vsel %vm1247, %v1150, 0
        %v1381 = vsel %vm1247, %v1151, 0
        %v1384 = vsel %vm1247, %v1152, 0
        %v1387 = vsel %vm1247, %v1153, 0
        %v1390 = vsel %vm1247, %v1154, 0
        %v1393 = vsel %vm1247, %v1155, 0
        %v1396 = vsel %vm1247, %v1156, 0
        %v1399 = vsel %vm1247, %v1157, 0
        %v1402 = vsel %vm1247, %v1158, 0
        %v1405 = vsel %vm1247, %v1159, 0
        %v1408 = vsel %vm1247, %v1160, 0
        %v1411 = vsel %vm1247, %v1161, 0
        %v1414 = vsel %vm1247, %v1162, 0
        %v1417 = vsel %vm1247, %v1163, 0
        %v1420 = vsel %vm1247, %v1164, 0
        %v1423 = vsel %vm1247, %v1165, 0
        %v1426 = vsel %vm1247, %v1166, 0
        %v1429 = vsel %vm1247, %v1167, 0
        %v1432 = vsel %vm1247, %v1168, 0
        %v1435 = vsel %vm1247, %v1169, 0
        %v1438 = vsel %vm1247, %v1170, 0
        %v1441 = vsel %vm1247, %v1171, 0
        %v1444 = vsel %vm1247, %v1172, 0
        %v1447 = vsel %vm1247, %v1173, 0
        %v1450 = vsel %vm1247, %v1174, 0
        %v1453 = vsel %vm1247, %v1175, 0
        %v1456 = vsel %vm1247, %v1176, 0
        %v1459 = vsel %vm1247, %v1177, 0
        %v1462 = vsel %vm1247, %v1178, 0
        %v1465 = vsel %vm1247, %v1179, 0
        %v1468 = vsel %vm1247, %v1180, 0
        %v1471 = vsel %vm1247, %v1181, 0
        %v1474 = vsel %vm1247, %v1182, 0
        %v1477 = vsel %vm1247, %v1183, 0
        %v1480 = vsel %vm1247, %v1184, 0
        %v1483 = vsel %vm1247, %v1185, 0
        %v1486 = vsel %vm1247, %v1186, 0
        %v1489 = vsel %vm1247, %v1187, 0
        %v1492 = vsel %vm1247, %v1188, 0
        %v1495 = vsel %vm1247, %v1189, 0
        %v1498 = vsel %vm1247, %v1190, 0
        %v1501 = vsel %vm1247, %v1191, 0
        %v1504 = vsel %vm1247, %v1192, 0
        %v1507 = vsel %vm1247, %v1193, 0
        %v1510 = vsel %vm1247, %v1194, 0
        %v1513 = vsel %vm1247, %v1195, 0
        %v1516 = vsel %vm1247, %v1196, 0
        %v1519 = vsel %vm1247, %v1197, 0
        %v1522 = vsel %vm1247, %v1198, 0
        %v1525 = vsel %vm1247, %v1199, 0
        %v1528 = vsel %vm1247, %v1200, 0
        %v1531 = vsel %vm1247, %v1201, 0
        %v1534 = vsel %vm1247, %v1202, 0
        %v1537 = vsel %vm1247, %v1203, 0
        %v1540 = vsel %vm1247, %v1204, 0
        %v1543 = vsel %vm1247, %v1205, 0
        %v1546 = vsel %vm1247, %v1206, 0
        %v1549 = vsel %vm1247, %v1207, 0
        %v1552 = vsel %vm1247, %v1208, 0
        %v1555 = vsel %vm1247, %v1209, 0
        %v1558 = vsel %vm1247, %v1210, 0
        %v1561 = vsel %vm1247, %v1211, 0
        %v1564 = vsel %vm1247, %v1212, 0
        %v1567 = vsel %vm1247, %v1213, 0
        %v1570 = vsel %vm1247, %v1214, 0
        %v1573 = vsel %vm1247, %v1215, 0
        %v1576 = vsel %vm1247, %v1216, 0
        %v1579 = vsel %vm1247, %v1217, 0
        %v1582 = vsel %vm1247, %v1218, 0
        %v1585 = vsel %vm1247, %v1219, 0
        %v1588 = vsel %vm1247, %v1220, 0
        %v1591 = vsel %vm1247, %v1221, 0
        %v1594 = vsel %vm1247, %v1222, 0
        %v1597 = vsel %vm1247, %v1223, 0
        %v1600 = vsel %vm1247, %v1224, 0
        %v1603 = vsel %vm1247, %v1225, 0
        %v1606 = vsel %vm1247, %v1226, 0
        %v1609 = vsel %vm1247, %v1227, 0
        %v1612 = vsel %vm1247, %v1228, 0
        %v1615 = vsel %vm1247, %v1229, 0
        %v1618 = vsel %vm1247, %v1230, 0
        %v1621 = vsel %vm1247, %v1231, 0
        %v1624 = vsel %vm1247, %v1232, 0
        %v1627 = vsel %vm1247, %v1233, 0
        %v1630 = vsel %vm1247, %v1234, 0
        %1632 = vmatpush.bf16.msra.mxu0 0
        %1633 = vmatpush.bf16.msra.mxu0 0
        %1634 = vmatpush.bf16.msra.mxu0 0
        %1635 = vmatpush.bf16.msra.mxu0 0
        %1636 = vmatpush.bf16.msra.mxu0 0
        %1637 = vmatpush.bf16.msra.mxu0 0
        %1638 = vmatpush.bf16.msra.mxu0 %v1244
        %1639 = vmatpush.bf16.msra.mxu0 %v1243
        %1640 = vmatmul.bf16.gmra.mxu0 %v1249
        %v1641 = vpop.f32.mrf.mxu0
        %v1642 = vadd.f32 0.0, %v1641
        %v1643 = vpop.f32.mrf.mxu0
        %v1644 = vadd.f32 0.0, %v1643
        %1645 = vmatmul.bf16.gmra.mxu0 %v1252
        %v1646 = vpop.f32.mrf.mxu0
        %v1647 = vadd.f32 0.0, %v1646
        %v1648 = vpop.f32.mrf.mxu0
        %v1649 = vadd.f32 0.0, %v1648
        %1650 = vmatmul.bf16.gmra.mxu0 %v1255
        %v1651 = vpop.f32.mrf.mxu0
        %v1652 = vadd.f32 0.0, %v1651
        %v1653 = vpop.f32.mrf.mxu0
        %v1654 = vadd.f32 0.0, %v1653
        %1655 = vmatmul.bf16.gmra.mxu0 %v1258
        %v1656 = vpop.f32.mrf.mxu0
        %v1657 = vadd.f32 0.0, %v1656
        %v1658 = vpop.f32.mrf.mxu0
        %v1659 = vadd.f32 0.0, %v1658
        %1660 = vmatmul.bf16.gmra.mxu0 %v1261
        %v1661 = vpop.f32.mrf.mxu0
        %v1662 = vadd.f32 0.0, %v1661
        %v1663 = vpop.f32.mrf.mxu0
        %v1664 = vadd.f32 0.0, %v1663
        %1665 = vmatmul.bf16.gmra.mxu0 %v1264
        %v1666 = vpop.f32.mrf.mxu0
        %v1667 = vadd.f32 0.0, %v1666
        %v1668 = vpop.f32.mrf.mxu0
        %v1669 = vadd.f32 0.0, %v1668
        %1670 = vmatmul.bf16.gmra.mxu0 %v1267
        %v1671 = vpop.f32.mrf.mxu0
        %v1672 = vadd.f32 0.0, %v1671
        %v1673 = vpop.f32.mrf.mxu0
        %v1674 = vadd.f32 0.0, %v1673
        %1675 = vmatmul.bf16.gmra.mxu0 %v1270
        %v1676 = vpop.f32.mrf.mxu0
        %v1677 = vadd.f32 0.0, %v1676
        %v1678 = vpop.f32.mrf.mxu0
        %v1679 = vadd.f32 0.0, %v1678
        %1680 = vmatmul.bf16.gmra.mxu0 %v1273
        %v1681 = vpop.f32.mrf.mxu0
        %v1682 = vadd.f32 0.0, %v1681
        %v1683 = vpop.f32.mrf.mxu0
        %v1684 = vadd.f32 0.0, %v1683
        %1685 = vmatmul.bf16.gmra.mxu0 %v1276
        %v1686 = vpop.f32.mrf.mxu0
        %v1687 = vadd.f32 0.0, %v1686
        %v1688 = vpop.f32.mrf.mxu0
        %v1689 = vadd.f32 0.0, %v1688
        %1690 = vmatmul.bf16.gmra.mxu0 %v1279
        %v1691 = vpop.f32.mrf.mxu0
        %v1692 = vadd.f32 0.0, %v1691
        %v1693 = vpop.f32.mrf.mxu0
        %v1694 = vadd.f32 0.0, %v1693
        %1695 = vmatmul.bf16.gmra.mxu0 %v1282
        %v1696 = vpop.f32.mrf.mxu0
        %v1697 = vadd.f32 0.0, %v1696
        %v1698 = vpop.f32.mrf.mxu0
        %v1699 = vadd.f32 0.0, %v1698
        %1700 = vmatmul.bf16.gmra.mxu0 %v1285
        %v1701 = vpop.f32.mrf.mxu0
        %v1702 = vadd.f32 0.0, %v1701
        %v1703 = vpop.f32.mrf.mxu0
        %v1704 = vadd.f32 0.0, %v1703
        %1705 = vmatmul.bf16.gmra.mxu0 %v1288
        %v1706 = vpop.f32.mrf.mxu0
        %v1707 = vadd.f32 0.0, %v1706
        %v1708 = vpop.f32.mrf.mxu0
        %v1709 = vadd.f32 0.0, %v1708
        %1710 = vmatmul.bf16.gmra.mxu0 %v1291
        %v1711 = vpop.f32.mrf.mxu0
        %v1712 = vadd.f32 0.0, %v1711
        %v1713 = vpop.f32.mrf.mxu0
        %v1714 = vadd.f32 0.0, %v1713
        %1715 = vmatmul.bf16.gmra.mxu0 %v1294
        %v1716 = vpop.f32.mrf.mxu0
        %v1717 = vadd.f32 0.0, %v1716
        %v1718 = vpop.f32.mrf.mxu0
        %v1719 = vadd.f32 0.0, %v1718
        %1720 = vmatmul.bf16.gmra.mxu0 %v1297
        %v1721 = vpop.f32.mrf.mxu0
        %v1722 = vadd.f32 0.0, %v1721
        %v1723 = vpop.f32.mrf.mxu0
        %v1724 = vadd.f32 0.0, %v1723
        %1725 = vmatmul.bf16.gmra.mxu0 %v1300
        %v1726 = vpop.f32.mrf.mxu0
        %v1727 = vadd.f32 0.0, %v1726
        %v1728 = vpop.f32.mrf.mxu0
        %v1729 = vadd.f32 0.0, %v1728
        %1730 = vmatmul.bf16.gmra.mxu0 %v1303
        %v1731 = vpop.f32.mrf.mxu0
        %v1732 = vadd.f32 0.0, %v1731
        %v1733 = vpop.f32.mrf.mxu0
        %v1734 = vadd.f32 0.0, %v1733
        %1735 = vmatmul.bf16.gmra.mxu0 %v1306
        %v1736 = vpop.f32.mrf.mxu0
        %v1737 = vadd.f32 0.0, %v1736
        %v1738 = vpop.f32.mrf.mxu0
        %v1739 = vadd.f32 0.0, %v1738
        %1740 = vmatmul.bf16.gmra.mxu0 %v1309
        %v1741 = vpop.f32.mrf.mxu0
        %v1742 = vadd.f32 0.0, %v1741
        %v1743 = vpop.f32.mrf.mxu0
        %v1744 = vadd.f32 0.0, %v1743
        %1745 = vmatmul.bf16.gmra.mxu0 %v1312
        %v1746 = vpop.f32.mrf.mxu0
        %v1747 = vadd.f32 0.0, %v1746
        %v1748 = vpop.f32.mrf.mxu0
        %v1749 = vadd.f32 0.0, %v1748
        %1750 = vmatmul.bf16.gmra.mxu0 %v1315
        %v1751 = vpop.f32.mrf.mxu0
        %v1752 = vadd.f32 0.0, %v1751
        %v1753 = vpop.f32.mrf.mxu0
        %v1754 = vadd.f32 0.0, %v1753
        %1755 = vmatmul.bf16.gmra.mxu0 %v1318
        %v1756 = vpop.f32.mrf.mxu0
        %v1757 = vadd.f32 0.0, %v1756
        %v1758 = vpop.f32.mrf.mxu0
        %v1759 = vadd.f32 0.0, %v1758
        %1760 = vmatmul.bf16.gmra.mxu0 %v1321
        %v1761 = vpop.f32.mrf.mxu0
        %v1762 = vadd.f32 0.0, %v1761
        %v1763 = vpop.f32.mrf.mxu0
        %v1764 = vadd.f32 0.0, %v1763
        %1765 = vmatmul.bf16.gmra.mxu0 %v1324
        %v1766 = vpop.f32.mrf.mxu0
        %v1767 = vadd.f32 0.0, %v1766
        %v1768 = vpop.f32.mrf.mxu0
        %v1769 = vadd.f32 0.0, %v1768
        %1770 = vmatmul.bf16.gmra.mxu0 %v1327
        %v1771 = vpop.f32.mrf.mxu0
        %v1772 = vadd.f32 0.0, %v1771
        %v1773 = vpop.f32.mrf.mxu0
        %v1774 = vadd.f32 0.0, %v1773
        %1775 = vmatmul.bf16.gmra.mxu0 %v1330
        %v1776 = vpop.f32.mrf.mxu0
        %v1777 = vadd.f32 0.0, %v1776
        %v1778 = vpop.f32.mrf.mxu0
        %v1779 = vadd.f32 0.0, %v1778
        %1780 = vmatmul.bf16.gmra.mxu0 %v1333
        %v1781 = vpop.f32.mrf.mxu0
        %v1782 = vadd.f32 0.0, %v1781
        %v1783 = vpop.f32.mrf.mxu0
        %v1784 = vadd.f32 0.0, %v1783
        %1785 = vmatmul.bf16.gmra.mxu0 %v1336
        %v1786 = vpop.f32.mrf.mxu0
        %v1787 = vadd.f32 0.0, %v1786
        %v1788 = vpop.f32.mrf.mxu0
        %v1789 = vadd.f32 0.0, %v1788
        %1790 = vmatmul.bf16.gmra.mxu0 %v1339
        %v1791 = vpop.f32.mrf.mxu0
        %v1792 = vadd.f32 0.0, %v1791
        %v1793 = vpop.f32.mrf.mxu0
        %v1794 = vadd.f32 0.0, %v1793
        %1795 = vmatmul.bf16.gmra.mxu0 %v1342
        %v1796 = vpop.f32.mrf.mxu0
        %v1797 = vadd.f32 0.0, %v1796
        %v1798 = vpop.f32.mrf.mxu0
        %v1799 = vadd.f32 0.0, %v1798
        %1800 = vmatmul.bf16.gmra.mxu0 %v1345
        %v1801 = vpop.f32.mrf.mxu0
        %v1802 = vadd.f32 0.0, %v1801
        %v1803 = vpop.f32.mrf.mxu0
        %v1804 = vadd.f32 0.0, %v1803
        %1805 = vmatmul.bf16.gmra.mxu0 %v1348
        %v1806 = vpop.f32.mrf.mxu0
        %v1807 = vadd.f32 0.0, %v1806
        %v1808 = vpop.f32.mrf.mxu0
        %v1809 = vadd.f32 0.0, %v1808
        %1810 = vmatmul.bf16.gmra.mxu0 %v1351
        %v1811 = vpop.f32.mrf.mxu0
        %v1812 = vadd.f32 0.0, %v1811
        %v1813 = vpop.f32.mrf.mxu0
        %v1814 = vadd.f32 0.0, %v1813
        %1815 = vmatmul.bf16.gmra.mxu0 %v1354
        %v1816 = vpop.f32.mrf.mxu0
        %v1817 = vadd.f32 0.0, %v1816
        %v1818 = vpop.f32.mrf.mxu0
        %v1819 = vadd.f32 0.0, %v1818
        %1820 = vmatmul.bf16.gmra.mxu0 %v1357
        %v1821 = vpop.f32.mrf.mxu0
        %v1822 = vadd.f32 0.0, %v1821
        %v1823 = vpop.f32.mrf.mxu0
        %v1824 = vadd.f32 0.0, %v1823
        %1825 = vmatmul.bf16.gmra.mxu0 %v1360
        %v1826 = vpop.f32.mrf.mxu0
        %v1827 = vadd.f32 0.0, %v1826
        %v1828 = vpop.f32.mrf.mxu0
        %v1829 = vadd.f32 0.0, %v1828
        %1830 = vmatmul.bf16.gmra.mxu0 %v1363
        %v1831 = vpop.f32.mrf.mxu0
        %v1832 = vadd.f32 0.0, %v1831
        %v1833 = vpop.f32.mrf.mxu0
        %v1834 = vadd.f32 0.0, %v1833
        %1835 = vmatmul.bf16.gmra.mxu0 %v1366
        %v1836 = vpop.f32.mrf.mxu0
        %v1837 = vadd.f32 0.0, %v1836
        %v1838 = vpop.f32.mrf.mxu0
        %v1839 = vadd.f32 0.0, %v1838
        %1840 = vmatmul.bf16.gmra.mxu0 %v1369
        %v1841 = vpop.f32.mrf.mxu0
        %v1842 = vadd.f32 0.0, %v1841
        %v1843 = vpop.f32.mrf.mxu0
        %v1844 = vadd.f32 0.0, %v1843
        %1845 = vmatmul.bf16.gmra.mxu0 %v1372
        %v1846 = vpop.f32.mrf.mxu0
        %v1847 = vadd.f32 0.0, %v1846
        %v1848 = vpop.f32.mrf.mxu0
        %v1849 = vadd.f32 0.0, %v1848
        %1850 = vmatmul.bf16.gmra.mxu0 %v1375
        %v1851 = vpop.f32.mrf.mxu0
        %v1852 = vadd.f32 0.0, %v1851
        %v1853 = vpop.f32.mrf.mxu0
        %v1854 = vadd.f32 0.0, %v1853
        %1855 = vmatmul.bf16.gmra.mxu0 %v1378
        %v1856 = vpop.f32.mrf.mxu0
        %v1857 = vadd.f32 0.0, %v1856
        %v1858 = vpop.f32.mrf.mxu0
        %v1859 = vadd.f32 0.0, %v1858
        %1860 = vmatmul.bf16.gmra.mxu0 %v1381
        %v1861 = vpop.f32.mrf.mxu0
        %v1862 = vadd.f32 0.0, %v1861
        %v1863 = vpop.f32.mrf.mxu0
        %v1864 = vadd.f32 0.0, %v1863
        %1865 = vmatmul.bf16.gmra.mxu0 %v1384
        %v1866 = vpop.f32.mrf.mxu0
        %v1867 = vadd.f32 0.0, %v1866
        %v1868 = vpop.f32.mrf.mxu0
        %v1869 = vadd.f32 0.0, %v1868
        %1870 = vmatmul.bf16.gmra.mxu0 %v1387
        %v1871 = vpop.f32.mrf.mxu0
        %v1872 = vadd.f32 0.0, %v1871
        %v1873 = vpop.f32.mrf.mxu0
        %v1874 = vadd.f32 0.0, %v1873
        %1875 = vmatmul.bf16.gmra.mxu0 %v1390
        %v1876 = vpop.f32.mrf.mxu0
        %v1877 = vadd.f32 0.0, %v1876
        %v1878 = vpop.f32.mrf.mxu0
        %v1879 = vadd.f32 0.0, %v1878
        %1880 = vmatmul.bf16.gmra.mxu0 %v1393
        %v1881 = vpop.f32.mrf.mxu0
        %v1882 = vadd.f32 0.0, %v1881
        %v1883 = vpop.f32.mrf.mxu0
        %v1884 = vadd.f32 0.0, %v1883
        %1885 = vmatmul.bf16.gmra.mxu0 %v1396
        %v1886 = vpop.f32.mrf.mxu0
        %v1887 = vadd.f32 0.0, %v1886
        %v1888 = vpop.f32.mrf.mxu0
        %v1889 = vadd.f32 0.0, %v1888
        %1890 = vmatmul.bf16.gmra.mxu0 %v1399
        %v1891 = vpop.f32.mrf.mxu0
        %v1892 = vadd.f32 0.0, %v1891
        %v1893 = vpop.f32.mrf.mxu0
        %v1894 = vadd.f32 0.0, %v1893
        %1895 = vmatmul.bf16.gmra.mxu0 %v1402
        %v1896 = vpop.f32.mrf.mxu0
        %v1897 = vadd.f32 0.0, %v1896
        %v1898 = vpop.f32.mrf.mxu0
        %v1899 = vadd.f32 0.0, %v1898
        %1900 = vmatmul.bf16.gmra.mxu0 %v1405
        %v1901 = vpop.f32.mrf.mxu0
        %v1902 = vadd.f32 0.0, %v1901
        %v1903 = vpop.f32.mrf.mxu0
        %v1904 = vadd.f32 0.0, %v1903
        %1905 = vmatmul.bf16.gmra.mxu0 %v1408
        %v1906 = vpop.f32.mrf.mxu0
        %v1907 = vadd.f32 0.0, %v1906
        %v1908 = vpop.f32.mrf.mxu0
        %v1909 = vadd.f32 0.0, %v1908
        %1910 = vmatmul.bf16.gmra.mxu0 %v1411
        %v1911 = vpop.f32.mrf.mxu0
        %v1912 = vadd.f32 0.0, %v1911
        %v1913 = vpop.f32.mrf.mxu0
        %v1914 = vadd.f32 0.0, %v1913
        %1915 = vmatmul.bf16.gmra.mxu0 %v1414
        %v1916 = vpop.f32.mrf.mxu0
        %v1917 = vadd.f32 0.0, %v1916
        %v1918 = vpop.f32.mrf.mxu0
        %v1919 = vadd.f32 0.0, %v1918
        %1920 = vmatmul.bf16.gmra.mxu0 %v1417
        %v1921 = vpop.f32.mrf.mxu0
        %v1922 = vadd.f32 0.0, %v1921
        %v1923 = vpop.f32.mrf.mxu0
        %v1924 = vadd.f32 0.0, %v1923
        %1925 = vmatmul.bf16.gmra.mxu0 %v1420
        %v1926 = vpop.f32.mrf.mxu0
        %v1927 = vadd.f32 0.0, %v1926
        %v1928 = vpop.f32.mrf.mxu0
        %v1929 = vadd.f32 0.0, %v1928
        %1930 = vmatmul.bf16.gmra.mxu0 %v1423
        %v1931 = vpop.f32.mrf.mxu0
        %v1932 = vadd.f32 0.0, %v1931
        %v1933 = vpop.f32.mrf.mxu0
        %v1934 = vadd.f32 0.0, %v1933
        %1935 = vmatmul.bf16.gmra.mxu0 %v1426
        %v1936 = vpop.f32.mrf.mxu0
        %v1937 = vadd.f32 0.0, %v1936
        %v1938 = vpop.f32.mrf.mxu0
        %v1939 = vadd.f32 0.0, %v1938
        %1940 = vmatmul.bf16.gmra.mxu0 %v1429
        %v1941 = vpop.f32.mrf.mxu0
        %v1942 = vadd.f32 0.0, %v1941
        %v1943 = vpop.f32.mrf.mxu0
        %v1944 = vadd.f32 0.0, %v1943
        %1945 = vmatmul.bf16.gmra.mxu0 %v1432
        %v1946 = vpop.f32.mrf.mxu0
        %v1947 = vadd.f32 0.0, %v1946
        %v1948 = vpop.f32.mrf.mxu0
        %v1949 = vadd.f32 0.0, %v1948
        %1950 = vmatmul.bf16.gmra.mxu0 %v1435
        %v1951 = vpop.f32.mrf.mxu0
        %v1952 = vadd.f32 0.0, %v1951
        %v1953 = vpop.f32.mrf.mxu0
        %v1954 = vadd.f32 0.0, %v1953
        %1955 = vmatmul.bf16.gmra.mxu0 %v1438
        %v1956 = vpop.f32.mrf.mxu0
        %v1957 = vadd.f32 0.0, %v1956
        %v1958 = vpop.f32.mrf.mxu0
        %v1959 = vadd.f32 0.0, %v1958
        %1960 = vmatmul.bf16.gmra.mxu0 %v1441
        %v1961 = vpop.f32.mrf.mxu0
        %v1962 = vadd.f32 0.0, %v1961
        %v1963 = vpop.f32.mrf.mxu0
        %v1964 = vadd.f32 0.0, %v1963
        %1965 = vmatmul.bf16.gmra.mxu0 %v1444
        %v1966 = vpop.f32.mrf.mxu0
        %v1967 = vadd.f32 0.0, %v1966
        %v1968 = vpop.f32.mrf.mxu0
        %v1969 = vadd.f32 0.0, %v1968
        %1970 = vmatmul.bf16.gmra.mxu0 %v1447
        %v1971 = vpop.f32.mrf.mxu0
        %v1972 = vadd.f32 0.0, %v1971
        %v1973 = vpop.f32.mrf.mxu0
        %v1974 = vadd.f32 0.0, %v1973
        %1975 = vmatmul.bf16.gmra.mxu0 %v1450
        %v1976 = vpop.f32.mrf.mxu0
        %v1977 = vadd.f32 0.0, %v1976
        %v1978 = vpop.f32.mrf.mxu0
        %v1979 = vadd.f32 0.0, %v1978
        %1980 = vmatmul.bf16.gmra.mxu0 %v1453
        %v1981 = vpop.f32.mrf.mxu0
        %v1982 = vadd.f32 0.0, %v1981
        %v1983 = vpop.f32.mrf.mxu0
        %v1984 = vadd.f32 0.0, %v1983
        %1985 = vmatmul.bf16.gmra.mxu0 %v1456
        %v1986 = vpop.f32.mrf.mxu0
        %v1987 = vadd.f32 0.0, %v1986
        %v1988 = vpop.f32.mrf.mxu0
        %v1989 = vadd.f32 0.0, %v1988
        %1990 = vmatmul.bf16.gmra.mxu0 %v1459
        %v1991 = vpop.f32.mrf.mxu0
        %v1992 = vadd.f32 0.0, %v1991
        %v1993 = vpop.f32.mrf.mxu0
        %v1994 = vadd.f32 0.0, %v1993
        %1995 = vmatmul.bf16.gmra.mxu0 %v1462
        %v1996 = vpop.f32.mrf.mxu0
        %v1997 = vadd.f32 0.0, %v1996
        %v1998 = vpop.f32.mrf.mxu0
        %v1999 = vadd.f32 0.0, %v1998
        %2000 = vmatmul.bf16.gmra.mxu0 %v1465
        %v2001 = vpop.f32.mrf.mxu0
        %v2002 = vadd.f32 0.0, %v2001
        %v2003 = vpop.f32.mrf.mxu0
        %v2004 = vadd.f32 0.0, %v2003
        %2005 = vmatmul.bf16.gmra.mxu0 %v1468
        %v2006 = vpop.f32.mrf.mxu0
        %v2007 = vadd.f32 0.0, %v2006
        %v2008 = vpop.f32.mrf.mxu0
        %v2009 = vadd.f32 0.0, %v2008
        %2010 = vmatmul.bf16.gmra.mxu0 %v1471
        %v2011 = vpop.f32.mrf.mxu0
        %v2012 = vadd.f32 0.0, %v2011
        %v2013 = vpop.f32.mrf.mxu0
        %v2014 = vadd.f32 0.0, %v2013
        %2015 = vmatmul.bf16.gmra.mxu0 %v1474
        %v2016 = vpop.f32.mrf.mxu0
        %v2017 = vadd.f32 0.0, %v2016
        %v2018 = vpop.f32.mrf.mxu0
        %v2019 = vadd.f32 0.0, %v2018
        %2020 = vmatmul.bf16.gmra.mxu0 %v1477
        %v2021 = vpop.f32.mrf.mxu0
        %v2022 = vadd.f32 0.0, %v2021
        %v2023 = vpop.f32.mrf.mxu0
        %v2024 = vadd.f32 0.0, %v2023
        %2025 = vmatmul.bf16.gmra.mxu0 %v1480
        %v2026 = vpop.f32.mrf.mxu0
        %v2027 = vadd.f32 0.0, %v2026
        %v2028 = vpop.f32.mrf.mxu0
        %v2029 = vadd.f32 0.0, %v2028
        %2030 = vmatmul.bf16.gmra.mxu0 %v1483
        %v2031 = vpop.f32.mrf.mxu0
        %v2032 = vadd.f32 0.0, %v2031
        %v2033 = vpop.f32.mrf.mxu0
        %v2034 = vadd.f32 0.0, %v2033
        %2035 = vmatmul.bf16.gmra.mxu0 %v1486
        %v2036 = vpop.f32.mrf.mxu0
        %v2037 = vadd.f32 0.0, %v2036
        %v2038 = vpop.f32.mrf.mxu0
        %v2039 = vadd.f32 0.0, %v2038
        %2040 = vmatmul.bf16.gmra.mxu0 %v1489
        %v2041 = vpop.f32.mrf.mxu0
        %v2042 = vadd.f32 0.0, %v2041
        %v2043 = vpop.f32.mrf.mxu0
        %v2044 = vadd.f32 0.0, %v2043
        %2045 = vmatmul.bf16.gmra.mxu0 %v1492
        %v2046 = vpop.f32.mrf.mxu0
        %v2047 = vadd.f32 0.0, %v2046
        %v2048 = vpop.f32.mrf.mxu0
        %v2049 = vadd.f32 0.0, %v2048
        %2050 = vmatmul.bf16.gmra.mxu0 %v1495
        %v2051 = vpop.f32.mrf.mxu0
        %v2052 = vadd.f32 0.0, %v2051
        %v2053 = vpop.f32.mrf.mxu0
        %v2054 = vadd.f32 0.0, %v2053
        %2055 = vmatmul.bf16.gmra.mxu0 %v1498
        %v2056 = vpop.f32.mrf.mxu0
        %v2057 = vadd.f32 0.0, %v2056
        %v2058 = vpop.f32.mrf.mxu0
        %v2059 = vadd.f32 0.0, %v2058
        %2060 = vmatmul.bf16.gmra.mxu0 %v1501
        %v2061 = vpop.f32.mrf.mxu0
        %v2062 = vadd.f32 0.0, %v2061
        %v2063 = vpop.f32.mrf.mxu0
        %v2064 = vadd.f32 0.0, %v2063
        %2065 = vmatmul.bf16.gmra.mxu0 %v1504
        %v2066 = vpop.f32.mrf.mxu0
        %v2067 = vadd.f32 0.0, %v2066
        %v2068 = vpop.f32.mrf.mxu0
        %v2069 = vadd.f32 0.0, %v2068
        %2070 = vmatmul.bf16.gmra.mxu0 %v1507
        %v2071 = vpop.f32.mrf.mxu0
        %v2072 = vadd.f32 0.0, %v2071
        %v2073 = vpop.f32.mrf.mxu0
        %v2074 = vadd.f32 0.0, %v2073
        %2075 = vmatmul.bf16.gmra.mxu0 %v1510
        %v2076 = vpop.f32.mrf.mxu0
        %v2077 = vadd.f32 0.0, %v2076
        %v2078 = vpop.f32.mrf.mxu0
        %v2079 = vadd.f32 0.0, %v2078
        %2080 = vmatmul.bf16.gmra.mxu0 %v1513
        %v2081 = vpop.f32.mrf.mxu0
        %v2082 = vadd.f32 0.0, %v2081
        %v2083 = vpop.f32.mrf.mxu0
        %v2084 = vadd.f32 0.0, %v2083
        %2085 = vmatmul.bf16.gmra.mxu0 %v1516
        %v2086 = vpop.f32.mrf.mxu0
        %v2087 = vadd.f32 0.0, %v2086
        %v2088 = vpop.f32.mrf.mxu0
        %v2089 = vadd.f32 0.0, %v2088
        %2090 = vmatmul.bf16.gmra.mxu0 %v1519
        %v2091 = vpop.f32.mrf.mxu0
        %v2092 = vadd.f32 0.0, %v2091
        %v2093 = vpop.f32.mrf.mxu0
        %v2094 = vadd.f32 0.0, %v2093
        %2095 = vmatmul.bf16.gmra.mxu0 %v1522
        %v2096 = vpop.f32.mrf.mxu0
        %v2097 = vadd.f32 0.0, %v2096
        %v2098 = vpop.f32.mrf.mxu0
        %v2099 = vadd.f32 0.0, %v2098
        %2100 = vmatmul.bf16.gmra.mxu0 %v1525
        %v2101 = vpop.f32.mrf.mxu0
        %v2102 = vadd.f32 0.0, %v2101
        %v2103 = vpop.f32.mrf.mxu0
        %v2104 = vadd.f32 0.0, %v2103
        %2105 = vmatmul.bf16.gmra.mxu0 %v1528
        %v2106 = vpop.f32.mrf.mxu0
        %v2107 = vadd.f32 0.0, %v2106
        %v2108 = vpop.f32.mrf.mxu0
        %v2109 = vadd.f32 0.0, %v2108
        %2110 = vmatmul.bf16.gmra.mxu0 %v1531
        %v2111 = vpop.f32.mrf.mxu0
        %v2112 = vadd.f32 0.0, %v2111
        %v2113 = vpop.f32.mrf.mxu0
        %v2114 = vadd.f32 0.0, %v2113
        %2115 = vmatmul.bf16.gmra.mxu0 %v1534
        %v2116 = vpop.f32.mrf.mxu0
        %v2117 = vadd.f32 0.0, %v2116
        %v2118 = vpop.f32.mrf.mxu0
        %v2119 = vadd.f32 0.0, %v2118
        %2120 = vmatmul.bf16.gmra.mxu0 %v1537
        %v2121 = vpop.f32.mrf.mxu0
        %v2122 = vadd.f32 0.0, %v2121
        %v2123 = vpop.f32.mrf.mxu0
        %v2124 = vadd.f32 0.0, %v2123
        %2125 = vmatmul.bf16.gmra.mxu0 %v1540
        %v2126 = vpop.f32.mrf.mxu0
        %v2127 = vadd.f32 0.0, %v2126
        %v2128 = vpop.f32.mrf.mxu0
        %v2129 = vadd.f32 0.0, %v2128
        %2130 = vmatmul.bf16.gmra.mxu0 %v1543
        %v2131 = vpop.f32.mrf.mxu0
        %v2132 = vadd.f32 0.0, %v2131
        %v2133 = vpop.f32.mrf.mxu0
        %v2134 = vadd.f32 0.0, %v2133
        %2135 = vmatmul.bf16.gmra.mxu0 %v1546
        %v2136 = vpop.f32.mrf.mxu0
        %v2137 = vadd.f32 0.0, %v2136
        %v2138 = vpop.f32.mrf.mxu0
        %v2139 = vadd.f32 0.0, %v2138
        %2140 = vmatmul.bf16.gmra.mxu0 %v1549
        %v2141 = vpop.f32.mrf.mxu0
        %v2142 = vadd.f32 0.0, %v2141
        %v2143 = vpop.f32.mrf.mxu0
        %v2144 = vadd.f32 0.0, %v2143
        %2145 = vmatmul.bf16.gmra.mxu0 %v1552
        %v2146 = vpop.f32.mrf.mxu0
        %v2147 = vadd.f32 0.0, %v2146
        %v2148 = vpop.f32.mrf.mxu0
        %v2149 = vadd.f32 0.0, %v2148
        %2150 = vmatmul.bf16.gmra.mxu0 %v1555
        %v2151 = vpop.f32.mrf.mxu0
        %v2152 = vadd.f32 0.0, %v2151
        %v2153 = vpop.f32.mrf.mxu0
        %v2154 = vadd.f32 0.0, %v2153
        %2155 = vmatmul.bf16.gmra.mxu0 %v1558
        %v2156 = vpop.f32.mrf.mxu0
        %v2157 = vadd.f32 0.0, %v2156
        %v2158 = vpop.f32.mrf.mxu0
        %v2159 = vadd.f32 0.0, %v2158
        %2160 = vmatmul.bf16.gmra.mxu0 %v1561
        %v2161 = vpop.f32.mrf.mxu0
        %v2162 = vadd.f32 0.0, %v2161
        %v2163 = vpop.f32.mrf.mxu0
        %v2164 = vadd.f32 0.0, %v2163
        %2165 = vmatmul.bf16.gmra.mxu0 %v1564
        %v2166 = vpop.f32.mrf.mxu0
        %v2167 = vadd.f32 0.0, %v2166
        %v2168 = vpop.f32.mrf.mxu0
        %v2169 = vadd.f32 0.0, %v2168
        %2170 = vmatmul.bf16.gmra.mxu0 %v1567
        %v2171 = vpop.f32.mrf.mxu0
        %v2172 = vadd.f32 0.0, %v2171
        %v2173 = vpop.f32.mrf.mxu0
        %v2174 = vadd.f32 0.0, %v2173
        %2175 = vmatmul.bf16.gmra.mxu0 %v1570
        %v2176 = vpop.f32.mrf.mxu0
        %v2177 = vadd.f32 0.0, %v2176
        %v2178 = vpop.f32.mrf.mxu0
        %v2179 = vadd.f32 0.0, %v2178
        %2180 = vmatmul.bf16.gmra.mxu0 %v1573
        %v2181 = vpop.f32.mrf.mxu0
        %v2182 = vadd.f32 0.0, %v2181
        %v2183 = vpop.f32.mrf.mxu0
        %v2184 = vadd.f32 0.0, %v2183
        %2185 = vmatmul.bf16.gmra.mxu0 %v1576
        %v2186 = vpop.f32.mrf.mxu0
        %v2187 = vadd.f32 0.0, %v2186
        %v2188 = vpop.f32.mrf.mxu0
        %v2189 = vadd.f32 0.0, %v2188
        %2190 = vmatmul.bf16.gmra.mxu0 %v1579
        %v2191 = vpop.f32.mrf.mxu0
        %v2192 = vadd.f32 0.0, %v2191
        %v2193 = vpop.f32.mrf.mxu0
        %v2194 = vadd.f32 0.0, %v2193
        %2195 = vmatmul.bf16.gmra.mxu0 %v1582
        %v2196 = vpop.f32.mrf.mxu0
        %v2197 = vadd.f32 0.0, %v2196
        %v2198 = vpop.f32.mrf.mxu0
        %v2199 = vadd.f32 0.0, %v2198
        %2200 = vmatmul.bf16.gmra.mxu0 %v1585
        %v2201 = vpop.f32.mrf.mxu0
        %v2202 = vadd.f32 0.0, %v2201
        %v2203 = vpop.f32.mrf.mxu0
        %v2204 = vadd.f32 0.0, %v2203
        %2205 = vmatmul.bf16.gmra.mxu0 %v1588
        %v2206 = vpop.f32.mrf.mxu0
        %v2207 = vadd.f32 0.0, %v2206
        %v2208 = vpop.f32.mrf.mxu0
        %v2209 = vadd.f32 0.0, %v2208
        %2210 = vmatmul.bf16.gmra.mxu0 %v1591
        %v2211 = vpop.f32.mrf.mxu0
        %v2212 = vadd.f32 0.0, %v2211
        %v2213 = vpop.f32.mrf.mxu0
        %v2214 = vadd.f32 0.0, %v2213
        %2215 = vmatmul.bf16.gmra.mxu0 %v1594
        %v2216 = vpop.f32.mrf.mxu0
        %v2217 = vadd.f32 0.0, %v2216
        %v2218 = vpop.f32.mrf.mxu0
        %v2219 = vadd.f32 0.0, %v2218
        %2220 = vmatmul.bf16.gmra.mxu0 %v1597
        %v2221 = vpop.f32.mrf.mxu0
        %v2222 = vadd.f32 0.0, %v2221
        %v2223 = vpop.f32.mrf.mxu0
        %v2224 = vadd.f32 0.0, %v2223
        %2225 = vmatmul.bf16.gmra.mxu0 %v1600
        %v2226 = vpop.f32.mrf.mxu0
        %v2227 = vadd.f32 0.0, %v2226
        %v2228 = vpop.f32.mrf.mxu0
        %v2229 = vadd.f32 0.0, %v2228
        %2230 = vmatmul.bf16.gmra.mxu0 %v1603
        %v2231 = vpop.f32.mrf.mxu0
        %v2232 = vadd.f32 0.0, %v2231
        %v2233 = vpop.f32.mrf.mxu0
        %v2234 = vadd.f32 0.0, %v2233
        %2235 = vmatmul.bf16.gmra.mxu0 %v1606
        %v2236 = vpop.f32.mrf.mxu0
        %v2237 = vadd.f32 0.0, %v2236
        %v2238 = vpop.f32.mrf.mxu0
        %v2239 = vadd.f32 0.0, %v2238
        %2240 = vmatmul.bf16.gmra.mxu0 %v1609
        %v2241 = vpop.f32.mrf.mxu0
        %v2242 = vadd.f32 0.0, %v2241
        %v2243 = vpop.f32.mrf.mxu0
        %v2244 = vadd.f32 0.0, %v2243
        %2245 = vmatmul.bf16.gmra.mxu0 %v1612
        %v2246 = vpop.f32.mrf.mxu0
        %v2247 = vadd.f32 0.0, %v2246
        %v2248 = vpop.f32.mrf.mxu0
        %v2249 = vadd.f32 0.0, %v2248
        %2250 = vmatmul.bf16.gmra.mxu0 %v1615
        %v2251 = vpop.f32.mrf.mxu0
        %v2252 = vadd.f32 0.0, %v2251
        %v2253 = vpop.f32.mrf.mxu0
        %v2254 = vadd.f32 0.0, %v2253
        %2255 = vmatmul.bf16.gmra.mxu0 %v1618
        %v2256 = vpop.f32.mrf.mxu0
        %v2257 = vadd.f32 0.0, %v2256
        %v2258 = vpop.f32.mrf.mxu0
        %v2259 = vadd.f32 0.0, %v2258
        %2260 = vmatmul.bf16.gmra.mxu0 %v1621
        %v2261 = vpop.f32.mrf.mxu0
        %v2262 = vadd.f32 0.0, %v2261
        %v2263 = vpop.f32.mrf.mxu0
        %v2264 = vadd.f32 0.0, %v2263
        %2265 = vmatmul.bf16.gmra.mxu0 %v1624
        %v2266 = vpop.f32.mrf.mxu0
        %v2267 = vadd.f32 0.0, %v2266
        %v2268 = vpop.f32.mrf.mxu0
        %v2269 = vadd.f32 0.0, %v2268
        %2270 = vmatmul.bf16.gmra.mxu0 %v1627
        %v2271 = vpop.f32.mrf.mxu0
        %v2272 = vadd.f32 0.0, %v2271
        %v2273 = vpop.f32.mrf.mxu0
        %v2274 = vadd.f32 0.0, %v2273
        %2275 = vmatmul.bf16.gmra.mxu0 %v1630
        %v2276 = vpop.f32.mrf.mxu0
        %v2277 = vadd.f32 0.0, %v2276
        %v2278 = vpop.f32.mrf.mxu0
        %v2279 = vadd.f32 0.0, %v2278
        %2280 = vdwg.mxu0
        %p2281 = scmp.lt.s32.totalorder %s24, 1
        // Predicated region
        $region116: #{tpu_custom_call.1} parent=102 // pred_check
          %p2282 = pneg %p2281
        $region117: #{tpu_custom_call.1} parent=102 // pred_check_branch
          %2284 = sbr.rel (%p2282) target = $region119
        $region118: #{tpu_custom_call.1} parent=102 // pred_region
          %2285 = vmax.xlane.f32.xlu0 %v1642
          %v2286 = vpop.xlane.xlu0 %2285
          %2287 = vmax.xlane.f32.xlu0 %v1644
          %v2288 = vpop.xlane.xlu0 %2287
          %2289 = vmax.xlane.f32.xlu0 %v1647
          %v2290 = vpop.xlane.xlu0 %2289
          %2291 = vmax.xlane.f32.xlu0 %v1649
          %v2292 = vpop.xlane.xlu0 %2291
          %2293 = vmax.xlane.f32.xlu0 %v1652
          %v2294 = vpop.xlane.xlu0 %2293
          %2295 = vmax.xlane.f32.xlu0 %v1654
          %v2296 = vpop.xlane.xlu0 %2295
          %2297 = vmax.xlane.f32.xlu0 %v1657
          %v2298 = vpop.xlane.xlu0 %2297
          %2299 = vmax.xlane.f32.xlu0 %v1659
          %v2300 = vpop.xlane.xlu0 %2299
          %2301 = vmax.xlane.f32.xlu0 %v1662
          %v2302 = vpop.xlane.xlu0 %2301
          %2303 = vmax.xlane.f32.xlu0 %v1664
          %v2304 = vpop.xlane.xlu0 %2303
          %2305 = vmax.xlane.f32.xlu0 %v1667
          %v2306 = vpop.xlane.xlu0 %2305
          %2307 = vmax.xlane.f32.xlu0 %v1669
          %v2308 = vpop.xlane.xlu0 %2307
          %2309 = vmax.xlane.f32.xlu0 %v1672
          %v2310 = vpop.xlane.xlu0 %2309
          %2311 = vmax.xlane.f32.xlu0 %v1674
          %v2312 = vpop.xlane.xlu0 %2311
          %2313 = vmax.xlane.f32.xlu0 %v1677
          %v2314 = vpop.xlane.xlu0 %2313
          %2315 = vmax.xlane.f32.xlu0 %v1679
          %v2316 = vpop.xlane.xlu0 %2315
          %2317 = vmax.xlane.f32.xlu0 %v1682
          %v2318 = vpop.xlane.xlu0 %2317
          %2319 = vmax.xlane.f32.xlu0 %v1684
          %v2320 = vpop.xlane.xlu0 %2319
          %2321 = vmax.xlane.f32.xlu0 %v1687
          %v2322 = vpop.xlane.xlu0 %2321
          %2323 = vmax.xlane.f32.xlu0 %v1689
          %v2324 = vpop.xlane.xlu0 %2323
          %2325 = vmax.xlane.f32.xlu0 %v1692
          %v2326 = vpop.xlane.xlu0 %2325
          %2327 = vmax.xlane.f32.xlu0 %v1694
          %v2328 = vpop.xlane.xlu0 %2327
          %2329 = vmax.xlane.f32.xlu0 %v1697
          %v2330 = vpop.xlane.xlu0 %2329
          %2331 = vmax.xlane.f32.xlu0 %v1699
          %v2332 = vpop.xlane.xlu0 %2331
          %2333 = vmax.xlane.f32.xlu0 %v1702
          %v2334 = vpop.xlane.xlu0 %2333
          %2335 = vmax.xlane.f32.xlu0 %v1704
          %v2336 = vpop.xlane.xlu0 %2335
          %2337 = vmax.xlane.f32.xlu0 %v1707
          %v2338 = vpop.xlane.xlu0 %2337
          %2339 = vmax.xlane.f32.xlu0 %v1709
          %v2340 = vpop.xlane.xlu0 %2339
          %2341 = vmax.xlane.f32.xlu0 %v1712
          %v2342 = vpop.xlane.xlu0 %2341
          %2343 = vmax.xlane.f32.xlu0 %v1714
          %v2344 = vpop.xlane.xlu0 %2343
          %2345 = vmax.xlane.f32.xlu0 %v1717
          %v2346 = vpop.xlane.xlu0 %2345
          %2347 = vmax.xlane.f32.xlu0 %v1719
          %v2348 = vpop.xlane.xlu0 %2347
          %2349 = vmax.xlane.f32.xlu0 %v1722
          %v2350 = vpop.xlane.xlu0 %2349
          %2351 = vmax.xlane.f32.xlu0 %v1724
          %v2352 = vpop.xlane.xlu0 %2351
          %2353 = vmax.xlane.f32.xlu0 %v1727
          %v2354 = vpop.xlane.xlu0 %2353
          %2355 = vmax.xlane.f32.xlu0 %v1729
          %v2356 = vpop.xlane.xlu0 %2355
          %2357 = vmax.xlane.f32.xlu0 %v1732
          %v2358 = vpop.xlane.xlu0 %2357
          %2359 = vmax.xlane.f32.xlu0 %v1734
          %v2360 = vpop.xlane.xlu0 %2359
          %2361 = vmax.xlane.f32.xlu0 %v1737
          %v2362 = vpop.xlane.xlu0 %2361
          %2363 = vmax.xlane.f32.xlu0 %v1739
          %v2364 = vpop.xlane.xlu0 %2363
          %2365 = vmax.xlane.f32.xlu0 %v1742
          %v2366 = vpop.xlane.xlu0 %2365
          %2367 = vmax.xlane.f32.xlu0 %v1744
          %v2368 = vpop.xlane.xlu0 %2367
          %2369 = vmax.xlane.f32.xlu0 %v1747
          %v2370 = vpop.xlane.xlu0 %2369
          %2371 = vmax.xlane.f32.xlu0 %v1749
          %v2372 = vpop.xlane.xlu0 %2371
          %2373 = vmax.xlane.f32.xlu0 %v1752
          %v2374 = vpop.xlane.xlu0 %2373
          %2375 = vmax.xlane.f32.xlu0 %v1754
          %v2376 = vpop.xlane.xlu0 %2375
          %2377 = vmax.xlane.f32.xlu0 %v1757
          %v2378 = vpop.xlane.xlu0 %2377
          %2379 = vmax.xlane.f32.xlu0 %v1759
          %v2380 = vpop.xlane.xlu0 %2379
          %2381 = vmax.xlane.f32.xlu0 %v1762
          %v2382 = vpop.xlane.xlu0 %2381
          %2383 = vmax.xlane.f32.xlu0 %v1764
          %v2384 = vpop.xlane.xlu0 %2383
          %2385 = vmax.xlane.f32.xlu0 %v1767
          %v2386 = vpop.xlane.xlu0 %2385
          %2387 = vmax.xlane.f32.xlu0 %v1769
          %v2388 = vpop.xlane.xlu0 %2387
          %2389 = vmax.xlane.f32.xlu0 %v1772
          %v2390 = vpop.xlane.xlu0 %2389
          %2391 = vmax.xlane.f32.xlu0 %v1774
          %v2392 = vpop.xlane.xlu0 %2391
          %2393 = vmax.xlane.f32.xlu0 %v1777
          %v2394 = vpop.xlane.xlu0 %2393
          %2395 = vmax.xlane.f32.xlu0 %v1779
          %v2396 = vpop.xlane.xlu0 %2395
          %2397 = vmax.xlane.f32.xlu0 %v1782
          %v2398 = vpop.xlane.xlu0 %2397
          %2399 = vmax.xlane.f32.xlu0 %v1784
          %v2400 = vpop.xlane.xlu0 %2399
          %2401 = vmax.xlane.f32.xlu0 %v1787
          %v2402 = vpop.xlane.xlu0 %2401
          %2403 = vmax.xlane.f32.xlu0 %v1789
          %v2404 = vpop.xlane.xlu0 %2403
          %2405 = vmax.xlane.f32.xlu0 %v1792
          %v2406 = vpop.xlane.xlu0 %2405
          %2407 = vmax.xlane.f32.xlu0 %v1794
          %v2408 = vpop.xlane.xlu0 %2407
          %2409 = vmax.xlane.f32.xlu0 %v1797
          %v2410 = vpop.xlane.xlu0 %2409
          %2411 = vmax.xlane.f32.xlu0 %v1799
          %v2412 = vpop.xlane.xlu0 %2411
          %2413 = vmax.xlane.f32.xlu0 %v1802
          %v2414 = vpop.xlane.xlu0 %2413
          %2415 = vmax.xlane.f32.xlu0 %v1804
          %v2416 = vpop.xlane.xlu0 %2415
          %2417 = vmax.xlane.f32.xlu0 %v1807
          %v2418 = vpop.xlane.xlu0 %2417
          %2419 = vmax.xlane.f32.xlu0 %v1809
          %v2420 = vpop.xlane.xlu0 %2419
          %2421 = vmax.xlane.f32.xlu0 %v1812
          %v2422 = vpop.xlane.xlu0 %2421
          %2423 = vmax.xlane.f32.xlu0 %v1814
          %v2424 = vpop.xlane.xlu0 %2423
          %2425 = vmax.xlane.f32.xlu0 %v1817
          %v2426 = vpop.xlane.xlu0 %2425
          %2427 = vmax.xlane.f32.xlu0 %v1819
          %v2428 = vpop.xlane.xlu0 %2427
          %2429 = vmax.xlane.f32.xlu0 %v1822
          %v2430 = vpop.xlane.xlu0 %2429
          %2431 = vmax.xlane.f32.xlu0 %v1824
          %v2432 = vpop.xlane.xlu0 %2431
          %2433 = vmax.xlane.f32.xlu0 %v1827
          %v2434 = vpop.xlane.xlu0 %2433
          %2435 = vmax.xlane.f32.xlu0 %v1829
          %v2436 = vpop.xlane.xlu0 %2435
          %2437 = vmax.xlane.f32.xlu0 %v1832
          %v2438 = vpop.xlane.xlu0 %2437
          %2439 = vmax.xlane.f32.xlu0 %v1834
          %v2440 = vpop.xlane.xlu0 %2439
          %2441 = vmax.xlane.f32.xlu0 %v1837
          %v2442 = vpop.xlane.xlu0 %2441
          %2443 = vmax.xlane.f32.xlu0 %v1839
          %v2444 = vpop.xlane.xlu0 %2443
          %2445 = vmax.xlane.f32.xlu0 %v1842
          %v2446 = vpop.xlane.xlu0 %2445
          %2447 = vmax.xlane.f32.xlu0 %v1844
          %v2448 = vpop.xlane.xlu0 %2447
          %2449 = vmax.xlane.f32.xlu0 %v1847
          %v2450 = vpop.xlane.xlu0 %2449
          %2451 = vmax.xlane.f32.xlu0 %v1849
          %v2452 = vpop.xlane.xlu0 %2451
          %2453 = vmax.xlane.f32.xlu0 %v1852
          %v2454 = vpop.xlane.xlu0 %2453
          %2455 = vmax.xlane.f32.xlu0 %v1854
          %v2456 = vpop.xlane.xlu0 %2455
          %2457 = vmax.xlane.f32.xlu0 %v1857
          %v2458 = vpop.xlane.xlu0 %2457
          %2459 = vmax.xlane.f32.xlu0 %v1859
          %v2460 = vpop.xlane.xlu0 %2459
          %2461 = vmax.xlane.f32.xlu0 %v1862
          %v2462 = vpop.xlane.xlu0 %2461
          %2463 = vmax.xlane.f32.xlu0 %v1864
          %v2464 = vpop.xlane.xlu0 %2463
          %2465 = vmax.xlane.f32.xlu0 %v1867
          %v2466 = vpop.xlane.xlu0 %2465
          %2467 = vmax.xlane.f32.xlu0 %v1869
          %v2468 = vpop.xlane.xlu0 %2467
          %2469 = vmax.xlane.f32.xlu0 %v1872
          %v2470 = vpop.xlane.xlu0 %2469
          %2471 = vmax.xlane.f32.xlu0 %v1874
          %v2472 = vpop.xlane.xlu0 %2471
          %2473 = vmax.xlane.f32.xlu0 %v1877
          %v2474 = vpop.xlane.xlu0 %2473
          %2475 = vmax.xlane.f32.xlu0 %v1879
          %v2476 = vpop.xlane.xlu0 %2475
          %2477 = vmax.xlane.f32.xlu0 %v1882
          %v2478 = vpop.xlane.xlu0 %2477
          %2479 = vmax.xlane.f32.xlu0 %v1884
          %v2480 = vpop.xlane.xlu0 %2479
          %2481 = vmax.xlane.f32.xlu0 %v1887
          %v2482 = vpop.xlane.xlu0 %2481
          %2483 = vmax.xlane.f32.xlu0 %v1889
          %v2484 = vpop.xlane.xlu0 %2483
          %2485 = vmax.xlane.f32.xlu0 %v1892
          %v2486 = vpop.xlane.xlu0 %2485
          %2487 = vmax.xlane.f32.xlu0 %v1894
          %v2488 = vpop.xlane.xlu0 %2487
          %2489 = vmax.xlane.f32.xlu0 %v1897
          %v2490 = vpop.xlane.xlu0 %2489
          %2491 = vmax.xlane.f32.xlu0 %v1899
          %v2492 = vpop.xlane.xlu0 %2491
          %2493 = vmax.xlane.f32.xlu0 %v1902
          %v2494 = vpop.xlane.xlu0 %2493
          %2495 = vmax.xlane.f32.xlu0 %v1904
          %v2496 = vpop.xlane.xlu0 %2495
          %2497 = vmax.xlane.f32.xlu0 %v1907
          %v2498 = vpop.xlane.xlu0 %2497
          %2499 = vmax.xlane.f32.xlu0 %v1909
          %v2500 = vpop.xlane.xlu0 %2499
          %2501 = vmax.xlane.f32.xlu0 %v1912
          %v2502 = vpop.xlane.xlu0 %2501
          %2503 = vmax.xlane.f32.xlu0 %v1914
          %v2504 = vpop.xlane.xlu0 %2503
          %2505 = vmax.xlane.f32.xlu0 %v1917
          %v2506 = vpop.xlane.xlu0 %2505
          %2507 = vmax.xlane.f32.xlu0 %v1919
          %v2508 = vpop.xlane.xlu0 %2507
          %2509 = vmax.xlane.f32.xlu0 %v1922
          %v2510 = vpop.xlane.xlu0 %2509
          %2511 = vmax.xlane.f32.xlu0 %v1924
          %v2512 = vpop.xlane.xlu0 %2511
          %2513 = vmax.xlane.f32.xlu0 %v1927
          %v2514 = vpop.xlane.xlu0 %2513
          %2515 = vmax.xlane.f32.xlu0 %v1929
          %v2516 = vpop.xlane.xlu0 %2515
          %2517 = vmax.xlane.f32.xlu0 %v1932
          %v2518 = vpop.xlane.xlu0 %2517
          %2519 = vmax.xlane.f32.xlu0 %v1934
          %v2520 = vpop.xlane.xlu0 %2519
          %2521 = vmax.xlane.f32.xlu0 %v1937
          %v2522 = vpop.xlane.xlu0 %2521
          %2523 = vmax.xlane.f32.xlu0 %v1939
          %v2524 = vpop.xlane.xlu0 %2523
          %2525 = vmax.xlane.f32.xlu0 %v1942
          %v2526 = vpop.xlane.xlu0 %2525
          %2527 = vmax.xlane.f32.xlu0 %v1944
          %v2528 = vpop.xlane.xlu0 %2527
          %2529 = vmax.xlane.f32.xlu0 %v1947
          %v2530 = vpop.xlane.xlu0 %2529
          %2531 = vmax.xlane.f32.xlu0 %v1949
          %v2532 = vpop.xlane.xlu0 %2531
          %2533 = vmax.xlane.f32.xlu0 %v1952
          %v2534 = vpop.xlane.xlu0 %2533
          %2535 = vmax.xlane.f32.xlu0 %v1954
          %v2536 = vpop.xlane.xlu0 %2535
          %2537 = vmax.xlane.f32.xlu0 %v1957
          %v2538 = vpop.xlane.xlu0 %2537
          %2539 = vmax.xlane.f32.xlu0 %v1959
          %v2540 = vpop.xlane.xlu0 %2539
          %2541 = vmax.xlane.f32.xlu0 %v1962
          %v2542 = vpop.xlane.xlu0 %2541
          %2543 = vmax.xlane.f32.xlu0 %v1964
          %v2544 = vpop.xlane.xlu0 %2543
          %2545 = vmax.xlane.f32.xlu0 %v1967
          %v2546 = vpop.xlane.xlu0 %2545
          %2547 = vmax.xlane.f32.xlu0 %v1969
          %v2548 = vpop.xlane.xlu0 %2547
          %2549 = vmax.xlane.f32.xlu0 %v1972
          %v2550 = vpop.xlane.xlu0 %2549
          %2551 = vmax.xlane.f32.xlu0 %v1974
          %v2552 = vpop.xlane.xlu0 %2551
          %2553 = vmax.xlane.f32.xlu0 %v1977
          %v2554 = vpop.xlane.xlu0 %2553
          %2555 = vmax.xlane.f32.xlu0 %v1979
          %v2556 = vpop.xlane.xlu0 %2555
          %2557 = vmax.xlane.f32.xlu0 %v1982
          %v2558 = vpop.xlane.xlu0 %2557
          %2559 = vmax.xlane.f32.xlu0 %v1984
          %v2560 = vpop.xlane.xlu0 %2559
          %2561 = vmax.xlane.f32.xlu0 %v1987
          %v2562 = vpop.xlane.xlu0 %2561
          %2563 = vmax.xlane.f32.xlu0 %v1989
          %v2564 = vpop.xlane.xlu0 %2563
          %2565 = vmax.xlane.f32.xlu0 %v1992
          %v2566 = vpop.xlane.xlu0 %2565
          %2567 = vmax.xlane.f32.xlu0 %v1994
          %v2568 = vpop.xlane.xlu0 %2567
          %2569 = vmax.xlane.f32.xlu0 %v1997
          %v2570 = vpop.xlane.xlu0 %2569
          %2571 = vmax.xlane.f32.xlu0 %v1999
          %v2572 = vpop.xlane.xlu0 %2571
          %2573 = vmax.xlane.f32.xlu0 %v2002
          %v2574 = vpop.xlane.xlu0 %2573
          %2575 = vmax.xlane.f32.xlu0 %v2004
          %v2576 = vpop.xlane.xlu0 %2575
          %2577 = vmax.xlane.f32.xlu0 %v2007
          %v2578 = vpop.xlane.xlu0 %2577
          %2579 = vmax.xlane.f32.xlu0 %v2009
          %v2580 = vpop.xlane.xlu0 %2579
          %2581 = vmax.xlane.f32.xlu0 %v2012
          %v2582 = vpop.xlane.xlu0 %2581
          %2583 = vmax.xlane.f32.xlu0 %v2014
          %v2584 = vpop.xlane.xlu0 %2583
          %2585 = vmax.xlane.f32.xlu0 %v2017
          %v2586 = vpop.xlane.xlu0 %2585
          %2587 = vmax.xlane.f32.xlu0 %v2019
          %v2588 = vpop.xlane.xlu0 %2587
          %2589 = vmax.xlane.f32.xlu0 %v2022
          %v2590 = vpop.xlane.xlu0 %2589
          %2591 = vmax.xlane.f32.xlu0 %v2024
          %v2592 = vpop.xlane.xlu0 %2591
          %2593 = vmax.xlane.f32.xlu0 %v2027
          %v2594 = vpop.xlane.xlu0 %2593
          %2595 = vmax.xlane.f32.xlu0 %v2029
          %v2596 = vpop.xlane.xlu0 %2595
          %2597 = vmax.xlane.f32.xlu0 %v2032
          %v2598 = vpop.xlane.xlu0 %2597
          %2599 = vmax.xlane.f32.xlu0 %v2034
          %v2600 = vpop.xlane.xlu0 %2599
          %2601 = vmax.xlane.f32.xlu0 %v2037
          %v2602 = vpop.xlane.xlu0 %2601
          %2603 = vmax.xlane.f32.xlu0 %v2039
          %v2604 = vpop.xlane.xlu0 %2603
          %2605 = vmax.xlane.f32.xlu0 %v2042
          %v2606 = vpop.xlane.xlu0 %2605
          %2607 = vmax.xlane.f32.xlu0 %v2044
          %v2608 = vpop.xlane.xlu0 %2607
          %2609 = vmax.xlane.f32.xlu0 %v2047
          %v2610 = vpop.xlane.xlu0 %2609
          %2611 = vmax.xlane.f32.xlu0 %v2049
          %v2612 = vpop.xlane.xlu0 %2611
          %2613 = vmax.xlane.f32.xlu0 %v2052
          %v2614 = vpop.xlane.xlu0 %2613
          %2615 = vmax.xlane.f32.xlu0 %v2054
          %v2616 = vpop.xlane.xlu0 %2615
          %2617 = vmax.xlane.f32.xlu0 %v2057
          %v2618 = vpop.xlane.xlu0 %2617
          %2619 = vmax.xlane.f32.xlu0 %v2059
          %v2620 = vpop.xlane.xlu0 %2619
          %2621 = vmax.xlane.f32.xlu0 %v2062
          %v2622 = vpop.xlane.xlu0 %2621
          %2623 = vmax.xlane.f32.xlu0 %v2064
          %v2624 = vpop.xlane.xlu0 %2623
          %2625 = vmax.xlane.f32.xlu0 %v2067
          %v2626 = vpop.xlane.xlu0 %2625
          %2627 = vmax.xlane.f32.xlu0 %v2069
          %v2628 = vpop.xlane.xlu0 %2627
          %2629 = vmax.xlane.f32.xlu0 %v2072
          %v2630 = vpop.xlane.xlu0 %2629
          %2631 = vmax.xlane.f32.xlu0 %v2074
          %v2632 = vpop.xlane.xlu0 %2631
          %2633 = vmax.xlane.f32.xlu0 %v2077
          %v2634 = vpop.xlane.xlu0 %2633
          %2635 = vmax.xlane.f32.xlu0 %v2079
          %v2636 = vpop.xlane.xlu0 %2635
          %2637 = vmax.xlane.f32.xlu0 %v2082
          %v2638 = vpop.xlane.xlu0 %2637
          %2639 = vmax.xlane.f32.xlu0 %v2084
          %v2640 = vpop.xlane.xlu0 %2639
          %2641 = vmax.xlane.f32.xlu0 %v2087
          %v2642 = vpop.xlane.xlu0 %2641
          %2643 = vmax.xlane.f32.xlu0 %v2089
          %v2644 = vpop.xlane.xlu0 %2643
          %2645 = vmax.xlane.f32.xlu0 %v2092
          %v2646 = vpop.xlane.xlu0 %2645
          %2647 = vmax.xlane.f32.xlu0 %v2094
          %v2648 = vpop.xlane.xlu0 %2647
          %2649 = vmax.xlane.f32.xlu0 %v2097
          %v2650 = vpop.xlane.xlu0 %2649
          %2651 = vmax.xlane.f32.xlu0 %v2099
          %v2652 = vpop.xlane.xlu0 %2651
          %2653 = vmax.xlane.f32.xlu0 %v2102
          %v2654 = vpop.xlane.xlu0 %2653
          %2655 = vmax.xlane.f32.xlu0 %v2104
          %v2656 = vpop.xlane.xlu0 %2655
          %2657 = vmax.xlane.f32.xlu0 %v2107
          %v2658 = vpop.xlane.xlu0 %2657
          %2659 = vmax.xlane.f32.xlu0 %v2109
          %v2660 = vpop.xlane.xlu0 %2659
          %2661 = vmax.xlane.f32.xlu0 %v2112
          %v2662 = vpop.xlane.xlu0 %2661
          %2663 = vmax.xlane.f32.xlu0 %v2114
          %v2664 = vpop.xlane.xlu0 %2663
          %2665 = vmax.xlane.f32.xlu0 %v2117
          %v2666 = vpop.xlane.xlu0 %2665
          %2667 = vmax.xlane.f32.xlu0 %v2119
          %v2668 = vpop.xlane.xlu0 %2667
          %2669 = vmax.xlane.f32.xlu0 %v2122
          %v2670 = vpop.xlane.xlu0 %2669
          %2671 = vmax.xlane.f32.xlu0 %v2124
          %v2672 = vpop.xlane.xlu0 %2671
          %2673 = vmax.xlane.f32.xlu0 %v2127
          %v2674 = vpop.xlane.xlu0 %2673
          %2675 = vmax.xlane.f32.xlu0 %v2129
          %v2676 = vpop.xlane.xlu0 %2675
          %2677 = vmax.xlane.f32.xlu0 %v2132
          %v2678 = vpop.xlane.xlu0 %2677
          %2679 = vmax.xlane.f32.xlu0 %v2134
          %v2680 = vpop.xlane.xlu0 %2679
          %2681 = vmax.xlane.f32.xlu0 %v2137
          %v2682 = vpop.xlane.xlu0 %2681
          %2683 = vmax.xlane.f32.xlu0 %v2139
          %v2684 = vpop.xlane.xlu0 %2683
          %2685 = vmax.xlane.f32.xlu0 %v2142
          %v2686 = vpop.xlane.xlu0 %2685
          %2687 = vmax.xlane.f32.xlu0 %v2144
          %v2688 = vpop.xlane.xlu0 %2687
          %2689 = vmax.xlane.f32.xlu0 %v2147
          %v2690 = vpop.xlane.xlu0 %2689
          %2691 = vmax.xlane.f32.xlu0 %v2149
          %v2692 = vpop.xlane.xlu0 %2691
          %2693 = vmax.xlane.f32.xlu0 %v2152
          %v2694 = vpop.xlane.xlu0 %2693
          %2695 = vmax.xlane.f32.xlu0 %v2154
          %v2696 = vpop.xlane.xlu0 %2695
          %2697 = vmax.xlane.f32.xlu0 %v2157
          %v2698 = vpop.xlane.xlu0 %2697
          %2699 = vmax.xlane.f32.xlu0 %v2159
          %v2700 = vpop.xlane.xlu0 %2699
          %2701 = vmax.xlane.f32.xlu0 %v2162
          %v2702 = vpop.xlane.xlu0 %2701
          %2703 = vmax.xlane.f32.xlu0 %v2164
          %v2704 = vpop.xlane.xlu0 %2703
          %2705 = vmax.xlane.f32.xlu0 %v2167
          %v2706 = vpop.xlane.xlu0 %2705
          %2707 = vmax.xlane.f32.xlu0 %v2169
          %v2708 = vpop.xlane.xlu0 %2707
          %2709 = vmax.xlane.f32.xlu0 %v2172
          %v2710 = vpop.xlane.xlu0 %2709
          %2711 = vmax.xlane.f32.xlu0 %v2174
          %v2712 = vpop.xlane.xlu0 %2711
          %2713 = vmax.xlane.f32.xlu0 %v2177
          %v2714 = vpop.xlane.xlu0 %2713
          %2715 = vmax.xlane.f32.xlu0 %v2179
          %v2716 = vpop.xlane.xlu0 %2715
          %2717 = vmax.xlane.f32.xlu0 %v2182
          %v2718 = vpop.xlane.xlu0 %2717
          %2719 = vmax.xlane.f32.xlu0 %v2184
          %v2720 = vpop.xlane.xlu0 %2719
          %2721 = vmax.xlane.f32.xlu0 %v2187
          %v2722 = vpop.xlane.xlu0 %2721
          %2723 = vmax.xlane.f32.xlu0 %v2189
          %v2724 = vpop.xlane.xlu0 %2723
          %2725 = vmax.xlane.f32.xlu0 %v2192
          %v2726 = vpop.xlane.xlu0 %2725
          %2727 = vmax.xlane.f32.xlu0 %v2194
          %v2728 = vpop.xlane.xlu0 %2727
          %2729 = vmax.xlane.f32.xlu0 %v2197
          %v2730 = vpop.xlane.xlu0 %2729
          %2731 = vmax.xlane.f32.xlu0 %v2199
          %v2732 = vpop.xlane.xlu0 %2731
          %2733 = vmax.xlane.f32.xlu0 %v2202
          %v2734 = vpop.xlane.xlu0 %2733
          %2735 = vmax.xlane.f32.xlu0 %v2204
          %v2736 = vpop.xlane.xlu0 %2735
          %2737 = vmax.xlane.f32.xlu0 %v2207
          %v2738 = vpop.xlane.xlu0 %2737
          %2739 = vmax.xlane.f32.xlu0 %v2209
          %v2740 = vpop.xlane.xlu0 %2739
          %2741 = vmax.xlane.f32.xlu0 %v2212
          %v2742 = vpop.xlane.xlu0 %2741
          %2743 = vmax.xlane.f32.xlu0 %v2214
          %v2744 = vpop.xlane.xlu0 %2743
          %2745 = vmax.xlane.f32.xlu0 %v2217
          %v2746 = vpop.xlane.xlu0 %2745
          %2747 = vmax.xlane.f32.xlu0 %v2219
          %v2748 = vpop.xlane.xlu0 %2747
          %2749 = vmax.xlane.f32.xlu0 %v2222
          %v2750 = vpop.xlane.xlu0 %2749
          %2751 = vmax.xlane.f32.xlu0 %v2224
          %v2752 = vpop.xlane.xlu0 %2751
          %2753 = vmax.xlane.f32.xlu0 %v2227
          %v2754 = vpop.xlane.xlu0 %2753
          %2755 = vmax.xlane.f32.xlu0 %v2229
          %v2756 = vpop.xlane.xlu0 %2755
          %2757 = vmax.xlane.f32.xlu0 %v2232
          %v2758 = vpop.xlane.xlu0 %2757
          %2759 = vmax.xlane.f32.xlu0 %v2234
          %v2760 = vpop.xlane.xlu0 %2759
          %2761 = vmax.xlane.f32.xlu0 %v2237
          %v2762 = vpop.xlane.xlu0 %2761
          %2763 = vmax.xlane.f32.xlu0 %v2239
          %v2764 = vpop.xlane.xlu0 %2763
          %2765 = vmax.xlane.f32.xlu0 %v2242
          %v2766 = vpop.xlane.xlu0 %2765
          %2767 = vmax.xlane.f32.xlu0 %v2244
          %v2768 = vpop.xlane.xlu0 %2767
          %2769 = vmax.xlane.f32.xlu0 %v2247
          %v2770 = vpop.xlane.xlu0 %2769
          %2771 = vmax.xlane.f32.xlu0 %v2249
          %v2772 = vpop.xlane.xlu0 %2771
          %2773 = vmax.xlane.f32.xlu0 %v2252
          %v2774 = vpop.xlane.xlu0 %2773
          %2775 = vmax.xlane.f32.xlu0 %v2254
          %v2776 = vpop.xlane.xlu0 %2775
          %2777 = vmax.xlane.f32.xlu0 %v2257
          %v2778 = vpop.xlane.xlu0 %2777
          %2779 = vmax.xlane.f32.xlu0 %v2259
          %v2780 = vpop.xlane.xlu0 %2779
          %2781 = vmax.xlane.f32.xlu0 %v2262
          %v2782 = vpop.xlane.xlu0 %2781
          %2783 = vmax.xlane.f32.xlu0 %v2264
          %v2784 = vpop.xlane.xlu0 %2783
          %2785 = vmax.xlane.f32.xlu0 %v2267
          %v2786 = vpop.xlane.xlu0 %2785
          %2787 = vmax.xlane.f32.xlu0 %v2269
          %v2788 = vpop.xlane.xlu0 %2787
          %2789 = vmax.xlane.f32.xlu0 %v2272
          %v2790 = vpop.xlane.xlu0 %2789
          %2791 = vmax.xlane.f32.xlu0 %v2274
          %v2792 = vpop.xlane.xlu0 %2791
          %2793 = vmax.xlane.f32.xlu0 %v2277
          %v2794 = vpop.xlane.xlu0 %2793
          %2795 = vmax.xlane.f32.xlu0 %v2279
          %v2796 = vpop.xlane.xlu0 %2795
          %v2797 = vld [vmem:[#allocation2] sm:$0xff]
          %v2798 = vld [vmem:[#allocation2 + $0x8] sm:$0xff]
          %v3055 = vlaneseq
          %v3056 = vand.u32 %v3055, 127
          %v3057 = vperm.slane %v2286, %v3056
          %v3058 = vadd.s32 %v3056, 4294967288
          %v3059 = vperm.slane %v2288, %v3058
          %vm3060 = vcmask 130112
          %v3061 = vsel %vm3060, %v3059, %v3057
          %v3062 = vadd.s32 %v3056, 4294967280
          %v3063 = vperm.slane %v2290, %v3062
          %vm3064 = vcmask 195712
          %v3065 = vsel %vm3064, %v3063, %v3061
          %v3066 = vadd.s32 %v3056, 4294967272
          %v3067 = vperm.slane %v2292, %v3066
          %vm3068 = vcmask 261312
          %v3069 = vsel %vm3068, %v3067, %v3065
          %v3070 = vadd.s32 %v3056, 4294967264
          %v3071 = vperm.slane %v2294, %v3070
          %vm3072 = vcmask 326912
          %v3073 = vsel %vm3072, %v3071, %v3069
          %v3074 = vadd.s32 %v3056, 4294967256
          %v3075 = vperm.slane %v2296, %v3074
          %vm3076 = vcmask 392512
          %v3077 = vsel %vm3076, %v3075, %v3073
          %v3078 = vadd.s32 %v3056, 4294967248
          %v3079 = vperm.slane %v2298, %v3078
          %vm3080 = vcmask 458112
          %v3081 = vsel %vm3080, %v3079, %v3077
          %v3082 = vadd.s32 %v3056, 4294967240
          %v3083 = vperm.slane %v2300, %v3082
          %vm3084 = vcmask 523712
          %v3085 = vsel %vm3084, %v3083, %v3081
          %v3086 = vadd.s32 %v3056, 4294967232
          %v3087 = vperm.slane %v2302, %v3086
          %vm3088 = vcmask 589312
          %v3089 = vsel %vm3088, %v3087, %v3085
          %v3090 = vadd.s32 %v3056, 4294967224
          %v3091 = vperm.slane %v2304, %v3090
          %vm3092 = vcmask 654912
          %v3093 = vsel %vm3092, %v3091, %v3089
          %v3094 = vadd.s32 %v3056, 4294967216
          %v3095 = vperm.slane %v2306, %v3094
          %vm3096 = vcmask 720512
          %v3097 = vsel %vm3096, %v3095, %v3093
          %v3098 = vadd.s32 %v3056, 4294967208
          %v3099 = vperm.slane %v2308, %v3098
          %vm3100 = vcmask 786112
          %v3101 = vsel %vm3100, %v3099, %v3097
          %v3102 = vadd.s32 %v3056, 4294967200
          %v3103 = vperm.slane %v2310, %v3102
          %vm3104 = vcmask 851712
          %v3105 = vsel %vm3104, %v3103, %v3101
          %v3106 = vadd.s32 %v3056, 4294967192
          %v3107 = vperm.slane %v2312, %v3106
          %vm3108 = vcmask 917312
          %v3109 = vsel %vm3108, %v3107, %v3105
          %v3110 = vadd.s32 %v3056, 4294967184
          %v3111 = vperm.slane %v2314, %v3110
          %vm3112 = vcmask 982912
          %v3113 = vsel %vm3112, %v3111, %v3109
          %v3114 = vadd.s32 %v3056, 4294967176
          %v3115 = vperm.slane %v2316, %v3114
          %vm3116 = vcmask 1048512
          %v3117 = vsel %vm3116, %v3115, %v3113
          %v3118 = vperm.slane %v2318, %v3056
          %v3119 = vperm.slane %v2320, %v3058
          %v3120 = vsel %vm3060, %v3119, %v3118
          %v3121 = vperm.slane %v2322, %v3062
          %v3122 = vsel %vm3064, %v3121, %v3120
          %v3123 = vperm.slane %v2324, %v3066
          %v3124 = vsel %vm3068, %v3123, %v3122
          %v3125 = vperm.slane %v2326, %v3070
          %v3126 = vsel %vm3072, %v3125, %v3124
          %v3127 = vperm.slane %v2328, %v3074
          %v3128 = vsel %vm3076, %v3127, %v3126
          %v3129 = vperm.slane %v2330, %v3078
          %v3130 = vsel %vm3080, %v3129, %v3128
          %v3131 = vperm.slane %v2332, %v3082
          %v3132 = vsel %vm3084, %v3131, %v3130
          %v3133 = vperm.slane %v2334, %v3086
          %v3134 = vsel %vm3088, %v3133, %v3132
          %v3135 = vperm.slane %v2336, %v3090
          %v3136 = vsel %vm3092, %v3135, %v3134
          %v3137 = vperm.slane %v2338, %v3094
          %v3138 = vsel %vm3096, %v3137, %v3136
          %v3139 = vperm.slane %v2340, %v3098
          %v3140 = vsel %vm3100, %v3139, %v3138
          %v3141 = vperm.slane %v2342, %v3102
          %v3142 = vsel %vm3104, %v3141, %v3140
          %v3143 = vperm.slane %v2344, %v3106
          %v3144 = vsel %vm3108, %v3143, %v3142
          %v3145 = vperm.slane %v2346, %v3110
          %v3146 = vsel %vm3112, %v3145, %v3144
          %v3147 = vperm.slane %v2348, %v3114
          %v3148 = vsel %vm3116, %v3147, %v3146
          %v3149 = vperm.slane %v2350, %v3056
          %v3150 = vperm.slane %v2352, %v3058
          %v3151 = vsel %vm3060, %v3150, %v3149
          %v3152 = vperm.slane %v2354, %v3062
          %v3153 = vsel %vm3064, %v3152, %v3151
          %v3154 = vperm.slane %v2356, %v3066
          %v3155 = vsel %vm3068, %v3154, %v3153
          %v3156 = vperm.slane %v2358, %v3070
          %v3157 = vsel %vm3072, %v3156, %v3155
          %v3158 = vperm.slane %v2360, %v3074
          %v3159 = vsel %vm3076, %v3158, %v3157
          %v3160 = vperm.slane %v2362, %v3078
          %v3161 = vsel %vm3080, %v3160, %v3159
          %v3162 = vperm.slane %v2364, %v3082
          %v3163 = vsel %vm3084, %v3162, %v3161
          %v3164 = vperm.slane %v2366, %v3086
          %v3165 = vsel %vm3088, %v3164, %v3163
          %v3166 = vperm.slane %v2368, %v3090
          %v3167 = vsel %vm3092, %v3166, %v3165
          %v3168 = vperm.slane %v2370, %v3094
          %v3169 = vsel %vm3096, %v3168, %v3167
          %v3170 = vperm.slane %v2372, %v3098
          %v3171 = vsel %vm3100, %v3170, %v3169
          %v3172 = vperm.slane %v2374, %v3102
          %v3173 = vsel %vm3104, %v3172, %v3171
          %v3174 = vperm.slane %v2376, %v3106
          %v3175 = vsel %vm3108, %v3174, %v3173
          %v3176 = vperm.slane %v2378, %v3110
          %v3177 = vsel %vm3112, %v3176, %v3175
          %v3178 = vperm.slane %v2380, %v3114
          %v3179 = vsel %vm3116, %v3178, %v3177
          %v3180 = vperm.slane %v2382, %v3056
          %v3181 = vperm.slane %v2384, %v3058
          %v3182 = vsel %vm3060, %v3181, %v3180
          %v3183 = vperm.slane %v2386, %v3062
          %v3184 = vsel %vm3064, %v3183, %v3182
          %v3185 = vperm.slane %v2388, %v3066
          %v3186 = vsel %vm3068, %v3185, %v3184
          %v3187 = vperm.slane %v2390, %v3070
          %v3188 = vsel %vm3072, %v3187, %v3186
          %v3189 = vperm.slane %v2392, %v3074
          %v3190 = vsel %vm3076, %v3189, %v3188
          %v3191 = vperm.slane %v2394, %v3078
          %v3192 = vsel %vm3080, %v3191, %v3190
          %v3193 = vperm.slane %v2396, %v3082
          %v3194 = vsel %vm3084, %v3193, %v3192
          %v3195 = vperm.slane %v2398, %v3086
          %v3196 = vsel %vm3088, %v3195, %v3194
          %v3197 = vperm.slane %v2400, %v3090
          %v3198 = vsel %vm3092, %v3197, %v3196
          %v3199 = vperm.slane %v2402, %v3094
          %v3200 = vsel %vm3096, %v3199, %v3198
          %v3201 = vperm.slane %v2404, %v3098
          %v3202 = vsel %vm3100, %v3201, %v3200
          %v3203 = vperm.slane %v2406, %v3102
          %v3204 = vsel %vm3104, %v3203, %v3202
          %v3205 = vperm.slane %v2408, %v3106
          %v3206 = vsel %vm3108, %v3205, %v3204
          %v3207 = vperm.slane %v2410, %v3110
          %v3208 = vsel %vm3112, %v3207, %v3206
          %v3209 = vperm.slane %v2412, %v3114
          %v3210 = vsel %vm3116, %v3209, %v3208
          %v3211 = vperm.slane %v2414, %v3056
          %v3212 = vperm.slane %v2416, %v3058
          %v3213 = vsel %vm3060, %v3212, %v3211
          %v3214 = vperm.slane %v2418, %v3062
          %v3215 = vsel %vm3064, %v3214, %v3213
          %v3216 = vperm.slane %v2420, %v3066
          %v3217 = vsel %vm3068, %v3216, %v3215
          %v3218 = vperm.slane %v2422, %v3070
          %v3219 = vsel %vm3072, %v3218, %v3217
          %v3220 = vperm.slane %v2424, %v3074
          %v3221 = vsel %vm3076, %v3220, %v3219
          %v3222 = vperm.slane %v2426, %v3078
          %v3223 = vsel %vm3080, %v3222, %v3221
          %v3224 = vperm.slane %v2428, %v3082
          %v3225 = vsel %vm3084, %v3224, %v3223
          %v3226 = vperm.slane %v2430, %v3086
          %v3227 = vsel %vm3088, %v3226, %v3225
          %v3228 = vperm.slane %v2432, %v3090
          %v3229 = vsel %vm3092, %v3228, %v3227
          %v3230 = vperm.slane %v2434, %v3094
          %v3231 = vsel %vm3096, %v3230, %v3229
          %v3232 = vperm.slane %v2436, %v3098
          %v3233 = vsel %vm3100, %v3232, %v3231
          %v3234 = vperm.slane %v2438, %v3102
          %v3235 = vsel %vm3104, %v3234, %v3233
          %v3236 = vperm.slane %v2440, %v3106
          %v3237 = vsel %vm3108, %v3236, %v3235
          %v3238 = vperm.slane %v2442, %v3110
          %v3239 = vsel %vm3112, %v3238, %v3237
          %v3240 = vperm.slane %v2444, %v3114
          %v3241 = vsel %vm3116, %v3240, %v3239
          %v3242 = vperm.slane %v2446, %v3056
          %v3243 = vperm.slane %v2448, %v3058
          %v3244 = vsel %vm3060, %v3243, %v3242
          %v3245 = vperm.slane %v2450, %v3062
          %v3246 = vsel %vm3064, %v3245, %v3244
          %v3247 = vperm.slane %v2452, %v3066
          %v3248 = vsel %vm3068, %v3247, %v3246
          %v3249 = vperm.slane %v2454, %v3070
          %v3250 = vsel %vm3072, %v3249, %v3248
          %v3251 = vperm.slane %v2456, %v3074
          %v3252 = vsel %vm3076, %v3251, %v3250
          %v3253 = vperm.slane %v2458, %v3078
          %v3254 = vsel %vm3080, %v3253, %v3252
          %v3255 = vperm.slane %v2460, %v3082
          %v3256 = vsel %vm3084, %v3255, %v3254
          %v3257 = vperm.slane %v2462, %v3086
          %v3258 = vsel %vm3088, %v3257, %v3256
          %v3259 = vperm.slane %v2464, %v3090
          %v3260 = vsel %vm3092, %v3259, %v3258
          %v3261 = vperm.slane %v2466, %v3094
          %v3262 = vsel %vm3096, %v3261, %v3260
          %v3263 = vperm.slane %v2468, %v3098
          %v3264 = vsel %vm3100, %v3263, %v3262
          %v3265 = vperm.slane %v2470, %v3102
          %v3266 = vsel %vm3104, %v3265, %v3264
          %v3267 = vperm.slane %v2472, %v3106
          %v3268 = vsel %vm3108, %v3267, %v3266
          %v3269 = vperm.slane %v2474, %v3110
          %v3270 = vsel %vm3112, %v3269, %v3268
          %v3271 = vperm.slane %v2476, %v3114
          %v3272 = vsel %vm3116, %v3271, %v3270
          %v3273 = vperm.slane %v2478, %v3056
          %v3274 = vperm.slane %v2480, %v3058
          %v3275 = vsel %vm3060, %v3274, %v3273
          %v3276 = vperm.slane %v2482, %v3062
          %v3277 = vsel %vm3064, %v3276, %v3275
          %v3278 = vperm.slane %v2484, %v3066
          %v3279 = vsel %vm3068, %v3278, %v3277
          %v3280 = vperm.slane %v2486, %v3070
          %v3281 = vsel %vm3072, %v3280, %v3279
          %v3282 = vperm.slane %v2488, %v3074
          %v3283 = vsel %vm3076, %v3282, %v3281
          %v3284 = vperm.slane %v2490, %v3078
          %v3285 = vsel %vm3080, %v3284, %v3283
          %v3286 = vperm.slane %v2492, %v3082
          %v3287 = vsel %vm3084, %v3286, %v3285
          %v3288 = vperm.slane %v2494, %v3086
          %v3289 = vsel %vm3088, %v3288, %v3287
          %v3290 = vperm.slane %v2496, %v3090
          %v3291 = vsel %vm3092, %v3290, %v3289
          %v3292 = vperm.slane %v2498, %v3094
          %v3293 = vsel %vm3096, %v3292, %v3291
          %v3294 = vperm.slane %v2500, %v3098
          %v3295 = vsel %vm3100, %v3294, %v3293
          %v3296 = vperm.slane %v2502, %v3102
          %v3297 = vsel %vm3104, %v3296, %v3295
          %v3298 = vperm.slane %v2504, %v3106
          %v3299 = vsel %vm3108, %v3298, %v3297
          %v3300 = vperm.slane %v2506, %v3110
          %v3301 = vsel %vm3112, %v3300, %v3299
          %v3302 = vperm.slane %v2508, %v3114
          %v3303 = vsel %vm3116, %v3302, %v3301
          %v3304 = vperm.slane %v2510, %v3056
          %v3305 = vperm.slane %v2512, %v3058
          %v3306 = vsel %vm3060, %v3305, %v3304
          %v3307 = vperm.slane %v2514, %v3062
          %v3308 = vsel %vm3064, %v3307, %v3306
          %v3309 = vperm.slane %v2516, %v3066
          %v3310 = vsel %vm3068, %v3309, %v3308
          %v3311 = vperm.slane %v2518, %v3070
          %v3312 = vsel %vm3072, %v3311, %v3310
          %v3313 = vperm.slane %v2520, %v3074
          %v3314 = vsel %vm3076, %v3313, %v3312
          %v3315 = vperm.slane %v2522, %v3078
          %v3316 = vsel %vm3080, %v3315, %v3314
          %v3317 = vperm.slane %v2524, %v3082
          %v3318 = vsel %vm3084, %v3317, %v3316
          %v3319 = vperm.slane %v2526, %v3086
          %v3320 = vsel %vm3088, %v3319, %v3318
          %v3321 = vperm.slane %v2528, %v3090
          %v3322 = vsel %vm3092, %v3321, %v3320
          %v3323 = vperm.slane %v2530, %v3094
          %v3324 = vsel %vm3096, %v3323, %v3322
          %v3325 = vperm.slane %v2532, %v3098
          %v3326 = vsel %vm3100, %v3325, %v3324
          %v3327 = vperm.slane %v2534, %v3102
          %v3328 = vsel %vm3104, %v3327, %v3326
          %v3329 = vperm.slane %v2536, %v3106
          %v3330 = vsel %vm3108, %v3329, %v3328
          %v3331 = vperm.slane %v2538, %v3110
          %v3332 = vsel %vm3112, %v3331, %v3330
          %v3333 = vperm.slane %v2540, %v3114
          %v3334 = vsel %vm3116, %v3333, %v3332
          %v3335 = vperm.slane %v2542, %v3056
          %v3336 = vperm.slane %v2544, %v3058
          %v3337 = vsel %vm3060, %v3336, %v3335
          %v3338 = vperm.slane %v2546, %v3062
          %v3339 = vsel %vm3064, %v3338, %v3337
          %v3340 = vperm.slane %v2548, %v3066
          %v3341 = vsel %vm3068, %v3340, %v3339
          %v3342 = vperm.slane %v2550, %v3070
          %v3343 = vsel %vm3072, %v3342, %v3341
          %v3344 = vperm.slane %v2552, %v3074
          %v3345 = vsel %vm3076, %v3344, %v3343
          %v3346 = vperm.slane %v2554, %v3078
          %v3347 = vsel %vm3080, %v3346, %v3345
          %v3348 = vperm.slane %v2556, %v3082
          %v3349 = vsel %vm3084, %v3348, %v3347
          %v3350 = vperm.slane %v2558, %v3086
          %v3351 = vsel %vm3088, %v3350, %v3349
          %v3352 = vperm.slane %v2560, %v3090
          %v3353 = vsel %vm3092, %v3352, %v3351
          %v3354 = vperm.slane %v2562, %v3094
          %v3355 = vsel %vm3096, %v3354, %v3353
          %v3356 = vperm.slane %v2564, %v3098
          %v3357 = vsel %vm3100, %v3356, %v3355
          %v3358 = vperm.slane %v2566, %v3102
          %v3359 = vsel %vm3104, %v3358, %v3357
          %v3360 = vperm.slane %v2568, %v3106
          %v3361 = vsel %vm3108, %v3360, %v3359
          %v3362 = vperm.slane %v2570, %v3110
          %v3363 = vsel %vm3112, %v3362, %v3361
          %v3364 = vperm.slane %v2572, %v3114
          %v3365 = vsel %vm3116, %v3364, %v3363
          %v3366 = vperm.slane %v2574, %v3056
          %v3367 = vperm.slane %v2576, %v3058
          %v3368 = vsel %vm3060, %v3367, %v3366
          %v3369 = vperm.slane %v2578, %v3062
          %v3370 = vsel %vm3064, %v3369, %v3368
          %v3371 = vperm.slane %v2580, %v3066
          %v3372 = vsel %vm3068, %v3371, %v3370
          %v3373 = vperm.slane %v2582, %v3070
          %v3374 = vsel %vm3072, %v3373, %v3372
          %v3375 = vperm.slane %v2584, %v3074
          %v3376 = vsel %vm3076, %v3375, %v3374
          %v3377 = vperm.slane %v2586, %v3078
          %v3378 = vsel %vm3080, %v3377, %v3376
          %v3379 = vperm.slane %v2588, %v3082
          %v3380 = vsel %vm3084, %v3379, %v3378
          %v3381 = vperm.slane %v2590, %v3086
          %v3382 = vsel %vm3088, %v3381, %v3380
          %v3383 = vperm.slane %v2592, %v3090
          %v3384 = vsel %vm3092, %v3383, %v3382
          %v3385 = vperm.slane %v2594, %v3094
          %v3386 = vsel %vm3096, %v3385, %v3384
          %v3387 = vperm.slane %v2596, %v3098
          %v3388 = vsel %vm3100, %v3387, %v3386
          %v3389 = vperm.slane %v2598, %v3102
          %v3390 = vsel %vm3104, %v3389, %v3388
          %v3391 = vperm.slane %v2600, %v3106
          %v3392 = vsel %vm3108, %v3391, %v3390
          %v3393 = vperm.slane %v2602, %v3110
          %v3394 = vsel %vm3112, %v3393, %v3392
          %v3395 = vperm.slane %v2604, %v3114
          %v3396 = vsel %vm3116, %v3395, %v3394
          %v3397 = vperm.slane %v2606, %v3056
          %v3398 = vperm.slane %v2608, %v3058
          %v3399 = vsel %vm3060, %v3398, %v3397
          %v3400 = vperm.slane %v2610, %v3062
          %v3401 = vsel %vm3064, %v3400, %v3399
          %v3402 = vperm.slane %v2612, %v3066
          %v3403 = vsel %vm3068, %v3402, %v3401
          %v3404 = vperm.slane %v2614, %v3070
          %v3405 = vsel %vm3072, %v3404, %v3403
          %v3406 = vperm.slane %v2616, %v3074
          %v3407 = vsel %vm3076, %v3406, %v3405
          %v3408 = vperm.slane %v2618, %v3078
          %v3409 = vsel %vm3080, %v3408, %v3407
          %v3410 = vperm.slane %v2620, %v3082
          %v3411 = vsel %vm3084, %v3410, %v3409
          %v3412 = vperm.slane %v2622, %v3086
          %v3413 = vsel %vm3088, %v3412, %v3411
          %v3414 = vperm.slane %v2624, %v3090
          %v3415 = vsel %vm3092, %v3414, %v3413
          %v3416 = vperm.slane %v2626, %v3094
          %v3417 = vsel %vm3096, %v3416, %v3415
          %v3418 = vperm.slane %v2628, %v3098
          %v3419 = vsel %vm3100, %v3418, %v3417
          %v3420 = vperm.slane %v2630, %v3102
          %v3421 = vsel %vm3104, %v3420, %v3419
          %v3422 = vperm.slane %v2632, %v3106
          %v3423 = vsel %vm3108, %v3422, %v3421
          %v3424 = vperm.slane %v2634, %v3110
          %v3425 = vsel %vm3112, %v3424, %v3423
          %v3426 = vperm.slane %v2636, %v3114
          %v3427 = vsel %vm3116, %v3426, %v3425
          %v3428 = vperm.slane %v2638, %v3056
          %v3429 = vperm.slane %v2640, %v3058
          %v3430 = vsel %vm3060, %v3429, %v3428
          %v3431 = vperm.slane %v2642, %v3062
          %v3432 = vsel %vm3064, %v3431, %v3430
          %v3433 = vperm.slane %v2644, %v3066
          %v3434 = vsel %vm3068, %v3433, %v3432
          %v3435 = vperm.slane %v2646, %v3070
          %v3436 = vsel %vm3072, %v3435, %v3434
          %v3437 = vperm.slane %v2648, %v3074
          %v3438 = vsel %vm3076, %v3437, %v3436
          %v3439 = vperm.slane %v2650, %v3078
          %v3440 = vsel %vm3080, %v3439, %v3438
          %v3441 = vperm.slane %v2652, %v3082
          %v3442 = vsel %vm3084, %v3441, %v3440
          %v3443 = vperm.slane %v2654, %v3086
          %v3444 = vsel %vm3088, %v3443, %v3442
          %v3445 = vperm.slane %v2656, %v3090
          %v3446 = vsel %vm3092, %v3445, %v3444
          %v3447 = vperm.slane %v2658, %v3094
          %v3448 = vsel %vm3096, %v3447, %v3446
          %v3449 = vperm.slane %v2660, %v3098
          %v3450 = vsel %vm3100, %v3449, %v3448
          %v3451 = vperm.slane %v2662, %v3102
          %v3452 = vsel %vm3104, %v3451, %v3450
          %v3453 = vperm.slane %v2664, %v3106
          %v3454 = vsel %vm3108, %v3453, %v3452
          %v3455 = vperm.slane %v2666, %v3110
          %v3456 = vsel %vm3112, %v3455, %v3454
          %v3457 = vperm.slane %v2668, %v3114
          %v3458 = vsel %vm3116, %v3457, %v3456
          %v3459 = vperm.slane %v2670, %v3056
          %v3460 = vperm.slane %v2672, %v3058
          %v3461 = vsel %vm3060, %v3460, %v3459
          %v3462 = vperm.slane %v2674, %v3062
          %v3463 = vsel %vm3064, %v3462, %v3461
          %v3464 = vperm.slane %v2676, %v3066
          %v3465 = vsel %vm3068, %v3464, %v3463
          %v3466 = vperm.slane %v2678, %v3070
          %v3467 = vsel %vm3072, %v3466, %v3465
          %v3468 = vperm.slane %v2680, %v3074
          %v3469 = vsel %vm3076, %v3468, %v3467
          %v3470 = vperm.slane %v2682, %v3078
          %v3471 = vsel %vm3080, %v3470, %v3469
          %v3472 = vperm.slane %v2684, %v3082
          %v3473 = vsel %vm3084, %v3472, %v3471
          %v3474 = vperm.slane %v2686, %v3086
          %v3475 = vsel %vm3088, %v3474, %v3473
          %v3476 = vperm.slane %v2688, %v3090
          %v3477 = vsel %vm3092, %v3476, %v3475
          %v3478 = vperm.slane %v2690, %v3094
          %v3479 = vsel %vm3096, %v3478, %v3477
          %v3480 = vperm.slane %v2692, %v3098
          %v3481 = vsel %vm3100, %v3480, %v3479
          %v3482 = vperm.slane %v2694, %v3102
          %v3483 = vsel %vm3104, %v3482, %v3481
          %v3484 = vperm.slane %v2696, %v3106
          %v3485 = vsel %vm3108, %v3484, %v3483
          %v3486 = vperm.slane %v2698, %v3110
          %v3487 = vsel %vm3112, %v3486, %v3485
          %v3488 = vperm.slane %v2700, %v3114
          %v3489 = vsel %vm3116, %v3488, %v3487
          %v3490 = vperm.slane %v2702, %v3056
          %v3491 = vperm.slane %v2704, %v3058
          %v3492 = vsel %vm3060, %v3491, %v3490
          %v3493 = vperm.slane %v2706, %v3062
          %v3494 = vsel %vm3064, %v3493, %v3492
          %v3495 = vperm.slane %v2708, %v3066
          %v3496 = vsel %vm3068, %v3495, %v3494
          %v3497 = vperm.slane %v2710, %v3070
          %v3498 = vsel %vm3072, %v3497, %v3496
          %v3499 = vperm.slane %v2712, %v3074
          %v3500 = vsel %vm3076, %v3499, %v3498
          %v3501 = vperm.slane %v2714, %v3078
          %v3502 = vsel %vm3080, %v3501, %v3500
          %v3503 = vperm.slane %v2716, %v3082
          %v3504 = vsel %vm3084, %v3503, %v3502
          %v3505 = vperm.slane %v2718, %v3086
          %v3506 = vsel %vm3088, %v3505, %v3504
          %v3507 = vperm.slane %v2720, %v3090
          %v3508 = vsel %vm3092, %v3507, %v3506
          %v3509 = vperm.slane %v2722, %v3094
          %v3510 = vsel %vm3096, %v3509, %v3508
          %v3511 = vperm.slane %v2724, %v3098
          %v3512 = vsel %vm3100, %v3511, %v3510
          %v3513 = vperm.slane %v2726, %v3102
          %v3514 = vsel %vm3104, %v3513, %v3512
          %v3515 = vperm.slane %v2728, %v3106
          %v3516 = vsel %vm3108, %v3515, %v3514
          %v3517 = vperm.slane %v2730, %v3110
          %v3518 = vsel %vm3112, %v3517, %v3516
          %v3519 = vperm.slane %v2732, %v3114
          %v3520 = vsel %vm3116, %v3519, %v3518
          %v3521 = vperm.slane %v2734, %v3056
          %v3522 = vperm.slane %v2736, %v3058
          %v3523 = vsel %vm3060, %v3522, %v3521
          %v3524 = vperm.slane %v2738, %v3062
          %v3525 = vsel %vm3064, %v3524, %v3523
          %v3526 = vperm.slane %v2740, %v3066
          %v3527 = vsel %vm3068, %v3526, %v3525
          %v3528 = vperm.slane %v2742, %v3070
          %v3529 = vsel %vm3072, %v3528, %v3527
          %v3530 = vperm.slane %v2744, %v3074
          %v3531 = vsel %vm3076, %v3530, %v3529
          %v3532 = vperm.slane %v2746, %v3078
          %v3533 = vsel %vm3080, %v3532, %v3531
          %v3534 = vperm.slane %v2748, %v3082
          %v3535 = vsel %vm3084, %v3534, %v3533
          %v3536 = vperm.slane %v2750, %v3086
          %v3537 = vsel %vm3088, %v3536, %v3535
          %v3538 = vperm.slane %v2752, %v3090
          %v3539 = vsel %vm3092, %v3538, %v3537
          %v3540 = vperm.slane %v2754, %v3094
          %v3541 = vsel %vm3096, %v3540, %v3539
          %v3542 = vperm.slane %v2756, %v3098
          %v3543 = vsel %vm3100, %v3542, %v3541
          %v3544 = vperm.slane %v2758, %v3102
          %v3545 = vsel %vm3104, %v3544, %v3543
          %v3546 = vperm.slane %v2760, %v3106
          %v3547 = vsel %vm3108, %v3546, %v3545
          %v3548 = vperm.slane %v2762, %v3110
          %v3549 = vsel %vm3112, %v3548, %v3547
          %v3550 = vperm.slane %v2764, %v3114
          %v3551 = vsel %vm3116, %v3550, %v3549
          %v3552 = vperm.slane %v2766, %v3056
          %v3553 = vperm.slane %v2768, %v3058
          %v3554 = vsel %vm3060, %v3553, %v3552
          %v3555 = vperm.slane %v2770, %v3062
          %v3556 = vsel %vm3064, %v3555, %v3554
          %v3557 = vperm.slane %v2772, %v3066
          %v3558 = vsel %vm3068, %v3557, %v3556
          %v3559 = vperm.slane %v2774, %v3070
          %v3560 = vsel %vm3072, %v3559, %v3558
          %v3561 = vperm.slane %v2776, %v3074
          %v3562 = vsel %vm3076, %v3561, %v3560
          %v3563 = vperm.slane %v2778, %v3078
          %v3564 = vsel %vm3080, %v3563, %v3562
          %v3565 = vperm.slane %v2780, %v3082
          %v3566 = vsel %vm3084, %v3565, %v3564
          %v3567 = vperm.slane %v2782, %v3086
          %v3568 = vsel %vm3088, %v3567, %v3566
          %v3569 = vperm.slane %v2784, %v3090
          %v3570 = vsel %vm3092, %v3569, %v3568
          %v3571 = vperm.slane %v2786, %v3094
          %v3572 = vsel %vm3096, %v3571, %v3570
          %v3573 = vperm.slane %v2788, %v3098
          %v3574 = vsel %vm3100, %v3573, %v3572
          %v3575 = vperm.slane %v2790, %v3102
          %v3576 = vsel %vm3104, %v3575, %v3574
          %v3577 = vperm.slane %v2792, %v3106
          %v3578 = vsel %vm3108, %v3577, %v3576
          %v3579 = vperm.slane %v2794, %v3110
          %v3580 = vsel %vm3112, %v3579, %v3578
          %v3581 = vperm.slane %v2796, %v3114
          %v3582 = vsel %vm3116, %v3581, %v3580
          %vm3583 = vcmask 1041409
          %v3584 = vsel %vm3583, %v3148, %v3117
          %vm3585 = vcmask 1042434
          %v3586 = vsel %vm3585, %v3179, %v3584
          %vm3587 = vcmask 1043459
          %v3588 = vsel %vm3587, %v3210, %v3586
          %vm3589 = vcmask 1044484
          %v3590 = vsel %vm3589, %v3241, %v3588
          %vm3591 = vcmask 1045509
          %v3592 = vsel %vm3591, %v3272, %v3590
          %vm3593 = vcmask 1046534
          %v3594 = vsel %vm3593, %v3303, %v3592
          %vm3595 = vcmask 1047559
          %v3596 = vsel %vm3595, %v3334, %v3594
          %v3597 = vsel %vm3583, %v3396, %v3365
          %v3598 = vsel %vm3585, %v3427, %v3597
          %v3599 = vsel %vm3587, %v3458, %v3598
          %v3600 = vsel %vm3589, %v3489, %v3599
          %v3601 = vsel %vm3591, %v3520, %v3600
          %v3602 = vsel %vm3593, %v3551, %v3601
          %v3603 = vsel %vm3595, %v3582, %v3602
          %v3606 = vmax.f32 %v2797, %v3596
          %v3607 = vmax.f32 %v2798, %v3603
          %3608 = vst [vmem:[#allocation2] sm:$0xff] %v3606
          %3609 = vst [vmem:[#allocation2 + $0x8] sm:$0xff] %v3607
        $region119: #{tpu_custom_call.1} parent=102 // pred_fallthru
          _
        %p3610 = scmp.eq.s32.totalorder %s24, 1
        // Predicated region
        $region120: #{tpu_custom_call.1} parent=102 // pred_check
          %p3611 = pneg %p3610
        $region121: #{tpu_custom_call.1} parent=102 // pred_check_branch
          %3613 = sbr.rel (%p3611) target = $region123
        $region122: #{tpu_custom_call.1} parent=102 // pred_region
          %v3614 = vlaneseq
          %v3615 = vand.u32 %v3614, 127
          %vm3616 = vcmp.lt.s32.totalorder %v3615, 72
          %v3617 = vsel %vm3616, 0.0, -1e+30
          %v3618 = vadd.f32 %v1642, %v3617
          %v3619 = vadd.f32 %v1644, %v3617
          %v3620 = vadd.f32 %v1647, %v3617
          %v3621 = vadd.f32 %v1649, %v3617
          %v3622 = vadd.f32 %v1652, %v3617
          %v3623 = vadd.f32 %v1654, %v3617
          %v3624 = vadd.f32 %v1657, %v3617
          %v3625 = vadd.f32 %v1659, %v3617
          %v3626 = vadd.f32 %v1662, %v3617
          %v3627 = vadd.f32 %v1664, %v3617
          %v3628 = vadd.f32 %v1667, %v3617
          %v3629 = vadd.f32 %v1669, %v3617
          %v3630 = vadd.f32 %v1672, %v3617
          %v3631 = vadd.f32 %v1674, %v3617
          %v3632 = vadd.f32 %v1677, %v3617
          %v3633 = vadd.f32 %v1679, %v3617
          %v3634 = vadd.f32 %v1682, %v3617
          %v3635 = vadd.f32 %v1684, %v3617
          %v3636 = vadd.f32 %v1687, %v3617
          %v3637 = vadd.f32 %v1689, %v3617
          %v3638 = vadd.f32 %v1692, %v3617
          %v3639 = vadd.f32 %v1694, %v3617
          %v3640 = vadd.f32 %v1697, %v3617
          %v3641 = vadd.f32 %v1699, %v3617
          %v3642 = vadd.f32 %v1702, %v3617
          %v3643 = vadd.f32 %v1704, %v3617
          %v3644 = vadd.f32 %v1707, %v3617
          %v3645 = vadd.f32 %v1709, %v3617
          %v3646 = vadd.f32 %v1712, %v3617
          %v3647 = vadd.f32 %v1714, %v3617
          %v3648 = vadd.f32 %v1717, %v3617
          %v3649 = vadd.f32 %v1719, %v3617
          %v3650 = vadd.f32 %v1722, %v3617
          %v3651 = vadd.f32 %v1724, %v3617
          %v3652 = vadd.f32 %v1727, %v3617
          %v3653 = vadd.f32 %v1729, %v3617
          %v3654 = vadd.f32 %v1732, %v3617
          %v3655 = vadd.f32 %v1734, %v3617
          %v3656 = vadd.f32 %v1737, %v3617
          %v3657 = vadd.f32 %v1739, %v3617
          %v3658 = vadd.f32 %v1742, %v3617
          %v3659 = vadd.f32 %v1744, %v3617
          %v3660 = vadd.f32 %v1747, %v3617
          %v3661 = vadd.f32 %v1749, %v3617
          %v3662 = vadd.f32 %v1752, %v3617
          %v3663 = vadd.f32 %v1754, %v3617
          %v3664 = vadd.f32 %v1757, %v3617
          %v3665 = vadd.f32 %v1759, %v3617
          %v3666 = vadd.f32 %v1762, %v3617
          %v3667 = vadd.f32 %v1764, %v3617
          %v3668 = vadd.f32 %v1767, %v3617
          %v3669 = vadd.f32 %v1769, %v3617
          %v3670 = vadd.f32 %v1772, %v3617
          %v3671 = vadd.f32 %v1774, %v3617
          %v3672 = vadd.f32 %v1777, %v3617
          %v3673 = vadd.f32 %v1779, %v3617
          %v3674 = vadd.f32 %v1782, %v3617
          %v3675 = vadd.f32 %v1784, %v3617
          %v3676 = vadd.f32 %v1787, %v3617
          %v3677 = vadd.f32 %v1789, %v3617
          %v3678 = vadd.f32 %v1792, %v3617
          %v3679 = vadd.f32 %v1794, %v3617
          %v3680 = vadd.f32 %v1797, %v3617
          %v3681 = vadd.f32 %v1799, %v3617
          %v3682 = vadd.f32 %v1802, %v3617
          %v3683 = vadd.f32 %v1804, %v3617
          %v3684 = vadd.f32 %v1807, %v3617
          %v3685 = vadd.f32 %v1809, %v3617
          %v3686 = vadd.f32 %v1812, %v3617
          %v3687 = vadd.f32 %v1814, %v3617
          %v3688 = vadd.f32 %v1817, %v3617
          %v3689 = vadd.f32 %v1819, %v3617
          %v3690 = vadd.f32 %v1822, %v3617
          %v3691 = vadd.f32 %v1824, %v3617
          %v3692 = vadd.f32 %v1827, %v3617
          %v3693 = vadd.f32 %v1829, %v3617
          %v3694 = vadd.f32 %v1832, %v3617
          %v3695 = vadd.f32 %v1834, %v3617
          %v3696 = vadd.f32 %v1837, %v3617
          %v3697 = vadd.f32 %v1839, %v3617
          %v3698 = vadd.f32 %v1842, %v3617
          %v3699 = vadd.f32 %v1844, %v3617
          %v3700 = vadd.f32 %v1847, %v3617
          %v3701 = vadd.f32 %v1849, %v3617
          %v3702 = vadd.f32 %v1852, %v3617
          %v3703 = vadd.f32 %v1854, %v3617
          %v3704 = vadd.f32 %v1857, %v3617
          %v3705 = vadd.f32 %v1859, %v3617
          %v3706 = vadd.f32 %v1862, %v3617
          %v3707 = vadd.f32 %v1864, %v3617
          %v3708 = vadd.f32 %v1867, %v3617
          %v3709 = vadd.f32 %v1869, %v3617
          %v3710 = vadd.f32 %v1872, %v3617
          %v3711 = vadd.f32 %v1874, %v3617
          %v3712 = vadd.f32 %v1877, %v3617
          %v3713 = vadd.f32 %v1879, %v3617
          %v3714 = vadd.f32 %v1882, %v3617
          %v3715 = vadd.f32 %v1884, %v3617
          %v3716 = vadd.f32 %v1887, %v3617
          %v3717 = vadd.f32 %v1889, %v3617
          %v3718 = vadd.f32 %v1892, %v3617
          %v3719 = vadd.f32 %v1894, %v3617
          %v3720 = vadd.f32 %v1897, %v3617
          %v3721 = vadd.f32 %v1899, %v3617
          %v3722 = vadd.f32 %v1902, %v3617
          %v3723 = vadd.f32 %v1904, %v3617
          %v3724 = vadd.f32 %v1907, %v3617
          %v3725 = vadd.f32 %v1909, %v3617
          %v3726 = vadd.f32 %v1912, %v3617
          %v3727 = vadd.f32 %v1914, %v3617
          %v3728 = vadd.f32 %v1917, %v3617
          %v3729 = vadd.f32 %v1919, %v3617
          %v3730 = vadd.f32 %v1922, %v3617
          %v3731 = vadd.f32 %v1924, %v3617
          %v3732 = vadd.f32 %v1927, %v3617
          %v3733 = vadd.f32 %v1929, %v3617
          %v3734 = vadd.f32 %v1932, %v3617
          %v3735 = vadd.f32 %v1934, %v3617
          %v3736 = vadd.f32 %v1937, %v3617
          %v3737 = vadd.f32 %v1939, %v3617
          %v3738 = vadd.f32 %v1942, %v3617
          %v3739 = vadd.f32 %v1944, %v3617
          %v3740 = vadd.f32 %v1947, %v3617
          %v3741 = vadd.f32 %v1949, %v3617
          %v3742 = vadd.f32 %v1952, %v3617
          %v3743 = vadd.f32 %v1954, %v3617
          %v3744 = vadd.f32 %v1957, %v3617
          %v3745 = vadd.f32 %v1959, %v3617
          %v3746 = vadd.f32 %v1962, %v3617
          %v3747 = vadd.f32 %v1964, %v3617
          %v3748 = vadd.f32 %v1967, %v3617
          %v3749 = vadd.f32 %v1969, %v3617
          %v3750 = vadd.f32 %v1972, %v3617
          %v3751 = vadd.f32 %v1974, %v3617
          %v3752 = vadd.f32 %v1977, %v3617
          %v3753 = vadd.f32 %v1979, %v3617
          %v3754 = vadd.f32 %v1982, %v3617
          %v3755 = vadd.f32 %v1984, %v3617
          %v3756 = vadd.f32 %v1987, %v3617
          %v3757 = vadd.f32 %v1989, %v3617
          %v3758 = vadd.f32 %v1992, %v3617
          %v3759 = vadd.f32 %v1994, %v3617
          %v3760 = vadd.f32 %v1997, %v3617
          %v3761 = vadd.f32 %v1999, %v3617
          %v3762 = vadd.f32 %v2002, %v3617
          %v3763 = vadd.f32 %v2004, %v3617
          %v3764 = vadd.f32 %v2007, %v3617
          %v3765 = vadd.f32 %v2009, %v3617
          %v3766 = vadd.f32 %v2012, %v3617
          %v3767 = vadd.f32 %v2014, %v3617
          %v3768 = vadd.f32 %v2017, %v3617
          %v3769 = vadd.f32 %v2019, %v3617
          %v3770 = vadd.f32 %v2022, %v3617
          %v3771 = vadd.f32 %v2024, %v3617
          %v3772 = vadd.f32 %v2027, %v3617
          %v3773 = vadd.f32 %v2029, %v3617
          %v3774 = vadd.f32 %v2032, %v3617
          %v3775 = vadd.f32 %v2034, %v3617
          %v3776 = vadd.f32 %v2037, %v3617
          %v3777 = vadd.f32 %v2039, %v3617
          %v3778 = vadd.f32 %v2042, %v3617
          %v3779 = vadd.f32 %v2044, %v3617
          %v3780 = vadd.f32 %v2047, %v3617
          %v3781 = vadd.f32 %v2049, %v3617
          %v3782 = vadd.f32 %v2052, %v3617
          %v3783 = vadd.f32 %v2054, %v3617
          %v3784 = vadd.f32 %v2057, %v3617
          %v3785 = vadd.f32 %v2059, %v3617
          %v3786 = vadd.f32 %v2062, %v3617
          %v3787 = vadd.f32 %v2064, %v3617
          %v3788 = vadd.f32 %v2067, %v3617
          %v3789 = vadd.f32 %v2069, %v3617
          %v3790 = vadd.f32 %v2072, %v3617
          %v3791 = vadd.f32 %v2074, %v3617
          %v3792 = vadd.f32 %v2077, %v3617
          %v3793 = vadd.f32 %v2079, %v3617
          %v3794 = vadd.f32 %v2082, %v3617
          %v3795 = vadd.f32 %v2084, %v3617
          %v3796 = vadd.f32 %v2087, %v3617
          %v3797 = vadd.f32 %v2089, %v3617
          %v3798 = vadd.f32 %v2092, %v3617
          %v3799 = vadd.f32 %v2094, %v3617
          %v3800 = vadd.f32 %v2097, %v3617
          %v3801 = vadd.f32 %v2099, %v3617
          %v3802 = vadd.f32 %v2102, %v3617
          %v3803 = vadd.f32 %v2104, %v3617
          %v3804 = vadd.f32 %v2107, %v3617
          %v3805 = vadd.f32 %v2109, %v3617
          %v3806 = vadd.f32 %v2112, %v3617
          %v3807 = vadd.f32 %v2114, %v3617
          %v3808 = vadd.f32 %v2117, %v3617
          %v3809 = vadd.f32 %v2119, %v3617
          %v3810 = vadd.f32 %v2122, %v3617
          %v3811 = vadd.f32 %v2124, %v3617
          %v3812 = vadd.f32 %v2127, %v3617
          %v3813 = vadd.f32 %v2129, %v3617
          %v3814 = vadd.f32 %v2132, %v3617
          %v3815 = vadd.f32 %v2134, %v3617
          %v3816 = vadd.f32 %v2137, %v3617
          %v3817 = vadd.f32 %v2139, %v3617
          %v3818 = vadd.f32 %v2142, %v3617
          %v3819 = vadd.f32 %v2144, %v3617
          %v3820 = vadd.f32 %v2147, %v3617
          %v3821 = vadd.f32 %v2149, %v3617
          %v3822 = vadd.f32 %v2152, %v3617
          %v3823 = vadd.f32 %v2154, %v3617
          %v3824 = vadd.f32 %v2157, %v3617
          %v3825 = vadd.f32 %v2159, %v3617
          %v3826 = vadd.f32 %v2162, %v3617
          %v3827 = vadd.f32 %v2164, %v3617
          %v3828 = vadd.f32 %v2167, %v3617
          %v3829 = vadd.f32 %v2169, %v3617
          %v3830 = vadd.f32 %v2172, %v3617
          %v3831 = vadd.f32 %v2174, %v3617
          %v3832 = vadd.f32 %v2177, %v3617
          %v3833 = vadd.f32 %v2179, %v3617
          %v3834 = vadd.f32 %v2182, %v3617
          %v3835 = vadd.f32 %v2184, %v3617
          %v3836 = vadd.f32 %v2187, %v3617
          %v3837 = vadd.f32 %v2189, %v3617
          %v3838 = vadd.f32 %v2192, %v3617
          %v3839 = vadd.f32 %v2194, %v3617
          %v3840 = vadd.f32 %v2197, %v3617
          %v3841 = vadd.f32 %v2199, %v3617
          %v3842 = vadd.f32 %v2202, %v3617
          %v3843 = vadd.f32 %v2204, %v3617
          %v3844 = vadd.f32 %v2207, %v3617
          %v3845 = vadd.f32 %v2209, %v3617
          %v3846 = vadd.f32 %v2212, %v3617
          %v3847 = vadd.f32 %v2214, %v3617
          %v3848 = vadd.f32 %v2217, %v3617
          %v3849 = vadd.f32 %v2219, %v3617
          %v3850 = vadd.f32 %v2222, %v3617
          %v3851 = vadd.f32 %v2224, %v3617
          %v3852 = vadd.f32 %v2227, %v3617
          %v3853 = vadd.f32 %v2229, %v3617
          %v3854 = vadd.f32 %v2232, %v3617
          %v3855 = vadd.f32 %v2234, %v3617
          %v3856 = vadd.f32 %v2237, %v3617
          %v3857 = vadd.f32 %v2239, %v3617
          %v3858 = vadd.f32 %v2242, %v3617
          %v3859 = vadd.f32 %v2244, %v3617
          %v3860 = vadd.f32 %v2247, %v3617
          %v3861 = vadd.f32 %v2249, %v3617
          %v3862 = vadd.f32 %v2252, %v3617
          %v3863 = vadd.f32 %v2254, %v3617
          %v3864 = vadd.f32 %v2257, %v3617
          %v3865 = vadd.f32 %v2259, %v3617
          %v3866 = vadd.f32 %v2262, %v3617
          %v3867 = vadd.f32 %v2264, %v3617
          %v3868 = vadd.f32 %v2267, %v3617
          %v3869 = vadd.f32 %v2269, %v3617
          %v3870 = vadd.f32 %v2272, %v3617
          %v3871 = vadd.f32 %v2274, %v3617
          %v3872 = vadd.f32 %v2277, %v3617
          %v3873 = vadd.f32 %v2279, %v3617
          %3874 = vmax.xlane.f32.xlu0 %v3618
          %v3875 = vpop.xlane.xlu0 %3874
          %3876 = vmax.xlane.f32.xlu0 %v3619
          %v3877 = vpop.xlane.xlu0 %3876
          %3878 = vmax.xlane.f32.xlu0 %v3620
          %v3879 = vpop.xlane.xlu0 %3878
          %3880 = vmax.xlane.f32.xlu0 %v3621
          %v3881 = vpop.xlane.xlu0 %3880
          %3882 = vmax.xlane.f32.xlu0 %v3622
          %v3883 = vpop.xlane.xlu0 %3882
          %3884 = vmax.xlane.f32.xlu0 %v3623
          %v3885 = vpop.xlane.xlu0 %3884
          %3886 = vmax.xlane.f32.xlu0 %v3624
          %v3887 = vpop.xlane.xlu0 %3886
          %3888 = vmax.xlane.f32.xlu0 %v3625
          %v3889 = vpop.xlane.xlu0 %3888
          %3890 = vmax.xlane.f32.xlu0 %v3626
          %v3891 = vpop.xlane.xlu0 %3890
          %3892 = vmax.xlane.f32.xlu0 %v3627
          %v3893 = vpop.xlane.xlu0 %3892
          %3894 = vmax.xlane.f32.xlu0 %v3628
          %v3895 = vpop.xlane.xlu0 %3894
          %3896 = vmax.xlane.f32.xlu0 %v3629
          %v3897 = vpop.xlane.xlu0 %3896
          %3898 = vmax.xlane.f32.xlu0 %v3630
          %v3899 = vpop.xlane.xlu0 %3898
          %3900 = vmax.xlane.f32.xlu0 %v3631
          %v3901 = vpop.xlane.xlu0 %3900
          %3902 = vmax.xlane.f32.xlu0 %v3632
          %v3903 = vpop.xlane.xlu0 %3902
          %3904 = vmax.xlane.f32.xlu0 %v3633
          %v3905 = vpop.xlane.xlu0 %3904
          %3906 = vmax.xlane.f32.xlu0 %v3634
          %v3907 = vpop.xlane.xlu0 %3906
          %3908 = vmax.xlane.f32.xlu0 %v3635
          %v3909 = vpop.xlane.xlu0 %3908
          %3910 = vmax.xlane.f32.xlu0 %v3636
          %v3911 = vpop.xlane.xlu0 %3910
          %3912 = vmax.xlane.f32.xlu0 %v3637
          %v3913 = vpop.xlane.xlu0 %3912
          %3914 = vmax.xlane.f32.xlu0 %v3638
          %v3915 = vpop.xlane.xlu0 %3914
          %3916 = vmax.xlane.f32.xlu0 %v3639
          %v3917 = vpop.xlane.xlu0 %3916
          %3918 = vmax.xlane.f32.xlu0 %v3640
          %v3919 = vpop.xlane.xlu0 %3918
          %3920 = vmax.xlane.f32.xlu0 %v3641
          %v3921 = vpop.xlane.xlu0 %3920
          %3922 = vmax.xlane.f32.xlu0 %v3642
          %v3923 = vpop.xlane.xlu0 %3922
          %3924 = vmax.xlane.f32.xlu0 %v3643
          %v3925 = vpop.xlane.xlu0 %3924
          %3926 = vmax.xlane.f32.xlu0 %v3644
          %v3927 = vpop.xlane.xlu0 %3926
          %3928 = vmax.xlane.f32.xlu0 %v3645
          %v3929 = vpop.xlane.xlu0 %3928
          %3930 = vmax.xlane.f32.xlu0 %v3646
          %v3931 = vpop.xlane.xlu0 %3930
          %3932 = vmax.xlane.f32.xlu0 %v3647
          %v3933 = vpop.xlane.xlu0 %3932
          %3934 = vmax.xlane.f32.xlu0 %v3648
          %v3935 = vpop.xlane.xlu0 %3934
          %3936 = vmax.xlane.f32.xlu0 %v3649
          %v3937 = vpop.xlane.xlu0 %3936
          %3938 = vmax.xlane.f32.xlu0 %v3650
          %v3939 = vpop.xlane.xlu0 %3938
          %3940 = vmax.xlane.f32.xlu0 %v3651
          %v3941 = vpop.xlane.xlu0 %3940
          %3942 = vmax.xlane.f32.xlu0 %v3652
          %v3943 = vpop.xlane.xlu0 %3942
          %3944 = vmax.xlane.f32.xlu0 %v3653
          %v3945 = vpop.xlane.xlu0 %3944
          %3946 = vmax.xlane.f32.xlu0 %v3654
          %v3947 = vpop.xlane.xlu0 %3946
          %3948 = vmax.xlane.f32.xlu0 %v3655
          %v3949 = vpop.xlane.xlu0 %3948
          %3950 = vmax.xlane.f32.xlu0 %v3656
          %v3951 = vpop.xlane.xlu0 %3950
          %3952 = vmax.xlane.f32.xlu0 %v3657
          %v3953 = vpop.xlane.xlu0 %3952
          %3954 = vmax.xlane.f32.xlu0 %v3658
          %v3955 = vpop.xlane.xlu0 %3954
          %3956 = vmax.xlane.f32.xlu0 %v3659
          %v3957 = vpop.xlane.xlu0 %3956
          %3958 = vmax.xlane.f32.xlu0 %v3660
          %v3959 = vpop.xlane.xlu0 %3958
          %3960 = vmax.xlane.f32.xlu0 %v3661
          %v3961 = vpop.xlane.xlu0 %3960
          %3962 = vmax.xlane.f32.xlu0 %v3662
          %v3963 = vpop.xlane.xlu0 %3962
          %3964 = vmax.xlane.f32.xlu0 %v3663
          %v3965 = vpop.xlane.xlu0 %3964
          %3966 = vmax.xlane.f32.xlu0 %v3664
          %v3967 = vpop.xlane.xlu0 %3966
          %3968 = vmax.xlane.f32.xlu0 %v3665
          %v3969 = vpop.xlane.xlu0 %3968
          %3970 = vmax.xlane.f32.xlu0 %v3666
          %v3971 = vpop.xlane.xlu0 %3970
          %3972 = vmax.xlane.f32.xlu0 %v3667
          %v3973 = vpop.xlane.xlu0 %3972
          %3974 = vmax.xlane.f32.xlu0 %v3668
          %v3975 = vpop.xlane.xlu0 %3974
          %3976 = vmax.xlane.f32.xlu0 %v3669
          %v3977 = vpop.xlane.xlu0 %3976
          %3978 = vmax.xlane.f32.xlu0 %v3670
          %v3979 = vpop.xlane.xlu0 %3978
          %3980 = vmax.xlane.f32.xlu0 %v3671
          %v3981 = vpop.xlane.xlu0 %3980
          %3982 = vmax.xlane.f32.xlu0 %v3672
          %v3983 = vpop.xlane.xlu0 %3982
          %3984 = vmax.xlane.f32.xlu0 %v3673
          %v3985 = vpop.xlane.xlu0 %3984
          %3986 = vmax.xlane.f32.xlu0 %v3674
          %v3987 = vpop.xlane.xlu0 %3986
          %3988 = vmax.xlane.f32.xlu0 %v3675
          %v3989 = vpop.xlane.xlu0 %3988
          %3990 = vmax.xlane.f32.xlu0 %v3676
          %v3991 = vpop.xlane.xlu0 %3990
          %3992 = vmax.xlane.f32.xlu0 %v3677
          %v3993 = vpop.xlane.xlu0 %3992
          %3994 = vmax.xlane.f32.xlu0 %v3678
          %v3995 = vpop.xlane.xlu0 %3994
          %3996 = vmax.xlane.f32.xlu0 %v3679
          %v3997 = vpop.xlane.xlu0 %3996
          %3998 = vmax.xlane.f32.xlu0 %v3680
          %v3999 = vpop.xlane.xlu0 %3998
          %4000 = vmax.xlane.f32.xlu0 %v3681
          %v4001 = vpop.xlane.xlu0 %4000
          %4002 = vmax.xlane.f32.xlu0 %v3682
          %v4003 = vpop.xlane.xlu0 %4002
          %4004 = vmax.xlane.f32.xlu0 %v3683
          %v4005 = vpop.xlane.xlu0 %4004
          %4006 = vmax.xlane.f32.xlu0 %v3684
          %v4007 = vpop.xlane.xlu0 %4006
          %4008 = vmax.xlane.f32.xlu0 %v3685
          %v4009 = vpop.xlane.xlu0 %4008
          %4010 = vmax.xlane.f32.xlu0 %v3686
          %v4011 = vpop.xlane.xlu0 %4010
          %4012 = vmax.xlane.f32.xlu0 %v3687
          %v4013 = vpop.xlane.xlu0 %4012
          %4014 = vmax.xlane.f32.xlu0 %v3688
          %v4015 = vpop.xlane.xlu0 %4014
          %4016 = vmax.xlane.f32.xlu0 %v3689
          %v4017 = vpop.xlane.xlu0 %4016
          %4018 = vmax.xlane.f32.xlu0 %v3690
          %v4019 = vpop.xlane.xlu0 %4018
          %4020 = vmax.xlane.f32.xlu0 %v3691
          %v4021 = vpop.xlane.xlu0 %4020
          %4022 = vmax.xlane.f32.xlu0 %v3692
          %v4023 = vpop.xlane.xlu0 %4022
          %4024 = vmax.xlane.f32.xlu0 %v3693
          %v4025 = vpop.xlane.xlu0 %4024
          %4026 = vmax.xlane.f32.xlu0 %v3694
          %v4027 = vpop.xlane.xlu0 %4026
          %4028 = vmax.xlane.f32.xlu0 %v3695
          %v4029 = vpop.xlane.xlu0 %4028
          %4030 = vmax.xlane.f32.xlu0 %v3696
          %v4031 = vpop.xlane.xlu0 %4030
          %4032 = vmax.xlane.f32.xlu0 %v3697
          %v4033 = vpop.xlane.xlu0 %4032
          %4034 = vmax.xlane.f32.xlu0 %v3698
          %v4035 = vpop.xlane.xlu0 %4034
          %4036 = vmax.xlane.f32.xlu0 %v3699
          %v4037 = vpop.xlane.xlu0 %4036
          %4038 = vmax.xlane.f32.xlu0 %v3700
          %v4039 = vpop.xlane.xlu0 %4038
          %4040 = vmax.xlane.f32.xlu0 %v3701
          %v4041 = vpop.xlane.xlu0 %4040
          %4042 = vmax.xlane.f32.xlu0 %v3702
          %v4043 = vpop.xlane.xlu0 %4042
          %4044 = vmax.xlane.f32.xlu0 %v3703
          %v4045 = vpop.xlane.xlu0 %4044
          %4046 = vmax.xlane.f32.xlu0 %v3704
          %v4047 = vpop.xlane.xlu0 %4046
          %4048 = vmax.xlane.f32.xlu0 %v3705
          %v4049 = vpop.xlane.xlu0 %4048
          %4050 = vmax.xlane.f32.xlu0 %v3706
          %v4051 = vpop.xlane.xlu0 %4050
          %4052 = vmax.xlane.f32.xlu0 %v3707
          %v4053 = vpop.xlane.xlu0 %4052
          %4054 = vmax.xlane.f32.xlu0 %v3708
          %v4055 = vpop.xlane.xlu0 %4054
          %4056 = vmax.xlane.f32.xlu0 %v3709
          %v4057 = vpop.xlane.xlu0 %4056
          %4058 = vmax.xlane.f32.xlu0 %v3710
          %v4059 = vpop.xlane.xlu0 %4058
          %4060 = vmax.xlane.f32.xlu0 %v3711
          %v4061 = vpop.xlane.xlu0 %4060
          %4062 = vmax.xlane.f32.xlu0 %v3712
          %v4063 = vpop.xlane.xlu0 %4062
          %4064 = vmax.xlane.f32.xlu0 %v3713
          %v4065 = vpop.xlane.xlu0 %4064
          %4066 = vmax.xlane.f32.xlu0 %v3714
          %v4067 = vpop.xlane.xlu0 %4066
          %4068 = vmax.xlane.f32.xlu0 %v3715
          %v4069 = vpop.xlane.xlu0 %4068
          %4070 = vmax.xlane.f32.xlu0 %v3716
          %v4071 = vpop.xlane.xlu0 %4070
          %4072 = vmax.xlane.f32.xlu0 %v3717
          %v4073 = vpop.xlane.xlu0 %4072
          %4074 = vmax.xlane.f32.xlu0 %v3718
          %v4075 = vpop.xlane.xlu0 %4074
          %4076 = vmax.xlane.f32.xlu0 %v3719
          %v4077 = vpop.xlane.xlu0 %4076
          %4078 = vmax.xlane.f32.xlu0 %v3720
          %v4079 = vpop.xlane.xlu0 %4078
          %4080 = vmax.xlane.f32.xlu0 %v3721
          %v4081 = vpop.xlane.xlu0 %4080
          %4082 = vmax.xlane.f32.xlu0 %v3722
          %v4083 = vpop.xlane.xlu0 %4082
          %4084 = vmax.xlane.f32.xlu0 %v3723
          %v4085 = vpop.xlane.xlu0 %4084
          %4086 = vmax.xlane.f32.xlu0 %v3724
          %v4087 = vpop.xlane.xlu0 %4086
          %4088 = vmax.xlane.f32.xlu0 %v3725
          %v4089 = vpop.xlane.xlu0 %4088
          %4090 = vmax.xlane.f32.xlu0 %v3726
          %v4091 = vpop.xlane.xlu0 %4090
          %4092 = vmax.xlane.f32.xlu0 %v3727
          %v4093 = vpop.xlane.xlu0 %4092
          %4094 = vmax.xlane.f32.xlu0 %v3728
          %v4095 = vpop.xlane.xlu0 %4094
          %4096 = vmax.xlane.f32.xlu0 %v3729
          %v4097 = vpop.xlane.xlu0 %4096
          %4098 = vmax.xlane.f32.xlu0 %v3730
          %v4099 = vpop.xlane.xlu0 %4098
          %4100 = vmax.xlane.f32.xlu0 %v3731
          %v4101 = vpop.xlane.xlu0 %4100
          %4102 = vmax.xlane.f32.xlu0 %v3732
          %v4103 = vpop.xlane.xlu0 %4102
          %4104 = vmax.xlane.f32.xlu0 %v3733
          %v4105 = vpop.xlane.xlu0 %4104
          %4106 = vmax.xlane.f32.xlu0 %v3734
          %v4107 = vpop.xlane.xlu0 %4106
          %4108 = vmax.xlane.f32.xlu0 %v3735
          %v4109 = vpop.xlane.xlu0 %4108
          %4110 = vmax.xlane.f32.xlu0 %v3736
          %v4111 = vpop.xlane.xlu0 %4110
          %4112 = vmax.xlane.f32.xlu0 %v3737
          %v4113 = vpop.xlane.xlu0 %4112
          %4114 = vmax.xlane.f32.xlu0 %v3738
          %v4115 = vpop.xlane.xlu0 %4114
          %4116 = vmax.xlane.f32.xlu0 %v3739
          %v4117 = vpop.xlane.xlu0 %4116
          %4118 = vmax.xlane.f32.xlu0 %v3740
          %v4119 = vpop.xlane.xlu0 %4118
          %4120 = vmax.xlane.f32.xlu0 %v3741
          %v4121 = vpop.xlane.xlu0 %4120
          %4122 = vmax.xlane.f32.xlu0 %v3742
          %v4123 = vpop.xlane.xlu0 %4122
          %4124 = vmax.xlane.f32.xlu0 %v3743
          %v4125 = vpop.xlane.xlu0 %4124
          %4126 = vmax.xlane.f32.xlu0 %v3744
          %v4127 = vpop.xlane.xlu0 %4126
          %4128 = vmax.xlane.f32.xlu0 %v3745
          %v4129 = vpop.xlane.xlu0 %4128
          %4130 = vmax.xlane.f32.xlu0 %v3746
          %v4131 = vpop.xlane.xlu0 %4130
          %4132 = vmax.xlane.f32.xlu0 %v3747
          %v4133 = vpop.xlane.xlu0 %4132
          %4134 = vmax.xlane.f32.xlu0 %v3748
          %v4135 = vpop.xlane.xlu0 %4134
          %4136 = vmax.xlane.f32.xlu0 %v3749
          %v4137 = vpop.xlane.xlu0 %4136
          %4138 = vmax.xlane.f32.xlu0 %v3750
          %v4139 = vpop.xlane.xlu0 %4138
          %4140 = vmax.xlane.f32.xlu0 %v3751
          %v4141 = vpop.xlane.xlu0 %4140
          %4142 = vmax.xlane.f32.xlu0 %v3752
          %v4143 = vpop.xlane.xlu0 %4142
          %4144 = vmax.xlane.f32.xlu0 %v3753
          %v4145 = vpop.xlane.xlu0 %4144
          %4146 = vmax.xlane.f32.xlu0 %v3754
          %v4147 = vpop.xlane.xlu0 %4146
          %4148 = vmax.xlane.f32.xlu0 %v3755
          %v4149 = vpop.xlane.xlu0 %4148
          %4150 = vmax.xlane.f32.xlu0 %v3756
          %v4151 = vpop.xlane.xlu0 %4150
          %4152 = vmax.xlane.f32.xlu0 %v3757
          %v4153 = vpop.xlane.xlu0 %4152
          %4154 = vmax.xlane.f32.xlu0 %v3758
          %v4155 = vpop.xlane.xlu0 %4154
          %4156 = vmax.xlane.f32.xlu0 %v3759
          %v4157 = vpop.xlane.xlu0 %4156
          %4158 = vmax.xlane.f32.xlu0 %v3760
          %v4159 = vpop.xlane.xlu0 %4158
          %4160 = vmax.xlane.f32.xlu0 %v3761
          %v4161 = vpop.xlane.xlu0 %4160
          %4162 = vmax.xlane.f32.xlu0 %v3762
          %v4163 = vpop.xlane.xlu0 %4162
          %4164 = vmax.xlane.f32.xlu0 %v3763
          %v4165 = vpop.xlane.xlu0 %4164
          %4166 = vmax.xlane.f32.xlu0 %v3764
          %v4167 = vpop.xlane.xlu0 %4166
          %4168 = vmax.xlane.f32.xlu0 %v3765
          %v4169 = vpop.xlane.xlu0 %4168
          %4170 = vmax.xlane.f32.xlu0 %v3766
          %v4171 = vpop.xlane.xlu0 %4170
          %4172 = vmax.xlane.f32.xlu0 %v3767
          %v4173 = vpop.xlane.xlu0 %4172
          %4174 = vmax.xlane.f32.xlu0 %v3768
          %v4175 = vpop.xlane.xlu0 %4174
          %4176 = vmax.xlane.f32.xlu0 %v3769
          %v4177 = vpop.xlane.xlu0 %4176
          %4178 = vmax.xlane.f32.xlu0 %v3770
          %v4179 = vpop.xlane.xlu0 %4178
          %4180 = vmax.xlane.f32.xlu0 %v3771
          %v4181 = vpop.xlane.xlu0 %4180
          %4182 = vmax.xlane.f32.xlu0 %v3772
          %v4183 = vpop.xlane.xlu0 %4182
          %4184 = vmax.xlane.f32.xlu0 %v3773
          %v4185 = vpop.xlane.xlu0 %4184
          %4186 = vmax.xlane.f32.xlu0 %v3774
          %v4187 = vpop.xlane.xlu0 %4186
          %4188 = vmax.xlane.f32.xlu0 %v3775
          %v4189 = vpop.xlane.xlu0 %4188
          %4190 = vmax.xlane.f32.xlu0 %v3776
          %v4191 = vpop.xlane.xlu0 %4190
          %4192 = vmax.xlane.f32.xlu0 %v3777
          %v4193 = vpop.xlane.xlu0 %4192
          %4194 = vmax.xlane.f32.xlu0 %v3778
          %v4195 = vpop.xlane.xlu0 %4194
          %4196 = vmax.xlane.f32.xlu0 %v3779
          %v4197 = vpop.xlane.xlu0 %4196
          %4198 = vmax.xlane.f32.xlu0 %v3780
          %v4199 = vpop.xlane.xlu0 %4198
          %4200 = vmax.xlane.f32.xlu0 %v3781
          %v4201 = vpop.xlane.xlu0 %4200
          %4202 = vmax.xlane.f32.xlu0 %v3782
          %v4203 = vpop.xlane.xlu0 %4202
          %4204 = vmax.xlane.f32.xlu0 %v3783
          %v4205 = vpop.xlane.xlu0 %4204
          %4206 = vmax.xlane.f32.xlu0 %v3784
          %v4207 = vpop.xlane.xlu0 %4206
          %4208 = vmax.xlane.f32.xlu0 %v3785
          %v4209 = vpop.xlane.xlu0 %4208
          %4210 = vmax.xlane.f32.xlu0 %v3786
          %v4211 = vpop.xlane.xlu0 %4210
          %4212 = vmax.xlane.f32.xlu0 %v3787
          %v4213 = vpop.xlane.xlu0 %4212
          %4214 = vmax.xlane.f32.xlu0 %v3788
          %v4215 = vpop.xlane.xlu0 %4214
          %4216 = vmax.xlane.f32.xlu0 %v3789
          %v4217 = vpop.xlane.xlu0 %4216
          %4218 = vmax.xlane.f32.xlu0 %v3790
          %v4219 = vpop.xlane.xlu0 %4218
          %4220 = vmax.xlane.f32.xlu0 %v3791
          %v4221 = vpop.xlane.xlu0 %4220
          %4222 = vmax.xlane.f32.xlu0 %v3792
          %v4223 = vpop.xlane.xlu0 %4222
          %4224 = vmax.xlane.f32.xlu0 %v3793
          %v4225 = vpop.xlane.xlu0 %4224
          %4226 = vmax.xlane.f32.xlu0 %v3794
          %v4227 = vpop.xlane.xlu0 %4226
          %4228 = vmax.xlane.f32.xlu0 %v3795
          %v4229 = vpop.xlane.xlu0 %4228
          %4230 = vmax.xlane.f32.xlu0 %v3796
          %v4231 = vpop.xlane.xlu0 %4230
          %4232 = vmax.xlane.f32.xlu0 %v3797
          %v4233 = vpop.xlane.xlu0 %4232
          %4234 = vmax.xlane.f32.xlu0 %v3798
          %v4235 = vpop.xlane.xlu0 %4234
          %4236 = vmax.xlane.f32.xlu0 %v3799
          %v4237 = vpop.xlane.xlu0 %4236
          %4238 = vmax.xlane.f32.xlu0 %v3800
          %v4239 = vpop.xlane.xlu0 %4238
          %4240 = vmax.xlane.f32.xlu0 %v3801
          %v4241 = vpop.xlane.xlu0 %4240
          %4242 = vmax.xlane.f32.xlu0 %v3802
          %v4243 = vpop.xlane.xlu0 %4242
          %4244 = vmax.xlane.f32.xlu0 %v3803
          %v4245 = vpop.xlane.xlu0 %4244
          %4246 = vmax.xlane.f32.xlu0 %v3804
          %v4247 = vpop.xlane.xlu0 %4246
          %4248 = vmax.xlane.f32.xlu0 %v3805
          %v4249 = vpop.xlane.xlu0 %4248
          %4250 = vmax.xlane.f32.xlu0 %v3806
          %v4251 = vpop.xlane.xlu0 %4250
          %4252 = vmax.xlane.f32.xlu0 %v3807
          %v4253 = vpop.xlane.xlu0 %4252
          %4254 = vmax.xlane.f32.xlu0 %v3808
          %v4255 = vpop.xlane.xlu0 %4254
          %4256 = vmax.xlane.f32.xlu0 %v3809
          %v4257 = vpop.xlane.xlu0 %4256
          %4258 = vmax.xlane.f32.xlu0 %v3810
          %v4259 = vpop.xlane.xlu0 %4258
          %4260 = vmax.xlane.f32.xlu0 %v3811
          %v4261 = vpop.xlane.xlu0 %4260
          %4262 = vmax.xlane.f32.xlu0 %v3812
          %v4263 = vpop.xlane.xlu0 %4262
          %4264 = vmax.xlane.f32.xlu0 %v3813
          %v4265 = vpop.xlane.xlu0 %4264
          %4266 = vmax.xlane.f32.xlu0 %v3814
          %v4267 = vpop.xlane.xlu0 %4266
          %4268 = vmax.xlane.f32.xlu0 %v3815
          %v4269 = vpop.xlane.xlu0 %4268
          %4270 = vmax.xlane.f32.xlu0 %v3816
          %v4271 = vpop.xlane.xlu0 %4270
          %4272 = vmax.xlane.f32.xlu0 %v3817
          %v4273 = vpop.xlane.xlu0 %4272
          %4274 = vmax.xlane.f32.xlu0 %v3818
          %v4275 = vpop.xlane.xlu0 %4274
          %4276 = vmax.xlane.f32.xlu0 %v3819
          %v4277 = vpop.xlane.xlu0 %4276
          %4278 = vmax.xlane.f32.xlu0 %v3820
          %v4279 = vpop.xlane.xlu0 %4278
          %4280 = vmax.xlane.f32.xlu0 %v3821
          %v4281 = vpop.xlane.xlu0 %4280
          %4282 = vmax.xlane.f32.xlu0 %v3822
          %v4283 = vpop.xlane.xlu0 %4282
          %4284 = vmax.xlane.f32.xlu0 %v3823
          %v4285 = vpop.xlane.xlu0 %4284
          %4286 = vmax.xlane.f32.xlu0 %v3824
          %v4287 = vpop.xlane.xlu0 %4286
          %4288 = vmax.xlane.f32.xlu0 %v3825
          %v4289 = vpop.xlane.xlu0 %4288
          %4290 = vmax.xlane.f32.xlu0 %v3826
          %v4291 = vpop.xlane.xlu0 %4290
          %4292 = vmax.xlane.f32.xlu0 %v3827
          %v4293 = vpop.xlane.xlu0 %4292
          %4294 = vmax.xlane.f32.xlu0 %v3828
          %v4295 = vpop.xlane.xlu0 %4294
          %4296 = vmax.xlane.f32.xlu0 %v3829
          %v4297 = vpop.xlane.xlu0 %4296
          %4298 = vmax.xlane.f32.xlu0 %v3830
          %v4299 = vpop.xlane.xlu0 %4298
          %4300 = vmax.xlane.f32.xlu0 %v3831
          %v4301 = vpop.xlane.xlu0 %4300
          %4302 = vmax.xlane.f32.xlu0 %v3832
          %v4303 = vpop.xlane.xlu0 %4302
          %4304 = vmax.xlane.f32.xlu0 %v3833
          %v4305 = vpop.xlane.xlu0 %4304
          %4306 = vmax.xlane.f32.xlu0 %v3834
          %v4307 = vpop.xlane.xlu0 %4306
          %4308 = vmax.xlane.f32.xlu0 %v3835
          %v4309 = vpop.xlane.xlu0 %4308
          %4310 = vmax.xlane.f32.xlu0 %v3836
          %v4311 = vpop.xlane.xlu0 %4310
          %4312 = vmax.xlane.f32.xlu0 %v3837
          %v4313 = vpop.xlane.xlu0 %4312
          %4314 = vmax.xlane.f32.xlu0 %v3838
          %v4315 = vpop.xlane.xlu0 %4314
          %4316 = vmax.xlane.f32.xlu0 %v3839
          %v4317 = vpop.xlane.xlu0 %4316
          %4318 = vmax.xlane.f32.xlu0 %v3840
          %v4319 = vpop.xlane.xlu0 %4318
          %4320 = vmax.xlane.f32.xlu0 %v3841
          %v4321 = vpop.xlane.xlu0 %4320
          %4322 = vmax.xlane.f32.xlu0 %v3842
          %v4323 = vpop.xlane.xlu0 %4322
          %4324 = vmax.xlane.f32.xlu0 %v3843
          %v4325 = vpop.xlane.xlu0 %4324
          %4326 = vmax.xlane.f32.xlu0 %v3844
          %v4327 = vpop.xlane.xlu0 %4326
          %4328 = vmax.xlane.f32.xlu0 %v3845
          %v4329 = vpop.xlane.xlu0 %4328
          %4330 = vmax.xlane.f32.xlu0 %v3846
          %v4331 = vpop.xlane.xlu0 %4330
          %4332 = vmax.xlane.f32.xlu0 %v3847
          %v4333 = vpop.xlane.xlu0 %4332
          %4334 = vmax.xlane.f32.xlu0 %v3848
          %v4335 = vpop.xlane.xlu0 %4334
          %4336 = vmax.xlane.f32.xlu0 %v3849
          %v4337 = vpop.xlane.xlu0 %4336
          %4338 = vmax.xlane.f32.xlu0 %v3850
          %v4339 = vpop.xlane.xlu0 %4338
          %4340 = vmax.xlane.f32.xlu0 %v3851
          %v4341 = vpop.xlane.xlu0 %4340
          %4342 = vmax.xlane.f32.xlu0 %v3852
          %v4343 = vpop.xlane.xlu0 %4342
          %4344 = vmax.xlane.f32.xlu0 %v3853
          %v4345 = vpop.xlane.xlu0 %4344
          %4346 = vmax.xlane.f32.xlu0 %v3854
          %v4347 = vpop.xlane.xlu0 %4346
          %4348 = vmax.xlane.f32.xlu0 %v3855
          %v4349 = vpop.xlane.xlu0 %4348
          %4350 = vmax.xlane.f32.xlu0 %v3856
          %v4351 = vpop.xlane.xlu0 %4350
          %4352 = vmax.xlane.f32.xlu0 %v3857
          %v4353 = vpop.xlane.xlu0 %4352
          %4354 = vmax.xlane.f32.xlu0 %v3858
          %v4355 = vpop.xlane.xlu0 %4354
          %4356 = vmax.xlane.f32.xlu0 %v3859
          %v4357 = vpop.xlane.xlu0 %4356
          %4358 = vmax.xlane.f32.xlu0 %v3860
          %v4359 = vpop.xlane.xlu0 %4358
          %4360 = vmax.xlane.f32.xlu0 %v3861
          %v4361 = vpop.xlane.xlu0 %4360
          %4362 = vmax.xlane.f32.xlu0 %v3862
          %v4363 = vpop.xlane.xlu0 %4362
          %4364 = vmax.xlane.f32.xlu0 %v3863
          %v4365 = vpop.xlane.xlu0 %4364
          %4366 = vmax.xlane.f32.xlu0 %v3864
          %v4367 = vpop.xlane.xlu0 %4366
          %4368 = vmax.xlane.f32.xlu0 %v3865
          %v4369 = vpop.xlane.xlu0 %4368
          %4370 = vmax.xlane.f32.xlu0 %v3866
          %v4371 = vpop.xlane.xlu0 %4370
          %4372 = vmax.xlane.f32.xlu0 %v3867
          %v4373 = vpop.xlane.xlu0 %4372
          %4374 = vmax.xlane.f32.xlu0 %v3868
          %v4375 = vpop.xlane.xlu0 %4374
          %4376 = vmax.xlane.f32.xlu0 %v3869
          %v4377 = vpop.xlane.xlu0 %4376
          %4378 = vmax.xlane.f32.xlu0 %v3870
          %v4379 = vpop.xlane.xlu0 %4378
          %4380 = vmax.xlane.f32.xlu0 %v3871
          %v4381 = vpop.xlane.xlu0 %4380
          %4382 = vmax.xlane.f32.xlu0 %v3872
          %v4383 = vpop.xlane.xlu0 %4382
          %4384 = vmax.xlane.f32.xlu0 %v3873
          %v4385 = vpop.xlane.xlu0 %4384
          %v4386 = vld [vmem:[#allocation2] sm:$0xff]
          %v4387 = vld [vmem:[#allocation2 + $0x8] sm:$0xff]
          %v4644 = vperm.slane %v3875, %v3615
          %v4645 = vadd.s32 %v3615, 4294967288
          %v4646 = vperm.slane %v3877, %v4645
          %vm4647 = vcmask 130112
          %v4648 = vsel %vm4647, %v4646, %v4644
          %v4649 = vadd.s32 %v3615, 4294967280
          %v4650 = vperm.slane %v3879, %v4649
          %vm4651 = vcmask 195712
          %v4652 = vsel %vm4651, %v4650, %v4648
          %v4653 = vadd.s32 %v3615, 4294967272
          %v4654 = vperm.slane %v3881, %v4653
          %vm4655 = vcmask 261312
          %v4656 = vsel %vm4655, %v4654, %v4652
          %v4657 = vadd.s32 %v3615, 4294967264
          %v4658 = vperm.slane %v3883, %v4657
          %vm4659 = vcmask 326912
          %v4660 = vsel %vm4659, %v4658, %v4656
          %v4661 = vadd.s32 %v3615, 4294967256
          %v4662 = vperm.slane %v3885, %v4661
          %vm4663 = vcmask 392512
          %v4664 = vsel %vm4663, %v4662, %v4660
          %v4665 = vadd.s32 %v3615, 4294967248
          %v4666 = vperm.slane %v3887, %v4665
          %vm4667 = vcmask 458112
          %v4668 = vsel %vm4667, %v4666, %v4664
          %v4669 = vadd.s32 %v3615, 4294967240
          %v4670 = vperm.slane %v3889, %v4669
          %vm4671 = vcmask 523712
          %v4672 = vsel %vm4671, %v4670, %v4668
          %v4673 = vadd.s32 %v3615, 4294967232
          %v4674 = vperm.slane %v3891, %v4673
          %vm4675 = vcmask 589312
          %v4676 = vsel %vm4675, %v4674, %v4672
          %v4677 = vadd.s32 %v3615, 4294967224
          %v4678 = vperm.slane %v3893, %v4677
          %vm4679 = vcmask 654912
          %v4680 = vsel %vm4679, %v4678, %v4676
          %v4681 = vadd.s32 %v3615, 4294967216
          %v4682 = vperm.slane %v3895, %v4681
          %vm4683 = vcmask 720512
          %v4684 = vsel %vm4683, %v4682, %v4680
          %v4685 = vadd.s32 %v3615, 4294967208
          %v4686 = vperm.slane %v3897, %v4685
          %vm4687 = vcmask 786112
          %v4688 = vsel %vm4687, %v4686, %v4684
          %v4689 = vadd.s32 %v3615, 4294967200
          %v4690 = vperm.slane %v3899, %v4689
          %vm4691 = vcmask 851712
          %v4692 = vsel %vm4691, %v4690, %v4688
          %v4693 = vadd.s32 %v3615, 4294967192
          %v4694 = vperm.slane %v3901, %v4693
          %vm4695 = vcmask 917312
          %v4696 = vsel %vm4695, %v4694, %v4692
          %v4697 = vadd.s32 %v3615, 4294967184
          %v4698 = vperm.slane %v3903, %v4697
          %vm4699 = vcmask 982912
          %v4700 = vsel %vm4699, %v4698, %v4696
          %v4701 = vadd.s32 %v3615, 4294967176
          %v4702 = vperm.slane %v3905, %v4701
          %vm4703 = vcmask 1048512
          %v4704 = vsel %vm4703, %v4702, %v4700
          %v4705 = vperm.slane %v3907, %v3615
          %v4706 = vperm.slane %v3909, %v4645
          %v4707 = vsel %vm4647, %v4706, %v4705
          %v4708 = vperm.slane %v3911, %v4649
          %v4709 = vsel %vm4651, %v4708, %v4707
          %v4710 = vperm.slane %v3913, %v4653
          %v4711 = vsel %vm4655, %v4710, %v4709
          %v4712 = vperm.slane %v3915, %v4657
          %v4713 = vsel %vm4659, %v4712, %v4711
          %v4714 = vperm.slane %v3917, %v4661
          %v4715 = vsel %vm4663, %v4714, %v4713
          %v4716 = vperm.slane %v3919, %v4665
          %v4717 = vsel %vm4667, %v4716, %v4715
          %v4718 = vperm.slane %v3921, %v4669
          %v4719 = vsel %vm4671, %v4718, %v4717
          %v4720 = vperm.slane %v3923, %v4673
          %v4721 = vsel %vm4675, %v4720, %v4719
          %v4722 = vperm.slane %v3925, %v4677
          %v4723 = vsel %vm4679, %v4722, %v4721
          %v4724 = vperm.slane %v3927, %v4681
          %v4725 = vsel %vm4683, %v4724, %v4723
          %v4726 = vperm.slane %v3929, %v4685
          %v4727 = vsel %vm4687, %v4726, %v4725
          %v4728 = vperm.slane %v3931, %v4689
          %v4729 = vsel %vm4691, %v4728, %v4727
          %v4730 = vperm.slane %v3933, %v4693
          %v4731 = vsel %vm4695, %v4730, %v4729
          %v4732 = vperm.slane %v3935, %v4697
          %v4733 = vsel %vm4699, %v4732, %v4731
          %v4734 = vperm.slane %v3937, %v4701
          %v4735 = vsel %vm4703, %v4734, %v4733
          %v4736 = vperm.slane %v3939, %v3615
          %v4737 = vperm.slane %v3941, %v4645
          %v4738 = vsel %vm4647, %v4737, %v4736
          %v4739 = vperm.slane %v3943, %v4649
          %v4740 = vsel %vm4651, %v4739, %v4738
          %v4741 = vperm.slane %v3945, %v4653
          %v4742 = vsel %vm4655, %v4741, %v4740
          %v4743 = vperm.slane %v3947, %v4657
          %v4744 = vsel %vm4659, %v4743, %v4742
          %v4745 = vperm.slane %v3949, %v4661
          %v4746 = vsel %vm4663, %v4745, %v4744
          %v4747 = vperm.slane %v3951, %v4665
          %v4748 = vsel %vm4667, %v4747, %v4746
          %v4749 = vperm.slane %v3953, %v4669
          %v4750 = vsel %vm4671, %v4749, %v4748
          %v4751 = vperm.slane %v3955, %v4673
          %v4752 = vsel %vm4675, %v4751, %v4750
          %v4753 = vperm.slane %v3957, %v4677
          %v4754 = vsel %vm4679, %v4753, %v4752
          %v4755 = vperm.slane %v3959, %v4681
          %v4756 = vsel %vm4683, %v4755, %v4754
          %v4757 = vperm.slane %v3961, %v4685
          %v4758 = vsel %vm4687, %v4757, %v4756
          %v4759 = vperm.slane %v3963, %v4689
          %v4760 = vsel %vm4691, %v4759, %v4758
          %v4761 = vperm.slane %v3965, %v4693
          %v4762 = vsel %vm4695, %v4761, %v4760
          %v4763 = vperm.slane %v3967, %v4697
          %v4764 = vsel %vm4699, %v4763, %v4762
          %v4765 = vperm.slane %v3969, %v4701
          %v4766 = vsel %vm4703, %v4765, %v4764
          %v4767 = vperm.slane %v3971, %v3615
          %v4768 = vperm.slane %v3973, %v4645
          %v4769 = vsel %vm4647, %v4768, %v4767
          %v4770 = vperm.slane %v3975, %v4649
          %v4771 = vsel %vm4651, %v4770, %v4769
          %v4772 = vperm.slane %v3977, %v4653
          %v4773 = vsel %vm4655, %v4772, %v4771
          %v4774 = vperm.slane %v3979, %v4657
          %v4775 = vsel %vm4659, %v4774, %v4773
          %v4776 = vperm.slane %v3981, %v4661
          %v4777 = vsel %vm4663, %v4776, %v4775
          %v4778 = vperm.slane %v3983, %v4665
          %v4779 = vsel %vm4667, %v4778, %v4777
          %v4780 = vperm.slane %v3985, %v4669
          %v4781 = vsel %vm4671, %v4780, %v4779
          %v4782 = vperm.slane %v3987, %v4673
          %v4783 = vsel %vm4675, %v4782, %v4781
          %v4784 = vperm.slane %v3989, %v4677
          %v4785 = vsel %vm4679, %v4784, %v4783
          %v4786 = vperm.slane %v3991, %v4681
          %v4787 = vsel %vm4683, %v4786, %v4785
          %v4788 = vperm.slane %v3993, %v4685
          %v4789 = vsel %vm4687, %v4788, %v4787
          %v4790 = vperm.slane %v3995, %v4689
          %v4791 = vsel %vm4691, %v4790, %v4789
          %v4792 = vperm.slane %v3997, %v4693
          %v4793 = vsel %vm4695, %v4792, %v4791
          %v4794 = vperm.slane %v3999, %v4697
          %v4795 = vsel %vm4699, %v4794, %v4793
          %v4796 = vperm.slane %v4001, %v4701
          %v4797 = vsel %vm4703, %v4796, %v4795
          %v4798 = vperm.slane %v4003, %v3615
          %v4799 = vperm.slane %v4005, %v4645
          %v4800 = vsel %vm4647, %v4799, %v4798
          %v4801 = vperm.slane %v4007, %v4649
          %v4802 = vsel %vm4651, %v4801, %v4800
          %v4803 = vperm.slane %v4009, %v4653
          %v4804 = vsel %vm4655, %v4803, %v4802
          %v4805 = vperm.slane %v4011, %v4657
          %v4806 = vsel %vm4659, %v4805, %v4804
          %v4807 = vperm.slane %v4013, %v4661
          %v4808 = vsel %vm4663, %v4807, %v4806
          %v4809 = vperm.slane %v4015, %v4665
          %v4810 = vsel %vm4667, %v4809, %v4808
          %v4811 = vperm.slane %v4017, %v4669
          %v4812 = vsel %vm4671, %v4811, %v4810
          %v4813 = vperm.slane %v4019, %v4673
          %v4814 = vsel %vm4675, %v4813, %v4812
          %v4815 = vperm.slane %v4021, %v4677
          %v4816 = vsel %vm4679, %v4815, %v4814
          %v4817 = vperm.slane %v4023, %v4681
          %v4818 = vsel %vm4683, %v4817, %v4816
          %v4819 = vperm.slane %v4025, %v4685
          %v4820 = vsel %vm4687, %v4819, %v4818
          %v4821 = vperm.slane %v4027, %v4689
          %v4822 = vsel %vm4691, %v4821, %v4820
          %v4823 = vperm.slane %v4029, %v4693
          %v4824 = vsel %vm4695, %v4823, %v4822
          %v4825 = vperm.slane %v4031, %v4697
          %v4826 = vsel %vm4699, %v4825, %v4824
          %v4827 = vperm.slane %v4033, %v4701
          %v4828 = vsel %vm4703, %v4827, %v4826
          %v4829 = vperm.slane %v4035, %v3615
          %v4830 = vperm.slane %v4037, %v4645
          %v4831 = vsel %vm4647, %v4830, %v4829
          %v4832 = vperm.slane %v4039, %v4649
          %v4833 = vsel %vm4651, %v4832, %v4831
          %v4834 = vperm.slane %v4041, %v4653
          %v4835 = vsel %vm4655, %v4834, %v4833
          %v4836 = vperm.slane %v4043, %v4657
          %v4837 = vsel %vm4659, %v4836, %v4835
          %v4838 = vperm.slane %v4045, %v4661
          %v4839 = vsel %vm4663, %v4838, %v4837
          %v4840 = vperm.slane %v4047, %v4665
          %v4841 = vsel %vm4667, %v4840, %v4839
          %v4842 = vperm.slane %v4049, %v4669
          %v4843 = vsel %vm4671, %v4842, %v4841
          %v4844 = vperm.slane %v4051, %v4673
          %v4845 = vsel %vm4675, %v4844, %v4843
          %v4846 = vperm.slane %v4053, %v4677
          %v4847 = vsel %vm4679, %v4846, %v4845
          %v4848 = vperm.slane %v4055, %v4681
          %v4849 = vsel %vm4683, %v4848, %v4847
          %v4850 = vperm.slane %v4057, %v4685
          %v4851 = vsel %vm4687, %v4850, %v4849
          %v4852 = vperm.slane %v4059, %v4689
          %v4853 = vsel %vm4691, %v4852, %v4851
          %v4854 = vperm.slane %v4061, %v4693
          %v4855 = vsel %vm4695, %v4854, %v4853
          %v4856 = vperm.slane %v4063, %v4697
          %v4857 = vsel %vm4699, %v4856, %v4855
          %v4858 = vperm.slane %v4065, %v4701
          %v4859 = vsel %vm4703, %v4858, %v4857
          %v4860 = vperm.slane %v4067, %v3615
          %v4861 = vperm.slane %v4069, %v4645
          %v4862 = vsel %vm4647, %v4861, %v4860
          %v4863 = vperm.slane %v4071, %v4649
          %v4864 = vsel %vm4651, %v4863, %v4862
          %v4865 = vperm.slane %v4073, %v4653
          %v4866 = vsel %vm4655, %v4865, %v4864
          %v4867 = vperm.slane %v4075, %v4657
          %v4868 = vsel %vm4659, %v4867, %v4866
          %v4869 = vperm.slane %v4077, %v4661
          %v4870 = vsel %vm4663, %v4869, %v4868
          %v4871 = vperm.slane %v4079, %v4665
          %v4872 = vsel %vm4667, %v4871, %v4870
          %v4873 = vperm.slane %v4081, %v4669
          %v4874 = vsel %vm4671, %v4873, %v4872
          %v4875 = vperm.slane %v4083, %v4673
          %v4876 = vsel %vm4675, %v4875, %v4874
          %v4877 = vperm.slane %v4085, %v4677
          %v4878 = vsel %vm4679, %v4877, %v4876
          %v4879 = vperm.slane %v4087, %v4681
          %v4880 = vsel %vm4683, %v4879, %v4878
          %v4881 = vperm.slane %v4089, %v4685
          %v4882 = vsel %vm4687, %v4881, %v4880
          %v4883 = vperm.slane %v4091, %v4689
          %v4884 = vsel %vm4691, %v4883, %v4882
          %v4885 = vperm.slane %v4093, %v4693
          %v4886 = vsel %vm4695, %v4885, %v4884
          %v4887 = vperm.slane %v4095, %v4697
          %v4888 = vsel %vm4699, %v4887, %v4886
          %v4889 = vperm.slane %v4097, %v4701
          %v4890 = vsel %vm4703, %v4889, %v4888
          %v4891 = vperm.slane %v4099, %v3615
          %v4892 = vperm.slane %v4101, %v4645
          %v4893 = vsel %vm4647, %v4892, %v4891
          %v4894 = vperm.slane %v4103, %v4649
          %v4895 = vsel %vm4651, %v4894, %v4893
          %v4896 = vperm.slane %v4105, %v4653
          %v4897 = vsel %vm4655, %v4896, %v4895
          %v4898 = vperm.slane %v4107, %v4657
          %v4899 = vsel %vm4659, %v4898, %v4897
          %v4900 = vperm.slane %v4109, %v4661
          %v4901 = vsel %vm4663, %v4900, %v4899
          %v4902 = vperm.slane %v4111, %v4665
          %v4903 = vsel %vm4667, %v4902, %v4901
          %v4904 = vperm.slane %v4113, %v4669
          %v4905 = vsel %vm4671, %v4904, %v4903
          %v4906 = vperm.slane %v4115, %v4673
          %v4907 = vsel %vm4675, %v4906, %v4905
          %v4908 = vperm.slane %v4117, %v4677
          %v4909 = vsel %vm4679, %v4908, %v4907
          %v4910 = vperm.slane %v4119, %v4681
          %v4911 = vsel %vm4683, %v4910, %v4909
          %v4912 = vperm.slane %v4121, %v4685
          %v4913 = vsel %vm4687, %v4912, %v4911
          %v4914 = vperm.slane %v4123, %v4689
          %v4915 = vsel %vm4691, %v4914, %v4913
          %v4916 = vperm.slane %v4125, %v4693
          %v4917 = vsel %vm4695, %v4916, %v4915
          %v4918 = vperm.slane %v4127, %v4697
          %v4919 = vsel %vm4699, %v4918, %v4917
          %v4920 = vperm.slane %v4129, %v4701
          %v4921 = vsel %vm4703, %v4920, %v4919
          %v4922 = vperm.slane %v4131, %v3615
          %v4923 = vperm.slane %v4133, %v4645
          %v4924 = vsel %vm4647, %v4923, %v4922
          %v4925 = vperm.slane %v4135, %v4649
          %v4926 = vsel %vm4651, %v4925, %v4924
          %v4927 = vperm.slane %v4137, %v4653
          %v4928 = vsel %vm4655, %v4927, %v4926
          %v4929 = vperm.slane %v4139, %v4657
          %v4930 = vsel %vm4659, %v4929, %v4928
          %v4931 = vperm.slane %v4141, %v4661
          %v4932 = vsel %vm4663, %v4931, %v4930
          %v4933 = vperm.slane %v4143, %v4665
          %v4934 = vsel %vm4667, %v4933, %v4932
          %v4935 = vperm.slane %v4145, %v4669
          %v4936 = vsel %vm4671, %v4935, %v4934
          %v4937 = vperm.slane %v4147, %v4673
          %v4938 = vsel %vm4675, %v4937, %v4936
          %v4939 = vperm.slane %v4149, %v4677
          %v4940 = vsel %vm4679, %v4939, %v4938
          %v4941 = vperm.slane %v4151, %v4681
          %v4942 = vsel %vm4683, %v4941, %v4940
          %v4943 = vperm.slane %v4153, %v4685
          %v4944 = vsel %vm4687, %v4943, %v4942
          %v4945 = vperm.slane %v4155, %v4689
          %v4946 = vsel %vm4691, %v4945, %v4944
          %v4947 = vperm.slane %v4157, %v4693
          %v4948 = vsel %vm4695, %v4947, %v4946
          %v4949 = vperm.slane %v4159, %v4697
          %v4950 = vsel %vm4699, %v4949, %v4948
          %v4951 = vperm.slane %v4161, %v4701
          %v4952 = vsel %vm4703, %v4951, %v4950
          %v4953 = vperm.slane %v4163, %v3615
          %v4954 = vperm.slane %v4165, %v4645
          %v4955 = vsel %vm4647, %v4954, %v4953
          %v4956 = vperm.slane %v4167, %v4649
          %v4957 = vsel %vm4651, %v4956, %v4955
          %v4958 = vperm.slane %v4169, %v4653
          %v4959 = vsel %vm4655, %v4958, %v4957
          %v4960 = vperm.slane %v4171, %v4657
          %v4961 = vsel %vm4659, %v4960, %v4959
          %v4962 = vperm.slane %v4173, %v4661
          %v4963 = vsel %vm4663, %v4962, %v4961
          %v4964 = vperm.slane %v4175, %v4665
          %v4965 = vsel %vm4667, %v4964, %v4963
          %v4966 = vperm.slane %v4177, %v4669
          %v4967 = vsel %vm4671, %v4966, %v4965
          %v4968 = vperm.slane %v4179, %v4673
          %v4969 = vsel %vm4675, %v4968, %v4967
          %v4970 = vperm.slane %v4181, %v4677
          %v4971 = vsel %vm4679, %v4970, %v4969
          %v4972 = vperm.slane %v4183, %v4681
          %v4973 = vsel %vm4683, %v4972, %v4971
          %v4974 = vperm.slane %v4185, %v4685
          %v4975 = vsel %vm4687, %v4974, %v4973
          %v4976 = vperm.slane %v4187, %v4689
          %v4977 = vsel %vm4691, %v4976, %v4975
          %v4978 = vperm.slane %v4189, %v4693
          %v4979 = vsel %vm4695, %v4978, %v4977
          %v4980 = vperm.slane %v4191, %v4697
          %v4981 = vsel %vm4699, %v4980, %v4979
          %v4982 = vperm.slane %v4193, %v4701
          %v4983 = vsel %vm4703, %v4982, %v4981
          %v4984 = vperm.slane %v4195, %v3615
          %v4985 = vperm.slane %v4197, %v4645
          %v4986 = vsel %vm4647, %v4985, %v4984
          %v4987 = vperm.slane %v4199, %v4649
          %v4988 = vsel %vm4651, %v4987, %v4986
          %v4989 = vperm.slane %v4201, %v4653
          %v4990 = vsel %vm4655, %v4989, %v4988
          %v4991 = vperm.slane %v4203, %v4657
          %v4992 = vsel %vm4659, %v4991, %v4990
          %v4993 = vperm.slane %v4205, %v4661
          %v4994 = vsel %vm4663, %v4993, %v4992
          %v4995 = vperm.slane %v4207, %v4665
          %v4996 = vsel %vm4667, %v4995, %v4994
          %v4997 = vperm.slane %v4209, %v4669
          %v4998 = vsel %vm4671, %v4997, %v4996
          %v4999 = vperm.slane %v4211, %v4673
          %v5000 = vsel %vm4675, %v4999, %v4998
          %v5001 = vperm.slane %v4213, %v4677
          %v5002 = vsel %vm4679, %v5001, %v5000
          %v5003 = vperm.slane %v4215, %v4681
          %v5004 = vsel %vm4683, %v5003, %v5002
          %v5005 = vperm.slane %v4217, %v4685
          %v5006 = vsel %vm4687, %v5005, %v5004
          %v5007 = vperm.slane %v4219, %v4689
          %v5008 = vsel %vm4691, %v5007, %v5006
          %v5009 = vperm.slane %v4221, %v4693
          %v5010 = vsel %vm4695, %v5009, %v5008
          %v5011 = vperm.slane %v4223, %v4697
          %v5012 = vsel %vm4699, %v5011, %v5010
          %v5013 = vperm.slane %v4225, %v4701
          %v5014 = vsel %vm4703, %v5013, %v5012
          %v5015 = vperm.slane %v4227, %v3615
          %v5016 = vperm.slane %v4229, %v4645
          %v5017 = vsel %vm4647, %v5016, %v5015
          %v5018 = vperm.slane %v4231, %v4649
          %v5019 = vsel %vm4651, %v5018, %v5017
          %v5020 = vperm.slane %v4233, %v4653
          %v5021 = vsel %vm4655, %v5020, %v5019
          %v5022 = vperm.slane %v4235, %v4657
          %v5023 = vsel %vm4659, %v5022, %v5021
          %v5024 = vperm.slane %v4237, %v4661
          %v5025 = vsel %vm4663, %v5024, %v5023
          %v5026 = vperm.slane %v4239, %v4665
          %v5027 = vsel %vm4667, %v5026, %v5025
          %v5028 = vperm.slane %v4241, %v4669
          %v5029 = vsel %vm4671, %v5028, %v5027
          %v5030 = vperm.slane %v4243, %v4673
          %v5031 = vsel %vm4675, %v5030, %v5029
          %v5032 = vperm.slane %v4245, %v4677
          %v5033 = vsel %vm4679, %v5032, %v5031
          %v5034 = vperm.slane %v4247, %v4681
          %v5035 = vsel %vm4683, %v5034, %v5033
          %v5036 = vperm.slane %v4249, %v4685
          %v5037 = vsel %vm4687, %v5036, %v5035
          %v5038 = vperm.slane %v4251, %v4689
          %v5039 = vsel %vm4691, %v5038, %v5037
          %v5040 = vperm.slane %v4253, %v4693
          %v5041 = vsel %vm4695, %v5040, %v5039
          %v5042 = vperm.slane %v4255, %v4697
          %v5043 = vsel %vm4699, %v5042, %v5041
          %v5044 = vperm.slane %v4257, %v4701
          %v5045 = vsel %vm4703, %v5044, %v5043
          %v5046 = vperm.slane %v4259, %v3615
          %v5047 = vperm.slane %v4261, %v4645
          %v5048 = vsel %vm4647, %v5047, %v5046
          %v5049 = vperm.slane %v4263, %v4649
          %v5050 = vsel %vm4651, %v5049, %v5048
          %v5051 = vperm.slane %v4265, %v4653
          %v5052 = vsel %vm4655, %v5051, %v5050
          %v5053 = vperm.slane %v4267, %v4657
          %v5054 = vsel %vm4659, %v5053, %v5052
          %v5055 = vperm.slane %v4269, %v4661
          %v5056 = vsel %vm4663, %v5055, %v5054
          %v5057 = vperm.slane %v4271, %v4665
          %v5058 = vsel %vm4667, %v5057, %v5056
          %v5059 = vperm.slane %v4273, %v4669
          %v5060 = vsel %vm4671, %v5059, %v5058
          %v5061 = vperm.slane %v4275, %v4673
          %v5062 = vsel %vm4675, %v5061, %v5060
          %v5063 = vperm.slane %v4277, %v4677
          %v5064 = vsel %vm4679, %v5063, %v5062
          %v5065 = vperm.slane %v4279, %v4681
          %v5066 = vsel %vm4683, %v5065, %v5064
          %v5067 = vperm.slane %v4281, %v4685
          %v5068 = vsel %vm4687, %v5067, %v5066
          %v5069 = vperm.slane %v4283, %v4689
          %v5070 = vsel %vm4691, %v5069, %v5068
          %v5071 = vperm.slane %v4285, %v4693
          %v5072 = vsel %vm4695, %v5071, %v5070
          %v5073 = vperm.slane %v4287, %v4697
          %v5074 = vsel %vm4699, %v5073, %v5072
          %v5075 = vperm.slane %v4289, %v4701
          %v5076 = vsel %vm4703, %v5075, %v5074
          %v5077 = vperm.slane %v4291, %v3615
          %v5078 = vperm.slane %v4293, %v4645
          %v5079 = vsel %vm4647, %v5078, %v5077
          %v5080 = vperm.slane %v4295, %v4649
          %v5081 = vsel %vm4651, %v5080, %v5079
          %v5082 = vperm.slane %v4297, %v4653
          %v5083 = vsel %vm4655, %v5082, %v5081
          %v5084 = vperm.slane %v4299, %v4657
          %v5085 = vsel %vm4659, %v5084, %v5083
          %v5086 = vperm.slane %v4301, %v4661
          %v5087 = vsel %vm4663, %v5086, %v5085
          %v5088 = vperm.slane %v4303, %v4665
          %v5089 = vsel %vm4667, %v5088, %v5087
          %v5090 = vperm.slane %v4305, %v4669
          %v5091 = vsel %vm4671, %v5090, %v5089
          %v5092 = vperm.slane %v4307, %v4673
          %v5093 = vsel %vm4675, %v5092, %v5091
          %v5094 = vperm.slane %v4309, %v4677
          %v5095 = vsel %vm4679, %v5094, %v5093
          %v5096 = vperm.slane %v4311, %v4681
          %v5097 = vsel %vm4683, %v5096, %v5095
          %v5098 = vperm.slane %v4313, %v4685
          %v5099 = vsel %vm4687, %v5098, %v5097
          %v5100 = vperm.slane %v4315, %v4689
          %v5101 = vsel %vm4691, %v5100, %v5099
          %v5102 = vperm.slane %v4317, %v4693
          %v5103 = vsel %vm4695, %v5102, %v5101
          %v5104 = vperm.slane %v4319, %v4697
          %v5105 = vsel %vm4699, %v5104, %v5103
          %v5106 = vperm.slane %v4321, %v4701
          %v5107 = vsel %vm4703, %v5106, %v5105
          %v5108 = vperm.slane %v4323, %v3615
          %v5109 = vperm.slane %v4325, %v4645
          %v5110 = vsel %vm4647, %v5109, %v5108
          %v5111 = vperm.slane %v4327, %v4649
          %v5112 = vsel %vm4651, %v5111, %v5110
          %v5113 = vperm.slane %v4329, %v4653
          %v5114 = vsel %vm4655, %v5113, %v5112
          %v5115 = vperm.slane %v4331, %v4657
          %v5116 = vsel %vm4659, %v5115, %v5114
          %v5117 = vperm.slane %v4333, %v4661
          %v5118 = vsel %vm4663, %v5117, %v5116
          %v5119 = vperm.slane %v4335, %v4665
          %v5120 = vsel %vm4667, %v5119, %v5118
          %v5121 = vperm.slane %v4337, %v4669
          %v5122 = vsel %vm4671, %v5121, %v5120
          %v5123 = vperm.slane %v4339, %v4673
          %v5124 = vsel %vm4675, %v5123, %v5122
          %v5125 = vperm.slane %v4341, %v4677
          %v5126 = vsel %vm4679, %v5125, %v5124
          %v5127 = vperm.slane %v4343, %v4681
          %v5128 = vsel %vm4683, %v5127, %v5126
          %v5129 = vperm.slane %v4345, %v4685
          %v5130 = vsel %vm4687, %v5129, %v5128
          %v5131 = vperm.slane %v4347, %v4689
          %v5132 = vsel %vm4691, %v5131, %v5130
          %v5133 = vperm.slane %v4349, %v4693
          %v5134 = vsel %vm4695, %v5133, %v5132
          %v5135 = vperm.slane %v4351, %v4697
          %v5136 = vsel %vm4699, %v5135, %v5134
          %v5137 = vperm.slane %v4353, %v4701
          %v5138 = vsel %vm4703, %v5137, %v5136
          %v5139 = vperm.slane %v4355, %v3615
          %v5140 = vperm.slane %v4357, %v4645
          %v5141 = vsel %vm4647, %v5140, %v5139
          %v5142 = vperm.slane %v4359, %v4649
          %v5143 = vsel %vm4651, %v5142, %v5141
          %v5144 = vperm.slane %v4361, %v4653
          %v5145 = vsel %vm4655, %v5144, %v5143
          %v5146 = vperm.slane %v4363, %v4657
          %v5147 = vsel %vm4659, %v5146, %v5145
          %v5148 = vperm.slane %v4365, %v4661
          %v5149 = vsel %vm4663, %v5148, %v5147
          %v5150 = vperm.slane %v4367, %v4665
          %v5151 = vsel %vm4667, %v5150, %v5149
          %v5152 = vperm.slane %v4369, %v4669
          %v5153 = vsel %vm4671, %v5152, %v5151
          %v5154 = vperm.slane %v4371, %v4673
          %v5155 = vsel %vm4675, %v5154, %v5153
          %v5156 = vperm.slane %v4373, %v4677
          %v5157 = vsel %vm4679, %v5156, %v5155
          %v5158 = vperm.slane %v4375, %v4681
          %v5159 = vsel %vm4683, %v5158, %v5157
          %v5160 = vperm.slane %v4377, %v4685
          %v5161 = vsel %vm4687, %v5160, %v5159
          %v5162 = vperm.slane %v4379, %v4689
          %v5163 = vsel %vm4691, %v5162, %v5161
          %v5164 = vperm.slane %v4381, %v4693
          %v5165 = vsel %vm4695, %v5164, %v5163
          %v5166 = vperm.slane %v4383, %v4697
          %v5167 = vsel %vm4699, %v5166, %v5165
          %v5168 = vperm.slane %v4385, %v4701
          %v5169 = vsel %vm4703, %v5168, %v5167
          %vm5170 = vcmask 1041409
          %v5171 = vsel %vm5170, %v4735, %v4704
          %vm5172 = vcmask 1042434
          %v5173 = vsel %vm5172, %v4766, %v5171
          %vm5174 = vcmask 1043459
          %v5175 = vsel %vm5174, %v4797, %v5173
          %vm5176 = vcmask 1044484
          %v5177 = vsel %vm5176, %v4828, %v5175
          %vm5178 = vcmask 1045509
          %v5179 = vsel %vm5178, %v4859, %v5177
          %vm5180 = vcmask 1046534
          %v5181 = vsel %vm5180, %v4890, %v5179
          %vm5182 = vcmask 1047559
          %v5183 = vsel %vm5182, %v4921, %v5181
          %v5184 = vsel %vm5170, %v4983, %v4952
          %v5185 = vsel %vm5172, %v5014, %v5184
          %v5186 = vsel %vm5174, %v5045, %v5185
          %v5187 = vsel %vm5176, %v5076, %v5186
          %v5188 = vsel %vm5178, %v5107, %v5187
          %v5189 = vsel %vm5180, %v5138, %v5188
          %v5190 = vsel %vm5182, %v5169, %v5189
          %v5193 = vmax.f32 %v4386, %v5183
          %v5194 = vmax.f32 %v4387, %v5190
          %5195 = vst [vmem:[#allocation2] sm:$0xff] %v5193
          %5196 = vst [vmem:[#allocation2 + $0x8] sm:$0xff] %v5194
          %v5197 = vld [vmem:[#allocation2] sm:$0xff]
          %v5198 = vld [vmem:[#allocation2 + $0x8] sm:$0xff]
          %v5199 = vld [vmem:[%s293] sm:$0xff]
          %v5200 = vld [vmem:[%s293 + $0x8] sm:$0xff]
          %v5201 = vadd.f32 %v5197, %v5199
          %v5202 = vadd.f32 %v5198, %v5200
          %v5203 = vmax.f32 %v5201, 0.0
          %v5204 = vmax.f32 %v5202, 0.0
          %v5205 = vmul.f32 %v5203, %v5203
          %v5206 = vmul.f32 %v5204, %v5204
          %v5207 = vadd.f32 %v5205, %v5206
          %v5208 = vrot.slane %v5207, 4
          %v5209 = vadd.f32 %v5207, %v5208
          %v5210 = vrot.slane %v5209, 2
          %v5211 = vadd.f32 %v5209, %v5210
          %v5212 = vrot.slane %v5211, 1
          %v5213 = vadd.f32 %v5211, %v5212
          %v5214 = vadd.f32 %v5213, 1.0
          %v5215 = vrcp.pop %v5214
          %v5216 = vmul.f32 %v5214, %v5215
          %v5217 = vsub.f32 1.0, %v5216
          %v5218 = vmul.f32 %v5215, %v5217
          %v5219 = vadd.f32 %v5215, %v5218
          %vm5220 = vweird.f32 %v5214
          %vm5221 = vweird.f32 %v5215
          %vm5222 = vmor %vm5220, %vm5221
          %v5223 = vsel %vm5222, %v5215, %v5219
          %v5224 = vand.u32 2147483647, %v5214
          %vm5225 = vcmp.eq.f32.partialorder %v5224, 8.507059e+37
          %v5226 = vand.u32 %v5214, 2147483648
          %v5227 = vor.u32 1.1754944e-38, %v5226
          %v5228 = vsel %vm5225, %v5227, %v5223
          %v5229 = vmul.f32 %v5213, %v5228
          %v5230 = vrsqrt.pop %v5213
          %v5231 = vmul.f32 %v5230, %v5213
          %v5232 = vmul.f32 %v5231, %v5230
          %v5233 = vmul.f32 0.5, %v5232
          %v5234 = vsub.f32 1.5, %v5233
          %v5235 = vmul.f32 %v5230, %v5234
          %v5236 = vmul.f32 %v5213, %v5235
          %vm5237 = vcmp.eq.f32.partialorder %v5213, inf
          %v5238 = vsel %vm5237, %v5213, %v5236
          %vm5239 = vcmp.eq.f32.partialorder %v5213, 0.0
          %v5240 = vand.u32 %v5213, 2147483648
          %v5241 = vsel %vm5239, %v5240, %v5238
          %v5242 = vadd.f32 %v5241, 1e-08
          %v5243 = vrcp.pop %v5242
          %v5244 = vmul.f32 %v5242, %v5243
          %v5245 = vsub.f32 1.0, %v5244
          %v5246 = vmul.f32 %v5243, %v5245
          %v5247 = vadd.f32 %v5243, %v5246
          %vm5248 = vweird.f32 %v5242
          %vm5249 = vweird.f32 %v5243
          %vm5250 = vmor %vm5248, %vm5249
          %v5251 = vsel %vm5250, %v5243, %v5247
          %v5252 = vand.u32 2147483647, %v5242
          %vm5253 = vcmp.eq.f32.partialorder %v5252, 8.507059e+37
          %v5254 = vand.u32 %v5242, 2147483648
          %v5255 = vor.u32 1.1754944e-38, %v5254
          %v5256 = vsel %vm5253, %v5255, %v5251
          %v5257 = vmul.f32 %v5229, %v5256
          %v5258 = vmul.f32 %v5203, %v5257
          %v5259 = vmul.f32 %v5204, %v5257
          %5260 = vst [vmem:[%s322] sm:$0xff] %v5258
          %5261 = vst [vmem:[%s322 + $0x8] sm:$0xff] %v5259
        $region123: #{tpu_custom_call.1} parent=102 // pred_fallthru
          _
        %s5262 = sand.u32 %s126, 1
        %s5263 = scalar_lea.sflag [#allocation6], %s5262
        %s5264 = sand.u32 %s126, 1
        %s5265 = smul.addr %s5264, 16
        %s5266 = scalar_lea.vmem [#allocation5], %s5265
        // Predicated region
        $region124: #{tpu_custom_call.1} parent=102 // pred_check
          %p5267 = pneg %p136
        $region125: #{tpu_custom_call.1} parent=102 // pred_check_branch
          %5269 = sbr.rel (%p5267) target = $region127
        $region126: #{tpu_custom_call.1} parent=102 // pred_region
          %5271 = vsyncadd %s5263, 0
          %s5272 = smul.addr %s22, 4
          %s5273 = sadd.s32 %s23, %s5272
          %s5274 = smul.addr %s5273, 8
          %s5275 = scalar_lea.hbm %s3, %s5274
          %s5276 = sshll.u32 %s5266, 4
          %s5277 = int_to_ptr.vmem [resolvable:$true] %s5276
          %s5278 = sshll.u32 %s5275, 4
          %s5279 = int_to_ptr.hbm [resolvable:$true] %s5278
          %5284 = dma.vmem_to_hbm [thread:$0]  %s5277, 256, %s5279, %s5263, 128, 256, 8
        $region127: #{tpu_custom_call.1} parent=102 // pred_fallthru
          _
      $region103: #{tpu_custom_call.1} parent=5 // pred_fallthru
        _
      %p5285 = scmp.le.s32.totalorder 2, %s12
      // Predicated region
      $region128: #{tpu_custom_call.1} parent=5 // pred_check
        %p5286 = pneg %p5285
      $region129: #{tpu_custom_call.1} parent=5 // pred_check_branch
        %5288 = sbr.rel (%p5286) target = $region131
      $region130: #{tpu_custom_call.1} parent=5 // pred_region
        %s5289 = ssub.s32 %s12, 2
        // Predicated region
        $region132: #{tpu_custom_call.1} parent=130 // pred_check
          %p5290 = pneg %p142
        $region133: #{tpu_custom_call.1} parent=130 // pred_check_branch
          %5292 = sbr.rel (%p5290) target = $region135
        $region134: #{tpu_custom_call.1} parent=130 // pred_region
          %s5293 = sand.u32 %s127, 1
          %s5294 = scalar_lea.sflag [#allocation6], %s5293
          %s5295 = sand.u32 %s127, 1
          %s5296 = smul.addr %s5295, 16
          %s5297 = scalar_lea.vmem [#allocation5], %s5296
          %5299 = dma.done %s5294, 256
        $region135: #{tpu_custom_call.1} parent=130 // pred_fallthru
          _
      $region131: #{tpu_custom_call.1} parent=5 // pred_fallthru
        _
    $region6: #{tpu_custom_call.1} parent=1 // loop_footer
      %s16 = sadd.s32 1, %s12
    $region7: #{tpu_custom_call.1} parent=1 // loop_footer_branch
      %11 = sbr.rel target = $region3
    $region8: #{tpu_custom_call.1} parent=1 // loop_exit
      _
    %5300 = vsyncpa [#allocation6], 1
    %s5301 = scalar_lea.sflag [#allocation6], 1
    %5302 = vsyncpa %s5301, 1

</llo_original>
